<compile_context>
chip_gen: v7x
topology: tpu7x:2x2x1
jax: 0.10.0
libtpu: 0.0.40
codegen_flags: <defaults>
</compile_context>

<pallas_src>
import functools
import math

import jax
import jax.numpy as jnp
from jax import lax
from jax.experimental import pallas as pl
from jax.experimental.pallas import tpu as pltpu


def _pick_q_tile(seq_len):
    """Largest query-tile width that divides S, caps the [S, Tq] f32 score slab and
    keeps stores lane-dense (multiple of 128)."""
    for cand in (512, 256, 128):
        if seq_len % cand == 0:
            return cand
    # TODO(synk): S not a multiple of 128 (deep U-Net levels): process several batch
    # elements per grid step on a [C, Bb*S] slab so vector ops / stores stay lane-dense.
    return seq_len


# ---------------------------------------------------------------------------
# Fused attention-block kernel (one batch element per grid step)
# ---------------------------------------------------------------------------
def _attn_block_kernel(x_ref, wqkv_ref, bqkv_ref, wout_ref, bout_ref, o_ref,
                       qkv_scr, *, n_heads, d_k, q_tile):
    """Transposed layout: features on sublanes, sequence on lanes.

    x_ref:    [C, S]         f32   (projection input + residual)
    wqkv_ref: [3*H*dk, C]    bf16  (PyTorch [out, in] layout; q rows pre-scaled)
    bqkv_ref: [3*H*dk, 1]    f32   (q rows pre-scaled)
    wout_ref: [C, H*dk]      bf16
    bout_ref: [C, 1]         f32
    o_ref:    [C, S]         f32
    qkv_scr:  [3*H*dk, S]    bf16  VMEM scratch holding the QKV projection
    """
    S = x_ref.shape[1]
    num_tiles = S // q_tile

    # --- QKV projection over the full sequence (MXU, f32 accumulation) ----------
    x_bf = x_ref[...].astype(jnp.bfloat16)                 # only bf16 copy kept live
    qkv = jnp.dot(wqkv_ref[...], x_bf, preferred_element_type=jnp.float32)
    qkv = qkv + bqkv_ref[...]                              # bias broadcast along lanes
    qkv_scr[...] = qkv.astype(jnp.bfloat16)                # park in VMEM scratch

    # --- per-query-tile attention + output projection + residual ----------------
    def tile_body(start):
        # start: lane offset of this query tile (static 0 or dynamic, 128-aligned)
        # residual + output bias seed the accumulator (x re-read from VMEM ref here,
        # not held live across the attention math).
        acc = x_ref[:, pl.ds(start, q_tile)] + bout_ref[...]        # [C, Tq] f32

        for h in range(n_heads):
            base = h * 3 * d_k
            # PyTorch: projection(x).view(B, S, H, 3*dk).chunk(3, -1)
            #   -> rows of head h are [q_h | k_h | v_h], each d_k wide.
            q_t = qkv_scr[base:base + d_k, pl.ds(start, q_tile)]     # [dk, Tq] bf16 (pre-scaled)
            k_h = qkv_scr[base + d_k:base + 2 * d_k, :]              # [dk, S]  bf16
            v_h = qkv_scr[base + 2 * d_k:base + 3 * d_k, :]          # [dk, S]  bf16

            # scores[j, i] = sum_d k[d, j] * q[d, i]   -> [Sk, Tq]
            s = lax.dot_general(k_h, q_t, (((0,), (0,)), ((), ())),
                                preferred_element_type=jnp.float32)
            # softmax over keys (axis 0), f32 math; denominator on the EUP slot.
            s = s - jnp.max(s, axis=0, keepdims=True)
            e = jnp.exp(s)
            p = e * pl.reciprocal(jnp.sum(e, axis=0, keepdims=True), approx=True)

            # canonical PV matmul: [dk, Sk] x [Sk, Tq] -> [dk, Tq]
            o_h = jnp.dot(v_h, p.astype(jnp.bfloat16),
                          preferred_element_type=jnp.float32)

            # consume the head immediately: out-projection slice accumulate.
            acc = acc + jnp.dot(wout_ref[:, h * d_k:(h + 1) * d_k],
                                o_h.astype(jnp.bfloat16),
                                preferred_element_type=jnp.float32)

        o_ref[:, pl.ds(start, q_tile)] = acc.astype(o_ref.dtype)     # lane-dense store

    if num_tiles == 1:
        tile_body(0)
    else:
        @pl.loop(0, num_tiles)
        def _(t):
            start = t * q_tile
            if q_tile % 128 == 0:
                start = pl.multiple_of(start, 128)
            tile_body(start)


def attention_block(x, kparams):
    """x: [B, C, H, W] (NCHW, f32).  Returns [B, C, H, W] (f32)."""
    B, C, H, W = x.shape
    S = H * W
    n_heads = kparams['n_heads']
    d_k = kparams['d_k']
    qkv_dim = 3 * n_heads * d_k
    out_in = n_heads * d_k
    q_tile = _pick_q_tile(S)

    x3 = x.reshape(B, C, S)                       # free (trailing-dim merge)

    cost = pl.CostEstimate(
        flops=B * (2 * qkv_dim * C * S                 # QKV projection
                   + 4 * n_heads * S * S * d_k         # QK^T and PV
                   + 2 * C * out_in * S),              # output projection
        transcendentals=B * n_heads * S * S,           # exp in softmax
        bytes_accessed=(2 * B * C * S * 4              # x in + out (f32)
                        + (qkv_dim * C + C * out_in) * 2   # bf16 weights
                        + (qkv_dim + C) * 4))              # f32 biases

    out = pl.pallas_call(
        functools.partial(_attn_block_kernel, n_heads=n_heads, d_k=d_k,
                          q_tile=q_tile),
        out_shape=jax.ShapeDtypeStruct((B, C, S), jnp.float32),
        grid=(B,),
        in_specs=[
            pl.BlockSpec((None, C, S), lambda b: (b, 0, 0)),     # x (per batch)
            pl.BlockSpec((qkv_dim, C), lambda b: (0, 0)),        # W_qkv (bf16)
            pl.BlockSpec((qkv_dim, 1), lambda b: (0, 0)),        # b_qkv
            pl.BlockSpec((C, out_in), lambda b: (0, 0)),         # W_out (bf16)
            pl.BlockSpec((C, 1), lambda b: (0, 0)),              # b_out
        ],
        out_specs=pl.BlockSpec((None, C, S), lambda b: (b, 0, 0)),
        scratch_shapes=[pltpu.VMEM((qkv_dim, S), jnp.bfloat16)],  # QKV projection
        compiler_params=pltpu.CompilerParams(
            dimension_semantics=("parallel",),
            vmem_limit_bytes=64 * 1024 * 1024),
        cost_estimate=cost,
    )(x3, kparams['w_qkv'], kparams['b_qkv'], kparams['w_out'], kparams['b_out'])

    return out.reshape(B, C, H, W)


# ---------------------------------------------------------------------------
# Parameters (PyTorch [out, in] layout; bf16 weights) + one-time kernel prep
# ---------------------------------------------------------------------------
def init_attention_block(key, n_channels, n_heads=1, d_k=None, n_groups=32):
    # TODO(synk): self.norm = nn.GroupNorm(n_groups, n_channels) is defined in the
    # PyTorch module but never called in forward(); intentionally omitted.
    if d_k is None:
        d_k = n_channels
    k1, k2, k3, k4 = jax.random.split(key, 4)
    w_qkv = (jax.random.normal(k1, (3 * n_heads * d_k, n_channels), jnp.float32)
             / math.sqrt(n_channels)).astype(jnp.bfloat16)
    b_qkv = 0.02 * jax.random.normal(k2, (3 * n_heads * d_k,), jnp.float32)
    w_out = (jax.random.normal(k3, (n_channels, n_heads * d_k), jnp.float32)
             / math.sqrt(n_heads * d_k)).astype(jnp.bfloat16)
    b_out = 0.02 * jax.random.normal(k4, (n_channels,), jnp.float32)
    return {'w_qkv': w_qkv, 'b_qkv': b_qkv, 'w_out': w_out, 'b_out': b_out,
            'n_heads': n_heads, 'd_k': d_k}


def prepare_kernel_params(p):
    """One-time transform: fold 1/sqrt(d_k) into the q rows of W_qkv/b_qkv and
    reshape biases to [*, 1] columns for lane-broadcast in the [C, S] layout."""
    nh, dk = p['n_heads'], p['d_k']
    scale = dk ** (-0.5)
    row_scale = jnp.tile(
        jnp.concatenate([jnp.full((dk,), scale, jnp.float32),
                         jnp.ones((2 * dk,), jnp.float32)]), nh)
    w_qkv = (p['w_qkv'].astype(jnp.float32) * row_scale[:, None]).astype(jnp.bfloat16)
    b_qkv = (p['b_qkv'] * row_scale).reshape(-1, 1)
    return {'w_qkv': w_qkv, 'b_qkv': b_qkv,
            'w_out': p['w_out'], 'b_out': p['b_out'].reshape(-1, 1),
            'n_heads': nh, 'd_k': dk}


# ---------------------------------------------------------------------------
# Pure-JAX reference (mirrors the PyTorch forward; f32 math, un-folded scale)
# ---------------------------------------------------------------------------
def attention_block_ref(x, p):
    B, C, H, W = x.shape
    S = H * W
    nh, dk = p['n_heads'], p['d_k']
    xs = jnp.transpose(x.reshape(B, C, S), (0, 2, 1))             # [B, S, C]
    w_qkv = p['w_qkv'].astype(jnp.float32)                        # [3*nh*dk, C]
    w_out = p['w_out'].astype(jnp.float32)                        # [C, nh*dk]
    qkv = xs @ w_qkv.T + p['b_qkv']                               # [B, S, 3*nh*dk]
    qkv = qkv.reshape(B, S, nh, 3 * dk)
    q, k, v = jnp.split(qkv, 3, axis=-1)
    attn = jnp.einsum('bihd,bjhd->bijh', q, k) * (dk ** (-0.5))
    attn = jax.nn.softmax(attn, axis=2)
    res = jnp.einsum('bijh,bjhd->bihd', attn, v).reshape(B, S, nh * dk)
    res = res @ w_out.T + p['b_out']
    res = res + xs
    return jnp.transpose(res, (0, 2, 1)).reshape(B, C, H, W)


if __name__ == "__main__":
    key = jax.random.PRNGKey(0)

    def run_case(B, C, H, W, n_heads, d_k, case_key):
        kp, kx = jax.random.split(case_key)
        raw = init_attention_block(kp, n_channels=C, n_heads=n_heads, d_k=d_k)
        kparams = prepare_kernel_params(raw)
        x = jax.random.normal(kx, (B, C, H, W), jnp.float32)

        out = jax.block_until_ready(attention_block(x, kparams))
        assert out.shape == (B, C, H, W), out.shape
        assert bool(jnp.all(jnp.isfinite(out)))

        ref = attention_block_ref(x, raw)
        max_err = float(jnp.max(jnp.abs(out - ref)))
        # bf16 MXU operands + approx reciprocal vs f32 reference => small drift.
        assert max_err < 0.08, f"max abs err {max_err}"
        return max_err

    k1, k2 = jax.random.split(key)
    # S = 1024 -> two 512-wide query tiles: exercises the pl.loop tiling path.
    run_case(2, 64, 32, 32, n_heads=1, d_k=None, case_key=k1)
    # Multi-head (n_heads=2, d_k != C), single 256-wide tile: exercises per-head
    # accumulation path.
    run_case(2, 64, 16, 16, n_heads=2, d_k=32, case_key=k2)
    print("KERNEL_OK")
</pallas_src>

<mosaic_0001>
module attributes {stable_mosaic.version = 11 : i64} {
  func.func @_attn_block_kernel(%arg0: i32, %arg1: memref<1x64x1024xf32, #tpu.memory_space<vmem>>, %arg2: memref<192x64xbf16, #tpu.memory_space<vmem>>, %arg3: memref<192x1xf32, #tpu.memory_space<vmem>>, %arg4: memref<64x64xbf16, #tpu.memory_space<vmem>>, %arg5: memref<64x1xf32, #tpu.memory_space<vmem>>, %arg6: memref<1x64x1024xf32, #tpu.memory_space<vmem>>, %arg7: memref<192x1024xbf16, #tpu.memory_space<vmem>>) attributes {dimension_semantics = [#tpu.dimension_semantics<parallel>], iteration_bounds = array<i64: 2>, scalar_prefetch = 0 : i64, scratch_operands = 1 : i64, tpu.core_type = #tpu.core_type<tc>, window_params = [{transform_indices = @transform_0, window_bounds = array<i64: 1, 64, 1024>}, {pipeline_mode = #tpu.pipeline_mode<synchronous>, transform_indices = @transform_1, window_bounds = array<i64: 192, 64>}, {pipeline_mode = #tpu.pipeline_mode<synchronous>, transform_indices = @transform_2, window_bounds = array<i64: 192, 1>}, {pipeline_mode = #tpu.pipeline_mode<synchronous>, transform_indices = @transform_3, window_bounds = array<i64: 64, 64>}, {pipeline_mode = #tpu.pipeline_mode<synchronous>, transform_indices = @transform_4, window_bounds = array<i64: 64, 1>}, {transform_indices = @transform_5, window_bounds = array<i64: 1, 64, 1024>}]} {
    %c0 = arith.constant 0 : index
    %c0_0 = arith.constant 0 : index
    %c0_1 = arith.constant 0 : index
    %0 = vector.load %arg1[%c0, %c0_0, %c0_1] : memref<1x64x1024xf32, #tpu.memory_space<vmem>>, vector<1x64x1024xf32>
    %1 = vector.shape_cast %0 : vector<1x64x1024xf32> to vector<64x1024xf32>
    %2 = arith.truncf %1 : vector<64x1024xf32> to vector<64x1024xbf16>
    %c0_2 = arith.constant 0 : index
    %c0_3 = arith.constant 0 : index
    %3 = vector.load %arg2[%c0_2, %c0_3] : memref<192x64xbf16, #tpu.memory_space<vmem>>, vector<192x64xbf16>
    %cst = arith.constant dense<0.000000e+00> : vector<192x1024xf32>
    %4 = tpu.matmul %3, %2, %cst {dimension_numbers = #tpu.dot_dimension_numbers<[1], [0], [0], [1], [0, 0, 1, 1], [], []>} : vector<192x64xbf16>, vector<64x1024xbf16>, vector<192x1024xf32> -> vector<192x1024xf32>
    %c0_4 = arith.constant 0 : index
    %c0_5 = arith.constant 0 : index
    %5 = vector.load %arg3[%c0_4, %c0_5] : memref<192x1xf32, #tpu.memory_space<vmem>>, vector<192x1xf32>
    %6 = vector.broadcast %5 : vector<192x1xf32> to vector<192x1024xf32>
    %7 = arith.addf %4, %6 : vector<192x1024xf32>
    %8 = arith.truncf %7 : vector<192x1024xf32> to vector<192x1024xbf16>
    %c0_6 = arith.constant 0 : index
    %c0_7 = arith.constant 0 : index
    %9 = vector.load %arg7[%c0_6, %c0_7] : memref<192x1024xbf16, #tpu.memory_space<vmem>>, vector<192x1024xbf16>
    tpu.vector_store %arg7[%c0_6, %c0_7], %8 {strides = array<i32>} : memref<192x1024xbf16, #tpu.memory_space<vmem>>, vector<192x1024xbf16>,
    %c0_i32 = arith.constant 0 : i32
    %c2_i32 = arith.constant 2 : i32
    %10 = arith.addi %c0_i32, %c2_i32 : i32
    %c1_i32 = arith.constant 1 : i32
    scf.for %arg8 = %c0_i32 to %10 step %c1_i32  : i32 {
      %c1_i32_9 = arith.constant 1 : i32
      %11 = arith.muli %arg8, %c1_i32_9 : i32
      %c0_i32_10 = arith.constant 0 : i32
      %12 = arith.addi %c0_i32_10, %11 : i32
      %c512_i32 = arith.constant 512 : i32
      %13 = arith.muli %12, %c512_i32 : i32
      %14 = tpu.assume_multiple %13, 128 : i32
      %c0_11 = arith.constant 0 : index
      %c0_12 = arith.constant 0 : index
      %15 = arith.index_cast %14 : i32 to index
      %16 = vector.load %arg1[%c0_11, %c0_12, %15] : memref<1x64x1024xf32, #tpu.memory_space<vmem>>, vector<1x64x512xf32>
      %17 = vector.shape_cast %16 : vector<1x64x512xf32> to vector<64x512xf32>
      %c0_13 = arith.constant 0 : index
      %c0_14 = arith.constant 0 : index
      %18 = vector.load %arg5[%c0_13, %c0_14] : memref<64x1xf32, #tpu.memory_space<vmem>>, vector<64x1xf32>
      %19 = vector.broadcast %18 : vector<64x1xf32> to vector<64x512xf32>
      %20 = arith.addf %17, %19 : vector<64x512xf32>
      %c0_15 = arith.constant 0 : index
      %21 = arith.index_cast %14 : i32 to index
      %22 = vector.load %arg7[%c0_15, %21] : memref<192x1024xbf16, #tpu.memory_space<vmem>>, vector<64x512xbf16>
      %c64 = arith.constant 64 : index
      %c0_16 = arith.constant 0 : index
      %23 = vector.load %arg7[%c64, %c0_16] : memref<192x1024xbf16, #tpu.memory_space<vmem>>, vector<64x1024xbf16>
      %c128 = arith.constant 128 : index
      %c0_17 = arith.constant 0 : index
      %24 = vector.load %arg7[%c128, %c0_17] : memref<192x1024xbf16, #tpu.memory_space<vmem>>, vector<64x1024xbf16>
      %cst_18 = arith.constant dense<0.000000e+00> : vector<1024x512xf32>
      %25 = tpu.matmul %23, %22, %cst_18 {dimension_numbers = #tpu.dot_dimension_numbers<[0], [0], [1], [1], [0, 1, 1, 1], [], []>} : vector<64x1024xbf16>, vector<64x512xbf16>, vector<1024x512xf32> -> vector<1024x512xf32>
      %cst_19 = arith.constant dense<0xFF800000> : vector<512xf32>
      %26 = vector.multi_reduction <maximumf>, %25, %cst_19 [0] : vector<1024x512xf32> to vector<512xf32>
      %27 = vector.shape_cast %26 : vector<512xf32> to vector<1x512xf32>
      %28 = vector.broadcast %27 : vector<1x512xf32> to vector<1024x512xf32>
      %29 = arith.subf %25, %28 : vector<1024x512xf32>
      %30 = math.exp %29 : vector<1024x512xf32>
      %cst_20 = arith.constant dense<0.000000e+00> : vector<512xf32>
      %31 = vector.multi_reduction <add>, %30, %cst_20 [0] : vector<1024x512xf32> to vector<512xf32>
      %32 = vector.shape_cast %31 : vector<512xf32> to vector<1x512xf32>
      %33 = tpu.reciprocal %32 {approx = true} : vector<1x512xf32> -> vector<1x512xf32>
      %34 = vector.broadcast %33 : vector<1x512xf32> to vector<1024x512xf32>
      %35 = arith.mulf %30, %34 : vector<1024x512xf32>
      %36 = arith.truncf %35 : vector<1024x512xf32> to vector<1024x512xbf16>
      %cst_21 = arith.constant dense<0.000000e+00> : vector<64x512xf32>
      %37 = tpu.matmul %24, %36, %cst_21 {dimension_numbers = #tpu.dot_dimension_numbers<[1], [0], [0], [1], [0, 0, 1, 1], [], []>} : vector<64x1024xbf16>, vector<1024x512xbf16>, vector<64x512xf32> -> vector<64x512xf32>
      %c0_22 = arith.constant 0 : index
      %c0_23 = arith.constant 0 : index
      %38 = vector.load %arg4[%c0_22, %c0_23] : memref<64x64xbf16, #tpu.memory_space<vmem>>, vector<64x64xbf16>
      %39 = arith.truncf %37 : vector<64x512xf32> to vector<64x512xbf16>
      %cst_24 = arith.constant dense<0.000000e+00> : vector<64x512xf32>
      %40 = tpu.matmul %38, %39, %cst_24 {dimension_numbers = #tpu.dot_dimension_numbers<[1], [0], [0], [1], [0, 0, 1, 1], [], []>} : vector<64x64xbf16>, vector<64x512xbf16>, vector<64x512xf32> -> vector<64x512xf32>
      %41 = arith.addf %20, %40 : vector<64x512xf32>
      %c0_25 = arith.constant 0 : index
      %c0_26 = arith.constant 0 : index
      %42 = arith.index_cast %14 : i32 to index
      %43 = vector.load %arg6[%c0_25, %c0_26, %42] : memref<1x64x1024xf32, #tpu.memory_space<vmem>>, vector<1x64x512xf32>
      %44 = vector.shape_cast %43 : vector<1x64x512xf32> to vector<64x512xf32>
      %45 = vector.shape_cast %41 : vector<64x512xf32> to vector<1x64x512xf32>
      tpu.vector_store %arg6[%c0_25, %c0_26, %42], %45 {strides = array<i32>} : memref<1x64x1024xf32, #tpu.memory_space<vmem>>, vector<1x64x512xf32>,
    }
    %c2_i32_8 = arith.constant 2 : i32
    return
  }
  func.func @transform_0(%arg0: i32) -> (i32, i32, i32) {
    %c0_i32 = arith.constant 0 : i32
    %c0_i32_0 = arith.constant 0 : i32
    %c0_i32_1 = arith.constant 0 : i32
    return %arg0, %c0_i32, %c0_i32_0 : i32, i32, i32
  }
  func.func @transform_1(%arg0: i32) -> (i32, i32) {
    %c0_i32 = arith.constant 0 : i32
    %c0_i32_0 = arith.constant 0 : i32
    %c0_i32_1 = arith.constant 0 : i32
    return %c0_i32, %c0_i32_0 : i32, i32
  }
  func.func @transform_2(%arg0: i32) -> (i32, i32) {
    %c0_i32 = arith.constant 0 : i32
    %c0_i32_0 = arith.constant 0 : i32
    %c0_i32_1 = arith.constant 0 : i32
    return %c0_i32, %c0_i32_0 : i32, i32
  }
  func.func @transform_3(%arg0: i32) -> (i32, i32) {
    %c0_i32 = arith.constant 0 : i32
    %c0_i32_0 = arith.constant 0 : i32
    %c0_i32_1 = arith.constant 0 : i32
    return %c0_i32, %c0_i32_0 : i32, i32
  }
  func.func @transform_4(%arg0: i32) -> (i32, i32) {
    %c0_i32 = arith.constant 0 : i32
    %c0_i32_0 = arith.constant 0 : i32
    %c0_i32_1 = arith.constant 0 : i32
    return %c0_i32, %c0_i32_0 : i32, i32
  }
  func.func @transform_5(%arg0: i32) -> (i32, i32, i32) {
    %c0_i32 = arith.constant 0 : i32
    %c0_i32_0 = arith.constant 0 : i32
    %c0_i32_1 = arith.constant 0 : i32
    return %arg0, %c0_i32, %c0_i32_0 : i32, i32, i32
  }
}

</mosaic_0001>

<llo_original>
// kernel: tpu_custom_call.1
$region0: #{tpu_custom_call.1}
  #allocation0 [shape = 'u32[]', space=smem, size = 0x4, offset = 0x4, fixed_abs, tag = 'smem constant byte address 0x4 - core index']
  #allocation1 [shape = 'u32[144,128]{1,0:T(1,128)}', space=vmem, size = 0x12000, scoped, tag = 'internal scratch']
  #allocation2 [shape = 'bf16[192,1024]{1,0:T(16,128)(2,1)}', space=vmem, size = 0x60000, scoped, tag = 'scratch operand']
  %s0 = inlined_call_operand.hbm [shape: f32[2,64,1024], index: 0, kind: input, shape index: {}]
  %s1 = inlined_call_operand.hbm [shape: bf16[192,64], index: 1, kind: input, shape index: {}]
  %s2 = inlined_call_operand.hbm [shape: f32[192,1], index: 2, kind: input, shape index: {}]
  %s3 = inlined_call_operand.hbm [shape: bf16[64,64], index: 3, kind: input, shape index: {}]
  %s4 = inlined_call_operand.hbm [shape: f32[64,1], index: 4, kind: input, shape index: {}]
  %s5 = inlined_call_operand.hbm [shape: f32[2,64,1024], index: 5, kind: output, shape index: {}]
  %s6 = sld [smem:[#allocation0]]
  $region80: #{tpu_custom_call.1} parent=0
    _
  %s8 = ssub.s32 1, %s6
  %s9 = scalar_select 0, %s8, %s6
  $region1: #{tpu_custom_call.1} parent=0
    #allocation3 [shape = 'u8[524288]{0}', space=vmem, size = 0x80000, scoped, tag = 'input window, operand 0']
    #allocation4 [shape = 's32[2]{0}', space=sflag, size = 0x8, scoped, tag = 'scoped memory for tpu_custom_call.1']
    #allocation5 [shape = 's32[2]{0}', space=sflag, size = 0x8, scoped, tag = 'scoped memory for tpu_custom_call.1']
    #allocation6 [shape = 'u8[49152]{0}', space=vmem, size = 0xc000, scoped, tag = 'input window, operand 1, single buffered']
    #allocation7 [shape = 's32[1]{0}', space=sflag, size = 0x4, scoped, tag = 'scoped memory for tpu_custom_call.1']
    #allocation8 [shape = 'u8[98304]{0}', space=vmem, size = 0x18000, scoped, tag = 'input window, operand 2, single buffered']
    #allocation9 [shape = 'u8[16384]{0}', space=vmem, size = 0x4000, scoped, tag = 'input window, operand 3, single buffered']
    #allocation10 [shape = 's32[1]{0}', space=sflag, size = 0x4, scoped, tag = 'scoped memory for tpu_custom_call.1']
    #allocation11 [shape = 'u8[32768]{0}', space=vmem, size = 0x8000, scoped, tag = 'input window, operand 4, single buffered']
    #allocation12 [shape = 'u8[524288]{0}', space=vmem, size = 0x80000, scoped, tag = 'output window, operand 0']
    %10 = vsyncpa [#allocation4], 0
    %s11 = scalar_lea.sflag [#allocation4], 1
    %12 = vsyncpa %s11, 0
    %13 = vsyncpa [#allocation7], 0
    %14 = vsyncpa [#allocation10], 0
    %15 = vsyncpa [#allocation5], 0
    %s16 = scalar_lea.sflag [#allocation5], 1
    %17 = vsyncpa %s16, 0
    loop: start=0, step=1, limit=4
    $region2: #{tpu_custom_call.1} parent=1 // loop_pre_header
      _
    $region3: #{tpu_custom_call.1} parent=1 // loop_header
      %s19 = sphi 0, %s23
      %p20 = scmp.ge.s32.totalorder %s19, 4
      %s29 = sphi 0, %s31
      %s32 = sphi 0, %s29
      %s33 = sphi 0, %s32
      %s49 = sphi 0, %s33
      %s53 = sphi 0, %s53
      %s55 = sphi 0, %s53
      %s56 = sphi 0, %s55
      %s70 = sphi 0, %s56
      %s74 = sphi 0, %s74
      %s76 = sphi 0, %s74
      %s77 = sphi 0, %s76
      %s91 = sphi 0, %s77
      %s95 = sphi 0, %s95
      %s97 = sphi 0, %s95
      %s98 = sphi 0, %s97
      %s112 = sphi 0, %s98
      %s116 = sphi 0, %s116
      %s118 = sphi 0, %s116
      %s119 = sphi 0, %s118
      %s133 = sphi 0, %s119
      %s139 = sphi 0, %s141
      %s142 = sphi 0, %s139
      %s143 = sphi 0, %s142
      %s159 = sphi 0, %s143
    $region4: #{tpu_custom_call.1} parent=1 // loop_header_branch
      %22 = sbr.rel (%p20) target = $region8
    $region5: #{tpu_custom_call.1} parent=1 // loop_body
      %s24 = ssub.s32 %s19, 1
      %s25 = ssub.s32 %s19, 2
      %s26 = sadd.s32 %s19, 1
      %s27 = ssub.s32 %s19, %s26
      %p28 = scmp.eq.s32.totalorder %s27, 0
      %s30 = sadd.s32 %s29, 1
      %s31 = scalar_select %p28, %s29, %s30
      %p34 = pneg %p28
      %p35 = scmp.eq.s32.totalorder %s19, 1
      %p36 = por %p34, %p35
      %p37 = scmp.ne.s32.totalorder %s29, %s32
      %p38 = scmp.eq.s32.totalorder %s19, 0
      %p39 = por %p37, %p38
      %p40 = scmp.ne.s32.totalorder %s29, %s32
      %p41 = scmp.eq.s32.totalorder %s24, 1
      %p42 = por %p40, %p41
      %p43 = scmp.ne.s32.totalorder %s32, %s33
      %p44 = scmp.eq.s32.totalorder %s24, 0
      %p45 = por %p43, %p44
      %p46 = scmp.ne.s32.totalorder %s32, %s33
      %p47 = scmp.eq.s32.totalorder %s25, 1
      %p48 = por %p46, %p47
      %p50 = scmp.ne.s32.totalorder %s33, %s49
      %p51 = scmp.eq.s32.totalorder %s25, 0
      %p52 = por %p50, %p51
      %s54 = sadd.s32 %s53, 1
      %p57 = scmp.eq.s32.totalorder %s19, 1
      %p58 = scmp.ne.s32.totalorder %s53, %s55
      %p59 = scmp.eq.s32.totalorder %s19, 0
      %p60 = por %p58, %p59
      %p61 = scmp.ne.s32.totalorder %s53, %s55
      %p62 = scmp.eq.s32.totalorder %s24, 1
      %p63 = por %p61, %p62
      %p64 = scmp.ne.s32.totalorder %s55, %s56
      %p65 = scmp.eq.s32.totalorder %s24, 0
      %p66 = por %p64, %p65
      %p67 = scmp.ne.s32.totalorder %s55, %s56
      %p68 = scmp.eq.s32.totalorder %s25, 1
      %p69 = por %p67, %p68
      %p71 = scmp.ne.s32.totalorder %s56, %s70
      %p72 = scmp.eq.s32.totalorder %s25, 0
      %p73 = por %p71, %p72
      %s75 = sadd.s32 %s74, 1
      %p78 = scmp.eq.s32.totalorder %s19, 1
      %p79 = scmp.ne.s32.totalorder %s74, %s76
      %p80 = scmp.eq.s32.totalorder %s19, 0
      %p81 = por %p79, %p80
      %p82 = scmp.ne.s32.totalorder %s74, %s76
      %p83 = scmp.eq.s32.totalorder %s24, 1
      %p84 = por %p82, %p83
      %p85 = scmp.ne.s32.totalorder %s76, %s77
      %p86 = scmp.eq.s32.totalorder %s24, 0
      %p87 = por %p85, %p86
      %p88 = scmp.ne.s32.totalorder %s76, %s77
      %p89 = scmp.eq.s32.totalorder %s25, 1
      %p90 = por %p88, %p89
      %p92 = scmp.ne.s32.totalorder %s77, %s91
      %p93 = scmp.eq.s32.totalorder %s25, 0
      %p94 = por %p92, %p93
      %s96 = sadd.s32 %s95, 1
      %p99 = scmp.eq.s32.totalorder %s19, 1
      %p100 = scmp.ne.s32.totalorder %s95, %s97
      %p101 = scmp.eq.s32.totalorder %s19, 0
      %p102 = por %p100, %p101
      %p103 = scmp.ne.s32.totalorder %s95, %s97
      %p104 = scmp.eq.s32.totalorder %s24, 1
      %p105 = por %p103, %p104
      %p106 = scmp.ne.s32.totalorder %s97, %s98
      %p107 = scmp.eq.s32.totalorder %s24, 0
      %p108 = por %p106, %p107
      %p109 = scmp.ne.s32.totalorder %s97, %s98
      %p110 = scmp.eq.s32.totalorder %s25, 1
      %p111 = por %p109, %p110
      %p113 = scmp.ne.s32.totalorder %s98, %s112
      %p114 = scmp.eq.s32.totalorder %s25, 0
      %p115 = por %p113, %p114
      %s117 = sadd.s32 %s116, 1
      %p120 = scmp.eq.s32.totalorder %s19, 1
      %p121 = scmp.ne.s32.totalorder %s116, %s118
      %p122 = scmp.eq.s32.totalorder %s19, 0
      %p123 = por %p121, %p122
      %p124 = scmp.ne.s32.totalorder %s116, %s118
      %p125 = scmp.eq.s32.totalorder %s24, 1
      %p126 = por %p124, %p125
      %p127 = scmp.ne.s32.totalorder %s118, %s119
      %p128 = scmp.eq.s32.totalorder %s24, 0
      %p129 = por %p127, %p128
      %p130 = scmp.ne.s32.totalorder %s118, %s119
      %p131 = scmp.eq.s32.totalorder %s25, 1
      %p132 = por %p130, %p131
      %p134 = scmp.ne.s32.totalorder %s119, %s133
      %p135 = scmp.eq.s32.totalorder %s25, 0
      %p136 = por %p134, %p135
      %s137 = ssub.s32 %s19, %s26
      %p138 = scmp.eq.s32.totalorder %s137, 0
      %s140 = sadd.s32 %s139, 1
      %s141 = scalar_select %p138, %s139, %s140
      %p144 = pneg %p138
      %p145 = scmp.eq.s32.totalorder %s19, 1
      %p146 = por %p144, %p145
      %p147 = scmp.ne.s32.totalorder %s139, %s142
      %p148 = scmp.eq.s32.totalorder %s19, 0
      %p149 = por %p147, %p148
      %p150 = scmp.ne.s32.totalorder %s139, %s142
      %p151 = scmp.eq.s32.totalorder %s24, 1
      %p152 = por %p150, %p151
      %p153 = scmp.ne.s32.totalorder %s142, %s143
      %p154 = scmp.eq.s32.totalorder %s24, 0
      %p155 = por %p153, %p154
      %p156 = scmp.ne.s32.totalorder %s142, %s143
      %p157 = scmp.eq.s32.totalorder %s25, 1
      %p158 = por %p156, %p157
      %p160 = scmp.ne.s32.totalorder %s143, %s159
      %p161 = scmp.eq.s32.totalorder %s25, 0
      %p162 = por %p160, %p161
      %p163 = scmp.le.s32.totalorder 1, %s19
      %p164 = scmp.lt.s32.totalorder %s19, 3
      %p165 = pnand %p163, %p164
      %p166 = pneg %p165
      // Predicated region
      $region9: #{tpu_custom_call.1} parent=5 // pred_check
        _
      $region10: #{tpu_custom_call.1} parent=5 // pred_check_branch
        %168 = sbr.rel (%p165) target = $region12
      $region11: #{tpu_custom_call.1} parent=5 // pred_region
        %s169 = ssub.s32 %s19, 1
        // Predicated region
        $region13: #{tpu_custom_call.1} parent=11 // pred_check
          %p170 = pneg %p66
        $region14: #{tpu_custom_call.1} parent=11 // pred_check_branch
          %172 = sbr.rel (%p170) target = $region16
        $region15: #{tpu_custom_call.1} parent=11 // pred_region
          %s174 = ssub.s32 1536, 1536
          %175 = vsyncadd [#allocation7], %s174
          %s176 = sshll.u32 [#allocation6], 4
          %s177 = int_to_ptr.vmem [resolvable:$true] %s176
          %182 = dma.hbm_to_vmem [thread:$0]  %s1, 1536, %s177, [#allocation7], 64, 64, 4
        $region16: #{tpu_custom_call.1} parent=11 // pred_fallthru
          _
        // Predicated region
        $region17: #{tpu_custom_call.1} parent=11 // pred_check
          %p183 = pneg %p87
        $region18: #{tpu_custom_call.1} parent=11 // pred_check_branch
          %185 = sbr.rel (%p183) target = $region20
        $region19: #{tpu_custom_call.1} parent=11 // pred_region
          %s187 = ssub.s32 3072, 3072
          %188 = vsyncadd [#allocation7], %s187
          %s189 = sshll.u32 [#allocation8], 4
          %s190 = int_to_ptr.vmem [resolvable:$true] %s189
          %195 = dma.hbm_to_vmem [thread:$0]  %s2, 3072, %s190, [#allocation7], 128, 128, 8
        $region20: #{tpu_custom_call.1} parent=11 // pred_fallthru
          _
        // Predicated region
        $region21: #{tpu_custom_call.1} parent=11 // pred_check
          %p196 = pneg %p108
        $region22: #{tpu_custom_call.1} parent=11 // pred_check_branch
          %198 = sbr.rel (%p196) target = $region24
        $region23: #{tpu_custom_call.1} parent=11 // pred_region
          %s200 = ssub.s32 512, 512
          %201 = vsyncadd [#allocation10], %s200
          %s202 = sshll.u32 [#allocation9], 4
          %s203 = int_to_ptr.vmem [resolvable:$true] %s202
          %208 = dma.hbm_to_vmem [thread:$0]  %s3, 512, %s203, [#allocation10], 64, 64, 4
        $region24: #{tpu_custom_call.1} parent=11 // pred_fallthru
          _
        // Predicated region
        $region25: #{tpu_custom_call.1} parent=11 // pred_check
          %p209 = pneg %p129
        $region26: #{tpu_custom_call.1} parent=11 // pred_check_branch
          %211 = sbr.rel (%p209) target = $region28
        $region27: #{tpu_custom_call.1} parent=11 // pred_region
          %s213 = ssub.s32 1024, 1024
          %214 = vsyncadd [#allocation10], %s213
          %s215 = sshll.u32 [#allocation11], 4
          %s216 = int_to_ptr.vmem [resolvable:$true] %s215
          %221 = dma.hbm_to_vmem [thread:$0]  %s4, 1024, %s216, [#allocation10], 128, 128, 8
        $region28: #{tpu_custom_call.1} parent=11 // pred_fallthru
          _
      $region12: #{tpu_custom_call.1} parent=5 // pred_fallthru
        _
      %p222 = scmp.lt.s32.totalorder %s19, 2
      // Predicated region
      $region29: #{tpu_custom_call.1} parent=5 // pred_check
        %p223 = pneg %p222
      $region30: #{tpu_custom_call.1} parent=5 // pred_check_branch
        %225 = sbr.rel (%p223) target = $region32
      $region31: #{tpu_custom_call.1} parent=5 // pred_region
        // Predicated region
        $region33: #{tpu_custom_call.1} parent=31 // pred_check
          %p226 = pneg %p39
        $region34: #{tpu_custom_call.1} parent=31 // pred_check_branch
          %228 = sbr.rel (%p226) target = $region36
        $region35: #{tpu_custom_call.1} parent=31 // pred_region
          %s229 = sand.u32 %s29, 1
          %s230 = scalar_lea.sflag [#allocation4], %s229
          %s231 = sand.u32 %s29, 1
          %s232 = smul.addr %s231, 512
          %s233 = scalar_lea.vmem [#allocation3], %s232
          %s235 = ssub.s32 8192, 8192
          %236 = vsyncadd %s230, %s235
          %s237 = smul.addr %s19, 64
          %s238 = smul.addr %s237, 128
          %s239 = scalar_lea.hbm %s0, %s238
          %s240 = sshll.u32 %s233, 4
          %s241 = int_to_ptr.vmem [resolvable:$true] %s240
          %246 = dma.hbm_to_vmem [thread:$0]  %s239, 8192, %s241, %s230, 1024, 1024, 64
        $region36: #{tpu_custom_call.1} parent=31 // pred_fallthru
          _
      $region32: #{tpu_custom_call.1} parent=5 // pred_fallthru
        _
      %p247 = scmp.le.s32.totalorder 1, %s19
      %p248 = scmp.lt.s32.totalorder %s19, 3
      %p249 = pnand %p247, %p248
      %p250 = pneg %p249
      // Predicated region
      $region37: #{tpu_custom_call.1} parent=5 // pred_check
        _
      $region38: #{tpu_custom_call.1} parent=5 // pred_check_branch
        %252 = sbr.rel (%p249) target = $region40
      $region39: #{tpu_custom_call.1} parent=5 // pred_region
        %s253 = ssub.s32 %s19, 1
        %s254 = sand.u32 %s32, 1
        %s255 = scalar_lea.sflag [#allocation4], %s254
        %s256 = sand.u32 %s32, 1
        %s257 = smul.addr %s256, 512
        %s258 = scalar_lea.vmem [#allocation3], %s257
        // Predicated region
        $region41: #{tpu_custom_call.1} parent=39 // pred_check
          %p259 = pneg %p45
        $region42: #{tpu_custom_call.1} parent=39 // pred_check_branch
          %261 = sbr.rel (%p259) target = $region44
        $region43: #{tpu_custom_call.1} parent=39 // pred_region
          %262 = dma.done %s255, 8192
        $region44: #{tpu_custom_call.1} parent=39 // pred_fallthru
          _
        // Predicated region
        $region45: #{tpu_custom_call.1} parent=39 // pred_check
          %p263 = pneg %p66
        $region46: #{tpu_custom_call.1} parent=39 // pred_check_branch
          %265 = sbr.rel (%p263) target = $region48
        $region47: #{tpu_custom_call.1} parent=39 // pred_region
          %266 = dma.done [#allocation7], 1536
        $region48: #{tpu_custom_call.1} parent=39 // pred_fallthru
          _
        // Predicated region
        $region49: #{tpu_custom_call.1} parent=39 // pred_check
          %p267 = pneg %p87
        $region50: #{tpu_custom_call.1} parent=39 // pred_check_branch
          %269 = sbr.rel (%p267) target = $region52
        $region51: #{tpu_custom_call.1} parent=39 // pred_region
          %270 = dma.done [#allocation7], 3072
        $region52: #{tpu_custom_call.1} parent=39 // pred_fallthru
          _
        // Predicated region
        $region53: #{tpu_custom_call.1} parent=39 // pred_check
          %p271 = pneg %p108
        $region54: #{tpu_custom_call.1} parent=39 // pred_check_branch
          %273 = sbr.rel (%p271) target = $region56
        $region55: #{tpu_custom_call.1} parent=39 // pred_region
          %274 = dma.done [#allocation10], 512
        $region56: #{tpu_custom_call.1} parent=39 // pred_fallthru
          _
        // Predicated region
        $region57: #{tpu_custom_call.1} parent=39 // pred_check
          %p275 = pneg %p129
        $region58: #{tpu_custom_call.1} parent=39 // pred_check_branch
          %277 = sbr.rel (%p275) target = $region60
        $region59: #{tpu_custom_call.1} parent=39 // pred_region
          %278 = dma.done [#allocation10], 1024
        $region60: #{tpu_custom_call.1} parent=39 // pred_fallthru
          _
        %s279 = sand.u32 %s32, 1
        %s280 = scalar_lea.sflag [#allocation4], %s279
        %s281 = sand.u32 %s32, 1
        %s282 = smul.addr %s281, 512
        %s283 = scalar_lea.vmem [#allocation3], %s282
        %p284 = pneg %p45
        %p285 = pneg %p42
        %p286 = pneg %p66
        %p287 = pneg %p63
        %p288 = pneg %p87
        %p289 = pneg %p84
        %p290 = pneg %p108
        %p291 = pneg %p105
        %p292 = pneg %p129
        %p293 = pneg %p126
        %p294 = pneg %p155
        %p295 = pneg %p152
        %s296 = sand.u32 %s142, 1
        %s297 = scalar_lea.sflag [#allocation5], %s296
        %s298 = sand.u32 %s142, 1
        %s299 = smul.addr %s298, 512
        %s300 = scalar_lea.vmem [#allocation12], %s299
        %v302 = vld [vmem:[%s258] sm:$0xff]
        %v303 = vld [vmem:[%s258 + $0x8] sm:$0xff]
        %v304 = vld [vmem:[%s258 + $0x10] sm:$0xff]
        %v305 = vld [vmem:[%s258 + $0x18] sm:$0xff]
        %v306 = vld [vmem:[%s258 + $0x20] sm:$0xff]
        %v307 = vld [vmem:[%s258 + $0x28] sm:$0xff]
        %v308 = vld [vmem:[%s258 + $0x30] sm:$0xff]
        %v309 = vld [vmem:[%s258 + $0x38] sm:$0xff]
        %v310 = vld [vmem:[%s258 + $0x40] sm:$0xff]
        %v311 = vld [vmem:[%s258 + $0x48] sm:$0xff]
        %v312 = vld [vmem:[%s258 + $0x50] sm:$0xff]
        %v313 = vld [vmem:[%s258 + $0x58] sm:$0xff]
        %v314 = vld [vmem:[%s258 + $0x60] sm:$0xff]
        %v315 = vld [vmem:[%s258 + $0x68] sm:$0xff]
        %v316 = vld [vmem:[%s258 + $0x70] sm:$0xff]
        %v317 = vld [vmem:[%s258 + $0x78] sm:$0xff]
        %v318 = vld [vmem:[%s258 + $0x80] sm:$0xff]
        %v319 = vld [vmem:[%s258 + $0x88] sm:$0xff]
        %v320 = vld [vmem:[%s258 + $0x90] sm:$0xff]
        %v321 = vld [vmem:[%s258 + $0x98] sm:$0xff]
        %v322 = vld [vmem:[%s258 + $0xa0] sm:$0xff]
        %v323 = vld [vmem:[%s258 + $0xa8] sm:$0xff]
        %v324 = vld [vmem:[%s258 + $0xb0] sm:$0xff]
        %v325 = vld [vmem:[%s258 + $0xb8] sm:$0xff]
        %v326 = vld [vmem:[%s258 + $0xc0] sm:$0xff]
        %v327 = vld [vmem:[%s258 + $0xc8] sm:$0xff]
        %v328 = vld [vmem:[%s258 + $0xd0] sm:$0xff]
        %v329 = vld [vmem:[%s258 + $0xd8] sm:$0xff]
        %v330 = vld [vmem:[%s258 + $0xe0] sm:$0xff]
        %v331 = vld [vmem:[%s258 + $0xe8] sm:$0xff]
        %v332 = vld [vmem:[%s258 + $0xf0] sm:$0xff]
        %v333 = vld [vmem:[%s258 + $0xf8] sm:$0xff]
        %v334 = vld [vmem:[%s258 + $0x100] sm:$0xff]
        %v335 = vld [vmem:[%s258 + $0x108] sm:$0xff]
        %v336 = vld [vmem:[%s258 + $0x110] sm:$0xff]
        %v337 = vld [vmem:[%s258 + $0x118] sm:$0xff]
        %v338 = vld [vmem:[%s258 + $0x120] sm:$0xff]
        %v339 = vld [vmem:[%s258 + $0x128] sm:$0xff]
        %v340 = vld [vmem:[%s258 + $0x130] sm:$0xff]
        %v341 = vld [vmem:[%s258 + $0x138] sm:$0xff]
        %v342 = vld [vmem:[%s258 + $0x140] sm:$0xff]
        %v343 = vld [vmem:[%s258 + $0x148] sm:$0xff]
        %v344 = vld [vmem:[%s258 + $0x150] sm:$0xff]
        %v345 = vld [vmem:[%s258 + $0x158] sm:$0xff]
        %v346 = vld [vmem:[%s258 + $0x160] sm:$0xff]
        %v347 = vld [vmem:[%s258 + $0x168] sm:$0xff]
        %v348 = vld [vmem:[%s258 + $0x170] sm:$0xff]
        %v349 = vld [vmem:[%s258 + $0x178] sm:$0xff]
        %v350 = vld [vmem:[%s258 + $0x180] sm:$0xff]
        %v351 = vld [vmem:[%s258 + $0x188] sm:$0xff]
        %v352 = vld [vmem:[%s258 + $0x190] sm:$0xff]
        %v353 = vld [vmem:[%s258 + $0x198] sm:$0xff]
        %v354 = vld [vmem:[%s258 + $0x1a0] sm:$0xff]
        %v355 = vld [vmem:[%s258 + $0x1a8] sm:$0xff]
        %v356 = vld [vmem:[%s258 + $0x1b0] sm:$0xff]
        %v357 = vld [vmem:[%s258 + $0x1b8] sm:$0xff]
        %v358 = vld [vmem:[%s258 + $0x1c0] sm:$0xff]
        %v359 = vld [vmem:[%s258 + $0x1c8] sm:$0xff]
        %v360 = vld [vmem:[%s258 + $0x1d0] sm:$0xff]
        %v361 = vld [vmem:[%s258 + $0x1d8] sm:$0xff]
        %v362 = vld [vmem:[%s258 + $0x1e0] sm:$0xff]
        %v363 = vld [vmem:[%s258 + $0x1e8] sm:$0xff]
        %v364 = vld [vmem:[%s258 + $0x1f0] sm:$0xff]
        %v365 = vld [vmem:[%s258 + $0x1f8] sm:$0xff]
        %v366 = vpack.c.bf16 %v310, %v302
        %v367 = vpack.c.bf16 %v311, %v303
        %v368 = vpack.c.bf16 %v312, %v304
        %v369 = vpack.c.bf16 %v313, %v305
        %v370 = vpack.c.bf16 %v314, %v306
        %v371 = vpack.c.bf16 %v315, %v307
        %v372 = vpack.c.bf16 %v316, %v308
        %v373 = vpack.c.bf16 %v317, %v309
        %v374 = vpack.c.bf16 %v326, %v318
        %v375 = vpack.c.bf16 %v327, %v319
        %v376 = vpack.c.bf16 %v328, %v320
        %v377 = vpack.c.bf16 %v329, %v321
        %v378 = vpack.c.bf16 %v330, %v322
        %v379 = vpack.c.bf16 %v331, %v323
        %v380 = vpack.c.bf16 %v332, %v324
        %v381 = vpack.c.bf16 %v333, %v325
        %v382 = vpack.c.bf16 %v342, %v334
        %v383 = vpack.c.bf16 %v343, %v335
        %v384 = vpack.c.bf16 %v344, %v336
        %v385 = vpack.c.bf16 %v345, %v337
        %v386 = vpack.c.bf16 %v346, %v338
        %v387 = vpack.c.bf16 %v347, %v339
        %v388 = vpack.c.bf16 %v348, %v340
        %v389 = vpack.c.bf16 %v349, %v341
        %v390 = vpack.c.bf16 %v358, %v350
        %v391 = vpack.c.bf16 %v359, %v351
        %v392 = vpack.c.bf16 %v360, %v352
        %v393 = vpack.c.bf16 %v361, %v353
        %v394 = vpack.c.bf16 %v362, %v354
        %v395 = vpack.c.bf16 %v363, %v355
        %v396 = vpack.c.bf16 %v364, %v356
        %v397 = vpack.c.bf16 %v365, %v357
        %v398 = vld [vmem:[#allocation6] sm:$0xf]
        %v399 = vld [vmem:[#allocation6 + $0x4] sm:$0xf]
        %v400 = vld [vmem:[#allocation6 + $0x8] sm:$0xf]
        %v401 = vld [vmem:[#allocation6 + $0xc] sm:$0xf]
        %v402 = vld [vmem:[#allocation6 + $0x10] sm:$0xf]
        %v403 = vld [vmem:[#allocation6 + $0x14] sm:$0xf]
        %v404 = vld [vmem:[#allocation6 + $0x18] sm:$0xf]
        %v405 = vld [vmem:[#allocation6 + $0x1c] sm:$0xf]
        %v406 = vld [vmem:[#allocation6 + $0x20] sm:$0xf]
        %v407 = vld [vmem:[#allocation6 + $0x24] sm:$0xf]
        %v408 = vld [vmem:[#allocation6 + $0x28] sm:$0xf]
        %v409 = vld [vmem:[#allocation6 + $0x2c] sm:$0xf]
        %v410 = vld [vmem:[#allocation6 + $0x30] sm:$0xf]
        %v411 = vld [vmem:[#allocation6 + $0x34] sm:$0xf]
        %v412 = vld [vmem:[#allocation6 + $0x38] sm:$0xf]
        %v413 = vld [vmem:[#allocation6 + $0x3c] sm:$0xf]
        %v414 = vld [vmem:[#allocation6 + $0x40] sm:$0xf]
        %v415 = vld [vmem:[#allocation6 + $0x44] sm:$0xf]
        %v416 = vld [vmem:[#allocation6 + $0x48] sm:$0xf]
        %v417 = vld [vmem:[#allocation6 + $0x4c] sm:$0xf]
        %v418 = vld [vmem:[#allocation6 + $0x50] sm:$0xf]
        %v419 = vld [vmem:[#allocation6 + $0x54] sm:$0xf]
        %v420 = vld [vmem:[#allocation6 + $0x58] sm:$0xf]
        %v421 = vld [vmem:[#allocation6 + $0x5c] sm:$0xf]
        %v422 = vld [vmem:[#allocation8] sm:$0xff]
        %v423 = vld [vmem:[#allocation8 + $0x8] sm:$0xff]
        %v424 = vld [vmem:[#allocation8 + $0x10] sm:$0xff]
        %v425 = vld [vmem:[#allocation8 + $0x18] sm:$0xff]
        %v426 = vld [vmem:[#allocation8 + $0x20] sm:$0xff]
        %v427 = vld [vmem:[#allocation8 + $0x28] sm:$0xff]
        %v428 = vld [vmem:[#allocation8 + $0x30] sm:$0xff]
        %v429 = vld [vmem:[#allocation8 + $0x38] sm:$0xff]
        %v430 = vld [vmem:[#allocation8 + $0x40] sm:$0xff]
        %v431 = vld [vmem:[#allocation8 + $0x48] sm:$0xff]
        %v432 = vld [vmem:[#allocation8 + $0x50] sm:$0xff]
        %v433 = vld [vmem:[#allocation8 + $0x58] sm:$0xff]
        %v434 = vld [vmem:[#allocation8 + $0x60] sm:$0xff]
        %v435 = vld [vmem:[#allocation8 + $0x68] sm:$0xff]
        %v436 = vld [vmem:[#allocation8 + $0x70] sm:$0xff]
        %v437 = vld [vmem:[#allocation8 + $0x78] sm:$0xff]
        %v438 = vld [vmem:[#allocation8 + $0x80] sm:$0xff]
        %v439 = vld [vmem:[#allocation8 + $0x88] sm:$0xff]
        %v440 = vld [vmem:[#allocation8 + $0x90] sm:$0xff]
        %v441 = vld [vmem:[#allocation8 + $0x98] sm:$0xff]
        %v442 = vld [vmem:[#allocation8 + $0xa0] sm:$0xff]
        %v443 = vld [vmem:[#allocation8 + $0xa8] sm:$0xff]
        %v444 = vld [vmem:[#allocation8 + $0xb0] sm:$0xff]
        %v445 = vld [vmem:[#allocation8 + $0xb8] sm:$0xff]
        %447 = vset.pattern.permute.xlu0 0
        %448 = vperm.xlu0 %447, %v422
        %v449 = vpop.permute.xlu0 %448
        %452 = vset.pattern.permute.xlu0 0
        %453 = vperm.xlu0 %452, %v423
        %v454 = vpop.permute.xlu0 %453
        %457 = vset.pattern.permute.xlu0 0
        %458 = vperm.xlu0 %457, %v424
        %v459 = vpop.permute.xlu0 %458
        %462 = vset.pattern.permute.xlu0 0
        %463 = vperm.xlu0 %462, %v425
        %v464 = vpop.permute.xlu0 %463
        %467 = vset.pattern.permute.xlu0 0
        %468 = vperm.xlu0 %467, %v426
        %v469 = vpop.permute.xlu0 %468
        %472 = vset.pattern.permute.xlu0 0
        %473 = vperm.xlu0 %472, %v427
        %v474 = vpop.permute.xlu0 %473
        %477 = vset.pattern.permute.xlu0 0
        %478 = vperm.xlu0 %477, %v428
        %v479 = vpop.permute.xlu0 %478
        %482 = vset.pattern.permute.xlu0 0
        %483 = vperm.xlu0 %482, %v429
        %v484 = vpop.permute.xlu0 %483
        %487 = vset.pattern.permute.xlu0 0
        %488 = vperm.xlu0 %487, %v430
        %v489 = vpop.permute.xlu0 %488
        %492 = vset.pattern.permute.xlu0 0
        %493 = vperm.xlu0 %492, %v431
        %v494 = vpop.permute.xlu0 %493
        %497 = vset.pattern.permute.xlu0 0
        %498 = vperm.xlu0 %497, %v432
        %v499 = vpop.permute.xlu0 %498
        %502 = vset.pattern.permute.xlu0 0
        %503 = vperm.xlu0 %502, %v433
        %v504 = vpop.permute.xlu0 %503
        %507 = vset.pattern.permute.xlu0 0
        %508 = vperm.xlu0 %507, %v434
        %v509 = vpop.permute.xlu0 %508
        %512 = vset.pattern.permute.xlu0 0
        %513 = vperm.xlu0 %512, %v435
        %v514 = vpop.permute.xlu0 %513
        %517 = vset.pattern.permute.xlu0 0
        %518 = vperm.xlu0 %517, %v436
        %v519 = vpop.permute.xlu0 %518
        %522 = vset.pattern.permute.xlu0 0
        %523 = vperm.xlu0 %522, %v437
        %v524 = vpop.permute.xlu0 %523
        %527 = vset.pattern.permute.xlu0 0
        %528 = vperm.xlu0 %527, %v438
        %v529 = vpop.permute.xlu0 %528
        %532 = vset.pattern.permute.xlu0 0
        %533 = vperm.xlu0 %532, %v439
        %v534 = vpop.permute.xlu0 %533
        %537 = vset.pattern.permute.xlu0 0
        %538 = vperm.xlu0 %537, %v440
        %v539 = vpop.permute.xlu0 %538
        %542 = vset.pattern.permute.xlu0 0
        %543 = vperm.xlu0 %542, %v441
        %v544 = vpop.permute.xlu0 %543
        %547 = vset.pattern.permute.xlu0 0
        %548 = vperm.xlu0 %547, %v442
        %v549 = vpop.permute.xlu0 %548
        %552 = vset.pattern.permute.xlu0 0
        %553 = vperm.xlu0 %552, %v443
        %v554 = vpop.permute.xlu0 %553
        %557 = vset.pattern.permute.xlu0 0
        %558 = vperm.xlu0 %557, %v444
        %v559 = vpop.permute.xlu0 %558
        %562 = vset.pattern.permute.xlu0 0
        %563 = vperm.xlu0 %562, %v445
        %v564 = vpop.permute.xlu0 %563
        %v590 = vunpack.c.l.b16 %v398
        %v591 = vunpack.c.l.b16 %v399
        %v592 = vunpack.c.l.b16 %v400
        %v593 = vunpack.c.l.b16 %v401
        %v594 = vunpack.c.l.b16 %v402
        %v595 = vunpack.c.l.b16 %v403
        %v596 = vunpack.c.l.b16 %v404
        %v597 = vunpack.c.l.b16 %v405
        %v598 = vunpack.c.l.b16 %v406
        %v599 = vunpack.c.l.b16 %v407
        %v600 = vunpack.c.l.b16 %v408
        %v601 = vunpack.c.l.b16 %v409
        %v602 = vunpack.c.l.b16 %v410
        %v603 = vunpack.c.l.b16 %v411
        %v604 = vunpack.c.l.b16 %v412
        %v605 = vunpack.c.l.b16 %v413
        %v606 = vunpack.c.l.b16 %v414
        %v607 = vunpack.c.l.b16 %v415
        %v608 = vunpack.c.l.b16 %v416
        %v609 = vunpack.c.l.b16 %v417
        %v610 = vunpack.c.l.b16 %v418
        %v611 = vunpack.c.l.b16 %v419
        %v612 = vunpack.c.l.b16 %v420
        %v613 = vunpack.c.l.b16 %v421
        %v614 = vpack.c.b16 %v591, %v590
        %v615 = vpack.c.b16 %v593, %v592
        %v616 = vpack.c.b16 %v595, %v594
        %v617 = vpack.c.b16 %v597, %v596
        %v618 = vpack.c.b16 %v599, %v598
        %v619 = vpack.c.b16 %v601, %v600
        %v620 = vpack.c.b16 %v603, %v602
        %v621 = vpack.c.b16 %v605, %v604
        %v622 = vpack.c.b16 %v607, %v606
        %v623 = vpack.c.b16 %v609, %v608
        %v624 = vpack.c.b16 %v611, %v610
        %v625 = vpack.c.b16 %v613, %v612
        %vm626 = vcmask 523264
        %v628 = vsel %vm626, %v614, 0
        %v631 = vsel %vm626, %v615, 0
        %v634 = vsel %vm626, %v616, 0
        %v637 = vsel %vm626, %v617, 0
        %v640 = vsel %vm626, %v618, 0
        %v643 = vsel %vm626, %v619, 0
        %v646 = vsel %vm626, %v620, 0
        %v649 = vsel %vm626, %v621, 0
        %v652 = vsel %vm626, %v622, 0
        %v655 = vsel %vm626, %v623, 0
        %v658 = vsel %vm626, %v624, 0
        %v661 = vsel %vm626, %v625, 0
        %663 = vmatprep.subr.bf16.mxu0 %v367
        %664 = vmatpush1.bf16.msra.mxu0 %v366
        %665 = vmatprep.subr.bf16.mxu0 %v375
        %666 = vmatpush1.bf16.msra.mxu0 %v374
        %667 = vmatprep.subr.bf16.mxu0 %v383
        %668 = vmatpush1.bf16.msra.mxu0 %v382
        %669 = vmatprep.subr.bf16.mxu0 %v391
        %670 = vmatpush1.bf16.msra.mxu0 %v390
        %671 = vmatprep.subr.bf16.mxu0 0
        %672 = vmatpush1.bf16.msra.mxu0 0
        %673 = vmatprep.subr.bf16.mxu0 0
        %674 = vmatpush1.bf16.msra.mxu0 0
        %675 = vmatprep.subr.bf16.mxu0 0
        %676 = vmatpush1.bf16.msra.mxu0 0
        %677 = vmatprep.subr.bf16.mxu0 0
        %678 = vmatpush1.bf16.msra.mxu0 0
        %679 = vmatprep.subr.bf16.mxu0 0
        %680 = vmatpush1.bf16.msra.mxu0 0
        %681 = vmatprep.subr.bf16.mxu0 0
        %682 = vmatpush1.bf16.msra.mxu0 0
        %683 = vmatprep.subr.bf16.mxu0 0
        %684 = vmatpush1.bf16.msra.mxu0 0
        %685 = vmatprep.subr.bf16.mxu0 0
        %686 = vmatpush1.bf16.msra.mxu0 0
        %687 = vmatprep.subr.bf16.mxu0 0
        %688 = vmatpush1.bf16.msra.mxu0 0
        %689 = vmatprep.subr.bf16.mxu0 0
        %690 = vmatpush1.bf16.msra.mxu0 0
        %691 = vmatprep.subr.bf16.mxu0 0
        %692 = vmatpush1.bf16.msra.mxu0 0
        %693 = vmatprep.subr.bf16.mxu0 0
        %694 = vmatpush1.bf16.msra.mxu0 0
        %695 = vmatprep.mubr.bf16.mxu0 0
        %696 = vmatmul.mubr.bf16.gmra.mrb[0].mxu0 %v628
        %v697 = vpop.f32.mrb[0].mxu0
        %v698 = vadd.f32 %v449, %v697
        %v699 = vpop.f32.mrb[0].mxu0
        %v700 = vadd.f32 %v449, %v699
        %v701 = vpop.f32.mrb[0].mxu0
        %v702 = vadd.f32 %v454, %v701
        %v703 = vpop.f32.mrb[0].mxu0
        %v704 = vadd.f32 %v454, %v703
        %705 = vmatprep.mubr.bf16.mxu0 0
        %706 = vmatmul.mubr.bf16.gmra.mrb[0].mxu0 %v631
        %v707 = vpop.f32.mrb[0].mxu0
        %v708 = vadd.f32 %v459, %v707
        %v709 = vpop.f32.mrb[0].mxu0
        %v710 = vadd.f32 %v459, %v709
        %v711 = vpop.f32.mrb[0].mxu0
        %v712 = vadd.f32 %v464, %v711
        %v713 = vpop.f32.mrb[0].mxu0
        %v714 = vadd.f32 %v464, %v713
        %715 = vmatprep.mubr.bf16.mxu0 0
        %716 = vmatmul.mubr.bf16.gmra.mrb[0].mxu0 %v634
        %v717 = vpop.f32.mrb[0].mxu0
        %v718 = vadd.f32 %v469, %v717
        %v719 = vpop.f32.mrb[0].mxu0
        %v720 = vadd.f32 %v469, %v719
        %v721 = vpop.f32.mrb[0].mxu0
        %v722 = vadd.f32 %v474, %v721
        %v723 = vpop.f32.mrb[0].mxu0
        %v724 = vadd.f32 %v474, %v723
        %725 = vmatprep.mubr.bf16.mxu0 0
        %726 = vmatmul.mubr.bf16.gmra.mrb[0].mxu0 %v637
        %v727 = vpop.f32.mrb[0].mxu0
        %v728 = vadd.f32 %v479, %v727
        %v729 = vpop.f32.mrb[0].mxu0
        %v730 = vadd.f32 %v479, %v729
        %v731 = vpop.f32.mrb[0].mxu0
        %v732 = vadd.f32 %v484, %v731
        %v733 = vpop.f32.mrb[0].mxu0
        %v734 = vadd.f32 %v484, %v733
        %735 = vmatprep.mubr.bf16.mxu0 0
        %736 = vmatmul.mubr.bf16.gmra.mrb[0].mxu0 %v640
        %v737 = vpop.f32.mrb[0].mxu0
        %v738 = vadd.f32 %v489, %v737
        %v739 = vpop.f32.mrb[0].mxu0
        %v740 = vadd.f32 %v489, %v739
        %v741 = vpop.f32.mrb[0].mxu0
        %v742 = vadd.f32 %v494, %v741
        %v743 = vpop.f32.mrb[0].mxu0
        %v744 = vadd.f32 %v494, %v743
        %745 = vmatprep.mubr.bf16.mxu0 0
        %746 = vmatmul.mubr.bf16.gmra.mrb[0].mxu0 %v643
        %v747 = vpop.f32.mrb[0].mxu0
        %v748 = vadd.f32 %v499, %v747
        %v749 = vpop.f32.mrb[0].mxu0
        %v750 = vadd.f32 %v499, %v749
        %v751 = vpop.f32.mrb[0].mxu0
        %v752 = vadd.f32 %v504, %v751
        %v753 = vpop.f32.mrb[0].mxu0
        %v754 = vadd.f32 %v504, %v753
        %755 = vmatprep.mubr.bf16.mxu0 0
        %756 = vmatmul.mubr.bf16.gmra.mrb[0].mxu0 %v646
        %v757 = vpop.f32.mrb[0].mxu0
        %v758 = vadd.f32 %v509, %v757
        %v759 = vpop.f32.mrb[0].mxu0
        %v760 = vadd.f32 %v509, %v759
        %v761 = vpop.f32.mrb[0].mxu0
        %v762 = vadd.f32 %v514, %v761
        %v763 = vpop.f32.mrb[0].mxu0
        %v764 = vadd.f32 %v514, %v763
        %765 = vmatprep.mubr.bf16.mxu0 0
        %766 = vmatmul.mubr.bf16.gmra.mrb[0].mxu0 %v649
        %v767 = vpop.f32.mrb[0].mxu0
        %v768 = vadd.f32 %v519, %v767
        %v769 = vpop.f32.mrb[0].mxu0
        %v770 = vadd.f32 %v519, %v769
        %v771 = vpop.f32.mrb[0].mxu0
        %v772 = vadd.f32 %v524, %v771
        %v773 = vpop.f32.mrb[0].mxu0
        %v774 = vadd.f32 %v524, %v773
        %775 = vmatprep.mubr.bf16.mxu0 0
        %776 = vmatmul.mubr.bf16.gmra.mrb[0].mxu0 %v652
        %v777 = vpop.f32.mrb[0].mxu0
        %v778 = vadd.f32 %v529, %v777
        %v779 = vpop.f32.mrb[0].mxu0
        %v780 = vadd.f32 %v529, %v779
        %v781 = vpop.f32.mrb[0].mxu0
        %v782 = vadd.f32 %v534, %v781
        %v783 = vpop.f32.mrb[0].mxu0
        %v784 = vadd.f32 %v534, %v783
        %785 = vmatprep.mubr.bf16.mxu0 0
        %786 = vmatmul.mubr.bf16.gmra.mrb[0].mxu0 %v655
        %v787 = vpop.f32.mrb[0].mxu0
        %v788 = vadd.f32 %v539, %v787
        %v789 = vpop.f32.mrb[0].mxu0
        %v790 = vadd.f32 %v539, %v789
        %v791 = vpop.f32.mrb[0].mxu0
        %v792 = vadd.f32 %v544, %v791
        %v793 = vpop.f32.mrb[0].mxu0
        %v794 = vadd.f32 %v544, %v793
        %795 = vmatprep.mubr.bf16.mxu0 0
        %796 = vmatmul.mubr.bf16.gmra.mrb[0].mxu0 %v658
        %v797 = vpop.f32.mrb[0].mxu0
        %v798 = vadd.f32 %v549, %v797
        %v799 = vpop.f32.mrb[0].mxu0
        %v800 = vadd.f32 %v549, %v799
        %v801 = vpop.f32.mrb[0].mxu0
        %v802 = vadd.f32 %v554, %v801
        %v803 = vpop.f32.mrb[0].mxu0
        %v804 = vadd.f32 %v554, %v803
        %805 = vmatprep.mubr.bf16.mxu0 0
        %806 = vmatmul.mubr.bf16.gmra.mrb[0].mxu0 %v661
        %v807 = vpop.f32.mrb[0].mxu0
        %v808 = vadd.f32 %v559, %v807
        %v809 = vpop.f32.mrb[0].mxu0
        %v810 = vadd.f32 %v559, %v809
        %v811 = vpop.f32.mrb[0].mxu0
        %v812 = vadd.f32 %v564, %v811
        %v813 = vpop.f32.mrb[0].mxu0
        %v814 = vadd.f32 %v564, %v813
        %815 = vdwg.mxu0
        %816 = vmatprep.subr.bf16.mxu0 %v369
        %817 = vmatpush1.bf16.msra.mxu0 %v368
        %818 = vmatprep.subr.bf16.mxu0 %v377
        %819 = vmatpush1.bf16.msra.mxu0 %v376
        %820 = vmatprep.subr.bf16.mxu0 %v385
        %821 = vmatpush1.bf16.msra.mxu0 %v384
        %822 = vmatprep.subr.bf16.mxu0 %v393
        %823 = vmatpush1.bf16.msra.mxu0 %v392
        %824 = vmatprep.subr.bf16.mxu0 0
        %825 = vmatpush1.bf16.msra.mxu0 0
        %826 = vmatprep.subr.bf16.mxu0 0
        %827 = vmatpush1.bf16.msra.mxu0 0
        %828 = vmatprep.subr.bf16.mxu0 0
        %829 = vmatpush1.bf16.msra.mxu0 0
        %830 = vmatprep.subr.bf16.mxu0 0
        %831 = vmatpush1.bf16.msra.mxu0 0
        %832 = vmatprep.subr.bf16.mxu0 0
        %833 = vmatpush1.bf16.msra.mxu0 0
        %834 = vmatprep.subr.bf16.mxu0 0
        %835 = vmatpush1.bf16.msra.mxu0 0
        %836 = vmatprep.subr.bf16.mxu0 0
        %837 = vmatpush1.bf16.msra.mxu0 0
        %838 = vmatprep.subr.bf16.mxu0 0
        %839 = vmatpush1.bf16.msra.mxu0 0
        %840 = vmatprep.subr.bf16.mxu0 0
        %841 = vmatpush1.bf16.msra.mxu0 0
        %842 = vmatprep.subr.bf16.mxu0 0
        %843 = vmatpush1.bf16.msra.mxu0 0
        %844 = vmatprep.subr.bf16.mxu0 0
        %845 = vmatpush1.bf16.msra.mxu0 0
        %846 = vmatprep.subr.bf16.mxu0 0
        %847 = vmatpush1.bf16.msra.mxu0 0
        %848 = vmatprep.mubr.bf16.mxu0 0
        %849 = vmatmul.mubr.bf16.gmra.mrb[0].mxu0 %v628
        %v850 = vpop.f32.mrb[0].mxu0
        %v851 = vadd.f32 %v449, %v850
        %v852 = vpop.f32.mrb[0].mxu0
        %v853 = vadd.f32 %v449, %v852
        %v854 = vpop.f32.mrb[0].mxu0
        %v855 = vadd.f32 %v454, %v854
        %v856 = vpop.f32.mrb[0].mxu0
        %v857 = vadd.f32 %v454, %v856
        %858 = vmatprep.mubr.bf16.mxu0 0
        %859 = vmatmul.mubr.bf16.gmra.mrb[0].mxu0 %v631
        %v860 = vpop.f32.mrb[0].mxu0
        %v861 = vadd.f32 %v459, %v860
        %v862 = vpop.f32.mrb[0].mxu0
        %v863 = vadd.f32 %v459, %v862
        %v864 = vpop.f32.mrb[0].mxu0
        %v865 = vadd.f32 %v464, %v864
        %v866 = vpop.f32.mrb[0].mxu0
        %v867 = vadd.f32 %v464, %v866
        %868 = vmatprep.mubr.bf16.mxu0 0
        %869 = vmatmul.mubr.bf16.gmra.mrb[0].mxu0 %v634
        %v870 = vpop.f32.mrb[0].mxu0
        %v871 = vadd.f32 %v469, %v870
        %v872 = vpop.f32.mrb[0].mxu0
        %v873 = vadd.f32 %v469, %v872
        %v874 = vpop.f32.mrb[0].mxu0
        %v875 = vadd.f32 %v474, %v874
        %v876 = vpop.f32.mrb[0].mxu0
        %v877 = vadd.f32 %v474, %v876
        %878 = vmatprep.mubr.bf16.mxu0 0
        %879 = vmatmul.mubr.bf16.gmra.mrb[0].mxu0 %v637
        %v880 = vpop.f32.mrb[0].mxu0
        %v881 = vadd.f32 %v479, %v880
        %v882 = vpop.f32.mrb[0].mxu0
        %v883 = vadd.f32 %v479, %v882
        %v884 = vpop.f32.mrb[0].mxu0
        %v885 = vadd.f32 %v484, %v884
        %v886 = vpop.f32.mrb[0].mxu0
        %v887 = vadd.f32 %v484, %v886
        %888 = vmatprep.mubr.bf16.mxu0 0
        %889 = vmatmul.mubr.bf16.gmra.mrb[0].mxu0 %v640
        %v890 = vpop.f32.mrb[0].mxu0
        %v891 = vadd.f32 %v489, %v890
        %v892 = vpop.f32.mrb[0].mxu0
        %v893 = vadd.f32 %v489, %v892
        %v894 = vpop.f32.mrb[0].mxu0
        %v895 = vadd.f32 %v494, %v894
        %v896 = vpop.f32.mrb[0].mxu0
        %v897 = vadd.f32 %v494, %v896
        %898 = vmatprep.mubr.bf16.mxu0 0
        %899 = vmatmul.mubr.bf16.gmra.mrb[0].mxu0 %v643
        %v900 = vpop.f32.mrb[0].mxu0
        %v901 = vadd.f32 %v499, %v900
        %v902 = vpop.f32.mrb[0].mxu0
        %v903 = vadd.f32 %v499, %v902
        %v904 = vpop.f32.mrb[0].mxu0
        %v905 = vadd.f32 %v504, %v904
        %v906 = vpop.f32.mrb[0].mxu0
        %v907 = vadd.f32 %v504, %v906
        %908 = vmatprep.mubr.bf16.mxu0 0
        %909 = vmatmul.mubr.bf16.gmra.mrb[0].mxu0 %v646
        %v910 = vpop.f32.mrb[0].mxu0
        %v911 = vadd.f32 %v509, %v910
        %v912 = vpop.f32.mrb[0].mxu0
        %v913 = vadd.f32 %v509, %v912
        %v914 = vpop.f32.mrb[0].mxu0
        %v915 = vadd.f32 %v514, %v914
        %v916 = vpop.f32.mrb[0].mxu0
        %v917 = vadd.f32 %v514, %v916
        %918 = vmatprep.mubr.bf16.mxu0 0
        %919 = vmatmul.mubr.bf16.gmra.mrb[0].mxu0 %v649
        %v920 = vpop.f32.mrb[0].mxu0
        %v921 = vadd.f32 %v519, %v920
        %v922 = vpop.f32.mrb[0].mxu0
        %v923 = vadd.f32 %v519, %v922
        %v924 = vpop.f32.mrb[0].mxu0
        %v925 = vadd.f32 %v524, %v924
        %v926 = vpop.f32.mrb[0].mxu0
        %v927 = vadd.f32 %v524, %v926
        %928 = vmatprep.mubr.bf16.mxu0 0
        %929 = vmatmul.mubr.bf16.gmra.mrb[0].mxu0 %v652
        %v930 = vpop.f32.mrb[0].mxu0
        %v931 = vadd.f32 %v529, %v930
        %v932 = vpop.f32.mrb[0].mxu0
        %v933 = vadd.f32 %v529, %v932
        %v934 = vpop.f32.mrb[0].mxu0
        %v935 = vadd.f32 %v534, %v934
        %v936 = vpop.f32.mrb[0].mxu0
        %v937 = vadd.f32 %v534, %v936
        %938 = vmatprep.mubr.bf16.mxu0 0
        %939 = vmatmul.mubr.bf16.gmra.mrb[0].mxu0 %v655
        %v940 = vpop.f32.mrb[0].mxu0
        %v941 = vadd.f32 %v539, %v940
        %v942 = vpop.f32.mrb[0].mxu0
        %v943 = vadd.f32 %v539, %v942
        %v944 = vpop.f32.mrb[0].mxu0
        %v945 = vadd.f32 %v544, %v944
        %v946 = vpop.f32.mrb[0].mxu0
        %v947 = vadd.f32 %v544, %v946
        %948 = vmatprep.mubr.bf16.mxu0 0
        %949 = vmatmul.mubr.bf16.gmra.mrb[0].mxu0 %v658
        %v950 = vpop.f32.mrb[0].mxu0
        %v951 = vadd.f32 %v549, %v950
        %v952 = vpop.f32.mrb[0].mxu0
        %v953 = vadd.f32 %v549, %v952
        %v954 = vpop.f32.mrb[0].mxu0
        %v955 = vadd.f32 %v554, %v954
        %v956 = vpop.f32.mrb[0].mxu0
        %v957 = vadd.f32 %v554, %v956
        %958 = vmatprep.mubr.bf16.mxu0 0
        %959 = vmatmul.mubr.bf16.gmra.mrb[0].mxu0 %v661
        %v960 = vpop.f32.mrb[0].mxu0
        %v961 = vadd.f32 %v559, %v960
        %v962 = vpop.f32.mrb[0].mxu0
        %v963 = vadd.f32 %v559, %v962
        %v964 = vpop.f32.mrb[0].mxu0
        %v965 = vadd.f32 %v564, %v964
        %v966 = vpop.f32.mrb[0].mxu0
        %v967 = vadd.f32 %v564, %v966
        %968 = vdwg.mxu0
        %969 = vmatprep.subr.bf16.mxu0 %v371
        %970 = vmatpush1.bf16.msra.mxu0 %v370
        %971 = vmatprep.subr.bf16.mxu0 %v379
        %972 = vmatpush1.bf16.msra.mxu0 %v378
        %973 = vmatprep.subr.bf16.mxu0 %v387
        %974 = vmatpush1.bf16.msra.mxu0 %v386
        %975 = vmatprep.subr.bf16.mxu0 %v395
        %976 = vmatpush1.bf16.msra.mxu0 %v394
        %977 = vmatprep.subr.bf16.mxu0 0
        %978 = vmatpush1.bf16.msra.mxu0 0
        %979 = vmatprep.subr.bf16.mxu0 0
        %980 = vmatpush1.bf16.msra.mxu0 0
        %981 = vmatprep.subr.bf16.mxu0 0
        %982 = vmatpush1.bf16.msra.mxu0 0
        %983 = vmatprep.subr.bf16.mxu0 0
        %984 = vmatpush1.bf16.msra.mxu0 0
        %985 = vmatprep.subr.bf16.mxu0 0
        %986 = vmatpush1.bf16.msra.mxu0 0
        %987 = vmatprep.subr.bf16.mxu0 0
        %988 = vmatpush1.bf16.msra.mxu0 0
        %989 = vmatprep.subr.bf16.mxu0 0
        %990 = vmatpush1.bf16.msra.mxu0 0
        %991 = vmatprep.subr.bf16.mxu0 0
        %992 = vmatpush1.bf16.msra.mxu0 0
        %993 = vmatprep.subr.bf16.mxu0 0
        %994 = vmatpush1.bf16.msra.mxu0 0
        %995 = vmatprep.subr.bf16.mxu0 0
        %996 = vmatpush1.bf16.msra.mxu0 0
        %997 = vmatprep.subr.bf16.mxu0 0
        %998 = vmatpush1.bf16.msra.mxu0 0
        %999 = vmatprep.subr.bf16.mxu0 0
        %1000 = vmatpush1.bf16.msra.mxu0 0
        %1001 = vmatprep.mubr.bf16.mxu0 0
        %1002 = vmatmul.mubr.bf16.gmra.mrb[0].mxu0 %v628
        %v1003 = vpop.f32.mrb[0].mxu0
        %v1004 = vadd.f32 %v449, %v1003
        %v1005 = vpop.f32.mrb[0].mxu0
        %v1006 = vadd.f32 %v449, %v1005
        %v1007 = vpop.f32.mrb[0].mxu0
        %v1008 = vadd.f32 %v454, %v1007
        %v1009 = vpop.f32.mrb[0].mxu0
        %v1010 = vadd.f32 %v454, %v1009
        %1011 = vmatprep.mubr.bf16.mxu0 0
        %1012 = vmatmul.mubr.bf16.gmra.mrb[0].mxu0 %v631
        %v1013 = vpop.f32.mrb[0].mxu0
        %v1014 = vadd.f32 %v459, %v1013
        %v1015 = vpop.f32.mrb[0].mxu0
        %v1016 = vadd.f32 %v459, %v1015
        %v1017 = vpop.f32.mrb[0].mxu0
        %v1018 = vadd.f32 %v464, %v1017
        %v1019 = vpop.f32.mrb[0].mxu0
        %v1020 = vadd.f32 %v464, %v1019
        %1021 = vmatprep.mubr.bf16.mxu0 0
        %1022 = vmatmul.mubr.bf16.gmra.mrb[0].mxu0 %v634
        %v1023 = vpop.f32.mrb[0].mxu0
        %v1024 = vadd.f32 %v469, %v1023
        %v1025 = vpop.f32.mrb[0].mxu0
        %v1026 = vadd.f32 %v469, %v1025
        %v1027 = vpop.f32.mrb[0].mxu0
        %v1028 = vadd.f32 %v474, %v1027
        %v1029 = vpop.f32.mrb[0].mxu0
        %v1030 = vadd.f32 %v474, %v1029
        %1031 = vmatprep.mubr.bf16.mxu0 0
        %1032 = vmatmul.mubr.bf16.gmra.mrb[0].mxu0 %v637
        %v1033 = vpop.f32.mrb[0].mxu0
        %v1034 = vadd.f32 %v479, %v1033
        %v1035 = vpop.f32.mrb[0].mxu0
        %v1036 = vadd.f32 %v479, %v1035
        %v1037 = vpop.f32.mrb[0].mxu0
        %v1038 = vadd.f32 %v484, %v1037
        %v1039 = vpop.f32.mrb[0].mxu0
        %v1040 = vadd.f32 %v484, %v1039
        %1041 = vmatprep.mubr.bf16.mxu0 0
        %1042 = vmatmul.mubr.bf16.gmra.mrb[0].mxu0 %v640
        %v1043 = vpop.f32.mrb[0].mxu0
        %v1044 = vadd.f32 %v489, %v1043
        %v1045 = vpop.f32.mrb[0].mxu0
        %v1046 = vadd.f32 %v489, %v1045
        %v1047 = vpop.f32.mrb[0].mxu0
        %v1048 = vadd.f32 %v494, %v1047
        %v1049 = vpop.f32.mrb[0].mxu0
        %v1050 = vadd.f32 %v494, %v1049
        %1051 = vmatprep.mubr.bf16.mxu0 0
        %1052 = vmatmul.mubr.bf16.gmra.mrb[0].mxu0 %v643
        %v1053 = vpop.f32.mrb[0].mxu0
        %v1054 = vadd.f32 %v499, %v1053
        %v1055 = vpop.f32.mrb[0].mxu0
        %v1056 = vadd.f32 %v499, %v1055
        %v1057 = vpop.f32.mrb[0].mxu0
        %v1058 = vadd.f32 %v504, %v1057
        %v1059 = vpop.f32.mrb[0].mxu0
        %v1060 = vadd.f32 %v504, %v1059
        %1061 = vmatprep.mubr.bf16.mxu0 0
        %1062 = vmatmul.mubr.bf16.gmra.mrb[0].mxu0 %v646
        %v1063 = vpop.f32.mrb[0].mxu0
        %v1064 = vadd.f32 %v509, %v1063
        %v1065 = vpop.f32.mrb[0].mxu0
        %v1066 = vadd.f32 %v509, %v1065
        %v1067 = vpop.f32.mrb[0].mxu0
        %v1068 = vadd.f32 %v514, %v1067
        %v1069 = vpop.f32.mrb[0].mxu0
        %v1070 = vadd.f32 %v514, %v1069
        %1071 = vmatprep.mubr.bf16.mxu0 0
        %1072 = vmatmul.mubr.bf16.gmra.mrb[0].mxu0 %v649
        %v1073 = vpop.f32.mrb[0].mxu0
        %v1074 = vadd.f32 %v519, %v1073
        %v1075 = vpop.f32.mrb[0].mxu0
        %v1076 = vadd.f32 %v519, %v1075
        %v1077 = vpop.f32.mrb[0].mxu0
        %v1078 = vadd.f32 %v524, %v1077
        %v1079 = vpop.f32.mrb[0].mxu0
        %v1080 = vadd.f32 %v524, %v1079
        %1081 = vmatprep.mubr.bf16.mxu0 0
        %1082 = vmatmul.mubr.bf16.gmra.mrb[0].mxu0 %v652
        %v1083 = vpop.f32.mrb[0].mxu0
        %v1084 = vadd.f32 %v529, %v1083
        %v1085 = vpop.f32.mrb[0].mxu0
        %v1086 = vadd.f32 %v529, %v1085
        %v1087 = vpop.f32.mrb[0].mxu0
        %v1088 = vadd.f32 %v534, %v1087
        %v1089 = vpop.f32.mrb[0].mxu0
        %v1090 = vadd.f32 %v534, %v1089
        %1091 = vmatprep.mubr.bf16.mxu0 0
        %1092 = vmatmul.mubr.bf16.gmra.mrb[0].mxu0 %v655
        %v1093 = vpop.f32.mrb[0].mxu0
        %v1094 = vadd.f32 %v539, %v1093
        %v1095 = vpop.f32.mrb[0].mxu0
        %v1096 = vadd.f32 %v539, %v1095
        %v1097 = vpop.f32.mrb[0].mxu0
        %v1098 = vadd.f32 %v544, %v1097
        %v1099 = vpop.f32.mrb[0].mxu0
        %v1100 = vadd.f32 %v544, %v1099
        %1101 = vmatprep.mubr.bf16.mxu0 0
        %1102 = vmatmul.mubr.bf16.gmra.mrb[0].mxu0 %v658
        %v1103 = vpop.f32.mrb[0].mxu0
        %v1104 = vadd.f32 %v549, %v1103
        %v1105 = vpop.f32.mrb[0].mxu0
        %v1106 = vadd.f32 %v549, %v1105
        %v1107 = vpop.f32.mrb[0].mxu0
        %v1108 = vadd.f32 %v554, %v1107
        %v1109 = vpop.f32.mrb[0].mxu0
        %v1110 = vadd.f32 %v554, %v1109
        %1111 = vmatprep.mubr.bf16.mxu0 0
        %1112 = vmatmul.mubr.bf16.gmra.mrb[0].mxu0 %v661
        %v1113 = vpop.f32.mrb[0].mxu0
        %v1114 = vadd.f32 %v559, %v1113
        %v1115 = vpop.f32.mrb[0].mxu0
        %v1116 = vadd.f32 %v559, %v1115
        %v1117 = vpop.f32.mrb[0].mxu0
        %v1118 = vadd.f32 %v564, %v1117
        %v1119 = vpop.f32.mrb[0].mxu0
        %v1120 = vadd.f32 %v564, %v1119
        %1121 = vdwg.mxu0
        %1122 = vmatprep.subr.bf16.mxu0 %v373
        %1123 = vmatpush1.bf16.msra.mxu0 %v372
        %1124 = vmatprep.subr.bf16.mxu0 %v381
        %1125 = vmatpush1.bf16.msra.mxu0 %v380
        %1126 = vmatprep.subr.bf16.mxu0 %v389
        %1127 = vmatpush1.bf16.msra.mxu0 %v388
        %1128 = vmatprep.subr.bf16.mxu0 %v397
        %1129 = vmatpush1.bf16.msra.mxu0 %v396
        %1130 = vmatprep.subr.bf16.mxu0 0
        %1131 = vmatpush1.bf16.msra.mxu0 0
        %1132 = vmatprep.subr.bf16.mxu0 0
        %1133 = vmatpush1.bf16.msra.mxu0 0
        %1134 = vmatprep.subr.bf16.mxu0 0
        %1135 = vmatpush1.bf16.msra.mxu0 0
        %1136 = vmatprep.subr.bf16.mxu0 0
        %1137 = vmatpush1.bf16.msra.mxu0 0
        %1138 = vmatprep.subr.bf16.mxu0 0
        %1139 = vmatpush1.bf16.msra.mxu0 0
        %1140 = vmatprep.subr.bf16.mxu0 0
        %1141 = vmatpush1.bf16.msra.mxu0 0
        %1142 = vmatprep.subr.bf16.mxu0 0
        %1143 = vmatpush1.bf16.msra.mxu0 0
        %1144 = vmatprep.subr.bf16.mxu0 0
        %1145 = vmatpush1.bf16.msra.mxu0 0
        %1146 = vmatprep.subr.bf16.mxu0 0
        %1147 = vmatpush1.bf16.msra.mxu0 0
        %1148 = vmatprep.subr.bf16.mxu0 0
        %1149 = vmatpush1.bf16.msra.mxu0 0
        %1150 = vmatprep.subr.bf16.mxu0 0
        %1151 = vmatpush1.bf16.msra.mxu0 0
        %1152 = vmatprep.subr.bf16.mxu0 0
        %1153 = vmatpush1.bf16.msra.mxu0 0
        %1154 = vmatprep.mubr.bf16.mxu0 0
        %1155 = vmatmul.mubr.bf16.gmra.mrb[0].mxu0 %v628
        %v1156 = vpop.f32.mrb[0].mxu0
        %v1157 = vadd.f32 %v449, %v1156
        %v1158 = vpop.f32.mrb[0].mxu0
        %v1159 = vadd.f32 %v449, %v1158
        %v1160 = vpop.f32.mrb[0].mxu0
        %v1161 = vadd.f32 %v454, %v1160
        %v1162 = vpop.f32.mrb[0].mxu0
        %v1163 = vadd.f32 %v454, %v1162
        %1164 = vmatprep.mubr.bf16.mxu0 0
        %1165 = vmatmul.mubr.bf16.gmra.mrb[0].mxu0 %v631
        %v1166 = vpop.f32.mrb[0].mxu0
        %v1167 = vadd.f32 %v459, %v1166
        %v1168 = vpop.f32.mrb[0].mxu0
        %v1169 = vadd.f32 %v459, %v1168
        %v1170 = vpop.f32.mrb[0].mxu0
        %v1171 = vadd.f32 %v464, %v1170
        %v1172 = vpop.f32.mrb[0].mxu0
        %v1173 = vadd.f32 %v464, %v1172
        %1174 = vmatprep.mubr.bf16.mxu0 0
        %1175 = vmatmul.mubr.bf16.gmra.mrb[0].mxu0 %v634
        %v1176 = vpop.f32.mrb[0].mxu0
        %v1177 = vadd.f32 %v469, %v1176
        %v1178 = vpop.f32.mrb[0].mxu0
        %v1179 = vadd.f32 %v469, %v1178
        %v1180 = vpop.f32.mrb[0].mxu0
        %v1181 = vadd.f32 %v474, %v1180
        %v1182 = vpop.f32.mrb[0].mxu0
        %v1183 = vadd.f32 %v474, %v1182
        %1184 = vmatprep.mubr.bf16.mxu0 0
        %1185 = vmatmul.mubr.bf16.gmra.mrb[0].mxu0 %v637
        %v1186 = vpop.f32.mrb[0].mxu0
        %v1187 = vadd.f32 %v479, %v1186
        %v1188 = vpop.f32.mrb[0].mxu0
        %v1189 = vadd.f32 %v479, %v1188
        %v1190 = vpop.f32.mrb[0].mxu0
        %v1191 = vadd.f32 %v484, %v1190
        %v1192 = vpop.f32.mrb[0].mxu0
        %v1193 = vadd.f32 %v484, %v1192
        %1194 = vmatprep.mubr.bf16.mxu0 0
        %1195 = vmatmul.mubr.bf16.gmra.mrb[0].mxu0 %v640
        %v1196 = vpop.f32.mrb[0].mxu0
        %v1197 = vadd.f32 %v489, %v1196
        %v1198 = vpop.f32.mrb[0].mxu0
        %v1199 = vadd.f32 %v489, %v1198
        %v1200 = vpop.f32.mrb[0].mxu0
        %v1201 = vadd.f32 %v494, %v1200
        %v1202 = vpop.f32.mrb[0].mxu0
        %v1203 = vadd.f32 %v494, %v1202
        %1204 = vmatprep.mubr.bf16.mxu0 0
        %1205 = vmatmul.mubr.bf16.gmra.mrb[0].mxu0 %v643
        %v1206 = vpop.f32.mrb[0].mxu0
        %v1207 = vadd.f32 %v499, %v1206
        %v1208 = vpop.f32.mrb[0].mxu0
        %v1209 = vadd.f32 %v499, %v1208
        %v1210 = vpop.f32.mrb[0].mxu0
        %v1211 = vadd.f32 %v504, %v1210
        %v1212 = vpop.f32.mrb[0].mxu0
        %v1213 = vadd.f32 %v504, %v1212
        %1214 = vmatprep.mubr.bf16.mxu0 0
        %1215 = vmatmul.mubr.bf16.gmra.mrb[0].mxu0 %v646
        %v1216 = vpop.f32.mrb[0].mxu0
        %v1217 = vadd.f32 %v509, %v1216
        %v1218 = vpop.f32.mrb[0].mxu0
        %v1219 = vadd.f32 %v509, %v1218
        %v1220 = vpop.f32.mrb[0].mxu0
        %v1221 = vadd.f32 %v514, %v1220
        %v1222 = vpop.f32.mrb[0].mxu0
        %v1223 = vadd.f32 %v514, %v1222
        %1224 = vmatprep.mubr.bf16.mxu0 0
        %1225 = vmatmul.mubr.bf16.gmra.mrb[0].mxu0 %v649
        %v1226 = vpop.f32.mrb[0].mxu0
        %v1227 = vadd.f32 %v519, %v1226
        %v1228 = vpop.f32.mrb[0].mxu0
        %v1229 = vadd.f32 %v519, %v1228
        %v1230 = vpop.f32.mrb[0].mxu0
        %v1231 = vadd.f32 %v524, %v1230
        %v1232 = vpop.f32.mrb[0].mxu0
        %v1233 = vadd.f32 %v524, %v1232
        %1234 = vmatprep.mubr.bf16.mxu0 0
        %1235 = vmatmul.mubr.bf16.gmra.mrb[0].mxu0 %v652
        %v1236 = vpop.f32.mrb[0].mxu0
        %v1237 = vadd.f32 %v529, %v1236
        %v1238 = vpop.f32.mrb[0].mxu0
        %v1239 = vadd.f32 %v529, %v1238
        %v1240 = vpop.f32.mrb[0].mxu0
        %v1241 = vadd.f32 %v534, %v1240
        %v1242 = vpop.f32.mrb[0].mxu0
        %v1243 = vadd.f32 %v534, %v1242
        %1244 = vmatprep.mubr.bf16.mxu0 0
        %1245 = vmatmul.mubr.bf16.gmra.mrb[0].mxu0 %v655
        %v1246 = vpop.f32.mrb[0].mxu0
        %v1247 = vadd.f32 %v539, %v1246
        %v1248 = vpop.f32.mrb[0].mxu0
        %v1249 = vadd.f32 %v539, %v1248
        %v1250 = vpop.f32.mrb[0].mxu0
        %v1251 = vadd.f32 %v544, %v1250
        %v1252 = vpop.f32.mrb[0].mxu0
        %v1253 = vadd.f32 %v544, %v1252
        %1254 = vmatprep.mubr.bf16.mxu0 0
        %1255 = vmatmul.mubr.bf16.gmra.mrb[0].mxu0 %v658
        %v1256 = vpop.f32.mrb[0].mxu0
        %v1257 = vadd.f32 %v549, %v1256
        %v1258 = vpop.f32.mrb[0].mxu0
        %v1259 = vadd.f32 %v549, %v1258
        %v1260 = vpop.f32.mrb[0].mxu0
        %v1261 = vadd.f32 %v554, %v1260
        %v1262 = vpop.f32.mrb[0].mxu0
        %v1263 = vadd.f32 %v554, %v1262
        %1264 = vmatprep.mubr.bf16.mxu0 0
        %1265 = vmatmul.mubr.bf16.gmra.mrb[0].mxu0 %v661
        %v1266 = vpop.f32.mrb[0].mxu0
        %v1267 = vadd.f32 %v559, %v1266
        %v1268 = vpop.f32.mrb[0].mxu0
        %v1269 = vadd.f32 %v559, %v1268
        %v1270 = vpop.f32.mrb[0].mxu0
        %v1271 = vadd.f32 %v564, %v1270
        %v1272 = vpop.f32.mrb[0].mxu0
        %v1273 = vadd.f32 %v564, %v1272
        %1274 = vdwg.mxu0
        %v1275 = vpack.c.bf16 %v702, %v698
        %v1276 = vpack.c.bf16 %v704, %v700
        %v1277 = vpack.c.bf16 %v855, %v851
        %v1278 = vpack.c.bf16 %v857, %v853
        %v1279 = vpack.c.bf16 %v1008, %v1004
        %v1280 = vpack.c.bf16 %v1010, %v1006
        %v1281 = vpack.c.bf16 %v1161, %v1157
        %v1282 = vpack.c.bf16 %v1163, %v1159
        %v1283 = vpack.c.bf16 %v712, %v708
        %v1284 = vpack.c.bf16 %v714, %v710
        %v1285 = vpack.c.bf16 %v865, %v861
        %v1286 = vpack.c.bf16 %v867, %v863
        %v1287 = vpack.c.bf16 %v1018, %v1014
        %v1288 = vpack.c.bf16 %v1020, %v1016
        %v1289 = vpack.c.bf16 %v1171, %v1167
        %v1290 = vpack.c.bf16 %v1173, %v1169
        %v1291 = vpack.c.bf16 %v722, %v718
        %v1292 = vpack.c.bf16 %v724, %v720
        %v1293 = vpack.c.bf16 %v875, %v871
        %v1294 = vpack.c.bf16 %v877, %v873
        %v1295 = vpack.c.bf16 %v1028, %v1024
        %v1296 = vpack.c.bf16 %v1030, %v1026
        %v1297 = vpack.c.bf16 %v1181, %v1177
        %v1298 = vpack.c.bf16 %v1183, %v1179
        %v1299 = vpack.c.bf16 %v732, %v728
        %v1300 = vpack.c.bf16 %v734, %v730
        %v1301 = vpack.c.bf16 %v885, %v881
        %v1302 = vpack.c.bf16 %v887, %v883
        %v1303 = vpack.c.bf16 %v1038, %v1034
        %v1304 = vpack.c.bf16 %v1040, %v1036
        %v1305 = vpack.c.bf16 %v1191, %v1187
        %v1306 = vpack.c.bf16 %v1193, %v1189
        %v1307 = vpack.c.bf16 %v742, %v738
        %v1308 = vpack.c.bf16 %v744, %v740
        %v1309 = vpack.c.bf16 %v895, %v891
        %v1310 = vpack.c.bf16 %v897, %v893
        %v1311 = vpack.c.bf16 %v1048, %v1044
        %v1312 = vpack.c.bf16 %v1050, %v1046
        %v1313 = vpack.c.bf16 %v1201, %v1197
        %v1314 = vpack.c.bf16 %v1203, %v1199
        %v1315 = vpack.c.bf16 %v752, %v748
        %v1316 = vpack.c.bf16 %v754, %v750
        %v1317 = vpack.c.bf16 %v905, %v901
        %v1318 = vpack.c.bf16 %v907, %v903
        %v1319 = vpack.c.bf16 %v1058, %v1054
        %v1320 = vpack.c.bf16 %v1060, %v1056
        %v1321 = vpack.c.bf16 %v1211, %v1207
        %v1322 = vpack.c.bf16 %v1213, %v1209
        %v1323 = vpack.c.bf16 %v762, %v758
        %v1324 = vpack.c.bf16 %v764, %v760
        %v1325 = vpack.c.bf16 %v915, %v911
        %v1326 = vpack.c.bf16 %v917, %v913
        %v1327 = vpack.c.bf16 %v1068, %v1064
        %v1328 = vpack.c.bf16 %v1070, %v1066
        %v1329 = vpack.c.bf16 %v1221, %v1217
        %v1330 = vpack.c.bf16 %v1223, %v1219
        %v1331 = vpack.c.bf16 %v772, %v768
        %v1332 = vpack.c.bf16 %v774, %v770
        %v1333 = vpack.c.bf16 %v925, %v921
        %v1334 = vpack.c.bf16 %v927, %v923
        %v1335 = vpack.c.bf16 %v1078, %v1074
        %v1336 = vpack.c.bf16 %v1080, %v1076
        %v1337 = vpack.c.bf16 %v1231, %v1227
        %v1338 = vpack.c.bf16 %v1233, %v1229
        %v1339 = vpack.c.bf16 %v782, %v778
        %v1340 = vpack.c.bf16 %v784, %v780
        %v1341 = vpack.c.bf16 %v935, %v931
        %v1342 = vpack.c.bf16 %v937, %v933
        %v1343 = vpack.c.bf16 %v1088, %v1084
        %v1344 = vpack.c.bf16 %v1090, %v1086
        %v1345 = vpack.c.bf16 %v1241, %v1237
        %v1346 = vpack.c.bf16 %v1243, %v1239
        %v1347 = vpack.c.bf16 %v792, %v788
        %v1348 = vpack.c.bf16 %v794, %v790
        %v1349 = vpack.c.bf16 %v945, %v941
        %v1350 = vpack.c.bf16 %v947, %v943
        %v1351 = vpack.c.bf16 %v1098, %v1094
        %v1352 = vpack.c.bf16 %v1100, %v1096
        %v1353 = vpack.c.bf16 %v1251, %v1247
        %v1354 = vpack.c.bf16 %v1253, %v1249
        %v1355 = vpack.c.bf16 %v802, %v798
        %v1356 = vpack.c.bf16 %v804, %v800
        %v1357 = vpack.c.bf16 %v955, %v951
        %v1358 = vpack.c.bf16 %v957, %v953
        %v1359 = vpack.c.bf16 %v1108, %v1104
        %v1360 = vpack.c.bf16 %v1110, %v1106
        %v1361 = vpack.c.bf16 %v1261, %v1257
        %v1362 = vpack.c.bf16 %v1263, %v1259
        %v1363 = vpack.c.bf16 %v812, %v808
        %v1364 = vpack.c.bf16 %v814, %v810
        %v1365 = vpack.c.bf16 %v965, %v961
        %v1366 = vpack.c.bf16 %v967, %v963
        %v1367 = vpack.c.bf16 %v1118, %v1114
        %v1368 = vpack.c.bf16 %v1120, %v1116
        %v1369 = vpack.c.bf16 %v1271, %v1267
        %v1370 = vpack.c.bf16 %v1273, %v1269
        %1371 = vst [vmem:[#allocation2] sm:$0xff] %v1275
        %1372 = vst [vmem:[#allocation2 + $0x8] sm:$0xff] %v1276
        %1373 = vst [vmem:[#allocation2 + $0x10] sm:$0xff] %v1277
        %1374 = vst [vmem:[#allocation2 + $0x18] sm:$0xff] %v1278
        %1375 = vst [vmem:[#allocation2 + $0x20] sm:$0xff] %v1279
        %1376 = vst [vmem:[#allocation2 + $0x28] sm:$0xff] %v1280
        %1377 = vst [vmem:[#allocation2 + $0x30] sm:$0xff] %v1281
        %1378 = vst [vmem:[#allocation2 + $0x38] sm:$0xff] %v1282
        %1379 = vst [vmem:[#allocation2 + $0x40] sm:$0xff] %v1283
        %1380 = vst [vmem:[#allocation2 + $0x48] sm:$0xff] %v1284
        %1381 = vst [vmem:[#allocation2 + $0x50] sm:$0xff] %v1285
        %1382 = vst [vmem:[#allocation2 + $0x58] sm:$0xff] %v1286
        %1383 = vst [vmem:[#allocation2 + $0x60] sm:$0xff] %v1287
        %1384 = vst [vmem:[#allocation2 + $0x68] sm:$0xff] %v1288
        %1385 = vst [vmem:[#allocation2 + $0x70] sm:$0xff] %v1289
        %1386 = vst [vmem:[#allocation2 + $0x78] sm:$0xff] %v1290
        %1387 = vst [vmem:[#allocation2 + $0x80] sm:$0xff] %v1291
        %1388 = vst [vmem:[#allocation2 + $0x88] sm:$0xff] %v1292
        %1389 = vst [vmem:[#allocation2 + $0x90] sm:$0xff] %v1293
        %1390 = vst [vmem:[#allocation2 + $0x98] sm:$0xff] %v1294
        %1391 = vst [vmem:[#allocation2 + $0xa0] sm:$0xff] %v1295
        %1392 = vst [vmem:[#allocation2 + $0xa8] sm:$0xff] %v1296
        %1393 = vst [vmem:[#allocation2 + $0xb0] sm:$0xff] %v1297
        %1394 = vst [vmem:[#allocation2 + $0xb8] sm:$0xff] %v1298
        %1395 = vst [vmem:[#allocation2 + $0xc0] sm:$0xff] %v1299
        %1396 = vst [vmem:[#allocation2 + $0xc8] sm:$0xff] %v1300
        %1397 = vst [vmem:[#allocation2 + $0xd0] sm:$0xff] %v1301
        %1398 = vst [vmem:[#allocation2 + $0xd8] sm:$0xff] %v1302
        %1399 = vst [vmem:[#allocation2 + $0xe0] sm:$0xff] %v1303
        %1400 = vst [vmem:[#allocation2 + $0xe8] sm:$0xff] %v1304
        %1401 = vst [vmem:[#allocation2 + $0xf0] sm:$0xff] %v1305
        %1402 = vst [vmem:[#allocation2 + $0xf8] sm:$0xff] %v1306
        %1403 = vst [vmem:[#allocation2 + $0x100] sm:$0xff] %v1307
        %1404 = vst [vmem:[#allocation2 + $0x108] sm:$0xff] %v1308
        %1405 = vst [vmem:[#allocation2 + $0x110] sm:$0xff] %v1309
        %1406 = vst [vmem:[#allocation2 + $0x118] sm:$0xff] %v1310
        %1407 = vst [vmem:[#allocation2 + $0x120] sm:$0xff] %v1311
        %1408 = vst [vmem:[#allocation2 + $0x128] sm:$0xff] %v1312
        %1409 = vst [vmem:[#allocation2 + $0x130] sm:$0xff] %v1313
        %1410 = vst [vmem:[#allocation2 + $0x138] sm:$0xff] %v1314
        %1411 = vst [vmem:[#allocation2 + $0x140] sm:$0xff] %v1315
        %1412 = vst [vmem:[#allocation2 + $0x148] sm:$0xff] %v1316
        %1413 = vst [vmem:[#allocation2 + $0x150] sm:$0xff] %v1317
        %1414 = vst [vmem:[#allocation2 + $0x158] sm:$0xff] %v1318
        %1415 = vst [vmem:[#allocation2 + $0x160] sm:$0xff] %v1319
        %1416 = vst [vmem:[#allocation2 + $0x168] sm:$0xff] %v1320
        %1417 = vst [vmem:[#allocation2 + $0x170] sm:$0xff] %v1321
        %1418 = vst [vmem:[#allocation2 + $0x178] sm:$0xff] %v1322
        %1419 = vst [vmem:[#allocation2 + $0x180] sm:$0xff] %v1323
        %1420 = vst [vmem:[#allocation2 + $0x188] sm:$0xff] %v1324
        %1421 = vst [vmem:[#allocation2 + $0x190] sm:$0xff] %v1325
        %1422 = vst [vmem:[#allocation2 + $0x198] sm:$0xff] %v1326
        %1423 = vst [vmem:[#allocation2 + $0x1a0] sm:$0xff] %v1327
        %1424 = vst [vmem:[#allocation2 + $0x1a8] sm:$0xff] %v1328
        %1425 = vst [vmem:[#allocation2 + $0x1b0] sm:$0xff] %v1329
        %1426 = vst [vmem:[#allocation2 + $0x1b8] sm:$0xff] %v1330
        %1427 = vst [vmem:[#allocation2 + $0x1c0] sm:$0xff] %v1331
        %1428 = vst [vmem:[#allocation2 + $0x1c8] sm:$0xff] %v1332
        %1429 = vst [vmem:[#allocation2 + $0x1d0] sm:$0xff] %v1333
        %1430 = vst [vmem:[#allocation2 + $0x1d8] sm:$0xff] %v1334
        %1431 = vst [vmem:[#allocation2 + $0x1e0] sm:$0xff] %v1335
        %1432 = vst [vmem:[#allocation2 + $0x1e8] sm:$0xff] %v1336
        %1433 = vst [vmem:[#allocation2 + $0x1f0] sm:$0xff] %v1337
        %1434 = vst [vmem:[#allocation2 + $0x1f8] sm:$0xff] %v1338
        %1435 = vst [vmem:[#allocation2 + $0x200] sm:$0xff] %v1339
        %1436 = vst [vmem:[#allocation2 + $0x208] sm:$0xff] %v1340
        %1437 = vst [vmem:[#allocation2 + $0x210] sm:$0xff] %v1341
        %1438 = vst [vmem:[#allocation2 + $0x218] sm:$0xff] %v1342
        %1439 = vst [vmem:[#allocation2 + $0x220] sm:$0xff] %v1343
        %1440 = vst [vmem:[#allocation2 + $0x228] sm:$0xff] %v1344
        %1441 = vst [vmem:[#allocation2 + $0x230] sm:$0xff] %v1345
        %1442 = vst [vmem:[#allocation2 + $0x238] sm:$0xff] %v1346
        %1443 = vst [vmem:[#allocation2 + $0x240] sm:$0xff] %v1347
        %1444 = vst [vmem:[#allocation2 + $0x248] sm:$0xff] %v1348
        %1445 = vst [vmem:[#allocation2 + $0x250] sm:$0xff] %v1349
        %1446 = vst [vmem:[#allocation2 + $0x258] sm:$0xff] %v1350
        %1447 = vst [vmem:[#allocation2 + $0x260] sm:$0xff] %v1351
        %1448 = vst [vmem:[#allocation2 + $0x268] sm:$0xff] %v1352
        %1449 = vst [vmem:[#allocation2 + $0x270] sm:$0xff] %v1353
        %1450 = vst [vmem:[#allocation2 + $0x278] sm:$0xff] %v1354
        %1451 = vst [vmem:[#allocation2 + $0x280] sm:$0xff] %v1355
        %1452 = vst [vmem:[#allocation2 + $0x288] sm:$0xff] %v1356
        %1453 = vst [vmem:[#allocation2 + $0x290] sm:$0xff] %v1357
        %1454 = vst [vmem:[#allocation2 + $0x298] sm:$0xff] %v1358
        %1455 = vst [vmem:[#allocation2 + $0x2a0] sm:$0xff] %v1359
        %1456 = vst [vmem:[#allocation2 + $0x2a8] sm:$0xff] %v1360
        %1457 = vst [vmem:[#allocation2 + $0x2b0] sm:$0xff] %v1361
        %1458 = vst [vmem:[#allocation2 + $0x2b8] sm:$0xff] %v1362
        %1459 = vst [vmem:[#allocation2 + $0x2c0] sm:$0xff] %v1363
        %1460 = vst [vmem:[#allocation2 + $0x2c8] sm:$0xff] %v1364
        %1461 = vst [vmem:[#allocation2 + $0x2d0] sm:$0xff] %v1365
        %1462 = vst [vmem:[#allocation2 + $0x2d8] sm:$0xff] %v1366
        %1463 = vst [vmem:[#allocation2 + $0x2e0] sm:$0xff] %v1367
        %1464 = vst [vmem:[#allocation2 + $0x2e8] sm:$0xff] %v1368
        %1465 = vst [vmem:[#allocation2 + $0x2f0] sm:$0xff] %v1369
        %1466 = vst [vmem:[#allocation2 + $0x2f8] sm:$0xff] %v1370
        loop: start=0, step=1, limit=2
        $region61: #{tpu_custom_call.1} parent=39 // loop_pre_header
          _
        $region62: #{tpu_custom_call.1} parent=39 // loop_header
          %s1468 = sphi 0, %s1472
          %p1469 = scmp.ge.s32.totalorder %s1468, 2
        $region63: #{tpu_custom_call.1} parent=39 // loop_header_branch
          %1471 = sbr.rel (%p1469) target = $region67
        $region64: #{tpu_custom_call.1} parent=39 // loop_body
          %s1473 = smul.u32 %s1468, 512
          %s1474 = sshra.s32 %s1473, 7
          %s1475 = sand.u32 %s1473, 127
          %s1476 = smul.addr %s1474, 8
          %s1477 = scalar_lea.vmem %s258, %s1476 [#allocation3]
          %v1478 = vld [vmem:[%s1477] sm:$0xff]
          %v1479 = vld [vmem:[%s1477 + $0x8] sm:$0xff]
          %v1480 = vld [vmem:[%s1477 + $0x10] sm:$0xff]
          %v1481 = vld [vmem:[%s1477 + $0x18] sm:$0xff]
          %v1482 = vld [vmem:[%s1477 + $0x40] sm:$0xff]
          %v1483 = vld [vmem:[%s1477 + $0x48] sm:$0xff]
          %v1484 = vld [vmem:[%s1477 + $0x50] sm:$0xff]
          %v1485 = vld [vmem:[%s1477 + $0x58] sm:$0xff]
          %v1486 = vld [vmem:[%s1477 + $0x80] sm:$0xff]
          %v1487 = vld [vmem:[%s1477 + $0x88] sm:$0xff]
          %v1488 = vld [vmem:[%s1477 + $0x90] sm:$0xff]
          %v1489 = vld [vmem:[%s1477 + $0x98] sm:$0xff]
          %v1490 = vld [vmem:[%s1477 + $0xc0] sm:$0xff]
          %v1491 = vld [vmem:[%s1477 + $0xc8] sm:$0xff]
          %v1492 = vld [vmem:[%s1477 + $0xd0] sm:$0xff]
          %v1493 = vld [vmem:[%s1477 + $0xd8] sm:$0xff]
          %v1494 = vld [vmem:[%s1477 + $0x100] sm:$0xff]
          %v1495 = vld [vmem:[%s1477 + $0x108] sm:$0xff]
          %v1496 = vld [vmem:[%s1477 + $0x110] sm:$0xff]
          %v1497 = vld [vmem:[%s1477 + $0x118] sm:$0xff]
          %v1498 = vld [vmem:[%s1477 + $0x140] sm:$0xff]
          %v1499 = vld [vmem:[%s1477 + $0x148] sm:$0xff]
          %v1500 = vld [vmem:[%s1477 + $0x150] sm:$0xff]
          %v1501 = vld [vmem:[%s1477 + $0x158] sm:$0xff]
          %v1502 = vld [vmem:[%s1477 + $0x180] sm:$0xff]
          %v1503 = vld [vmem:[%s1477 + $0x188] sm:$0xff]
          %v1504 = vld [vmem:[%s1477 + $0x190] sm:$0xff]
          %v1505 = vld [vmem:[%s1477 + $0x198] sm:$0xff]
          %v1506 = vld [vmem:[%s1477 + $0x1c0] sm:$0xff]
          %v1507 = vld [vmem:[%s1477 + $0x1c8] sm:$0xff]
          %v1508 = vld [vmem:[%s1477 + $0x1d0] sm:$0xff]
          %v1509 = vld [vmem:[%s1477 + $0x1d8] sm:$0xff]
          %v1510 = vld [vmem:[#allocation11] sm:$0xff]
          %v1511 = vld [vmem:[#allocation11 + $0x8] sm:$0xff]
          %v1512 = vld [vmem:[#allocation11 + $0x10] sm:$0xff]
          %v1513 = vld [vmem:[#allocation11 + $0x18] sm:$0xff]
          %v1514 = vld [vmem:[#allocation11 + $0x20] sm:$0xff]
          %v1515 = vld [vmem:[#allocation11 + $0x28] sm:$0xff]
          %v1516 = vld [vmem:[#allocation11 + $0x30] sm:$0xff]
          %v1517 = vld [vmem:[#allocation11 + $0x38] sm:$0xff]
          %1519 = vset.pattern.permute.xlu0 0
          %1520 = vperm.xlu0 %1519, %v1510
          %v1521 = vpop.permute.xlu0 %1520
          %1524 = vset.pattern.permute.xlu0 0
          %1525 = vperm.xlu0 %1524, %v1511
          %v1526 = vpop.permute.xlu0 %1525
          %1529 = vset.pattern.permute.xlu0 0
          %1530 = vperm.xlu0 %1529, %v1512
          %v1531 = vpop.permute.xlu0 %1530
          %1534 = vset.pattern.permute.xlu0 0
          %1535 = vperm.xlu0 %1534, %v1513
          %v1536 = vpop.permute.xlu0 %1535
          %1539 = vset.pattern.permute.xlu0 0
          %1540 = vperm.xlu0 %1539, %v1514
          %v1541 = vpop.permute.xlu0 %1540
          %1544 = vset.pattern.permute.xlu0 0
          %1545 = vperm.xlu0 %1544, %v1515
          %v1546 = vpop.permute.xlu0 %1545
          %1549 = vset.pattern.permute.xlu0 0
          %1550 = vperm.xlu0 %1549, %v1516
          %v1551 = vpop.permute.xlu0 %1550
          %1554 = vset.pattern.permute.xlu0 0
          %1555 = vperm.xlu0 %1554, %v1517
          %v1556 = vpop.permute.xlu0 %1555
          %v1558 = vadd.f32 %v1478, %v1521
          %v1559 = vadd.f32 %v1479, %v1521
          %v1560 = vadd.f32 %v1480, %v1521
          %v1561 = vadd.f32 %v1481, %v1521
          %v1562 = vadd.f32 %v1482, %v1526
          %v1563 = vadd.f32 %v1483, %v1526
          %v1564 = vadd.f32 %v1484, %v1526
          %v1565 = vadd.f32 %v1485, %v1526
          %v1566 = vadd.f32 %v1486, %v1531
          %v1567 = vadd.f32 %v1487, %v1531
          %v1568 = vadd.f32 %v1488, %v1531
          %v1569 = vadd.f32 %v1489, %v1531
          %v1570 = vadd.f32 %v1490, %v1536
          %v1571 = vadd.f32 %v1491, %v1536
          %v1572 = vadd.f32 %v1492, %v1536
          %v1573 = vadd.f32 %v1493, %v1536
          %v1574 = vadd.f32 %v1494, %v1541
          %v1575 = vadd.f32 %v1495, %v1541
          %v1576 = vadd.f32 %v1496, %v1541
          %v1577 = vadd.f32 %v1497, %v1541
          %v1578 = vadd.f32 %v1498, %v1546
          %v1579 = vadd.f32 %v1499, %v1546
          %v1580 = vadd.f32 %v1500, %v1546
          %v1581 = vadd.f32 %v1501, %v1546
          %v1582 = vadd.f32 %v1502, %v1551
          %v1583 = vadd.f32 %v1503, %v1551
          %v1584 = vadd.f32 %v1504, %v1551
          %v1585 = vadd.f32 %v1505, %v1551
          %v1586 = vadd.f32 %v1506, %v1556
          %v1587 = vadd.f32 %v1507, %v1556
          %v1588 = vadd.f32 %v1508, %v1556
          %v1589 = vadd.f32 %v1509, %v1556
          %s1590 = smul.addr %s1474, 8
          %s1591 = scalar_lea.vmem [#allocation2], %s1590
          %v1592 = vld [vmem:[%s1591] sm:$0xff]
          %v1593 = vld [vmem:[%s1591 + $0x8] sm:$0xff]
          %v1594 = vld [vmem:[%s1591 + $0x10] sm:$0xff]
          %v1595 = vld [vmem:[%s1591 + $0x18] sm:$0xff]
          %v1596 = vld [vmem:[%s1591 + $0x40] sm:$0xff]
          %v1597 = vld [vmem:[%s1591 + $0x48] sm:$0xff]
          %v1598 = vld [vmem:[%s1591 + $0x50] sm:$0xff]
          %v1599 = vld [vmem:[%s1591 + $0x58] sm:$0xff]
          %v1600 = vld [vmem:[%s1591 + $0x80] sm:$0xff]
          %v1601 = vld [vmem:[%s1591 + $0x88] sm:$0xff]
          %v1602 = vld [vmem:[%s1591 + $0x90] sm:$0xff]
          %v1603 = vld [vmem:[%s1591 + $0x98] sm:$0xff]
          %v1604 = vld [vmem:[%s1591 + $0xc0] sm:$0xff]
          %v1605 = vld [vmem:[%s1591 + $0xc8] sm:$0xff]
          %v1606 = vld [vmem:[%s1591 + $0xd0] sm:$0xff]
          %v1607 = vld [vmem:[%s1591 + $0xd8] sm:$0xff]
          %v1608 = vld [vmem:[#allocation2 + $0x100] sm:$0xff]
          %v1609 = vld [vmem:[#allocation2 + $0x108] sm:$0xff]
          %v1610 = vld [vmem:[#allocation2 + $0x110] sm:$0xff]
          %v1611 = vld [vmem:[#allocation2 + $0x118] sm:$0xff]
          %v1612 = vld [vmem:[#allocation2 + $0x120] sm:$0xff]
          %v1613 = vld [vmem:[#allocation2 + $0x128] sm:$0xff]
          %v1614 = vld [vmem:[#allocation2 + $0x130] sm:$0xff]
          %v1615 = vld [vmem:[#allocation2 + $0x138] sm:$0xff]
          %v1616 = vld [vmem:[#allocation2 + $0x140] sm:$0xff]
          %v1617 = vld [vmem:[#allocation2 + $0x148] sm:$0xff]
          %v1618 = vld [vmem:[#allocation2 + $0x150] sm:$0xff]
          %v1619 = vld [vmem:[#allocation2 + $0x158] sm:$0xff]
          %v1620 = vld [vmem:[#allocation2 + $0x160] sm:$0xff]
          %v1621 = vld [vmem:[#allocation2 + $0x168] sm:$0xff]
          %v1622 = vld [vmem:[#allocation2 + $0x170] sm:$0xff]
          %v1623 = vld [vmem:[#allocation2 + $0x178] sm:$0xff]
          %v1624 = vld [vmem:[#allocation2 + $0x180] sm:$0xff]
          %v1625 = vld [vmem:[#allocation2 + $0x188] sm:$0xff]
          %v1626 = vld [vmem:[#allocation2 + $0x190] sm:$0xff]
          %v1627 = vld [vmem:[#allocation2 + $0x198] sm:$0xff]
          %v1628 = vld [vmem:[#allocation2 + $0x1a0] sm:$0xff]
          %v1629 = vld [vmem:[#allocation2 + $0x1a8] sm:$0xff]
          %v1630 = vld [vmem:[#allocation2 + $0x1b0] sm:$0xff]
          %v1631 = vld [vmem:[#allocation2 + $0x1b8] sm:$0xff]
          %v1632 = vld [vmem:[#allocation2 + $0x1c0] sm:$0xff]
          %v1633 = vld [vmem:[#allocation2 + $0x1c8] sm:$0xff]
          %v1634 = vld [vmem:[#allocation2 + $0x1d0] sm:$0xff]
          %v1635 = vld [vmem:[#allocation2 + $0x1d8] sm:$0xff]
          %v1636 = vld [vmem:[#allocation2 + $0x1e0] sm:$0xff]
          %v1637 = vld [vmem:[#allocation2 + $0x1e8] sm:$0xff]
          %v1638 = vld [vmem:[#allocation2 + $0x1f0] sm:$0xff]
          %v1639 = vld [vmem:[#allocation2 + $0x1f8] sm:$0xff]
          %v1640 = vld [vmem:[#allocation2 + $0x200] sm:$0xff]
          %v1641 = vld [vmem:[#allocation2 + $0x208] sm:$0xff]
          %v1642 = vld [vmem:[#allocation2 + $0x210] sm:$0xff]
          %v1643 = vld [vmem:[#allocation2 + $0x218] sm:$0xff]
          %v1644 = vld [vmem:[#allocation2 + $0x220] sm:$0xff]
          %v1645 = vld [vmem:[#allocation2 + $0x228] sm:$0xff]
          %v1646 = vld [vmem:[#allocation2 + $0x230] sm:$0xff]
          %v1647 = vld [vmem:[#allocation2 + $0x238] sm:$0xff]
          %v1648 = vld [vmem:[#allocation2 + $0x240] sm:$0xff]
          %v1649 = vld [vmem:[#allocation2 + $0x248] sm:$0xff]
          %v1650 = vld [vmem:[#allocation2 + $0x250] sm:$0xff]
          %v1651 = vld [vmem:[#allocation2 + $0x258] sm:$0xff]
          %v1652 = vld [vmem:[#allocation2 + $0x260] sm:$0xff]
          %v1653 = vld [vmem:[#allocation2 + $0x268] sm:$0xff]
          %v1654 = vld [vmem:[#allocation2 + $0x270] sm:$0xff]
          %v1655 = vld [vmem:[#allocation2 + $0x278] sm:$0xff]
          %v1656 = vld [vmem:[#allocation2 + $0x280] sm:$0xff]
          %v1657 = vld [vmem:[#allocation2 + $0x288] sm:$0xff]
          %v1658 = vld [vmem:[#allocation2 + $0x290] sm:$0xff]
          %v1659 = vld [vmem:[#allocation2 + $0x298] sm:$0xff]
          %v1660 = vld [vmem:[#allocation2 + $0x2a0] sm:$0xff]
          %v1661 = vld [vmem:[#allocation2 + $0x2a8] sm:$0xff]
          %v1662 = vld [vmem:[#allocation2 + $0x2b0] sm:$0xff]
          %v1663 = vld [vmem:[#allocation2 + $0x2b8] sm:$0xff]
          %v1664 = vld [vmem:[#allocation2 + $0x2c0] sm:$0xff]
          %v1665 = vld [vmem:[#allocation2 + $0x2c8] sm:$0xff]
          %v1666 = vld [vmem:[#allocation2 + $0x2d0] sm:$0xff]
          %v1667 = vld [vmem:[#allocation2 + $0x2d8] sm:$0xff]
          %v1668 = vld [vmem:[#allocation2 + $0x2e0] sm:$0xff]
          %v1669 = vld [vmem:[#allocation2 + $0x2e8] sm:$0xff]
          %v1670 = vld [vmem:[#allocation2 + $0x2f0] sm:$0xff]
          %v1671 = vld [vmem:[#allocation2 + $0x2f8] sm:$0xff]
          %1672 = vxpose.xlu0.c.b16.start [1/8] %v1608, 128
          %1673 = vxpose.xlu0.c.b16.cont [2/8] %v1616, 128
          %1674 = vxpose.xlu0.c.b16.cont [3/8] %v1624, 128
          %1675 = vxpose.xlu0.c.b16.cont [4/8] %v1632, 128
          %1676 = vxpose.xlu0.c.b16.cont [5/8] 0, 128
          %1677 = vxpose.xlu0.c.b16.cont [6/8] 0, 128
          %1678 = vxpose.xlu0.c.b16.cont [7/8] 0, 128
          %1679 = vxpose.xlu0.c.b16.end [8/8] 0, 128
          %v1680 = vpop.trf.xlu0
          %v1681 = vpop.trf.xlu0
          %v1682 = vpop.trf.xlu0
          %v1683 = vpop.trf.xlu0
          %v1684 = vpop.trf.xlu0
          %v1685 = vpop.trf.xlu0
          %v1686 = vpop.trf.xlu0
          %v1687 = vpop.trf.xlu0
          %1688 = vxpose.xlu0.c.b16.start [1/8] %v1609, 128
          %1689 = vxpose.xlu0.c.b16.cont [2/8] %v1617, 128
          %1690 = vxpose.xlu0.c.b16.cont [3/8] %v1625, 128
          %1691 = vxpose.xlu0.c.b16.cont [4/8] %v1633, 128
          %1692 = vxpose.xlu0.c.b16.cont [5/8] 0, 128
          %1693 = vxpose.xlu0.c.b16.cont [6/8] 0, 128
          %1694 = vxpose.xlu0.c.b16.cont [7/8] 0, 128
          %1695 = vxpose.xlu0.c.b16.end [8/8] 0, 128
          %v1696 = vpop.trf.xlu0
          %v1697 = vpop.trf.xlu0
          %v1698 = vpop.trf.xlu0
          %v1699 = vpop.trf.xlu0
          %v1700 = vpop.trf.xlu0
          %v1701 = vpop.trf.xlu0
          %v1702 = vpop.trf.xlu0
          %v1703 = vpop.trf.xlu0
          %1704 = vxpose.xlu0.c.b16.start [1/8] %v1610, 128
          %1705 = vxpose.xlu0.c.b16.cont [2/8] %v1618, 128
          %1706 = vxpose.xlu0.c.b16.cont [3/8] %v1626, 128
          %1707 = vxpose.xlu0.c.b16.cont [4/8] %v1634, 128
          %1708 = vxpose.xlu0.c.b16.cont [5/8] 0, 128
          %1709 = vxpose.xlu0.c.b16.cont [6/8] 0, 128
          %1710 = vxpose.xlu0.c.b16.cont [7/8] 0, 128
          %1711 = vxpose.xlu0.c.b16.end [8/8] 0, 128
          %v1712 = vpop.trf.xlu0
          %v1713 = vpop.trf.xlu0
          %v1714 = vpop.trf.xlu0
          %v1715 = vpop.trf.xlu0
          %v1716 = vpop.trf.xlu0
          %v1717 = vpop.trf.xlu0
          %v1718 = vpop.trf.xlu0
          %v1719 = vpop.trf.xlu0
          %1720 = vxpose.xlu0.c.b16.start [1/8] %v1611, 128
          %1721 = vxpose.xlu0.c.b16.cont [2/8] %v1619, 128
          %1722 = vxpose.xlu0.c.b16.cont [3/8] %v1627, 128
          %1723 = vxpose.xlu0.c.b16.cont [4/8] %v1635, 128
          %1724 = vxpose.xlu0.c.b16.cont [5/8] 0, 128
          %1725 = vxpose.xlu0.c.b16.cont [6/8] 0, 128
          %1726 = vxpose.xlu0.c.b16.cont [7/8] 0, 128
          %1727 = vxpose.xlu0.c.b16.end [8/8] 0, 128
          %v1728 = vpop.trf.xlu0
          %v1729 = vpop.trf.xlu0
          %v1730 = vpop.trf.xlu0
          %v1731 = vpop.trf.xlu0
          %v1732 = vpop.trf.xlu0
          %v1733 = vpop.trf.xlu0
          %v1734 = vpop.trf.xlu0
          %v1735 = vpop.trf.xlu0
          %1736 = vxpose.xlu0.c.b16.start [1/8] %v1612, 128
          %1737 = vxpose.xlu0.c.b16.cont [2/8] %v1620, 128
          %1738 = vxpose.xlu0.c.b16.cont [3/8] %v1628, 128
          %1739 = vxpose.xlu0.c.b16.cont [4/8] %v1636, 128
          %1740 = vxpose.xlu0.c.b16.cont [5/8] 0, 128
          %1741 = vxpose.xlu0.c.b16.cont [6/8] 0, 128
          %1742 = vxpose.xlu0.c.b16.cont [7/8] 0, 128
          %1743 = vxpose.xlu0.c.b16.end [8/8] 0, 128
          %v1744 = vpop.trf.xlu0
          %v1745 = vpop.trf.xlu0
          %v1746 = vpop.trf.xlu0
          %v1747 = vpop.trf.xlu0
          %v1748 = vpop.trf.xlu0
          %v1749 = vpop.trf.xlu0
          %v1750 = vpop.trf.xlu0
          %v1751 = vpop.trf.xlu0
          %1752 = vxpose.xlu0.c.b16.start [1/8] %v1613, 128
          %1753 = vxpose.xlu0.c.b16.cont [2/8] %v1621, 128
          %1754 = vxpose.xlu0.c.b16.cont [3/8] %v1629, 128
          %1755 = vxpose.xlu0.c.b16.cont [4/8] %v1637, 128
          %1756 = vxpose.xlu0.c.b16.cont [5/8] 0, 128
          %1757 = vxpose.xlu0.c.b16.cont [6/8] 0, 128
          %1758 = vxpose.xlu0.c.b16.cont [7/8] 0, 128
          %1759 = vxpose.xlu0.c.b16.end [8/8] 0, 128
          %v1760 = vpop.trf.xlu0
          %v1761 = vpop.trf.xlu0
          %v1762 = vpop.trf.xlu0
          %v1763 = vpop.trf.xlu0
          %v1764 = vpop.trf.xlu0
          %v1765 = vpop.trf.xlu0
          %v1766 = vpop.trf.xlu0
          %v1767 = vpop.trf.xlu0
          %1768 = vxpose.xlu0.c.b16.start [1/8] %v1614, 128
          %1769 = vxpose.xlu0.c.b16.cont [2/8] %v1622, 128
          %1770 = vxpose.xlu0.c.b16.cont [3/8] %v1630, 128
          %1771 = vxpose.xlu0.c.b16.cont [4/8] %v1638, 128
          %1772 = vxpose.xlu0.c.b16.cont [5/8] 0, 128
          %1773 = vxpose.xlu0.c.b16.cont [6/8] 0, 128
          %1774 = vxpose.xlu0.c.b16.cont [7/8] 0, 128
          %1775 = vxpose.xlu0.c.b16.end [8/8] 0, 128
          %v1776 = vpop.trf.xlu0
          %v1777 = vpop.trf.xlu0
          %v1778 = vpop.trf.xlu0
          %v1779 = vpop.trf.xlu0
          %v1780 = vpop.trf.xlu0
          %v1781 = vpop.trf.xlu0
          %v1782 = vpop.trf.xlu0
          %v1783 = vpop.trf.xlu0
          %1784 = vxpose.xlu0.c.b16.start [1/8] %v1615, 128
          %1785 = vxpose.xlu0.c.b16.cont [2/8] %v1623, 128
          %1786 = vxpose.xlu0.c.b16.cont [3/8] %v1631, 128
          %1787 = vxpose.xlu0.c.b16.cont [4/8] %v1639, 128
          %1788 = vxpose.xlu0.c.b16.cont [5/8] 0, 128
          %1789 = vxpose.xlu0.c.b16.cont [6/8] 0, 128
          %1790 = vxpose.xlu0.c.b16.cont [7/8] 0, 128
          %1791 = vxpose.xlu0.c.b16.end [8/8] 0, 128
          %v1792 = vpop.trf.xlu0
          %v1793 = vpop.trf.xlu0
          %v1794 = vpop.trf.xlu0
          %v1795 = vpop.trf.xlu0
          %v1796 = vpop.trf.xlu0
          %v1797 = vpop.trf.xlu0
          %v1798 = vpop.trf.xlu0
          %v1799 = vpop.trf.xlu0
          %v1801 = vsel %vm626, %v1680, 0
          %v1804 = vsel %vm626, %v1681, 0
          %v1807 = vsel %vm626, %v1682, 0
          %v1810 = vsel %vm626, %v1683, 0
          %v1813 = vsel %vm626, %v1684, 0
          %v1816 = vsel %vm626, %v1685, 0
          %v1819 = vsel %vm626, %v1686, 0
          %v1822 = vsel %vm626, %v1687, 0
          %v1825 = vsel %vm626, %v1696, 0
          %v1828 = vsel %vm626, %v1697, 0
          %v1831 = vsel %vm626, %v1698, 0
          %v1834 = vsel %vm626, %v1699, 0
          %v1837 = vsel %vm626, %v1700, 0
          %v1840 = vsel %vm626, %v1701, 0
          %v1843 = vsel %vm626, %v1702, 0
          %v1846 = vsel %vm626, %v1703, 0
          %v1849 = vsel %vm626, %v1712, 0
          %v1852 = vsel %vm626, %v1713, 0
          %v1855 = vsel %vm626, %v1714, 0
          %v1858 = vsel %vm626, %v1715, 0
          %v1861 = vsel %vm626, %v1716, 0
          %v1864 = vsel %vm626, %v1717, 0
          %v1867 = vsel %vm626, %v1718, 0
          %v1870 = vsel %vm626, %v1719, 0
          %v1873 = vsel %vm626, %v1728, 0
          %v1876 = vsel %vm626, %v1729, 0
          %v1879 = vsel %vm626, %v1730, 0
          %v1882 = vsel %vm626, %v1731, 0
          %v1885 = vsel %vm626, %v1732, 0
          %v1888 = vsel %vm626, %v1733, 0
          %v1891 = vsel %vm626, %v1734, 0
          %v1894 = vsel %vm626, %v1735, 0
          %v1897 = vsel %vm626, %v1744, 0
          %v1900 = vsel %vm626, %v1745, 0
          %v1903 = vsel %vm626, %v1746, 0
          %v1906 = vsel %vm626, %v1747, 0
          %v1909 = vsel %vm626, %v1748, 0
          %v1912 = vsel %vm626, %v1749, 0
          %v1915 = vsel %vm626, %v1750, 0
          %v1918 = vsel %vm626, %v1751, 0
          %v1921 = vsel %vm626, %v1760, 0
          %v1924 = vsel %vm626, %v1761, 0
          %v1927 = vsel %vm626, %v1762, 0
          %v1930 = vsel %vm626, %v1763, 0
          %v1933 = vsel %vm626, %v1764, 0
          %v1936 = vsel %vm626, %v1765, 0
          %v1939 = vsel %vm626, %v1766, 0
          %v1942 = vsel %vm626, %v1767, 0
          %v1945 = vsel %vm626, %v1776, 0
          %v1948 = vsel %vm626, %v1777, 0
          %v1951 = vsel %vm626, %v1778, 0
          %v1954 = vsel %vm626, %v1779, 0
          %v1957 = vsel %vm626, %v1780, 0
          %v1960 = vsel %vm626, %v1781, 0
          %v1963 = vsel %vm626, %v1782, 0
          %v1966 = vsel %vm626, %v1783, 0
          %v1969 = vsel %vm626, %v1792, 0
          %v1972 = vsel %vm626, %v1793, 0
          %v1975 = vsel %vm626, %v1794, 0
          %v1978 = vsel %vm626, %v1795, 0
          %v1981 = vsel %vm626, %v1796, 0
          %v1984 = vsel %vm626, %v1797, 0
          %v1987 = vsel %vm626, %v1798, 0
          %v1990 = vsel %vm626, %v1799, 0
          %1992 = vmatprep.subr.bf16.mxu0 %v1593
          %1993 = vmatpush1.bf16.msra.mxu0 %v1592
          %1994 = vmatprep.subr.bf16.mxu0 %v1597
          %1995 = vmatpush1.bf16.msra.mxu0 %v1596
          %1996 = vmatprep.subr.bf16.mxu0 %v1601
          %1997 = vmatpush1.bf16.msra.mxu0 %v1600
          %1998 = vmatprep.subr.bf16.mxu0 %v1605
          %1999 = vmatpush1.bf16.msra.mxu0 %v1604
          %2000 = vmatprep.subr.bf16.mxu0 0
          %2001 = vmatpush1.bf16.msra.mxu0 0
          %2002 = vmatprep.subr.bf16.mxu0 0
          %2003 = vmatpush1.bf16.msra.mxu0 0
          %2004 = vmatprep.subr.bf16.mxu0 0
          %2005 = vmatpush1.bf16.msra.mxu0 0
          %2006 = vmatprep.subr.bf16.mxu0 0
          %2007 = vmatpush1.bf16.msra.mxu0 0
          %2008 = vmatprep.subr.bf16.mxu0 0
          %2009 = vmatpush1.bf16.msra.mxu0 0
          %2010 = vmatprep.subr.bf16.mxu0 0
          %2011 = vmatpush1.bf16.msra.mxu0 0
          %2012 = vmatprep.subr.bf16.mxu0 0
          %2013 = vmatpush1.bf16.msra.mxu0 0
          %2014 = vmatprep.subr.bf16.mxu0 0
          %2015 = vmatpush1.bf16.msra.mxu0 0
          %2016 = vmatprep.subr.bf16.mxu0 0
          %2017 = vmatpush1.bf16.msra.mxu0 0
          %2018 = vmatprep.subr.bf16.mxu0 0
          %2019 = vmatpush1.bf16.msra.mxu0 0
          %2020 = vmatprep.subr.bf16.mxu0 0
          %2021 = vmatpush1.bf16.msra.mxu0 0
          %2022 = vmatprep.subr.bf16.mxu0 0
          %2023 = vmatpush1.bf16.msra.mxu0 0
          %2024 = vmatprep.mubr.bf16.mxu0 0
          %2025 = vmatmul.mubr.bf16.gmra.mrb[0].mxu0 %v1801
          %v2026 = vpop.f32.mrb[0].mxu0
          %v2027 = vadd.f32 0.0, %v2026
          %v2028 = vpop.f32.mrb[0].mxu0
          %v2029 = vadd.f32 0.0, %v2028
          %v2030 = vpop.f32.mrb[0].mxu0
          %v2031 = vadd.f32 0.0, %v2030
          %v2032 = vpop.f32.mrb[0].mxu0
          %v2033 = vadd.f32 0.0, %v2032
          %2034 = vmatprep.mubr.bf16.mxu0 0
          %2035 = vmatmul.mubr.bf16.gmra.mrb[0].mxu0 %v1804
          %v2036 = vpop.f32.mrb[0].mxu0
          %v2037 = vadd.f32 0.0, %v2036
          %v2038 = vpop.f32.mrb[0].mxu0
          %v2039 = vadd.f32 0.0, %v2038
          %v2040 = vpop.f32.mrb[0].mxu0
          %v2041 = vadd.f32 0.0, %v2040
          %v2042 = vpop.f32.mrb[0].mxu0
          %v2043 = vadd.f32 0.0, %v2042
          %2044 = vmatprep.mubr.bf16.mxu0 0
          %2045 = vmatmul.mubr.bf16.gmra.mrb[0].mxu0 %v1807
          %v2046 = vpop.f32.mrb[0].mxu0
          %v2047 = vadd.f32 0.0, %v2046
          %v2048 = vpop.f32.mrb[0].mxu0
          %v2049 = vadd.f32 0.0, %v2048
          %v2050 = vpop.f32.mrb[0].mxu0
          %v2051 = vadd.f32 0.0, %v2050
          %v2052 = vpop.f32.mrb[0].mxu0
          %v2053 = vadd.f32 0.0, %v2052
          %2054 = vmatprep.mubr.bf16.mxu0 0
          %2055 = vmatmul.mubr.bf16.gmra.mrb[0].mxu0 %v1810
          %v2056 = vpop.f32.mrb[0].mxu0
          %v2057 = vadd.f32 0.0, %v2056
          %v2058 = vpop.f32.mrb[0].mxu0
          %v2059 = vadd.f32 0.0, %v2058
          %v2060 = vpop.f32.mrb[0].mxu0
          %v2061 = vadd.f32 0.0, %v2060
          %v2062 = vpop.f32.mrb[0].mxu0
          %v2063 = vadd.f32 0.0, %v2062
          %2064 = vmatprep.mubr.bf16.mxu0 0
          %2065 = vmatmul.mubr.bf16.gmra.mrb[0].mxu0 %v1813
          %v2066 = vpop.f32.mrb[0].mxu0
          %v2067 = vadd.f32 0.0, %v2066
          %v2068 = vpop.f32.mrb[0].mxu0
          %v2069 = vadd.f32 0.0, %v2068
          %v2070 = vpop.f32.mrb[0].mxu0
          %v2071 = vadd.f32 0.0, %v2070
          %v2072 = vpop.f32.mrb[0].mxu0
          %v2073 = vadd.f32 0.0, %v2072
          %2074 = vmatprep.mubr.bf16.mxu0 0
          %2075 = vmatmul.mubr.bf16.gmra.mrb[0].mxu0 %v1816
          %v2076 = vpop.f32.mrb[0].mxu0
          %v2077 = vadd.f32 0.0, %v2076
          %v2078 = vpop.f32.mrb[0].mxu0
          %v2079 = vadd.f32 0.0, %v2078
          %v2080 = vpop.f32.mrb[0].mxu0
          %v2081 = vadd.f32 0.0, %v2080
          %v2082 = vpop.f32.mrb[0].mxu0
          %v2083 = vadd.f32 0.0, %v2082
          %2084 = vmatprep.mubr.bf16.mxu0 0
          %2085 = vmatmul.mubr.bf16.gmra.mrb[0].mxu0 %v1819
          %v2086 = vpop.f32.mrb[0].mxu0
          %v2087 = vadd.f32 0.0, %v2086
          %v2088 = vpop.f32.mrb[0].mxu0
          %v2089 = vadd.f32 0.0, %v2088
          %v2090 = vpop.f32.mrb[0].mxu0
          %v2091 = vadd.f32 0.0, %v2090
          %v2092 = vpop.f32.mrb[0].mxu0
          %v2093 = vadd.f32 0.0, %v2092
          %2094 = vmatprep.mubr.bf16.mxu0 0
          %2095 = vmatmul.mubr.bf16.gmra.mrb[0].mxu0 %v1822
          %v2096 = vpop.f32.mrb[0].mxu0
          %v2097 = vadd.f32 0.0, %v2096
          %v2098 = vpop.f32.mrb[0].mxu0
          %v2099 = vadd.f32 0.0, %v2098
          %v2100 = vpop.f32.mrb[0].mxu0
          %v2101 = vadd.f32 0.0, %v2100
          %v2102 = vpop.f32.mrb[0].mxu0
          %v2103 = vadd.f32 0.0, %v2102
          %2104 = vmatprep.mubr.bf16.mxu0 0
          %2105 = vmatmul.mubr.bf16.gmra.mrb[0].mxu0 %v1825
          %v2106 = vpop.f32.mrb[0].mxu0
          %v2107 = vadd.f32 0.0, %v2106
          %v2108 = vpop.f32.mrb[0].mxu0
          %v2109 = vadd.f32 0.0, %v2108
          %v2110 = vpop.f32.mrb[0].mxu0
          %v2111 = vadd.f32 0.0, %v2110
          %v2112 = vpop.f32.mrb[0].mxu0
          %v2113 = vadd.f32 0.0, %v2112
          %2114 = vmatprep.mubr.bf16.mxu0 0
          %2115 = vmatmul.mubr.bf16.gmra.mrb[0].mxu0 %v1828
          %v2116 = vpop.f32.mrb[0].mxu0
          %v2117 = vadd.f32 0.0, %v2116
          %v2118 = vpop.f32.mrb[0].mxu0
          %v2119 = vadd.f32 0.0, %v2118
          %v2120 = vpop.f32.mrb[0].mxu0
          %v2121 = vadd.f32 0.0, %v2120
          %v2122 = vpop.f32.mrb[0].mxu0
          %v2123 = vadd.f32 0.0, %v2122
          %2124 = vmatprep.mubr.bf16.mxu0 0
          %2125 = vmatmul.mubr.bf16.gmra.mrb[0].mxu0 %v1831
          %v2126 = vpop.f32.mrb[0].mxu0
          %v2127 = vadd.f32 0.0, %v2126
          %v2128 = vpop.f32.mrb[0].mxu0
          %v2129 = vadd.f32 0.0, %v2128
          %v2130 = vpop.f32.mrb[0].mxu0
          %v2131 = vadd.f32 0.0, %v2130
          %v2132 = vpop.f32.mrb[0].mxu0
          %v2133 = vadd.f32 0.0, %v2132
          %2134 = vmatprep.mubr.bf16.mxu0 0
          %2135 = vmatmul.mubr.bf16.gmra.mrb[0].mxu0 %v1834
          %v2136 = vpop.f32.mrb[0].mxu0
          %v2137 = vadd.f32 0.0, %v2136
          %v2138 = vpop.f32.mrb[0].mxu0
          %v2139 = vadd.f32 0.0, %v2138
          %v2140 = vpop.f32.mrb[0].mxu0
          %v2141 = vadd.f32 0.0, %v2140
          %v2142 = vpop.f32.mrb[0].mxu0
          %v2143 = vadd.f32 0.0, %v2142
          %2144 = vmatprep.mubr.bf16.mxu0 0
          %2145 = vmatmul.mubr.bf16.gmra.mrb[0].mxu0 %v1837
          %v2146 = vpop.f32.mrb[0].mxu0
          %v2147 = vadd.f32 0.0, %v2146
          %v2148 = vpop.f32.mrb[0].mxu0
          %v2149 = vadd.f32 0.0, %v2148
          %v2150 = vpop.f32.mrb[0].mxu0
          %v2151 = vadd.f32 0.0, %v2150
          %v2152 = vpop.f32.mrb[0].mxu0
          %v2153 = vadd.f32 0.0, %v2152
          %2154 = vmatprep.mubr.bf16.mxu0 0
          %2155 = vmatmul.mubr.bf16.gmra.mrb[0].mxu0 %v1840
          %v2156 = vpop.f32.mrb[0].mxu0
          %v2157 = vadd.f32 0.0, %v2156
          %v2158 = vpop.f32.mrb[0].mxu0
          %v2159 = vadd.f32 0.0, %v2158
          %v2160 = vpop.f32.mrb[0].mxu0
          %v2161 = vadd.f32 0.0, %v2160
          %v2162 = vpop.f32.mrb[0].mxu0
          %v2163 = vadd.f32 0.0, %v2162
          %2164 = vmatprep.mubr.bf16.mxu0 0
          %2165 = vmatmul.mubr.bf16.gmra.mrb[0].mxu0 %v1843
          %v2166 = vpop.f32.mrb[0].mxu0
          %v2167 = vadd.f32 0.0, %v2166
          %v2168 = vpop.f32.mrb[0].mxu0
          %v2169 = vadd.f32 0.0, %v2168
          %v2170 = vpop.f32.mrb[0].mxu0
          %v2171 = vadd.f32 0.0, %v2170
          %v2172 = vpop.f32.mrb[0].mxu0
          %v2173 = vadd.f32 0.0, %v2172
          %2174 = vmatprep.mubr.bf16.mxu0 0
          %2175 = vmatmul.mubr.bf16.gmra.mrb[0].mxu0 %v1846
          %v2176 = vpop.f32.mrb[0].mxu0
          %v2177 = vadd.f32 0.0, %v2176
          %v2178 = vpop.f32.mrb[0].mxu0
          %v2179 = vadd.f32 0.0, %v2178
          %v2180 = vpop.f32.mrb[0].mxu0
          %v2181 = vadd.f32 0.0, %v2180
          %v2182 = vpop.f32.mrb[0].mxu0
          %v2183 = vadd.f32 0.0, %v2182
          %2184 = vmatprep.mubr.bf16.mxu0 0
          %2185 = vmatmul.mubr.bf16.gmra.mrb[0].mxu0 %v1849
          %v2186 = vpop.f32.mrb[0].mxu0
          %v2187 = vadd.f32 0.0, %v2186
          %v2188 = vpop.f32.mrb[0].mxu0
          %v2189 = vadd.f32 0.0, %v2188
          %v2190 = vpop.f32.mrb[0].mxu0
          %v2191 = vadd.f32 0.0, %v2190
          %v2192 = vpop.f32.mrb[0].mxu0
          %v2193 = vadd.f32 0.0, %v2192
          %2194 = vmatprep.mubr.bf16.mxu0 0
          %2195 = vmatmul.mubr.bf16.gmra.mrb[0].mxu0 %v1852
          %v2196 = vpop.f32.mrb[0].mxu0
          %v2197 = vadd.f32 0.0, %v2196
          %v2198 = vpop.f32.mrb[0].mxu0
          %v2199 = vadd.f32 0.0, %v2198
          %v2200 = vpop.f32.mrb[0].mxu0
          %v2201 = vadd.f32 0.0, %v2200
          %v2202 = vpop.f32.mrb[0].mxu0
          %v2203 = vadd.f32 0.0, %v2202
          %2204 = vmatprep.mubr.bf16.mxu0 0
          %2205 = vmatmul.mubr.bf16.gmra.mrb[0].mxu0 %v1855
          %v2206 = vpop.f32.mrb[0].mxu0
          %v2207 = vadd.f32 0.0, %v2206
          %v2208 = vpop.f32.mrb[0].mxu0
          %v2209 = vadd.f32 0.0, %v2208
          %v2210 = vpop.f32.mrb[0].mxu0
          %v2211 = vadd.f32 0.0, %v2210
          %v2212 = vpop.f32.mrb[0].mxu0
          %v2213 = vadd.f32 0.0, %v2212
          %2214 = vmatprep.mubr.bf16.mxu0 0
          %2215 = vmatmul.mubr.bf16.gmra.mrb[0].mxu0 %v1858
          %v2216 = vpop.f32.mrb[0].mxu0
          %v2217 = vadd.f32 0.0, %v2216
          %v2218 = vpop.f32.mrb[0].mxu0
          %v2219 = vadd.f32 0.0, %v2218
          %v2220 = vpop.f32.mrb[0].mxu0
          %v2221 = vadd.f32 0.0, %v2220
          %v2222 = vpop.f32.mrb[0].mxu0
          %v2223 = vadd.f32 0.0, %v2222
          %2224 = vmatprep.mubr.bf16.mxu0 0
          %2225 = vmatmul.mubr.bf16.gmra.mrb[0].mxu0 %v1861
          %v2226 = vpop.f32.mrb[0].mxu0
          %v2227 = vadd.f32 0.0, %v2226
          %v2228 = vpop.f32.mrb[0].mxu0
          %v2229 = vadd.f32 0.0, %v2228
          %v2230 = vpop.f32.mrb[0].mxu0
          %v2231 = vadd.f32 0.0, %v2230
          %v2232 = vpop.f32.mrb[0].mxu0
          %v2233 = vadd.f32 0.0, %v2232
          %2234 = vmatprep.mubr.bf16.mxu0 0
          %2235 = vmatmul.mubr.bf16.gmra.mrb[0].mxu0 %v1864
          %v2236 = vpop.f32.mrb[0].mxu0
          %v2237 = vadd.f32 0.0, %v2236
          %v2238 = vpop.f32.mrb[0].mxu0
          %v2239 = vadd.f32 0.0, %v2238
          %v2240 = vpop.f32.mrb[0].mxu0
          %v2241 = vadd.f32 0.0, %v2240
          %v2242 = vpop.f32.mrb[0].mxu0
          %v2243 = vadd.f32 0.0, %v2242
          %2244 = vmatprep.mubr.bf16.mxu0 0
          %2245 = vmatmul.mubr.bf16.gmra.mrb[0].mxu0 %v1867
          %v2246 = vpop.f32.mrb[0].mxu0
          %v2247 = vadd.f32 0.0, %v2246
          %v2248 = vpop.f32.mrb[0].mxu0
          %v2249 = vadd.f32 0.0, %v2248
          %v2250 = vpop.f32.mrb[0].mxu0
          %v2251 = vadd.f32 0.0, %v2250
          %v2252 = vpop.f32.mrb[0].mxu0
          %v2253 = vadd.f32 0.0, %v2252
          %2254 = vmatprep.mubr.bf16.mxu0 0
          %2255 = vmatmul.mubr.bf16.gmra.mrb[0].mxu0 %v1870
          %v2256 = vpop.f32.mrb[0].mxu0
          %v2257 = vadd.f32 0.0, %v2256
          %v2258 = vpop.f32.mrb[0].mxu0
          %v2259 = vadd.f32 0.0, %v2258
          %v2260 = vpop.f32.mrb[0].mxu0
          %v2261 = vadd.f32 0.0, %v2260
          %v2262 = vpop.f32.mrb[0].mxu0
          %v2263 = vadd.f32 0.0, %v2262
          %2264 = vmatprep.mubr.bf16.mxu0 0
          %2265 = vmatmul.mubr.bf16.gmra.mrb[0].mxu0 %v1873
          %v2266 = vpop.f32.mrb[0].mxu0
          %v2267 = vadd.f32 0.0, %v2266
          %v2268 = vpop.f32.mrb[0].mxu0
          %v2269 = vadd.f32 0.0, %v2268
          %v2270 = vpop.f32.mrb[0].mxu0
          %v2271 = vadd.f32 0.0, %v2270
          %v2272 = vpop.f32.mrb[0].mxu0
          %v2273 = vadd.f32 0.0, %v2272
          %2274 = vmatprep.mubr.bf16.mxu0 0
          %2275 = vmatmul.mubr.bf16.gmra.mrb[0].mxu0 %v1876
          %v2276 = vpop.f32.mrb[0].mxu0
          %v2277 = vadd.f32 0.0, %v2276
          %v2278 = vpop.f32.mrb[0].mxu0
          %v2279 = vadd.f32 0.0, %v2278
          %v2280 = vpop.f32.mrb[0].mxu0
          %v2281 = vadd.f32 0.0, %v2280
          %v2282 = vpop.f32.mrb[0].mxu0
          %v2283 = vadd.f32 0.0, %v2282
          %2284 = vmatprep.mubr.bf16.mxu0 0
          %2285 = vmatmul.mubr.bf16.gmra.mrb[0].mxu0 %v1879
          %v2286 = vpop.f32.mrb[0].mxu0
          %v2287 = vadd.f32 0.0, %v2286
          %v2288 = vpop.f32.mrb[0].mxu0
          %v2289 = vadd.f32 0.0, %v2288
          %v2290 = vpop.f32.mrb[0].mxu0
          %v2291 = vadd.f32 0.0, %v2290
          %v2292 = vpop.f32.mrb[0].mxu0
          %v2293 = vadd.f32 0.0, %v2292
          %2294 = vmatprep.mubr.bf16.mxu0 0
          %2295 = vmatmul.mubr.bf16.gmra.mrb[0].mxu0 %v1882
          %v2296 = vpop.f32.mrb[0].mxu0
          %v2297 = vadd.f32 0.0, %v2296
          %v2298 = vpop.f32.mrb[0].mxu0
          %v2299 = vadd.f32 0.0, %v2298
          %v2300 = vpop.f32.mrb[0].mxu0
          %v2301 = vadd.f32 0.0, %v2300
          %v2302 = vpop.f32.mrb[0].mxu0
          %v2303 = vadd.f32 0.0, %v2302
          %2304 = vmatprep.mubr.bf16.mxu0 0
          %2305 = vmatmul.mubr.bf16.gmra.mrb[0].mxu0 %v1885
          %v2306 = vpop.f32.mrb[0].mxu0
          %v2307 = vadd.f32 0.0, %v2306
          %v2308 = vpop.f32.mrb[0].mxu0
          %v2309 = vadd.f32 0.0, %v2308
          %v2310 = vpop.f32.mrb[0].mxu0
          %v2311 = vadd.f32 0.0, %v2310
          %v2312 = vpop.f32.mrb[0].mxu0
          %v2313 = vadd.f32 0.0, %v2312
          %2314 = vmatprep.mubr.bf16.mxu0 0
          %2315 = vmatmul.mubr.bf16.gmra.mrb[0].mxu0 %v1888
          %v2316 = vpop.f32.mrb[0].mxu0
          %v2317 = vadd.f32 0.0, %v2316
          %v2318 = vpop.f32.mrb[0].mxu0
          %v2319 = vadd.f32 0.0, %v2318
          %v2320 = vpop.f32.mrb[0].mxu0
          %v2321 = vadd.f32 0.0, %v2320
          %v2322 = vpop.f32.mrb[0].mxu0
          %v2323 = vadd.f32 0.0, %v2322
          %2324 = vmatprep.mubr.bf16.mxu0 0
          %2325 = vmatmul.mubr.bf16.gmra.mrb[0].mxu0 %v1891
          %v2326 = vpop.f32.mrb[0].mxu0
          %v2327 = vadd.f32 0.0, %v2326
          %v2328 = vpop.f32.mrb[0].mxu0
          %v2329 = vadd.f32 0.0, %v2328
          %v2330 = vpop.f32.mrb[0].mxu0
          %v2331 = vadd.f32 0.0, %v2330
          %v2332 = vpop.f32.mrb[0].mxu0
          %v2333 = vadd.f32 0.0, %v2332
          %2334 = vmatprep.mubr.bf16.mxu0 0
          %2335 = vmatmul.mubr.bf16.gmra.mrb[0].mxu0 %v1894
          %v2336 = vpop.f32.mrb[0].mxu0
          %v2337 = vadd.f32 0.0, %v2336
          %v2338 = vpop.f32.mrb[0].mxu0
          %v2339 = vadd.f32 0.0, %v2338
          %v2340 = vpop.f32.mrb[0].mxu0
          %v2341 = vadd.f32 0.0, %v2340
          %v2342 = vpop.f32.mrb[0].mxu0
          %v2343 = vadd.f32 0.0, %v2342
          %2344 = vmatprep.mubr.bf16.mxu0 0
          %2345 = vmatmul.mubr.bf16.gmra.mrb[0].mxu0 %v1897
          %v2346 = vpop.f32.mrb[0].mxu0
          %v2347 = vadd.f32 0.0, %v2346
          %v2348 = vpop.f32.mrb[0].mxu0
          %v2349 = vadd.f32 0.0, %v2348
          %v2350 = vpop.f32.mrb[0].mxu0
          %v2351 = vadd.f32 0.0, %v2350
          %v2352 = vpop.f32.mrb[0].mxu0
          %v2353 = vadd.f32 0.0, %v2352
          %2354 = vmatprep.mubr.bf16.mxu0 0
          %2355 = vmatmul.mubr.bf16.gmra.mrb[0].mxu0 %v1900
          %v2356 = vpop.f32.mrb[0].mxu0
          %v2357 = vadd.f32 0.0, %v2356
          %v2358 = vpop.f32.mrb[0].mxu0
          %v2359 = vadd.f32 0.0, %v2358
          %v2360 = vpop.f32.mrb[0].mxu0
          %v2361 = vadd.f32 0.0, %v2360
          %v2362 = vpop.f32.mrb[0].mxu0
          %v2363 = vadd.f32 0.0, %v2362
          %2364 = vmatprep.mubr.bf16.mxu0 0
          %2365 = vmatmul.mubr.bf16.gmra.mrb[0].mxu0 %v1903
          %v2366 = vpop.f32.mrb[0].mxu0
          %v2367 = vadd.f32 0.0, %v2366
          %v2368 = vpop.f32.mrb[0].mxu0
          %v2369 = vadd.f32 0.0, %v2368
          %v2370 = vpop.f32.mrb[0].mxu0
          %v2371 = vadd.f32 0.0, %v2370
          %v2372 = vpop.f32.mrb[0].mxu0
          %v2373 = vadd.f32 0.0, %v2372
          %2374 = vmatprep.mubr.bf16.mxu0 0
          %2375 = vmatmul.mubr.bf16.gmra.mrb[0].mxu0 %v1906
          %v2376 = vpop.f32.mrb[0].mxu0
          %v2377 = vadd.f32 0.0, %v2376
          %v2378 = vpop.f32.mrb[0].mxu0
          %v2379 = vadd.f32 0.0, %v2378
          %v2380 = vpop.f32.mrb[0].mxu0
          %v2381 = vadd.f32 0.0, %v2380
          %v2382 = vpop.f32.mrb[0].mxu0
          %v2383 = vadd.f32 0.0, %v2382
          %2384 = vmatprep.mubr.bf16.mxu0 0
          %2385 = vmatmul.mubr.bf16.gmra.mrb[0].mxu0 %v1909
          %v2386 = vpop.f32.mrb[0].mxu0
          %v2387 = vadd.f32 0.0, %v2386
          %v2388 = vpop.f32.mrb[0].mxu0
          %v2389 = vadd.f32 0.0, %v2388
          %v2390 = vpop.f32.mrb[0].mxu0
          %v2391 = vadd.f32 0.0, %v2390
          %v2392 = vpop.f32.mrb[0].mxu0
          %v2393 = vadd.f32 0.0, %v2392
          %2394 = vmatprep.mubr.bf16.mxu0 0
          %2395 = vmatmul.mubr.bf16.gmra.mrb[0].mxu0 %v1912
          %v2396 = vpop.f32.mrb[0].mxu0
          %v2397 = vadd.f32 0.0, %v2396
          %v2398 = vpop.f32.mrb[0].mxu0
          %v2399 = vadd.f32 0.0, %v2398
          %v2400 = vpop.f32.mrb[0].mxu0
          %v2401 = vadd.f32 0.0, %v2400
          %v2402 = vpop.f32.mrb[0].mxu0
          %v2403 = vadd.f32 0.0, %v2402
          %2404 = vmatprep.mubr.bf16.mxu0 0
          %2405 = vmatmul.mubr.bf16.gmra.mrb[0].mxu0 %v1915
          %v2406 = vpop.f32.mrb[0].mxu0
          %v2407 = vadd.f32 0.0, %v2406
          %v2408 = vpop.f32.mrb[0].mxu0
          %v2409 = vadd.f32 0.0, %v2408
          %v2410 = vpop.f32.mrb[0].mxu0
          %v2411 = vadd.f32 0.0, %v2410
          %v2412 = vpop.f32.mrb[0].mxu0
          %v2413 = vadd.f32 0.0, %v2412
          %2414 = vmatprep.mubr.bf16.mxu0 0
          %2415 = vmatmul.mubr.bf16.gmra.mrb[0].mxu0 %v1918
          %v2416 = vpop.f32.mrb[0].mxu0
          %v2417 = vadd.f32 0.0, %v2416
          %v2418 = vpop.f32.mrb[0].mxu0
          %v2419 = vadd.f32 0.0, %v2418
          %v2420 = vpop.f32.mrb[0].mxu0
          %v2421 = vadd.f32 0.0, %v2420
          %v2422 = vpop.f32.mrb[0].mxu0
          %v2423 = vadd.f32 0.0, %v2422
          %2424 = vmatprep.mubr.bf16.mxu0 0
          %2425 = vmatmul.mubr.bf16.gmra.mrb[0].mxu0 %v1921
          %v2426 = vpop.f32.mrb[0].mxu0
          %v2427 = vadd.f32 0.0, %v2426
          %v2428 = vpop.f32.mrb[0].mxu0
          %v2429 = vadd.f32 0.0, %v2428
          %v2430 = vpop.f32.mrb[0].mxu0
          %v2431 = vadd.f32 0.0, %v2430
          %v2432 = vpop.f32.mrb[0].mxu0
          %v2433 = vadd.f32 0.0, %v2432
          %2434 = vmatprep.mubr.bf16.mxu0 0
          %2435 = vmatmul.mubr.bf16.gmra.mrb[0].mxu0 %v1924
          %v2436 = vpop.f32.mrb[0].mxu0
          %v2437 = vadd.f32 0.0, %v2436
          %v2438 = vpop.f32.mrb[0].mxu0
          %v2439 = vadd.f32 0.0, %v2438
          %v2440 = vpop.f32.mrb[0].mxu0
          %v2441 = vadd.f32 0.0, %v2440
          %v2442 = vpop.f32.mrb[0].mxu0
          %v2443 = vadd.f32 0.0, %v2442
          %2444 = vmatprep.mubr.bf16.mxu0 0
          %2445 = vmatmul.mubr.bf16.gmra.mrb[0].mxu0 %v1927
          %v2446 = vpop.f32.mrb[0].mxu0
          %v2447 = vadd.f32 0.0, %v2446
          %v2448 = vpop.f32.mrb[0].mxu0
          %v2449 = vadd.f32 0.0, %v2448
          %v2450 = vpop.f32.mrb[0].mxu0
          %v2451 = vadd.f32 0.0, %v2450
          %v2452 = vpop.f32.mrb[0].mxu0
          %v2453 = vadd.f32 0.0, %v2452
          %2454 = vmatprep.mubr.bf16.mxu0 0
          %2455 = vmatmul.mubr.bf16.gmra.mrb[0].mxu0 %v1930
          %v2456 = vpop.f32.mrb[0].mxu0
          %v2457 = vadd.f32 0.0, %v2456
          %v2458 = vpop.f32.mrb[0].mxu0
          %v2459 = vadd.f32 0.0, %v2458
          %v2460 = vpop.f32.mrb[0].mxu0
          %v2461 = vadd.f32 0.0, %v2460
          %v2462 = vpop.f32.mrb[0].mxu0
          %v2463 = vadd.f32 0.0, %v2462
          %2464 = vmatprep.mubr.bf16.mxu0 0
          %2465 = vmatmul.mubr.bf16.gmra.mrb[0].mxu0 %v1933
          %v2466 = vpop.f32.mrb[0].mxu0
          %v2467 = vadd.f32 0.0, %v2466
          %v2468 = vpop.f32.mrb[0].mxu0
          %v2469 = vadd.f32 0.0, %v2468
          %v2470 = vpop.f32.mrb[0].mxu0
          %v2471 = vadd.f32 0.0, %v2470
          %v2472 = vpop.f32.mrb[0].mxu0
          %v2473 = vadd.f32 0.0, %v2472
          %2474 = vmatprep.mubr.bf16.mxu0 0
          %2475 = vmatmul.mubr.bf16.gmra.mrb[0].mxu0 %v1936
          %v2476 = vpop.f32.mrb[0].mxu0
          %v2477 = vadd.f32 0.0, %v2476
          %v2478 = vpop.f32.mrb[0].mxu0
          %v2479 = vadd.f32 0.0, %v2478
          %v2480 = vpop.f32.mrb[0].mxu0
          %v2481 = vadd.f32 0.0, %v2480
          %v2482 = vpop.f32.mrb[0].mxu0
          %v2483 = vadd.f32 0.0, %v2482
          %2484 = vmatprep.mubr.bf16.mxu0 0
          %2485 = vmatmul.mubr.bf16.gmra.mrb[0].mxu0 %v1939
          %v2486 = vpop.f32.mrb[0].mxu0
          %v2487 = vadd.f32 0.0, %v2486
          %v2488 = vpop.f32.mrb[0].mxu0
          %v2489 = vadd.f32 0.0, %v2488
          %v2490 = vpop.f32.mrb[0].mxu0
          %v2491 = vadd.f32 0.0, %v2490
          %v2492 = vpop.f32.mrb[0].mxu0
          %v2493 = vadd.f32 0.0, %v2492
          %2494 = vmatprep.mubr.bf16.mxu0 0
          %2495 = vmatmul.mubr.bf16.gmra.mrb[0].mxu0 %v1942
          %v2496 = vpop.f32.mrb[0].mxu0
          %v2497 = vadd.f32 0.0, %v2496
          %v2498 = vpop.f32.mrb[0].mxu0
          %v2499 = vadd.f32 0.0, %v2498
          %v2500 = vpop.f32.mrb[0].mxu0
          %v2501 = vadd.f32 0.0, %v2500
          %v2502 = vpop.f32.mrb[0].mxu0
          %v2503 = vadd.f32 0.0, %v2502
          %2504 = vmatprep.mubr.bf16.mxu0 0
          %2505 = vmatmul.mubr.bf16.gmra.mrb[0].mxu0 %v1945
          %v2506 = vpop.f32.mrb[0].mxu0
          %v2507 = vadd.f32 0.0, %v2506
          %v2508 = vpop.f32.mrb[0].mxu0
          %v2509 = vadd.f32 0.0, %v2508
          %v2510 = vpop.f32.mrb[0].mxu0
          %v2511 = vadd.f32 0.0, %v2510
          %v2512 = vpop.f32.mrb[0].mxu0
          %v2513 = vadd.f32 0.0, %v2512
          %2514 = vmatprep.mubr.bf16.mxu0 0
          %2515 = vmatmul.mubr.bf16.gmra.mrb[0].mxu0 %v1948
          %v2516 = vpop.f32.mrb[0].mxu0
          %v2517 = vadd.f32 0.0, %v2516
          %v2518 = vpop.f32.mrb[0].mxu0
          %v2519 = vadd.f32 0.0, %v2518
          %v2520 = vpop.f32.mrb[0].mxu0
          %v2521 = vadd.f32 0.0, %v2520
          %v2522 = vpop.f32.mrb[0].mxu0
          %v2523 = vadd.f32 0.0, %v2522
          %2524 = vmatprep.mubr.bf16.mxu0 0
          %2525 = vmatmul.mubr.bf16.gmra.mrb[0].mxu0 %v1951
          %v2526 = vpop.f32.mrb[0].mxu0
          %v2527 = vadd.f32 0.0, %v2526
          %v2528 = vpop.f32.mrb[0].mxu0
          %v2529 = vadd.f32 0.0, %v2528
          %v2530 = vpop.f32.mrb[0].mxu0
          %v2531 = vadd.f32 0.0, %v2530
          %v2532 = vpop.f32.mrb[0].mxu0
          %v2533 = vadd.f32 0.0, %v2532
          %2534 = vmatprep.mubr.bf16.mxu0 0
          %2535 = vmatmul.mubr.bf16.gmra.mrb[0].mxu0 %v1954
          %v2536 = vpop.f32.mrb[0].mxu0
          %v2537 = vadd.f32 0.0, %v2536
          %v2538 = vpop.f32.mrb[0].mxu0
          %v2539 = vadd.f32 0.0, %v2538
          %v2540 = vpop.f32.mrb[0].mxu0
          %v2541 = vadd.f32 0.0, %v2540
          %v2542 = vpop.f32.mrb[0].mxu0
          %v2543 = vadd.f32 0.0, %v2542
          %2544 = vmatprep.mubr.bf16.mxu0 0
          %2545 = vmatmul.mubr.bf16.gmra.mrb[0].mxu0 %v1957
          %v2546 = vpop.f32.mrb[0].mxu0
          %v2547 = vadd.f32 0.0, %v2546
          %v2548 = vpop.f32.mrb[0].mxu0
          %v2549 = vadd.f32 0.0, %v2548
          %v2550 = vpop.f32.mrb[0].mxu0
          %v2551 = vadd.f32 0.0, %v2550
          %v2552 = vpop.f32.mrb[0].mxu0
          %v2553 = vadd.f32 0.0, %v2552
          %2554 = vmatprep.mubr.bf16.mxu0 0
          %2555 = vmatmul.mubr.bf16.gmra.mrb[0].mxu0 %v1960
          %v2556 = vpop.f32.mrb[0].mxu0
          %v2557 = vadd.f32 0.0, %v2556
          %v2558 = vpop.f32.mrb[0].mxu0
          %v2559 = vadd.f32 0.0, %v2558
          %v2560 = vpop.f32.mrb[0].mxu0
          %v2561 = vadd.f32 0.0, %v2560
          %v2562 = vpop.f32.mrb[0].mxu0
          %v2563 = vadd.f32 0.0, %v2562
          %2564 = vmatprep.mubr.bf16.mxu0 0
          %2565 = vmatmul.mubr.bf16.gmra.mrb[0].mxu0 %v1963
          %v2566 = vpop.f32.mrb[0].mxu0
          %v2567 = vadd.f32 0.0, %v2566
          %v2568 = vpop.f32.mrb[0].mxu0
          %v2569 = vadd.f32 0.0, %v2568
          %v2570 = vpop.f32.mrb[0].mxu0
          %v2571 = vadd.f32 0.0, %v2570
          %v2572 = vpop.f32.mrb[0].mxu0
          %v2573 = vadd.f32 0.0, %v2572
          %2574 = vmatprep.mubr.bf16.mxu0 0
          %2575 = vmatmul.mubr.bf16.gmra.mrb[0].mxu0 %v1966
          %v2576 = vpop.f32.mrb[0].mxu0
          %v2577 = vadd.f32 0.0, %v2576
          %v2578 = vpop.f32.mrb[0].mxu0
          %v2579 = vadd.f32 0.0, %v2578
          %v2580 = vpop.f32.mrb[0].mxu0
          %v2581 = vadd.f32 0.0, %v2580
          %v2582 = vpop.f32.mrb[0].mxu0
          %v2583 = vadd.f32 0.0, %v2582
          %2584 = vmatprep.mubr.bf16.mxu0 0
          %2585 = vmatmul.mubr.bf16.gmra.mrb[0].mxu0 %v1969
          %v2586 = vpop.f32.mrb[0].mxu0
          %v2587 = vadd.f32 0.0, %v2586
          %v2588 = vpop.f32.mrb[0].mxu0
          %v2589 = vadd.f32 0.0, %v2588
          %v2590 = vpop.f32.mrb[0].mxu0
          %v2591 = vadd.f32 0.0, %v2590
          %v2592 = vpop.f32.mrb[0].mxu0
          %v2593 = vadd.f32 0.0, %v2592
          %2594 = vmatprep.mubr.bf16.mxu0 0
          %2595 = vmatmul.mubr.bf16.gmra.mrb[0].mxu0 %v1972
          %v2596 = vpop.f32.mrb[0].mxu0
          %v2597 = vadd.f32 0.0, %v2596
          %v2598 = vpop.f32.mrb[0].mxu0
          %v2599 = vadd.f32 0.0, %v2598
          %v2600 = vpop.f32.mrb[0].mxu0
          %v2601 = vadd.f32 0.0, %v2600
          %v2602 = vpop.f32.mrb[0].mxu0
          %v2603 = vadd.f32 0.0, %v2602
          %2604 = vmatprep.mubr.bf16.mxu0 0
          %2605 = vmatmul.mubr.bf16.gmra.mrb[0].mxu0 %v1975
          %v2606 = vpop.f32.mrb[0].mxu0
          %v2607 = vadd.f32 0.0, %v2606
          %v2608 = vpop.f32.mrb[0].mxu0
          %v2609 = vadd.f32 0.0, %v2608
          %v2610 = vpop.f32.mrb[0].mxu0
          %v2611 = vadd.f32 0.0, %v2610
          %v2612 = vpop.f32.mrb[0].mxu0
          %v2613 = vadd.f32 0.0, %v2612
          %2614 = vmatprep.mubr.bf16.mxu0 0
          %2615 = vmatmul.mubr.bf16.gmra.mrb[0].mxu0 %v1978
          %v2616 = vpop.f32.mrb[0].mxu0
          %v2617 = vadd.f32 0.0, %v2616
          %v2618 = vpop.f32.mrb[0].mxu0
          %v2619 = vadd.f32 0.0, %v2618
          %v2620 = vpop.f32.mrb[0].mxu0
          %v2621 = vadd.f32 0.0, %v2620
          %v2622 = vpop.f32.mrb[0].mxu0
          %v2623 = vadd.f32 0.0, %v2622
          %2624 = vmatprep.mubr.bf16.mxu0 0
          %2625 = vmatmul.mubr.bf16.gmra.mrb[0].mxu0 %v1981
          %v2626 = vpop.f32.mrb[0].mxu0
          %v2627 = vadd.f32 0.0, %v2626
          %v2628 = vpop.f32.mrb[0].mxu0
          %v2629 = vadd.f32 0.0, %v2628
          %v2630 = vpop.f32.mrb[0].mxu0
          %v2631 = vadd.f32 0.0, %v2630
          %v2632 = vpop.f32.mrb[0].mxu0
          %v2633 = vadd.f32 0.0, %v2632
          %2634 = vmatprep.mubr.bf16.mxu0 0
          %2635 = vmatmul.mubr.bf16.gmra.mrb[0].mxu0 %v1984
          %v2636 = vpop.f32.mrb[0].mxu0
          %v2637 = vadd.f32 0.0, %v2636
          %v2638 = vpop.f32.mrb[0].mxu0
          %v2639 = vadd.f32 0.0, %v2638
          %v2640 = vpop.f32.mrb[0].mxu0
          %v2641 = vadd.f32 0.0, %v2640
          %v2642 = vpop.f32.mrb[0].mxu0
          %v2643 = vadd.f32 0.0, %v2642
          %2644 = vmatprep.mubr.bf16.mxu0 0
          %2645 = vmatmul.mubr.bf16.gmra.mrb[0].mxu0 %v1987
          %v2646 = vpop.f32.mrb[0].mxu0
          %v2647 = vadd.f32 0.0, %v2646
          %v2648 = vpop.f32.mrb[0].mxu0
          %v2649 = vadd.f32 0.0, %v2648
          %v2650 = vpop.f32.mrb[0].mxu0
          %v2651 = vadd.f32 0.0, %v2650
          %v2652 = vpop.f32.mrb[0].mxu0
          %v2653 = vadd.f32 0.0, %v2652
          %2654 = vmatprep.mubr.bf16.mxu0 0
          %2655 = vmatmul.mubr.bf16.gmra.mrb[0].mxu0 %v1990
          %v2656 = vpop.f32.mrb[0].mxu0
          %v2657 = vadd.f32 0.0, %v2656
          %v2658 = vpop.f32.mrb[0].mxu0
          %v2659 = vadd.f32 0.0, %v2658
          %v2660 = vpop.f32.mrb[0].mxu0
          %v2661 = vadd.f32 0.0, %v2660
          %v2662 = vpop.f32.mrb[0].mxu0
          %v2663 = vadd.f32 0.0, %v2662
          %2664 = vdwg.mxu0
          %2665 = vmatprep.subr.bf16.mxu0 %v1595
          %2666 = vmatpush1.bf16.msra.mxu0 %v1594
          %2667 = vmatprep.subr.bf16.mxu0 %v1599
          %2668 = vmatpush1.bf16.msra.mxu0 %v1598
          %2669 = vmatprep.subr.bf16.mxu0 %v1603
          %2670 = vmatpush1.bf16.msra.mxu0 %v1602
          %2671 = vmatprep.subr.bf16.mxu0 %v1607
          %2672 = vmatpush1.bf16.msra.mxu0 %v1606
          %2673 = vmatprep.subr.bf16.mxu0 0
          %2674 = vmatpush1.bf16.msra.mxu0 0
          %2675 = vmatprep.subr.bf16.mxu0 0
          %2676 = vmatpush1.bf16.msra.mxu0 0
          %2677 = vmatprep.subr.bf16.mxu0 0
          %2678 = vmatpush1.bf16.msra.mxu0 0
          %2679 = vmatprep.subr.bf16.mxu0 0
          %2680 = vmatpush1.bf16.msra.mxu0 0
          %2681 = vmatprep.subr.bf16.mxu0 0
          %2682 = vmatpush1.bf16.msra.mxu0 0
          %2683 = vmatprep.subr.bf16.mxu0 0
          %2684 = vmatpush1.bf16.msra.mxu0 0
          %2685 = vmatprep.subr.bf16.mxu0 0
          %2686 = vmatpush1.bf16.msra.mxu0 0
          %2687 = vmatprep.subr.bf16.mxu0 0
          %2688 = vmatpush1.bf16.msra.mxu0 0
          %2689 = vmatprep.subr.bf16.mxu0 0
          %2690 = vmatpush1.bf16.msra.mxu0 0
          %2691 = vmatprep.subr.bf16.mxu0 0
          %2692 = vmatpush1.bf16.msra.mxu0 0
          %2693 = vmatprep.subr.bf16.mxu0 0
          %2694 = vmatpush1.bf16.msra.mxu0 0
          %2695 = vmatprep.subr.bf16.mxu0 0
          %2696 = vmatpush1.bf16.msra.mxu0 0
          %2697 = vmatprep.mubr.bf16.mxu0 0
          %2698 = vmatmul.mubr.bf16.gmra.mrb[0].mxu0 %v1801
          %v2699 = vpop.f32.mrb[0].mxu0
          %v2700 = vadd.f32 0.0, %v2699
          %v2701 = vpop.f32.mrb[0].mxu0
          %v2702 = vadd.f32 0.0, %v2701
          %v2703 = vpop.f32.mrb[0].mxu0
          %v2704 = vadd.f32 0.0, %v2703
          %v2705 = vpop.f32.mrb[0].mxu0
          %v2706 = vadd.f32 0.0, %v2705
          %2707 = vmatprep.mubr.bf16.mxu0 0
          %2708 = vmatmul.mubr.bf16.gmra.mrb[0].mxu0 %v1804
          %v2709 = vpop.f32.mrb[0].mxu0
          %v2710 = vadd.f32 0.0, %v2709
          %v2711 = vpop.f32.mrb[0].mxu0
          %v2712 = vadd.f32 0.0, %v2711
          %v2713 = vpop.f32.mrb[0].mxu0
          %v2714 = vadd.f32 0.0, %v2713
          %v2715 = vpop.f32.mrb[0].mxu0
          %v2716 = vadd.f32 0.0, %v2715
          %2717 = vmatprep.mubr.bf16.mxu0 0
          %2718 = vmatmul.mubr.bf16.gmra.mrb[0].mxu0 %v1807
          %v2719 = vpop.f32.mrb[0].mxu0
          %v2720 = vadd.f32 0.0, %v2719
          %v2721 = vpop.f32.mrb[0].mxu0
          %v2722 = vadd.f32 0.0, %v2721
          %v2723 = vpop.f32.mrb[0].mxu0
          %v2724 = vadd.f32 0.0, %v2723
          %v2725 = vpop.f32.mrb[0].mxu0
          %v2726 = vadd.f32 0.0, %v2725
          %2727 = vmatprep.mubr.bf16.mxu0 0
          %2728 = vmatmul.mubr.bf16.gmra.mrb[0].mxu0 %v1810
          %v2729 = vpop.f32.mrb[0].mxu0
          %v2730 = vadd.f32 0.0, %v2729
          %v2731 = vpop.f32.mrb[0].mxu0
          %v2732 = vadd.f32 0.0, %v2731
          %v2733 = vpop.f32.mrb[0].mxu0
          %v2734 = vadd.f32 0.0, %v2733
          %v2735 = vpop.f32.mrb[0].mxu0
          %v2736 = vadd.f32 0.0, %v2735
          %2737 = vmatprep.mubr.bf16.mxu0 0
          %2738 = vmatmul.mubr.bf16.gmra.mrb[0].mxu0 %v1813
          %v2739 = vpop.f32.mrb[0].mxu0
          %v2740 = vadd.f32 0.0, %v2739
          %v2741 = vpop.f32.mrb[0].mxu0
          %v2742 = vadd.f32 0.0, %v2741
          %v2743 = vpop.f32.mrb[0].mxu0
          %v2744 = vadd.f32 0.0, %v2743
          %v2745 = vpop.f32.mrb[0].mxu0
          %v2746 = vadd.f32 0.0, %v2745
          %2747 = vmatprep.mubr.bf16.mxu0 0
          %2748 = vmatmul.mubr.bf16.gmra.mrb[0].mxu0 %v1816
          %v2749 = vpop.f32.mrb[0].mxu0
          %v2750 = vadd.f32 0.0, %v2749
          %v2751 = vpop.f32.mrb[0].mxu0
          %v2752 = vadd.f32 0.0, %v2751
          %v2753 = vpop.f32.mrb[0].mxu0
          %v2754 = vadd.f32 0.0, %v2753
          %v2755 = vpop.f32.mrb[0].mxu0
          %v2756 = vadd.f32 0.0, %v2755
          %2757 = vmatprep.mubr.bf16.mxu0 0
          %2758 = vmatmul.mubr.bf16.gmra.mrb[0].mxu0 %v1819
          %v2759 = vpop.f32.mrb[0].mxu0
          %v2760 = vadd.f32 0.0, %v2759
          %v2761 = vpop.f32.mrb[0].mxu0
          %v2762 = vadd.f32 0.0, %v2761
          %v2763 = vpop.f32.mrb[0].mxu0
          %v2764 = vadd.f32 0.0, %v2763
          %v2765 = vpop.f32.mrb[0].mxu0
          %v2766 = vadd.f32 0.0, %v2765
          %2767 = vmatprep.mubr.bf16.mxu0 0
          %2768 = vmatmul.mubr.bf16.gmra.mrb[0].mxu0 %v1822
          %v2769 = vpop.f32.mrb[0].mxu0
          %v2770 = vadd.f32 0.0, %v2769
          %v2771 = vpop.f32.mrb[0].mxu0
          %v2772 = vadd.f32 0.0, %v2771
          %v2773 = vpop.f32.mrb[0].mxu0
          %v2774 = vadd.f32 0.0, %v2773
          %v2775 = vpop.f32.mrb[0].mxu0
          %v2776 = vadd.f32 0.0, %v2775
          %2777 = vmatprep.mubr.bf16.mxu0 0
          %2778 = vmatmul.mubr.bf16.gmra.mrb[0].mxu0 %v1825
          %v2779 = vpop.f32.mrb[0].mxu0
          %v2780 = vadd.f32 0.0, %v2779
          %v2781 = vpop.f32.mrb[0].mxu0
          %v2782 = vadd.f32 0.0, %v2781
          %v2783 = vpop.f32.mrb[0].mxu0
          %v2784 = vadd.f32 0.0, %v2783
          %v2785 = vpop.f32.mrb[0].mxu0
          %v2786 = vadd.f32 0.0, %v2785
          %2787 = vmatprep.mubr.bf16.mxu0 0
          %2788 = vmatmul.mubr.bf16.gmra.mrb[0].mxu0 %v1828
          %v2789 = vpop.f32.mrb[0].mxu0
          %v2790 = vadd.f32 0.0, %v2789
          %v2791 = vpop.f32.mrb[0].mxu0
          %v2792 = vadd.f32 0.0, %v2791
          %v2793 = vpop.f32.mrb[0].mxu0
          %v2794 = vadd.f32 0.0, %v2793
          %v2795 = vpop.f32.mrb[0].mxu0
          %v2796 = vadd.f32 0.0, %v2795
          %2797 = vmatprep.mubr.bf16.mxu0 0
          %2798 = vmatmul.mubr.bf16.gmra.mrb[0].mxu0 %v1831
          %v2799 = vpop.f32.mrb[0].mxu0
          %v2800 = vadd.f32 0.0, %v2799
          %v2801 = vpop.f32.mrb[0].mxu0
          %v2802 = vadd.f32 0.0, %v2801
          %v2803 = vpop.f32.mrb[0].mxu0
          %v2804 = vadd.f32 0.0, %v2803
          %v2805 = vpop.f32.mrb[0].mxu0
          %v2806 = vadd.f32 0.0, %v2805
          %2807 = vmatprep.mubr.bf16.mxu0 0
          %2808 = vmatmul.mubr.bf16.gmra.mrb[0].mxu0 %v1834
          %v2809 = vpop.f32.mrb[0].mxu0
          %v2810 = vadd.f32 0.0, %v2809
          %v2811 = vpop.f32.mrb[0].mxu0
          %v2812 = vadd.f32 0.0, %v2811
          %v2813 = vpop.f32.mrb[0].mxu0
          %v2814 = vadd.f32 0.0, %v2813
          %v2815 = vpop.f32.mrb[0].mxu0
          %v2816 = vadd.f32 0.0, %v2815
          %2817 = vmatprep.mubr.bf16.mxu0 0
          %2818 = vmatmul.mubr.bf16.gmra.mrb[0].mxu0 %v1837
          %v2819 = vpop.f32.mrb[0].mxu0
          %v2820 = vadd.f32 0.0, %v2819
          %v2821 = vpop.f32.mrb[0].mxu0
          %v2822 = vadd.f32 0.0, %v2821
          %v2823 = vpop.f32.mrb[0].mxu0
          %v2824 = vadd.f32 0.0, %v2823
          %v2825 = vpop.f32.mrb[0].mxu0
          %v2826 = vadd.f32 0.0, %v2825
          %2827 = vmatprep.mubr.bf16.mxu0 0
          %2828 = vmatmul.mubr.bf16.gmra.mrb[0].mxu0 %v1840
          %v2829 = vpop.f32.mrb[0].mxu0
          %v2830 = vadd.f32 0.0, %v2829
          %v2831 = vpop.f32.mrb[0].mxu0
          %v2832 = vadd.f32 0.0, %v2831
          %v2833 = vpop.f32.mrb[0].mxu0
          %v2834 = vadd.f32 0.0, %v2833
          %v2835 = vpop.f32.mrb[0].mxu0
          %v2836 = vadd.f32 0.0, %v2835
          %2837 = vmatprep.mubr.bf16.mxu0 0
          %2838 = vmatmul.mubr.bf16.gmra.mrb[0].mxu0 %v1843
          %v2839 = vpop.f32.mrb[0].mxu0
          %v2840 = vadd.f32 0.0, %v2839
          %v2841 = vpop.f32.mrb[0].mxu0
          %v2842 = vadd.f32 0.0, %v2841
          %v2843 = vpop.f32.mrb[0].mxu0
          %v2844 = vadd.f32 0.0, %v2843
          %v2845 = vpop.f32.mrb[0].mxu0
          %v2846 = vadd.f32 0.0, %v2845
          %2847 = vmatprep.mubr.bf16.mxu0 0
          %2848 = vmatmul.mubr.bf16.gmra.mrb[0].mxu0 %v1846
          %v2849 = vpop.f32.mrb[0].mxu0
          %v2850 = vadd.f32 0.0, %v2849
          %v2851 = vpop.f32.mrb[0].mxu0
          %v2852 = vadd.f32 0.0, %v2851
          %v2853 = vpop.f32.mrb[0].mxu0
          %v2854 = vadd.f32 0.0, %v2853
          %v2855 = vpop.f32.mrb[0].mxu0
          %v2856 = vadd.f32 0.0, %v2855
          %2857 = vmatprep.mubr.bf16.mxu0 0
          %2858 = vmatmul.mubr.bf16.gmra.mrb[0].mxu0 %v1849
          %v2859 = vpop.f32.mrb[0].mxu0
          %v2860 = vadd.f32 0.0, %v2859
          %v2861 = vpop.f32.mrb[0].mxu0
          %v2862 = vadd.f32 0.0, %v2861
          %v2863 = vpop.f32.mrb[0].mxu0
          %v2864 = vadd.f32 0.0, %v2863
          %v2865 = vpop.f32.mrb[0].mxu0
          %v2866 = vadd.f32 0.0, %v2865
          %2867 = vmatprep.mubr.bf16.mxu0 0
          %2868 = vmatmul.mubr.bf16.gmra.mrb[0].mxu0 %v1852
          %v2869 = vpop.f32.mrb[0].mxu0
          %v2870 = vadd.f32 0.0, %v2869
          %v2871 = vpop.f32.mrb[0].mxu0
          %v2872 = vadd.f32 0.0, %v2871
          %v2873 = vpop.f32.mrb[0].mxu0
          %v2874 = vadd.f32 0.0, %v2873
          %v2875 = vpop.f32.mrb[0].mxu0
          %v2876 = vadd.f32 0.0, %v2875
          %2877 = vmatprep.mubr.bf16.mxu0 0
          %2878 = vmatmul.mubr.bf16.gmra.mrb[0].mxu0 %v1855
          %v2879 = vpop.f32.mrb[0].mxu0
          %v2880 = vadd.f32 0.0, %v2879
          %v2881 = vpop.f32.mrb[0].mxu0
          %v2882 = vadd.f32 0.0, %v2881
          %v2883 = vpop.f32.mrb[0].mxu0
          %v2884 = vadd.f32 0.0, %v2883
          %v2885 = vpop.f32.mrb[0].mxu0
          %v2886 = vadd.f32 0.0, %v2885
          %2887 = vmatprep.mubr.bf16.mxu0 0
          %2888 = vmatmul.mubr.bf16.gmra.mrb[0].mxu0 %v1858
          %v2889 = vpop.f32.mrb[0].mxu0
          %v2890 = vadd.f32 0.0, %v2889
          %v2891 = vpop.f32.mrb[0].mxu0
          %v2892 = vadd.f32 0.0, %v2891
          %v2893 = vpop.f32.mrb[0].mxu0
          %v2894 = vadd.f32 0.0, %v2893
          %v2895 = vpop.f32.mrb[0].mxu0
          %v2896 = vadd.f32 0.0, %v2895
          %2897 = vmatprep.mubr.bf16.mxu0 0
          %2898 = vmatmul.mubr.bf16.gmra.mrb[0].mxu0 %v1861
          %v2899 = vpop.f32.mrb[0].mxu0
          %v2900 = vadd.f32 0.0, %v2899
          %v2901 = vpop.f32.mrb[0].mxu0
          %v2902 = vadd.f32 0.0, %v2901
          %v2903 = vpop.f32.mrb[0].mxu0
          %v2904 = vadd.f32 0.0, %v2903
          %v2905 = vpop.f32.mrb[0].mxu0
          %v2906 = vadd.f32 0.0, %v2905
          %2907 = vmatprep.mubr.bf16.mxu0 0
          %2908 = vmatmul.mubr.bf16.gmra.mrb[0].mxu0 %v1864
          %v2909 = vpop.f32.mrb[0].mxu0
          %v2910 = vadd.f32 0.0, %v2909
          %v2911 = vpop.f32.mrb[0].mxu0
          %v2912 = vadd.f32 0.0, %v2911
          %v2913 = vpop.f32.mrb[0].mxu0
          %v2914 = vadd.f32 0.0, %v2913
          %v2915 = vpop.f32.mrb[0].mxu0
          %v2916 = vadd.f32 0.0, %v2915
          %2917 = vmatprep.mubr.bf16.mxu0 0
          %2918 = vmatmul.mubr.bf16.gmra.mrb[0].mxu0 %v1867
          %v2919 = vpop.f32.mrb[0].mxu0
          %v2920 = vadd.f32 0.0, %v2919
          %v2921 = vpop.f32.mrb[0].mxu0
          %v2922 = vadd.f32 0.0, %v2921
          %v2923 = vpop.f32.mrb[0].mxu0
          %v2924 = vadd.f32 0.0, %v2923
          %v2925 = vpop.f32.mrb[0].mxu0
          %v2926 = vadd.f32 0.0, %v2925
          %2927 = vmatprep.mubr.bf16.mxu0 0
          %2928 = vmatmul.mubr.bf16.gmra.mrb[0].mxu0 %v1870
          %v2929 = vpop.f32.mrb[0].mxu0
          %v2930 = vadd.f32 0.0, %v2929
          %v2931 = vpop.f32.mrb[0].mxu0
          %v2932 = vadd.f32 0.0, %v2931
          %v2933 = vpop.f32.mrb[0].mxu0
          %v2934 = vadd.f32 0.0, %v2933
          %v2935 = vpop.f32.mrb[0].mxu0
          %v2936 = vadd.f32 0.0, %v2935
          %2937 = vmatprep.mubr.bf16.mxu0 0
          %2938 = vmatmul.mubr.bf16.gmra.mrb[0].mxu0 %v1873
          %v2939 = vpop.f32.mrb[0].mxu0
          %v2940 = vadd.f32 0.0, %v2939
          %v2941 = vpop.f32.mrb[0].mxu0
          %v2942 = vadd.f32 0.0, %v2941
          %v2943 = vpop.f32.mrb[0].mxu0
          %v2944 = vadd.f32 0.0, %v2943
          %v2945 = vpop.f32.mrb[0].mxu0
          %v2946 = vadd.f32 0.0, %v2945
          %2947 = vmatprep.mubr.bf16.mxu0 0
          %2948 = vmatmul.mubr.bf16.gmra.mrb[0].mxu0 %v1876
          %v2949 = vpop.f32.mrb[0].mxu0
          %v2950 = vadd.f32 0.0, %v2949
          %v2951 = vpop.f32.mrb[0].mxu0
          %v2952 = vadd.f32 0.0, %v2951
          %v2953 = vpop.f32.mrb[0].mxu0
          %v2954 = vadd.f32 0.0, %v2953
          %v2955 = vpop.f32.mrb[0].mxu0
          %v2956 = vadd.f32 0.0, %v2955
          %2957 = vmatprep.mubr.bf16.mxu0 0
          %2958 = vmatmul.mubr.bf16.gmra.mrb[0].mxu0 %v1879
          %v2959 = vpop.f32.mrb[0].mxu0
          %v2960 = vadd.f32 0.0, %v2959
          %v2961 = vpop.f32.mrb[0].mxu0
          %v2962 = vadd.f32 0.0, %v2961
          %v2963 = vpop.f32.mrb[0].mxu0
          %v2964 = vadd.f32 0.0, %v2963
          %v2965 = vpop.f32.mrb[0].mxu0
          %v2966 = vadd.f32 0.0, %v2965
          %2967 = vmatprep.mubr.bf16.mxu0 0
          %2968 = vmatmul.mubr.bf16.gmra.mrb[0].mxu0 %v1882
          %v2969 = vpop.f32.mrb[0].mxu0
          %v2970 = vadd.f32 0.0, %v2969
          %v2971 = vpop.f32.mrb[0].mxu0
          %v2972 = vadd.f32 0.0, %v2971
          %v2973 = vpop.f32.mrb[0].mxu0
          %v2974 = vadd.f32 0.0, %v2973
          %v2975 = vpop.f32.mrb[0].mxu0
          %v2976 = vadd.f32 0.0, %v2975
          %2977 = vmatprep.mubr.bf16.mxu0 0
          %2978 = vmatmul.mubr.bf16.gmra.mrb[0].mxu0 %v1885
          %v2979 = vpop.f32.mrb[0].mxu0
          %v2980 = vadd.f32 0.0, %v2979
          %v2981 = vpop.f32.mrb[0].mxu0
          %v2982 = vadd.f32 0.0, %v2981
          %v2983 = vpop.f32.mrb[0].mxu0
          %v2984 = vadd.f32 0.0, %v2983
          %v2985 = vpop.f32.mrb[0].mxu0
          %v2986 = vadd.f32 0.0, %v2985
          %2987 = vmatprep.mubr.bf16.mxu0 0
          %2988 = vmatmul.mubr.bf16.gmra.mrb[0].mxu0 %v1888
          %v2989 = vpop.f32.mrb[0].mxu0
          %v2990 = vadd.f32 0.0, %v2989
          %v2991 = vpop.f32.mrb[0].mxu0
          %v2992 = vadd.f32 0.0, %v2991
          %v2993 = vpop.f32.mrb[0].mxu0
          %v2994 = vadd.f32 0.0, %v2993
          %v2995 = vpop.f32.mrb[0].mxu0
          %v2996 = vadd.f32 0.0, %v2995
          %2997 = vmatprep.mubr.bf16.mxu0 0
          %2998 = vmatmul.mubr.bf16.gmra.mrb[0].mxu0 %v1891
          %v2999 = vpop.f32.mrb[0].mxu0
          %v3000 = vadd.f32 0.0, %v2999
          %v3001 = vpop.f32.mrb[0].mxu0
          %v3002 = vadd.f32 0.0, %v3001
          %v3003 = vpop.f32.mrb[0].mxu0
          %v3004 = vadd.f32 0.0, %v3003
          %v3005 = vpop.f32.mrb[0].mxu0
          %v3006 = vadd.f32 0.0, %v3005
          %3007 = vmatprep.mubr.bf16.mxu0 0
          %3008 = vmatmul.mubr.bf16.gmra.mrb[0].mxu0 %v1894
          %v3009 = vpop.f32.mrb[0].mxu0
          %v3010 = vadd.f32 0.0, %v3009
          %v3011 = vpop.f32.mrb[0].mxu0
          %v3012 = vadd.f32 0.0, %v3011
          %v3013 = vpop.f32.mrb[0].mxu0
          %v3014 = vadd.f32 0.0, %v3013
          %v3015 = vpop.f32.mrb[0].mxu0
          %v3016 = vadd.f32 0.0, %v3015
          %3017 = vmatprep.mubr.bf16.mxu0 0
          %3018 = vmatmul.mubr.bf16.gmra.mrb[0].mxu0 %v1897
          %v3019 = vpop.f32.mrb[0].mxu0
          %v3020 = vadd.f32 0.0, %v3019
          %v3021 = vpop.f32.mrb[0].mxu0
          %v3022 = vadd.f32 0.0, %v3021
          %v3023 = vpop.f32.mrb[0].mxu0
          %v3024 = vadd.f32 0.0, %v3023
          %v3025 = vpop.f32.mrb[0].mxu0
          %v3026 = vadd.f32 0.0, %v3025
          %3027 = vmatprep.mubr.bf16.mxu0 0
          %3028 = vmatmul.mubr.bf16.gmra.mrb[0].mxu0 %v1900
          %v3029 = vpop.f32.mrb[0].mxu0
          %v3030 = vadd.f32 0.0, %v3029
          %v3031 = vpop.f32.mrb[0].mxu0
          %v3032 = vadd.f32 0.0, %v3031
          %v3033 = vpop.f32.mrb[0].mxu0
          %v3034 = vadd.f32 0.0, %v3033
          %v3035 = vpop.f32.mrb[0].mxu0
          %v3036 = vadd.f32 0.0, %v3035
          %3037 = vmatprep.mubr.bf16.mxu0 0
          %3038 = vmatmul.mubr.bf16.gmra.mrb[0].mxu0 %v1903
          %v3039 = vpop.f32.mrb[0].mxu0
          %v3040 = vadd.f32 0.0, %v3039
          %v3041 = vpop.f32.mrb[0].mxu0
          %v3042 = vadd.f32 0.0, %v3041
          %v3043 = vpop.f32.mrb[0].mxu0
          %v3044 = vadd.f32 0.0, %v3043
          %v3045 = vpop.f32.mrb[0].mxu0
          %v3046 = vadd.f32 0.0, %v3045
          %3047 = vmatprep.mubr.bf16.mxu0 0
          %3048 = vmatmul.mubr.bf16.gmra.mrb[0].mxu0 %v1906
          %v3049 = vpop.f32.mrb[0].mxu0
          %v3050 = vadd.f32 0.0, %v3049
          %v3051 = vpop.f32.mrb[0].mxu0
          %v3052 = vadd.f32 0.0, %v3051
          %v3053 = vpop.f32.mrb[0].mxu0
          %v3054 = vadd.f32 0.0, %v3053
          %v3055 = vpop.f32.mrb[0].mxu0
          %v3056 = vadd.f32 0.0, %v3055
          %3057 = vmatprep.mubr.bf16.mxu0 0
          %3058 = vmatmul.mubr.bf16.gmra.mrb[0].mxu0 %v1909
          %v3059 = vpop.f32.mrb[0].mxu0
          %v3060 = vadd.f32 0.0, %v3059
          %v3061 = vpop.f32.mrb[0].mxu0
          %v3062 = vadd.f32 0.0, %v3061
          %v3063 = vpop.f32.mrb[0].mxu0
          %v3064 = vadd.f32 0.0, %v3063
          %v3065 = vpop.f32.mrb[0].mxu0
          %v3066 = vadd.f32 0.0, %v3065
          %3067 = vmatprep.mubr.bf16.mxu0 0
          %3068 = vmatmul.mubr.bf16.gmra.mrb[0].mxu0 %v1912
          %v3069 = vpop.f32.mrb[0].mxu0
          %v3070 = vadd.f32 0.0, %v3069
          %v3071 = vpop.f32.mrb[0].mxu0
          %v3072 = vadd.f32 0.0, %v3071
          %v3073 = vpop.f32.mrb[0].mxu0
          %v3074 = vadd.f32 0.0, %v3073
          %v3075 = vpop.f32.mrb[0].mxu0
          %v3076 = vadd.f32 0.0, %v3075
          %3077 = vmatprep.mubr.bf16.mxu0 0
          %3078 = vmatmul.mubr.bf16.gmra.mrb[0].mxu0 %v1915
          %v3079 = vpop.f32.mrb[0].mxu0
          %v3080 = vadd.f32 0.0, %v3079
          %v3081 = vpop.f32.mrb[0].mxu0
          %v3082 = vadd.f32 0.0, %v3081
          %v3083 = vpop.f32.mrb[0].mxu0
          %v3084 = vadd.f32 0.0, %v3083
          %v3085 = vpop.f32.mrb[0].mxu0
          %v3086 = vadd.f32 0.0, %v3085
          %3087 = vmatprep.mubr.bf16.mxu0 0
          %3088 = vmatmul.mubr.bf16.gmra.mrb[0].mxu0 %v1918
          %v3089 = vpop.f32.mrb[0].mxu0
          %v3090 = vadd.f32 0.0, %v3089
          %v3091 = vpop.f32.mrb[0].mxu0
          %v3092 = vadd.f32 0.0, %v3091
          %v3093 = vpop.f32.mrb[0].mxu0
          %v3094 = vadd.f32 0.0, %v3093
          %v3095 = vpop.f32.mrb[0].mxu0
          %v3096 = vadd.f32 0.0, %v3095
          %3097 = vmatprep.mubr.bf16.mxu0 0
          %3098 = vmatmul.mubr.bf16.gmra.mrb[0].mxu0 %v1921
          %v3099 = vpop.f32.mrb[0].mxu0
          %v3100 = vadd.f32 0.0, %v3099
          %v3101 = vpop.f32.mrb[0].mxu0
          %v3102 = vadd.f32 0.0, %v3101
          %v3103 = vpop.f32.mrb[0].mxu0
          %v3104 = vadd.f32 0.0, %v3103
          %v3105 = vpop.f32.mrb[0].mxu0
          %v3106 = vadd.f32 0.0, %v3105
          %3107 = vmatprep.mubr.bf16.mxu0 0
          %3108 = vmatmul.mubr.bf16.gmra.mrb[0].mxu0 %v1924
          %v3109 = vpop.f32.mrb[0].mxu0
          %v3110 = vadd.f32 0.0, %v3109
          %v3111 = vpop.f32.mrb[0].mxu0
          %v3112 = vadd.f32 0.0, %v3111
          %v3113 = vpop.f32.mrb[0].mxu0
          %v3114 = vadd.f32 0.0, %v3113
          %v3115 = vpop.f32.mrb[0].mxu0
          %v3116 = vadd.f32 0.0, %v3115
          %3117 = vmatprep.mubr.bf16.mxu0 0
          %3118 = vmatmul.mubr.bf16.gmra.mrb[0].mxu0 %v1927
          %v3119 = vpop.f32.mrb[0].mxu0
          %v3120 = vadd.f32 0.0, %v3119
          %v3121 = vpop.f32.mrb[0].mxu0
          %v3122 = vadd.f32 0.0, %v3121
          %v3123 = vpop.f32.mrb[0].mxu0
          %v3124 = vadd.f32 0.0, %v3123
          %v3125 = vpop.f32.mrb[0].mxu0
          %v3126 = vadd.f32 0.0, %v3125
          %3127 = vmatprep.mubr.bf16.mxu0 0
          %3128 = vmatmul.mubr.bf16.gmra.mrb[0].mxu0 %v1930
          %v3129 = vpop.f32.mrb[0].mxu0
          %v3130 = vadd.f32 0.0, %v3129
          %v3131 = vpop.f32.mrb[0].mxu0
          %v3132 = vadd.f32 0.0, %v3131
          %v3133 = vpop.f32.mrb[0].mxu0
          %v3134 = vadd.f32 0.0, %v3133
          %v3135 = vpop.f32.mrb[0].mxu0
          %v3136 = vadd.f32 0.0, %v3135
          %3137 = vmatprep.mubr.bf16.mxu0 0
          %3138 = vmatmul.mubr.bf16.gmra.mrb[0].mxu0 %v1933
          %v3139 = vpop.f32.mrb[0].mxu0
          %v3140 = vadd.f32 0.0, %v3139
          %v3141 = vpop.f32.mrb[0].mxu0
          %v3142 = vadd.f32 0.0, %v3141
          %v3143 = vpop.f32.mrb[0].mxu0
          %v3144 = vadd.f32 0.0, %v3143
          %v3145 = vpop.f32.mrb[0].mxu0
          %v3146 = vadd.f32 0.0, %v3145
          %3147 = vmatprep.mubr.bf16.mxu0 0
          %3148 = vmatmul.mubr.bf16.gmra.mrb[0].mxu0 %v1936
          %v3149 = vpop.f32.mrb[0].mxu0
          %v3150 = vadd.f32 0.0, %v3149
          %v3151 = vpop.f32.mrb[0].mxu0
          %v3152 = vadd.f32 0.0, %v3151
          %v3153 = vpop.f32.mrb[0].mxu0
          %v3154 = vadd.f32 0.0, %v3153
          %v3155 = vpop.f32.mrb[0].mxu0
          %v3156 = vadd.f32 0.0, %v3155
          %3157 = vmatprep.mubr.bf16.mxu0 0
          %3158 = vmatmul.mubr.bf16.gmra.mrb[0].mxu0 %v1939
          %v3159 = vpop.f32.mrb[0].mxu0
          %v3160 = vadd.f32 0.0, %v3159
          %v3161 = vpop.f32.mrb[0].mxu0
          %v3162 = vadd.f32 0.0, %v3161
          %v3163 = vpop.f32.mrb[0].mxu0
          %v3164 = vadd.f32 0.0, %v3163
          %v3165 = vpop.f32.mrb[0].mxu0
          %v3166 = vadd.f32 0.0, %v3165
          %3167 = vmatprep.mubr.bf16.mxu0 0
          %3168 = vmatmul.mubr.bf16.gmra.mrb[0].mxu0 %v1942
          %v3169 = vpop.f32.mrb[0].mxu0
          %v3170 = vadd.f32 0.0, %v3169
          %v3171 = vpop.f32.mrb[0].mxu0
          %v3172 = vadd.f32 0.0, %v3171
          %v3173 = vpop.f32.mrb[0].mxu0
          %v3174 = vadd.f32 0.0, %v3173
          %v3175 = vpop.f32.mrb[0].mxu0
          %v3176 = vadd.f32 0.0, %v3175
          %3177 = vmatprep.mubr.bf16.mxu0 0
          %3178 = vmatmul.mubr.bf16.gmra.mrb[0].mxu0 %v1945
          %v3179 = vpop.f32.mrb[0].mxu0
          %v3180 = vadd.f32 0.0, %v3179
          %v3181 = vpop.f32.mrb[0].mxu0
          %v3182 = vadd.f32 0.0, %v3181
          %v3183 = vpop.f32.mrb[0].mxu0
          %v3184 = vadd.f32 0.0, %v3183
          %v3185 = vpop.f32.mrb[0].mxu0
          %v3186 = vadd.f32 0.0, %v3185
          %3187 = vmatprep.mubr.bf16.mxu0 0
          %3188 = vmatmul.mubr.bf16.gmra.mrb[0].mxu0 %v1948
          %v3189 = vpop.f32.mrb[0].mxu0
          %v3190 = vadd.f32 0.0, %v3189
          %v3191 = vpop.f32.mrb[0].mxu0
          %v3192 = vadd.f32 0.0, %v3191
          %v3193 = vpop.f32.mrb[0].mxu0
          %v3194 = vadd.f32 0.0, %v3193
          %v3195 = vpop.f32.mrb[0].mxu0
          %v3196 = vadd.f32 0.0, %v3195
          %3197 = vmatprep.mubr.bf16.mxu0 0
          %3198 = vmatmul.mubr.bf16.gmra.mrb[0].mxu0 %v1951
          %v3199 = vpop.f32.mrb[0].mxu0
          %v3200 = vadd.f32 0.0, %v3199
          %v3201 = vpop.f32.mrb[0].mxu0
          %v3202 = vadd.f32 0.0, %v3201
          %v3203 = vpop.f32.mrb[0].mxu0
          %v3204 = vadd.f32 0.0, %v3203
          %v3205 = vpop.f32.mrb[0].mxu0
          %v3206 = vadd.f32 0.0, %v3205
          %3207 = vmatprep.mubr.bf16.mxu0 0
          %3208 = vmatmul.mubr.bf16.gmra.mrb[0].mxu0 %v1954
          %v3209 = vpop.f32.mrb[0].mxu0
          %v3210 = vadd.f32 0.0, %v3209
          %v3211 = vpop.f32.mrb[0].mxu0
          %v3212 = vadd.f32 0.0, %v3211
          %v3213 = vpop.f32.mrb[0].mxu0
          %v3214 = vadd.f32 0.0, %v3213
          %v3215 = vpop.f32.mrb[0].mxu0
          %v3216 = vadd.f32 0.0, %v3215
          %3217 = vmatprep.mubr.bf16.mxu0 0
          %3218 = vmatmul.mubr.bf16.gmra.mrb[0].mxu0 %v1957
          %v3219 = vpop.f32.mrb[0].mxu0
          %v3220 = vadd.f32 0.0, %v3219
          %v3221 = vpop.f32.mrb[0].mxu0
          %v3222 = vadd.f32 0.0, %v3221
          %v3223 = vpop.f32.mrb[0].mxu0
          %v3224 = vadd.f32 0.0, %v3223
          %v3225 = vpop.f32.mrb[0].mxu0
          %v3226 = vadd.f32 0.0, %v3225
          %3227 = vmatprep.mubr.bf16.mxu0 0
          %3228 = vmatmul.mubr.bf16.gmra.mrb[0].mxu0 %v1960
          %v3229 = vpop.f32.mrb[0].mxu0
          %v3230 = vadd.f32 0.0, %v3229
          %v3231 = vpop.f32.mrb[0].mxu0
          %v3232 = vadd.f32 0.0, %v3231
          %v3233 = vpop.f32.mrb[0].mxu0
          %v3234 = vadd.f32 0.0, %v3233
          %v3235 = vpop.f32.mrb[0].mxu0
          %v3236 = vadd.f32 0.0, %v3235
          %3237 = vmatprep.mubr.bf16.mxu0 0
          %3238 = vmatmul.mubr.bf16.gmra.mrb[0].mxu0 %v1963
          %v3239 = vpop.f32.mrb[0].mxu0
          %v3240 = vadd.f32 0.0, %v3239
          %v3241 = vpop.f32.mrb[0].mxu0
          %v3242 = vadd.f32 0.0, %v3241
          %v3243 = vpop.f32.mrb[0].mxu0
          %v3244 = vadd.f32 0.0, %v3243
          %v3245 = vpop.f32.mrb[0].mxu0
          %v3246 = vadd.f32 0.0, %v3245
          %3247 = vmatprep.mubr.bf16.mxu0 0
          %3248 = vmatmul.mubr.bf16.gmra.mrb[0].mxu0 %v1966
          %v3249 = vpop.f32.mrb[0].mxu0
          %v3250 = vadd.f32 0.0, %v3249
          %v3251 = vpop.f32.mrb[0].mxu0
          %v3252 = vadd.f32 0.0, %v3251
          %v3253 = vpop.f32.mrb[0].mxu0
          %v3254 = vadd.f32 0.0, %v3253
          %v3255 = vpop.f32.mrb[0].mxu0
          %v3256 = vadd.f32 0.0, %v3255
          %3257 = vmatprep.mubr.bf16.mxu0 0
          %3258 = vmatmul.mubr.bf16.gmra.mrb[0].mxu0 %v1969
          %v3259 = vpop.f32.mrb[0].mxu0
          %v3260 = vadd.f32 0.0, %v3259
          %v3261 = vpop.f32.mrb[0].mxu0
          %v3262 = vadd.f32 0.0, %v3261
          %v3263 = vpop.f32.mrb[0].mxu0
          %v3264 = vadd.f32 0.0, %v3263
          %v3265 = vpop.f32.mrb[0].mxu0
          %v3266 = vadd.f32 0.0, %v3265
          %3267 = vmatprep.mubr.bf16.mxu0 0
          %3268 = vmatmul.mubr.bf16.gmra.mrb[0].mxu0 %v1972
          %v3269 = vpop.f32.mrb[0].mxu0
          %v3270 = vadd.f32 0.0, %v3269
          %v3271 = vpop.f32.mrb[0].mxu0
          %v3272 = vadd.f32 0.0, %v3271
          %v3273 = vpop.f32.mrb[0].mxu0
          %v3274 = vadd.f32 0.0, %v3273
          %v3275 = vpop.f32.mrb[0].mxu0
          %v3276 = vadd.f32 0.0, %v3275
          %3277 = vmatprep.mubr.bf16.mxu0 0
          %3278 = vmatmul.mubr.bf16.gmra.mrb[0].mxu0 %v1975
          %v3279 = vpop.f32.mrb[0].mxu0
          %v3280 = vadd.f32 0.0, %v3279
          %v3281 = vpop.f32.mrb[0].mxu0
          %v3282 = vadd.f32 0.0, %v3281
          %v3283 = vpop.f32.mrb[0].mxu0
          %v3284 = vadd.f32 0.0, %v3283
          %v3285 = vpop.f32.mrb[0].mxu0
          %v3286 = vadd.f32 0.0, %v3285
          %3287 = vmatprep.mubr.bf16.mxu0 0
          %3288 = vmatmul.mubr.bf16.gmra.mrb[0].mxu0 %v1978
          %v3289 = vpop.f32.mrb[0].mxu0
          %v3290 = vadd.f32 0.0, %v3289
          %v3291 = vpop.f32.mrb[0].mxu0
          %v3292 = vadd.f32 0.0, %v3291
          %v3293 = vpop.f32.mrb[0].mxu0
          %v3294 = vadd.f32 0.0, %v3293
          %v3295 = vpop.f32.mrb[0].mxu0
          %v3296 = vadd.f32 0.0, %v3295
          %3297 = vmatprep.mubr.bf16.mxu0 0
          %3298 = vmatmul.mubr.bf16.gmra.mrb[0].mxu0 %v1981
          %v3299 = vpop.f32.mrb[0].mxu0
          %v3300 = vadd.f32 0.0, %v3299
          %v3301 = vpop.f32.mrb[0].mxu0
          %v3302 = vadd.f32 0.0, %v3301
          %v3303 = vpop.f32.mrb[0].mxu0
          %v3304 = vadd.f32 0.0, %v3303
          %v3305 = vpop.f32.mrb[0].mxu0
          %v3306 = vadd.f32 0.0, %v3305
          %3307 = vmatprep.mubr.bf16.mxu0 0
          %3308 = vmatmul.mubr.bf16.gmra.mrb[0].mxu0 %v1984
          %v3309 = vpop.f32.mrb[0].mxu0
          %v3310 = vadd.f32 0.0, %v3309
          %v3311 = vpop.f32.mrb[0].mxu0
          %v3312 = vadd.f32 0.0, %v3311
          %v3313 = vpop.f32.mrb[0].mxu0
          %v3314 = vadd.f32 0.0, %v3313
          %v3315 = vpop.f32.mrb[0].mxu0
          %v3316 = vadd.f32 0.0, %v3315
          %3317 = vmatprep.mubr.bf16.mxu0 0
          %3318 = vmatmul.mubr.bf16.gmra.mrb[0].mxu0 %v1987
          %v3319 = vpop.f32.mrb[0].mxu0
          %v3320 = vadd.f32 0.0, %v3319
          %v3321 = vpop.f32.mrb[0].mxu0
          %v3322 = vadd.f32 0.0, %v3321
          %v3323 = vpop.f32.mrb[0].mxu0
          %v3324 = vadd.f32 0.0, %v3323
          %v3325 = vpop.f32.mrb[0].mxu0
          %v3326 = vadd.f32 0.0, %v3325
          %3327 = vmatprep.mubr.bf16.mxu0 0
          %3328 = vmatmul.mubr.bf16.gmra.mrb[0].mxu0 %v1990
          %v3329 = vpop.f32.mrb[0].mxu0
          %v3330 = vadd.f32 0.0, %v3329
          %v3331 = vpop.f32.mrb[0].mxu0
          %v3332 = vadd.f32 0.0, %v3331
          %v3333 = vpop.f32.mrb[0].mxu0
          %v3334 = vadd.f32 0.0, %v3333
          %v3335 = vpop.f32.mrb[0].mxu0
          %v3336 = vadd.f32 0.0, %v3335
          %3337 = vdwg.mxu0
          %v3338 = vmax.f32 %v2027, %v2031
          %v3339 = vmax.f32 %v3338, %v2037
          %v3340 = vmax.f32 %v3339, %v2041
          %v3341 = vmax.f32 %v3340, %v2047
          %v3342 = vmax.f32 %v3341, %v2051
          %v3343 = vmax.f32 %v3342, %v2057
          %v3344 = vmax.f32 %v3343, %v2061
          %v3345 = vmax.f32 %v3344, %v2067
          %v3346 = vmax.f32 %v3345, %v2071
          %v3347 = vmax.f32 %v3346, %v2077
          %v3348 = vmax.f32 %v3347, %v2081
          %v3349 = vmax.f32 %v3348, %v2087
          %v3350 = vmax.f32 %v3349, %v2091
          %v3351 = vmax.f32 %v3350, %v2097
          %v3352 = vmax.f32 %v3351, %v2101
          %v3353 = vmax.f32 %v3352, %v2107
          %v3354 = vmax.f32 %v3353, %v2111
          %v3355 = vmax.f32 %v3354, %v2117
          %v3356 = vmax.f32 %v3355, %v2121
          %v3357 = vmax.f32 %v3356, %v2127
          %v3358 = vmax.f32 %v3357, %v2131
          %v3359 = vmax.f32 %v3358, %v2137
          %v3360 = vmax.f32 %v3359, %v2141
          %v3361 = vmax.f32 %v3360, %v2147
          %v3362 = vmax.f32 %v3361, %v2151
          %v3363 = vmax.f32 %v3362, %v2157
          %v3364 = vmax.f32 %v3363, %v2161
          %v3365 = vmax.f32 %v3364, %v2167
          %v3366 = vmax.f32 %v3365, %v2171
          %v3367 = vmax.f32 %v3366, %v2177
          %v3368 = vmax.f32 %v3367, %v2181
          %v3369 = vmax.f32 %v3368, %v2187
          %v3370 = vmax.f32 %v3369, %v2191
          %v3371 = vmax.f32 %v3370, %v2197
          %v3372 = vmax.f32 %v3371, %v2201
          %v3373 = vmax.f32 %v3372, %v2207
          %v3374 = vmax.f32 %v3373, %v2211
          %v3375 = vmax.f32 %v3374, %v2217
          %v3376 = vmax.f32 %v3375, %v2221
          %v3377 = vmax.f32 %v3376, %v2227
          %v3378 = vmax.f32 %v3377, %v2231
          %v3379 = vmax.f32 %v3378, %v2237
          %v3380 = vmax.f32 %v3379, %v2241
          %v3381 = vmax.f32 %v3380, %v2247
          %v3382 = vmax.f32 %v3381, %v2251
          %v3383 = vmax.f32 %v3382, %v2257
          %v3384 = vmax.f32 %v3383, %v2261
          %v3385 = vmax.f32 %v3384, %v2267
          %v3386 = vmax.f32 %v3385, %v2271
          %v3387 = vmax.f32 %v3386, %v2277
          %v3388 = vmax.f32 %v3387, %v2281
          %v3389 = vmax.f32 %v3388, %v2287
          %v3390 = vmax.f32 %v3389, %v2291
          %v3391 = vmax.f32 %v3390, %v2297
          %v3392 = vmax.f32 %v3391, %v2301
          %v3393 = vmax.f32 %v3392, %v2307
          %v3394 = vmax.f32 %v3393, %v2311
          %v3395 = vmax.f32 %v3394, %v2317
          %v3396 = vmax.f32 %v3395, %v2321
          %v3397 = vmax.f32 %v3396, %v2327
          %v3398 = vmax.f32 %v3397, %v2331
          %v3399 = vmax.f32 %v3398, %v2337
          %v3400 = vmax.f32 %v3399, %v2341
          %v3401 = vmax.f32 %v3400, %v2347
          %v3402 = vmax.f32 %v3401, %v2351
          %v3403 = vmax.f32 %v3402, %v2357
          %v3404 = vmax.f32 %v3403, %v2361
          %v3405 = vmax.f32 %v3404, %v2367
          %v3406 = vmax.f32 %v3405, %v2371
          %v3407 = vmax.f32 %v3406, %v2377
          %v3408 = vmax.f32 %v3407, %v2381
          %v3409 = vmax.f32 %v3408, %v2387
          %v3410 = vmax.f32 %v3409, %v2391
          %v3411 = vmax.f32 %v3410, %v2397
          %v3412 = vmax.f32 %v3411, %v2401
          %v3413 = vmax.f32 %v3412, %v2407
          %v3414 = vmax.f32 %v3413, %v2411
          %v3415 = vmax.f32 %v3414, %v2417
          %v3416 = vmax.f32 %v3415, %v2421
          %v3417 = vmax.f32 %v3416, %v2427
          %v3418 = vmax.f32 %v3417, %v2431
          %v3419 = vmax.f32 %v3418, %v2437
          %v3420 = vmax.f32 %v3419, %v2441
          %v3421 = vmax.f32 %v3420, %v2447
          %v3422 = vmax.f32 %v3421, %v2451
          %v3423 = vmax.f32 %v3422, %v2457
          %v3424 = vmax.f32 %v3423, %v2461
          %v3425 = vmax.f32 %v3424, %v2467
          %v3426 = vmax.f32 %v3425, %v2471
          %v3427 = vmax.f32 %v3426, %v2477
          %v3428 = vmax.f32 %v3427, %v2481
          %v3429 = vmax.f32 %v3428, %v2487
          %v3430 = vmax.f32 %v3429, %v2491
          %v3431 = vmax.f32 %v3430, %v2497
          %v3432 = vmax.f32 %v3431, %v2501
          %v3433 = vmax.f32 %v3432, %v2507
          %v3434 = vmax.f32 %v3433, %v2511
          %v3435 = vmax.f32 %v3434, %v2517
          %v3436 = vmax.f32 %v3435, %v2521
          %v3437 = vmax.f32 %v3436, %v2527
          %v3438 = vmax.f32 %v3437, %v2531
          %v3439 = vmax.f32 %v3438, %v2537
          %v3440 = vmax.f32 %v3439, %v2541
          %v3441 = vmax.f32 %v3440, %v2547
          %v3442 = vmax.f32 %v3441, %v2551
          %v3443 = vmax.f32 %v3442, %v2557
          %v3444 = vmax.f32 %v3443, %v2561
          %v3445 = vmax.f32 %v3444, %v2567
          %v3446 = vmax.f32 %v3445, %v2571
          %v3447 = vmax.f32 %v3446, %v2577
          %v3448 = vmax.f32 %v3447, %v2581
          %v3449 = vmax.f32 %v3448, %v2587
          %v3450 = vmax.f32 %v3449, %v2591
          %v3451 = vmax.f32 %v3450, %v2597
          %v3452 = vmax.f32 %v3451, %v2601
          %v3453 = vmax.f32 %v3452, %v2607
          %v3454 = vmax.f32 %v3453, %v2611
          %v3455 = vmax.f32 %v3454, %v2617
          %v3456 = vmax.f32 %v3455, %v2621
          %v3457 = vmax.f32 %v3456, %v2627
          %v3458 = vmax.f32 %v3457, %v2631
          %v3459 = vmax.f32 %v3458, %v2637
          %v3460 = vmax.f32 %v3459, %v2641
          %v3461 = vmax.f32 %v3460, %v2647
          %v3462 = vmax.f32 %v3461, %v2651
          %v3463 = vmax.f32 %v3462, %v2657
          %v3464 = vmax.f32 %v3463, %v2661
          %v3465 = vrot.slane %v3464, 4
          %v3466 = vmax.f32 %v3464, %v3465
          %v3467 = vrot.slane %v3466, 2
          %v3468 = vmax.f32 %v3466, %v3467
          %v3469 = vrot.slane %v3468, 1
          %v3470 = vmax.f32 %v3468, %v3469
          %v3471 = vmax.f32 %v2029, %v2033
          %v3472 = vmax.f32 %v3471, %v2039
          %v3473 = vmax.f32 %v3472, %v2043
          %v3474 = vmax.f32 %v3473, %v2049
          %v3475 = vmax.f32 %v3474, %v2053
          %v3476 = vmax.f32 %v3475, %v2059
          %v3477 = vmax.f32 %v3476, %v2063
          %v3478 = vmax.f32 %v3477, %v2069
          %v3479 = vmax.f32 %v3478, %v2073
          %v3480 = vmax.f32 %v3479, %v2079
          %v3481 = vmax.f32 %v3480, %v2083
          %v3482 = vmax.f32 %v3481, %v2089
          %v3483 = vmax.f32 %v3482, %v2093
          %v3484 = vmax.f32 %v3483, %v2099
          %v3485 = vmax.f32 %v3484, %v2103
          %v3486 = vmax.f32 %v3485, %v2109
          %v3487 = vmax.f32 %v3486, %v2113
          %v3488 = vmax.f32 %v3487, %v2119
          %v3489 = vmax.f32 %v3488, %v2123
          %v3490 = vmax.f32 %v3489, %v2129
          %v3491 = vmax.f32 %v3490, %v2133
          %v3492 = vmax.f32 %v3491, %v2139
          %v3493 = vmax.f32 %v3492, %v2143
          %v3494 = vmax.f32 %v3493, %v2149
          %v3495 = vmax.f32 %v3494, %v2153
          %v3496 = vmax.f32 %v3495, %v2159
          %v3497 = vmax.f32 %v3496, %v2163
          %v3498 = vmax.f32 %v3497, %v2169
          %v3499 = vmax.f32 %v3498, %v2173
          %v3500 = vmax.f32 %v3499, %v2179
          %v3501 = vmax.f32 %v3500, %v2183
          %v3502 = vmax.f32 %v3501, %v2189
          %v3503 = vmax.f32 %v3502, %v2193
          %v3504 = vmax.f32 %v3503, %v2199
          %v3505 = vmax.f32 %v3504, %v2203
          %v3506 = vmax.f32 %v3505, %v2209
          %v3507 = vmax.f32 %v3506, %v2213
          %v3508 = vmax.f32 %v3507, %v2219
          %v3509 = vmax.f32 %v3508, %v2223
          %v3510 = vmax.f32 %v3509, %v2229
          %v3511 = vmax.f32 %v3510, %v2233
          %v3512 = vmax.f32 %v3511, %v2239
          %v3513 = vmax.f32 %v3512, %v2243
          %v3514 = vmax.f32 %v3513, %v2249
          %v3515 = vmax.f32 %v3514, %v2253
          %v3516 = vmax.f32 %v3515, %v2259
          %v3517 = vmax.f32 %v3516, %v2263
          %v3518 = vmax.f32 %v3517, %v2269
          %v3519 = vmax.f32 %v3518, %v2273
          %v3520 = vmax.f32 %v3519, %v2279
          %v3521 = vmax.f32 %v3520, %v2283
          %v3522 = vmax.f32 %v3521, %v2289
          %v3523 = vmax.f32 %v3522, %v2293
          %v3524 = vmax.f32 %v3523, %v2299
          %v3525 = vmax.f32 %v3524, %v2303
          %v3526 = vmax.f32 %v3525, %v2309
          %v3527 = vmax.f32 %v3526, %v2313
          %v3528 = vmax.f32 %v3527, %v2319
          %v3529 = vmax.f32 %v3528, %v2323
          %v3530 = vmax.f32 %v3529, %v2329
          %v3531 = vmax.f32 %v3530, %v2333
          %v3532 = vmax.f32 %v3531, %v2339
          %v3533 = vmax.f32 %v3532, %v2343
          %v3534 = vmax.f32 %v3533, %v2349
          %v3535 = vmax.f32 %v3534, %v2353
          %v3536 = vmax.f32 %v3535, %v2359
          %v3537 = vmax.f32 %v3536, %v2363
          %v3538 = vmax.f32 %v3537, %v2369
          %v3539 = vmax.f32 %v3538, %v2373
          %v3540 = vmax.f32 %v3539, %v2379
          %v3541 = vmax.f32 %v3540, %v2383
          %v3542 = vmax.f32 %v3541, %v2389
          %v3543 = vmax.f32 %v3542, %v2393
          %v3544 = vmax.f32 %v3543, %v2399
          %v3545 = vmax.f32 %v3544, %v2403
          %v3546 = vmax.f32 %v3545, %v2409
          %v3547 = vmax.f32 %v3546, %v2413
          %v3548 = vmax.f32 %v3547, %v2419
          %v3549 = vmax.f32 %v3548, %v2423
          %v3550 = vmax.f32 %v3549, %v2429
          %v3551 = vmax.f32 %v3550, %v2433
          %v3552 = vmax.f32 %v3551, %v2439
          %v3553 = vmax.f32 %v3552, %v2443
          %v3554 = vmax.f32 %v3553, %v2449
          %v3555 = vmax.f32 %v3554, %v2453
          %v3556 = vmax.f32 %v3555, %v2459
          %v3557 = vmax.f32 %v3556, %v2463
          %v3558 = vmax.f32 %v3557, %v2469
          %v3559 = vmax.f32 %v3558, %v2473
          %v3560 = vmax.f32 %v3559, %v2479
          %v3561 = vmax.f32 %v3560, %v2483
          %v3562 = vmax.f32 %v3561, %v2489
          %v3563 = vmax.f32 %v3562, %v2493
          %v3564 = vmax.f32 %v3563, %v2499
          %v3565 = vmax.f32 %v3564, %v2503
          %v3566 = vmax.f32 %v3565, %v2509
          %v3567 = vmax.f32 %v3566, %v2513
          %v3568 = vmax.f32 %v3567, %v2519
          %v3569 = vmax.f32 %v3568, %v2523
          %v3570 = vmax.f32 %v3569, %v2529
          %v3571 = vmax.f32 %v3570, %v2533
          %v3572 = vmax.f32 %v3571, %v2539
          %v3573 = vmax.f32 %v3572, %v2543
          %v3574 = vmax.f32 %v3573, %v2549
          %v3575 = vmax.f32 %v3574, %v2553
          %v3576 = vmax.f32 %v3575, %v2559
          %v3577 = vmax.f32 %v3576, %v2563
          %v3578 = vmax.f32 %v3577, %v2569
          %v3579 = vmax.f32 %v3578, %v2573
          %v3580 = vmax.f32 %v3579, %v2579
          %v3581 = vmax.f32 %v3580, %v2583
          %v3582 = vmax.f32 %v3581, %v2589
          %v3583 = vmax.f32 %v3582, %v2593
          %v3584 = vmax.f32 %v3583, %v2599
          %v3585 = vmax.f32 %v3584, %v2603
          %v3586 = vmax.f32 %v3585, %v2609
          %v3587 = vmax.f32 %v3586, %v2613
          %v3588 = vmax.f32 %v3587, %v2619
          %v3589 = vmax.f32 %v3588, %v2623
          %v3590 = vmax.f32 %v3589, %v2629
          %v3591 = vmax.f32 %v3590, %v2633
          %v3592 = vmax.f32 %v3591, %v2639
          %v3593 = vmax.f32 %v3592, %v2643
          %v3594 = vmax.f32 %v3593, %v2649
          %v3595 = vmax.f32 %v3594, %v2653
          %v3596 = vmax.f32 %v3595, %v2659
          %v3597 = vmax.f32 %v3596, %v2663
          %v3598 = vrot.slane %v3597, 4
          %v3599 = vmax.f32 %v3597, %v3598
          %v3600 = vrot.slane %v3599, 2
          %v3601 = vmax.f32 %v3599, %v3600
          %v3602 = vrot.slane %v3601, 1
          %v3603 = vmax.f32 %v3601, %v3602
          %v3604 = vmax.f32 %v2700, %v2704
          %v3605 = vmax.f32 %v3604, %v2710
          %v3606 = vmax.f32 %v3605, %v2714
          %v3607 = vmax.f32 %v3606, %v2720
          %v3608 = vmax.f32 %v3607, %v2724
          %v3609 = vmax.f32 %v3608, %v2730
          %v3610 = vmax.f32 %v3609, %v2734
          %v3611 = vmax.f32 %v3610, %v2740
          %v3612 = vmax.f32 %v3611, %v2744
          %v3613 = vmax.f32 %v3612, %v2750
          %v3614 = vmax.f32 %v3613, %v2754
          %v3615 = vmax.f32 %v3614, %v2760
          %v3616 = vmax.f32 %v3615, %v2764
          %v3617 = vmax.f32 %v3616, %v2770
          %v3618 = vmax.f32 %v3617, %v2774
          %v3619 = vmax.f32 %v3618, %v2780
          %v3620 = vmax.f32 %v3619, %v2784
          %v3621 = vmax.f32 %v3620, %v2790
          %v3622 = vmax.f32 %v3621, %v2794
          %v3623 = vmax.f32 %v3622, %v2800
          %v3624 = vmax.f32 %v3623, %v2804
          %v3625 = vmax.f32 %v3624, %v2810
          %v3626 = vmax.f32 %v3625, %v2814
          %v3627 = vmax.f32 %v3626, %v2820
          %v3628 = vmax.f32 %v3627, %v2824
          %v3629 = vmax.f32 %v3628, %v2830
          %v3630 = vmax.f32 %v3629, %v2834
          %v3631 = vmax.f32 %v3630, %v2840
          %v3632 = vmax.f32 %v3631, %v2844
          %v3633 = vmax.f32 %v3632, %v2850
          %v3634 = vmax.f32 %v3633, %v2854
          %v3635 = vmax.f32 %v3634, %v2860
          %v3636 = vmax.f32 %v3635, %v2864
          %v3637 = vmax.f32 %v3636, %v2870
          %v3638 = vmax.f32 %v3637, %v2874
          %v3639 = vmax.f32 %v3638, %v2880
          %v3640 = vmax.f32 %v3639, %v2884
          %v3641 = vmax.f32 %v3640, %v2890
          %v3642 = vmax.f32 %v3641, %v2894
          %v3643 = vmax.f32 %v3642, %v2900
          %v3644 = vmax.f32 %v3643, %v2904
          %v3645 = vmax.f32 %v3644, %v2910
          %v3646 = vmax.f32 %v3645, %v2914
          %v3647 = vmax.f32 %v3646, %v2920
          %v3648 = vmax.f32 %v3647, %v2924
          %v3649 = vmax.f32 %v3648, %v2930
          %v3650 = vmax.f32 %v3649, %v2934
          %v3651 = vmax.f32 %v3650, %v2940
          %v3652 = vmax.f32 %v3651, %v2944
          %v3653 = vmax.f32 %v3652, %v2950
          %v3654 = vmax.f32 %v3653, %v2954
          %v3655 = vmax.f32 %v3654, %v2960
          %v3656 = vmax.f32 %v3655, %v2964
          %v3657 = vmax.f32 %v3656, %v2970
          %v3658 = vmax.f32 %v3657, %v2974
          %v3659 = vmax.f32 %v3658, %v2980
          %v3660 = vmax.f32 %v3659, %v2984
          %v3661 = vmax.f32 %v3660, %v2990
          %v3662 = vmax.f32 %v3661, %v2994
          %v3663 = vmax.f32 %v3662, %v3000
          %v3664 = vmax.f32 %v3663, %v3004
          %v3665 = vmax.f32 %v3664, %v3010
          %v3666 = vmax.f32 %v3665, %v3014
          %v3667 = vmax.f32 %v3666, %v3020
          %v3668 = vmax.f32 %v3667, %v3024
          %v3669 = vmax.f32 %v3668, %v3030
          %v3670 = vmax.f32 %v3669, %v3034
          %v3671 = vmax.f32 %v3670, %v3040
          %v3672 = vmax.f32 %v3671, %v3044
          %v3673 = vmax.f32 %v3672, %v3050
          %v3674 = vmax.f32 %v3673, %v3054
          %v3675 = vmax.f32 %v3674, %v3060
          %v3676 = vmax.f32 %v3675, %v3064
          %v3677 = vmax.f32 %v3676, %v3070
          %v3678 = vmax.f32 %v3677, %v3074
          %v3679 = vmax.f32 %v3678, %v3080
          %v3680 = vmax.f32 %v3679, %v3084
          %v3681 = vmax.f32 %v3680, %v3090
          %v3682 = vmax.f32 %v3681, %v3094
          %v3683 = vmax.f32 %v3682, %v3100
          %v3684 = vmax.f32 %v3683, %v3104
          %v3685 = vmax.f32 %v3684, %v3110
          %v3686 = vmax.f32 %v3685, %v3114
          %v3687 = vmax.f32 %v3686, %v3120
          %v3688 = vmax.f32 %v3687, %v3124
          %v3689 = vmax.f32 %v3688, %v3130
          %v3690 = vmax.f32 %v3689, %v3134
          %v3691 = vmax.f32 %v3690, %v3140
          %v3692 = vmax.f32 %v3691, %v3144
          %v3693 = vmax.f32 %v3692, %v3150
          %v3694 = vmax.f32 %v3693, %v3154
          %v3695 = vmax.f32 %v3694, %v3160
          %v3696 = vmax.f32 %v3695, %v3164
          %v3697 = vmax.f32 %v3696, %v3170
          %v3698 = vmax.f32 %v3697, %v3174
          %v3699 = vmax.f32 %v3698, %v3180
          %v3700 = vmax.f32 %v3699, %v3184
          %v3701 = vmax.f32 %v3700, %v3190
          %v3702 = vmax.f32 %v3701, %v3194
          %v3703 = vmax.f32 %v3702, %v3200
          %v3704 = vmax.f32 %v3703, %v3204
          %v3705 = vmax.f32 %v3704, %v3210
          %v3706 = vmax.f32 %v3705, %v3214
          %v3707 = vmax.f32 %v3706, %v3220
          %v3708 = vmax.f32 %v3707, %v3224
          %v3709 = vmax.f32 %v3708, %v3230
          %v3710 = vmax.f32 %v3709, %v3234
          %v3711 = vmax.f32 %v3710, %v3240
          %v3712 = vmax.f32 %v3711, %v3244
          %v3713 = vmax.f32 %v3712, %v3250
          %v3714 = vmax.f32 %v3713, %v3254
          %v3715 = vmax.f32 %v3714, %v3260
          %v3716 = vmax.f32 %v3715, %v3264
          %v3717 = vmax.f32 %v3716, %v3270
          %v3718 = vmax.f32 %v3717, %v3274
          %v3719 = vmax.f32 %v3718, %v3280
          %v3720 = vmax.f32 %v3719, %v3284
          %v3721 = vmax.f32 %v3720, %v3290
          %v3722 = vmax.f32 %v3721, %v3294
          %v3723 = vmax.f32 %v3722, %v3300
          %v3724 = vmax.f32 %v3723, %v3304
          %v3725 = vmax.f32 %v3724, %v3310
          %v3726 = vmax.f32 %v3725, %v3314
          %v3727 = vmax.f32 %v3726, %v3320
          %v3728 = vmax.f32 %v3727, %v3324
          %v3729 = vmax.f32 %v3728, %v3330
          %v3730 = vmax.f32 %v3729, %v3334
          %v3731 = vrot.slane %v3730, 4
          %v3732 = vmax.f32 %v3730, %v3731
          %v3733 = vrot.slane %v3732, 2
          %v3734 = vmax.f32 %v3732, %v3733
          %v3735 = vrot.slane %v3734, 1
          %v3736 = vmax.f32 %v3734, %v3735
          %v3737 = vmax.f32 %v2702, %v2706
          %v3738 = vmax.f32 %v3737, %v2712
          %v3739 = vmax.f32 %v3738, %v2716
          %v3740 = vmax.f32 %v3739, %v2722
          %v3741 = vmax.f32 %v3740, %v2726
          %v3742 = vmax.f32 %v3741, %v2732
          %v3743 = vmax.f32 %v3742, %v2736
          %v3744 = vmax.f32 %v3743, %v2742
          %v3745 = vmax.f32 %v3744, %v2746
          %v3746 = vmax.f32 %v3745, %v2752
          %v3747 = vmax.f32 %v3746, %v2756
          %v3748 = vmax.f32 %v3747, %v2762
          %v3749 = vmax.f32 %v3748, %v2766
          %v3750 = vmax.f32 %v3749, %v2772
          %v3751 = vmax.f32 %v3750, %v2776
          %v3752 = vmax.f32 %v3751, %v2782
          %v3753 = vmax.f32 %v3752, %v2786
          %v3754 = vmax.f32 %v3753, %v2792
          %v3755 = vmax.f32 %v3754, %v2796
          %v3756 = vmax.f32 %v3755, %v2802
          %v3757 = vmax.f32 %v3756, %v2806
          %v3758 = vmax.f32 %v3757, %v2812
          %v3759 = vmax.f32 %v3758, %v2816
          %v3760 = vmax.f32 %v3759, %v2822
          %v3761 = vmax.f32 %v3760, %v2826
          %v3762 = vmax.f32 %v3761, %v2832
          %v3763 = vmax.f32 %v3762, %v2836
          %v3764 = vmax.f32 %v3763, %v2842
          %v3765 = vmax.f32 %v3764, %v2846
          %v3766 = vmax.f32 %v3765, %v2852
          %v3767 = vmax.f32 %v3766, %v2856
          %v3768 = vmax.f32 %v3767, %v2862
          %v3769 = vmax.f32 %v3768, %v2866
          %v3770 = vmax.f32 %v3769, %v2872
          %v3771 = vmax.f32 %v3770, %v2876
          %v3772 = vmax.f32 %v3771, %v2882
          %v3773 = vmax.f32 %v3772, %v2886
          %v3774 = vmax.f32 %v3773, %v2892
          %v3775 = vmax.f32 %v3774, %v2896
          %v3776 = vmax.f32 %v3775, %v2902
          %v3777 = vmax.f32 %v3776, %v2906
          %v3778 = vmax.f32 %v3777, %v2912
          %v3779 = vmax.f32 %v3778, %v2916
          %v3780 = vmax.f32 %v3779, %v2922
          %v3781 = vmax.f32 %v3780, %v2926
          %v3782 = vmax.f32 %v3781, %v2932
          %v3783 = vmax.f32 %v3782, %v2936
          %v3784 = vmax.f32 %v3783, %v2942
          %v3785 = vmax.f32 %v3784, %v2946
          %v3786 = vmax.f32 %v3785, %v2952
          %v3787 = vmax.f32 %v3786, %v2956
          %v3788 = vmax.f32 %v3787, %v2962
          %v3789 = vmax.f32 %v3788, %v2966
          %v3790 = vmax.f32 %v3789, %v2972
          %v3791 = vmax.f32 %v3790, %v2976
          %v3792 = vmax.f32 %v3791, %v2982
          %v3793 = vmax.f32 %v3792, %v2986
          %v3794 = vmax.f32 %v3793, %v2992
          %v3795 = vmax.f32 %v3794, %v2996
          %v3796 = vmax.f32 %v3795, %v3002
          %v3797 = vmax.f32 %v3796, %v3006
          %v3798 = vmax.f32 %v3797, %v3012
          %v3799 = vmax.f32 %v3798, %v3016
          %v3800 = vmax.f32 %v3799, %v3022
          %v3801 = vmax.f32 %v3800, %v3026
          %v3802 = vmax.f32 %v3801, %v3032
          %v3803 = vmax.f32 %v3802, %v3036
          %v3804 = vmax.f32 %v3803, %v3042
          %v3805 = vmax.f32 %v3804, %v3046
          %v3806 = vmax.f32 %v3805, %v3052
          %v3807 = vmax.f32 %v3806, %v3056
          %v3808 = vmax.f32 %v3807, %v3062
          %v3809 = vmax.f32 %v3808, %v3066
          %v3810 = vmax.f32 %v3809, %v3072
          %v3811 = vmax.f32 %v3810, %v3076
          %v3812 = vmax.f32 %v3811, %v3082
          %v3813 = vmax.f32 %v3812, %v3086
          %v3814 = vmax.f32 %v3813, %v3092
          %v3815 = vmax.f32 %v3814, %v3096
          %v3816 = vmax.f32 %v3815, %v3102
          %v3817 = vmax.f32 %v3816, %v3106
          %v3818 = vmax.f32 %v3817, %v3112
          %v3819 = vmax.f32 %v3818, %v3116
          %v3820 = vmax.f32 %v3819, %v3122
          %v3821 = vmax.f32 %v3820, %v3126
          %v3822 = vmax.f32 %v3821, %v3132
          %v3823 = vmax.f32 %v3822, %v3136
          %v3824 = vmax.f32 %v3823, %v3142
          %v3825 = vmax.f32 %v3824, %v3146
          %v3826 = vmax.f32 %v3825, %v3152
          %v3827 = vmax.f32 %v3826, %v3156
          %v3828 = vmax.f32 %v3827, %v3162
          %v3829 = vmax.f32 %v3828, %v3166
          %v3830 = vmax.f32 %v3829, %v3172
          %v3831 = vmax.f32 %v3830, %v3176
          %v3832 = vmax.f32 %v3831, %v3182
          %v3833 = vmax.f32 %v3832, %v3186
          %v3834 = vmax.f32 %v3833, %v3192
          %v3835 = vmax.f32 %v3834, %v3196
          %v3836 = vmax.f32 %v3835, %v3202
          %v3837 = vmax.f32 %v3836, %v3206
          %v3838 = vmax.f32 %v3837, %v3212
          %v3839 = vmax.f32 %v3838, %v3216
          %v3840 = vmax.f32 %v3839, %v3222
          %v3841 = vmax.f32 %v3840, %v3226
          %v3842 = vmax.f32 %v3841, %v3232
          %v3843 = vmax.f32 %v3842, %v3236
          %v3844 = vmax.f32 %v3843, %v3242
          %v3845 = vmax.f32 %v3844, %v3246
          %v3846 = vmax.f32 %v3845, %v3252
          %v3847 = vmax.f32 %v3846, %v3256
          %v3848 = vmax.f32 %v3847, %v3262
          %v3849 = vmax.f32 %v3848, %v3266
          %v3850 = vmax.f32 %v3849, %v3272
          %v3851 = vmax.f32 %v3850, %v3276
          %v3852 = vmax.f32 %v3851, %v3282
          %v3853 = vmax.f32 %v3852, %v3286
          %v3854 = vmax.f32 %v3853, %v3292
          %v3855 = vmax.f32 %v3854, %v3296
          %v3856 = vmax.f32 %v3855, %v3302
          %v3857 = vmax.f32 %v3856, %v3306
          %v3858 = vmax.f32 %v3857, %v3312
          %v3859 = vmax.f32 %v3858, %v3316
          %v3860 = vmax.f32 %v3859, %v3322
          %v3861 = vmax.f32 %v3860, %v3326
          %v3862 = vmax.f32 %v3861, %v3332
          %v3863 = vmax.f32 %v3862, %v3336
          %v3864 = vrot.slane %v3863, 4
          %v3865 = vmax.f32 %v3863, %v3864
          %v3866 = vrot.slane %v3865, 2
          %v3867 = vmax.f32 %v3865, %v3866
          %v3868 = vrot.slane %v3867, 1
          %v3869 = vmax.f32 %v3867, %v3868
          %v3870 = vsub.f32 %v2027, %v3470
          %v3871 = vsub.f32 %v2029, %v3603
          %v3872 = vsub.f32 %v2700, %v3736
          %v3873 = vsub.f32 %v2702, %v3869
          %v3874 = vsub.f32 %v2031, %v3470
          %v3875 = vsub.f32 %v2033, %v3603
          %v3876 = vsub.f32 %v2704, %v3736
          %v3877 = vsub.f32 %v2706, %v3869
          %v3878 = vsub.f32 %v2037, %v3470
          %v3879 = vsub.f32 %v2039, %v3603
          %v3880 = vsub.f32 %v2710, %v3736
          %v3881 = vsub.f32 %v2712, %v3869
          %v3882 = vsub.f32 %v2041, %v3470
          %v3883 = vsub.f32 %v2043, %v3603
          %v3884 = vsub.f32 %v2714, %v3736
          %v3885 = vsub.f32 %v2716, %v3869
          %v3886 = vsub.f32 %v2047, %v3470
          %v3887 = vsub.f32 %v2049, %v3603
          %v3888 = vsub.f32 %v2720, %v3736
          %v3889 = vsub.f32 %v2722, %v3869
          %v3890 = vsub.f32 %v2051, %v3470
          %v3891 = vsub.f32 %v2053, %v3603
          %v3892 = vsub.f32 %v2724, %v3736
          %v3893 = vsub.f32 %v2726, %v3869
          %v3894 = vsub.f32 %v2057, %v3470
          %v3895 = vsub.f32 %v2059, %v3603
          %v3896 = vsub.f32 %v2730, %v3736
          %v3897 = vsub.f32 %v2732, %v3869
          %v3898 = vsub.f32 %v2061, %v3470
          %v3899 = vsub.f32 %v2063, %v3603
          %v3900 = vsub.f32 %v2734, %v3736
          %v3901 = vsub.f32 %v2736, %v3869
          %v3902 = vsub.f32 %v2067, %v3470
          %v3903 = vsub.f32 %v2069, %v3603
          %v3904 = vsub.f32 %v2740, %v3736
          %v3905 = vsub.f32 %v2742, %v3869
          %v3906 = vsub.f32 %v2071, %v3470
          %v3907 = vsub.f32 %v2073, %v3603
          %v3908 = vsub.f32 %v2744, %v3736
          %v3909 = vsub.f32 %v2746, %v3869
          %v3910 = vsub.f32 %v2077, %v3470
          %v3911 = vsub.f32 %v2079, %v3603
          %v3912 = vsub.f32 %v2750, %v3736
          %v3913 = vsub.f32 %v2752, %v3869
          %v3914 = vsub.f32 %v2081, %v3470
          %v3915 = vsub.f32 %v2083, %v3603
          %v3916 = vsub.f32 %v2754, %v3736
          %v3917 = vsub.f32 %v2756, %v3869
          %v3918 = vsub.f32 %v2087, %v3470
          %v3919 = vsub.f32 %v2089, %v3603
          %v3920 = vsub.f32 %v2760, %v3736
          %v3921 = vsub.f32 %v2762, %v3869
          %v3922 = vsub.f32 %v2091, %v3470
          %v3923 = vsub.f32 %v2093, %v3603
          %v3924 = vsub.f32 %v2764, %v3736
          %v3925 = vsub.f32 %v2766, %v3869
          %v3926 = vsub.f32 %v2097, %v3470
          %v3927 = vsub.f32 %v2099, %v3603
          %v3928 = vsub.f32 %v2770, %v3736
          %v3929 = vsub.f32 %v2772, %v3869
          %v3930 = vsub.f32 %v2101, %v3470
          %v3931 = vsub.f32 %v2103, %v3603
          %v3932 = vsub.f32 %v2774, %v3736
          %v3933 = vsub.f32 %v2776, %v3869
          %v3934 = vsub.f32 %v2107, %v3470
          %v3935 = vsub.f32 %v2109, %v3603
          %v3936 = vsub.f32 %v2780, %v3736
          %v3937 = vsub.f32 %v2782, %v3869
          %v3938 = vsub.f32 %v2111, %v3470
          %v3939 = vsub.f32 %v2113, %v3603
          %v3940 = vsub.f32 %v2784, %v3736
          %v3941 = vsub.f32 %v2786, %v3869
          %v3942 = vsub.f32 %v2117, %v3470
          %v3943 = vsub.f32 %v2119, %v3603
          %v3944 = vsub.f32 %v2790, %v3736
          %v3945 = vsub.f32 %v2792, %v3869
          %v3946 = vsub.f32 %v2121, %v3470
          %v3947 = vsub.f32 %v2123, %v3603
          %v3948 = vsub.f32 %v2794, %v3736
          %v3949 = vsub.f32 %v2796, %v3869
          %v3950 = vsub.f32 %v2127, %v3470
          %v3951 = vsub.f32 %v2129, %v3603
          %v3952 = vsub.f32 %v2800, %v3736
          %v3953 = vsub.f32 %v2802, %v3869
          %v3954 = vsub.f32 %v2131, %v3470
          %v3955 = vsub.f32 %v2133, %v3603
          %v3956 = vsub.f32 %v2804, %v3736
          %v3957 = vsub.f32 %v2806, %v3869
          %v3958 = vsub.f32 %v2137, %v3470
          %v3959 = vsub.f32 %v2139, %v3603
          %v3960 = vsub.f32 %v2810, %v3736
          %v3961 = vsub.f32 %v2812, %v3869
          %v3962 = vsub.f32 %v2141, %v3470
          %v3963 = vsub.f32 %v2143, %v3603
          %v3964 = vsub.f32 %v2814, %v3736
          %v3965 = vsub.f32 %v2816, %v3869
          %v3966 = vsub.f32 %v2147, %v3470
          %v3967 = vsub.f32 %v2149, %v3603
          %v3968 = vsub.f32 %v2820, %v3736
          %v3969 = vsub.f32 %v2822, %v3869
          %v3970 = vsub.f32 %v2151, %v3470
          %v3971 = vsub.f32 %v2153, %v3603
          %v3972 = vsub.f32 %v2824, %v3736
          %v3973 = vsub.f32 %v2826, %v3869
          %v3974 = vsub.f32 %v2157, %v3470
          %v3975 = vsub.f32 %v2159, %v3603
          %v3976 = vsub.f32 %v2830, %v3736
          %v3977 = vsub.f32 %v2832, %v3869
          %v3978 = vsub.f32 %v2161, %v3470
          %v3979 = vsub.f32 %v2163, %v3603
          %v3980 = vsub.f32 %v2834, %v3736
          %v3981 = vsub.f32 %v2836, %v3869
          %v3982 = vsub.f32 %v2167, %v3470
          %v3983 = vsub.f32 %v2169, %v3603
          %v3984 = vsub.f32 %v2840, %v3736
          %v3985 = vsub.f32 %v2842, %v3869
          %v3986 = vsub.f32 %v2171, %v3470
          %v3987 = vsub.f32 %v2173, %v3603
          %v3988 = vsub.f32 %v2844, %v3736
          %v3989 = vsub.f32 %v2846, %v3869
          %v3990 = vsub.f32 %v2177, %v3470
          %v3991 = vsub.f32 %v2179, %v3603
          %v3992 = vsub.f32 %v2850, %v3736
          %v3993 = vsub.f32 %v2852, %v3869
          %v3994 = vsub.f32 %v2181, %v3470
          %v3995 = vsub.f32 %v2183, %v3603
          %v3996 = vsub.f32 %v2854, %v3736
          %v3997 = vsub.f32 %v2856, %v3869
          %v3998 = vsub.f32 %v2187, %v3470
          %v3999 = vsub.f32 %v2189, %v3603
          %v4000 = vsub.f32 %v2860, %v3736
          %v4001 = vsub.f32 %v2862, %v3869
          %v4002 = vsub.f32 %v2191, %v3470
          %v4003 = vsub.f32 %v2193, %v3603
          %v4004 = vsub.f32 %v2864, %v3736
          %v4005 = vsub.f32 %v2866, %v3869
          %v4006 = vsub.f32 %v2197, %v3470
          %v4007 = vsub.f32 %v2199, %v3603
          %v4008 = vsub.f32 %v2870, %v3736
          %v4009 = vsub.f32 %v2872, %v3869
          %v4010 = vsub.f32 %v2201, %v3470
          %v4011 = vsub.f32 %v2203, %v3603
          %v4012 = vsub.f32 %v2874, %v3736
          %v4013 = vsub.f32 %v2876, %v3869
          %v4014 = vsub.f32 %v2207, %v3470
          %v4015 = vsub.f32 %v2209, %v3603
          %v4016 = vsub.f32 %v2880, %v3736
          %v4017 = vsub.f32 %v2882, %v3869
          %v4018 = vsub.f32 %v2211, %v3470
          %v4019 = vsub.f32 %v2213, %v3603
          %v4020 = vsub.f32 %v2884, %v3736
          %v4021 = vsub.f32 %v2886, %v3869
          %v4022 = vsub.f32 %v2217, %v3470
          %v4023 = vsub.f32 %v2219, %v3603
          %v4024 = vsub.f32 %v2890, %v3736
          %v4025 = vsub.f32 %v2892, %v3869
          %v4026 = vsub.f32 %v2221, %v3470
          %v4027 = vsub.f32 %v2223, %v3603
          %v4028 = vsub.f32 %v2894, %v3736
          %v4029 = vsub.f32 %v2896, %v3869
          %v4030 = vsub.f32 %v2227, %v3470
          %v4031 = vsub.f32 %v2229, %v3603
          %v4032 = vsub.f32 %v2900, %v3736
          %v4033 = vsub.f32 %v2902, %v3869
          %v4034 = vsub.f32 %v2231, %v3470
          %v4035 = vsub.f32 %v2233, %v3603
          %v4036 = vsub.f32 %v2904, %v3736
          %v4037 = vsub.f32 %v2906, %v3869
          %v4038 = vsub.f32 %v2237, %v3470
          %v4039 = vsub.f32 %v2239, %v3603
          %v4040 = vsub.f32 %v2910, %v3736
          %v4041 = vsub.f32 %v2912, %v3869
          %v4042 = vsub.f32 %v2241, %v3470
          %v4043 = vsub.f32 %v2243, %v3603
          %v4044 = vsub.f32 %v2914, %v3736
          %v4045 = vsub.f32 %v2916, %v3869
          %v4046 = vsub.f32 %v2247, %v3470
          %v4047 = vsub.f32 %v2249, %v3603
          %v4048 = vsub.f32 %v2920, %v3736
          %v4049 = vsub.f32 %v2922, %v3869
          %v4050 = vsub.f32 %v2251, %v3470
          %v4051 = vsub.f32 %v2253, %v3603
          %v4052 = vsub.f32 %v2924, %v3736
          %v4053 = vsub.f32 %v2926, %v3869
          %v4054 = vsub.f32 %v2257, %v3470
          %v4055 = vsub.f32 %v2259, %v3603
          %v4056 = vsub.f32 %v2930, %v3736
          %v4057 = vsub.f32 %v2932, %v3869
          %v4058 = vsub.f32 %v2261, %v3470
          %v4059 = vsub.f32 %v2263, %v3603
          %v4060 = vsub.f32 %v2934, %v3736
          %v4061 = vsub.f32 %v2936, %v3869
          %v4062 = vsub.f32 %v2267, %v3470
          %v4063 = vsub.f32 %v2269, %v3603
          %v4064 = vsub.f32 %v2940, %v3736
          %v4065 = vsub.f32 %v2942, %v3869
          %v4066 = vsub.f32 %v2271, %v3470
          %v4067 = vsub.f32 %v2273, %v3603
          %v4068 = vsub.f32 %v2944, %v3736
          %v4069 = vsub.f32 %v2946, %v3869
          %v4070 = vsub.f32 %v2277, %v3470
          %v4071 = vsub.f32 %v2279, %v3603
          %v4072 = vsub.f32 %v2950, %v3736
          %v4073 = vsub.f32 %v2952, %v3869
          %v4074 = vsub.f32 %v2281, %v3470
          %v4075 = vsub.f32 %v2283, %v3603
          %v4076 = vsub.f32 %v2954, %v3736
          %v4077 = vsub.f32 %v2956, %v3869
          %v4078 = vsub.f32 %v2287, %v3470
          %v4079 = vsub.f32 %v2289, %v3603
          %v4080 = vsub.f32 %v2960, %v3736
          %v4081 = vsub.f32 %v2962, %v3869
          %v4082 = vsub.f32 %v2291, %v3470
          %v4083 = vsub.f32 %v2293, %v3603
          %v4084 = vsub.f32 %v2964, %v3736
          %v4085 = vsub.f32 %v2966, %v3869
          %v4086 = vsub.f32 %v2297, %v3470
          %v4087 = vsub.f32 %v2299, %v3603
          %v4088 = vsub.f32 %v2970, %v3736
          %v4089 = vsub.f32 %v2972, %v3869
          %v4090 = vsub.f32 %v2301, %v3470
          %v4091 = vsub.f32 %v2303, %v3603
          %v4092 = vsub.f32 %v2974, %v3736
          %v4093 = vsub.f32 %v2976, %v3869
          %v4094 = vsub.f32 %v2307, %v3470
          %v4095 = vsub.f32 %v2309, %v3603
          %v4096 = vsub.f32 %v2980, %v3736
          %v4097 = vsub.f32 %v2982, %v3869
          %v4098 = vsub.f32 %v2311, %v3470
          %v4099 = vsub.f32 %v2313, %v3603
          %v4100 = vsub.f32 %v2984, %v3736
          %v4101 = vsub.f32 %v2986, %v3869
          %v4102 = vsub.f32 %v2317, %v3470
          %v4103 = vsub.f32 %v2319, %v3603
          %v4104 = vsub.f32 %v2990, %v3736
          %v4105 = vsub.f32 %v2992, %v3869
          %v4106 = vsub.f32 %v2321, %v3470
          %v4107 = vsub.f32 %v2323, %v3603
          %v4108 = vsub.f32 %v2994, %v3736
          %v4109 = vsub.f32 %v2996, %v3869
          %v4110 = vsub.f32 %v2327, %v3470
          %v4111 = vsub.f32 %v2329, %v3603
          %v4112 = vsub.f32 %v3000, %v3736
          %v4113 = vsub.f32 %v3002, %v3869
          %v4114 = vsub.f32 %v2331, %v3470
          %v4115 = vsub.f32 %v2333, %v3603
          %v4116 = vsub.f32 %v3004, %v3736
          %v4117 = vsub.f32 %v3006, %v3869
          %v4118 = vsub.f32 %v2337, %v3470
          %v4119 = vsub.f32 %v2339, %v3603
          %v4120 = vsub.f32 %v3010, %v3736
          %v4121 = vsub.f32 %v3012, %v3869
          %v4122 = vsub.f32 %v2341, %v3470
          %v4123 = vsub.f32 %v2343, %v3603
          %v4124 = vsub.f32 %v3014, %v3736
          %v4125 = vsub.f32 %v3016, %v3869
          %v4126 = vsub.f32 %v2347, %v3470
          %v4127 = vsub.f32 %v2349, %v3603
          %v4128 = vsub.f32 %v3020, %v3736
          %v4129 = vsub.f32 %v3022, %v3869
          %v4130 = vsub.f32 %v2351, %v3470
          %v4131 = vsub.f32 %v2353, %v3603
          %v4132 = vsub.f32 %v3024, %v3736
          %v4133 = vsub.f32 %v3026, %v3869
          %v4134 = vsub.f32 %v2357, %v3470
          %v4135 = vsub.f32 %v2359, %v3603
          %v4136 = vsub.f32 %v3030, %v3736
          %v4137 = vsub.f32 %v3032, %v3869
          %v4138 = vsub.f32 %v2361, %v3470
          %v4139 = vsub.f32 %v2363, %v3603
          %v4140 = vsub.f32 %v3034, %v3736
          %v4141 = vsub.f32 %v3036, %v3869
          %v4142 = vsub.f32 %v2367, %v3470
          %v4143 = vsub.f32 %v2369, %v3603
          %v4144 = vsub.f32 %v3040, %v3736
          %v4145 = vsub.f32 %v3042, %v3869
          %v4146 = vsub.f32 %v2371, %v3470
          %v4147 = vsub.f32 %v2373, %v3603
          %v4148 = vsub.f32 %v3044, %v3736
          %v4149 = vsub.f32 %v3046, %v3869
          %v4150 = vsub.f32 %v2377, %v3470
          %v4151 = vsub.f32 %v2379, %v3603
          %v4152 = vsub.f32 %v3050, %v3736
          %v4153 = vsub.f32 %v3052, %v3869
          %v4154 = vsub.f32 %v2381, %v3470
          %v4155 = vsub.f32 %v2383, %v3603
          %v4156 = vsub.f32 %v3054, %v3736
          %v4157 = vsub.f32 %v3056, %v3869
          %v4158 = vsub.f32 %v2387, %v3470
          %v4159 = vsub.f32 %v2389, %v3603
          %v4160 = vsub.f32 %v3060, %v3736
          %v4161 = vsub.f32 %v3062, %v3869
          %v4162 = vsub.f32 %v2391, %v3470
          %v4163 = vsub.f32 %v2393, %v3603
          %v4164 = vsub.f32 %v3064, %v3736
          %v4165 = vsub.f32 %v3066, %v3869
          %v4166 = vsub.f32 %v2397, %v3470
          %v4167 = vsub.f32 %v2399, %v3603
          %v4168 = vsub.f32 %v3070, %v3736
          %v4169 = vsub.f32 %v3072, %v3869
          %v4170 = vsub.f32 %v2401, %v3470
          %v4171 = vsub.f32 %v2403, %v3603
          %v4172 = vsub.f32 %v3074, %v3736
          %v4173 = vsub.f32 %v3076, %v3869
          %v4174 = vsub.f32 %v2407, %v3470
          %v4175 = vsub.f32 %v2409, %v3603
          %v4176 = vsub.f32 %v3080, %v3736
          %v4177 = vsub.f32 %v3082, %v3869
          %v4178 = vsub.f32 %v2411, %v3470
          %v4179 = vsub.f32 %v2413, %v3603
          %v4180 = vsub.f32 %v3084, %v3736
          %v4181 = vsub.f32 %v3086, %v3869
          %v4182 = vsub.f32 %v2417, %v3470
          %v4183 = vsub.f32 %v2419, %v3603
          %v4184 = vsub.f32 %v3090, %v3736
          %v4185 = vsub.f32 %v3092, %v3869
          %v4186 = vsub.f32 %v2421, %v3470
          %v4187 = vsub.f32 %v2423, %v3603
          %v4188 = vsub.f32 %v3094, %v3736
          %v4189 = vsub.f32 %v3096, %v3869
          %v4190 = vsub.f32 %v2427, %v3470
          %v4191 = vsub.f32 %v2429, %v3603
          %v4192 = vsub.f32 %v3100, %v3736
          %v4193 = vsub.f32 %v3102, %v3869
          %v4194 = vsub.f32 %v2431, %v3470
          %v4195 = vsub.f32 %v2433, %v3603
          %v4196 = vsub.f32 %v3104, %v3736
          %v4197 = vsub.f32 %v3106, %v3869
          %v4198 = vsub.f32 %v2437, %v3470
          %v4199 = vsub.f32 %v2439, %v3603
          %v4200 = vsub.f32 %v3110, %v3736
          %v4201 = vsub.f32 %v3112, %v3869
          %v4202 = vsub.f32 %v2441, %v3470
          %v4203 = vsub.f32 %v2443, %v3603
          %v4204 = vsub.f32 %v3114, %v3736
          %v4205 = vsub.f32 %v3116, %v3869
          %v4206 = vsub.f32 %v2447, %v3470
          %v4207 = vsub.f32 %v2449, %v3603
          %v4208 = vsub.f32 %v3120, %v3736
          %v4209 = vsub.f32 %v3122, %v3869
          %v4210 = vsub.f32 %v2451, %v3470
          %v4211 = vsub.f32 %v2453, %v3603
          %v4212 = vsub.f32 %v3124, %v3736
          %v4213 = vsub.f32 %v3126, %v3869
          %v4214 = vsub.f32 %v2457, %v3470
          %v4215 = vsub.f32 %v2459, %v3603
          %v4216 = vsub.f32 %v3130, %v3736
          %v4217 = vsub.f32 %v3132, %v3869
          %v4218 = vsub.f32 %v2461, %v3470
          %v4219 = vsub.f32 %v2463, %v3603
          %v4220 = vsub.f32 %v3134, %v3736
          %v4221 = vsub.f32 %v3136, %v3869
          %v4222 = vsub.f32 %v2467, %v3470
          %v4223 = vsub.f32 %v2469, %v3603
          %v4224 = vsub.f32 %v3140, %v3736
          %v4225 = vsub.f32 %v3142, %v3869
          %v4226 = vsub.f32 %v2471, %v3470
          %v4227 = vsub.f32 %v2473, %v3603
          %v4228 = vsub.f32 %v3144, %v3736
          %v4229 = vsub.f32 %v3146, %v3869
          %v4230 = vsub.f32 %v2477, %v3470
          %v4231 = vsub.f32 %v2479, %v3603
          %v4232 = vsub.f32 %v3150, %v3736
          %v4233 = vsub.f32 %v3152, %v3869
          %v4234 = vsub.f32 %v2481, %v3470
          %v4235 = vsub.f32 %v2483, %v3603
          %v4236 = vsub.f32 %v3154, %v3736
          %v4237 = vsub.f32 %v3156, %v3869
          %v4238 = vsub.f32 %v2487, %v3470
          %v4239 = vsub.f32 %v2489, %v3603
          %v4240 = vsub.f32 %v3160, %v3736
          %v4241 = vsub.f32 %v3162, %v3869
          %v4242 = vsub.f32 %v2491, %v3470
          %v4243 = vsub.f32 %v2493, %v3603
          %v4244 = vsub.f32 %v3164, %v3736
          %v4245 = vsub.f32 %v3166, %v3869
          %v4246 = vsub.f32 %v2497, %v3470
          %v4247 = vsub.f32 %v2499, %v3603
          %v4248 = vsub.f32 %v3170, %v3736
          %v4249 = vsub.f32 %v3172, %v3869
          %v4250 = vsub.f32 %v2501, %v3470
          %v4251 = vsub.f32 %v2503, %v3603
          %v4252 = vsub.f32 %v3174, %v3736
          %v4253 = vsub.f32 %v3176, %v3869
          %v4254 = vsub.f32 %v2507, %v3470
          %v4255 = vsub.f32 %v2509, %v3603
          %v4256 = vsub.f32 %v3180, %v3736
          %v4257 = vsub.f32 %v3182, %v3869
          %v4258 = vsub.f32 %v2511, %v3470
          %v4259 = vsub.f32 %v2513, %v3603
          %v4260 = vsub.f32 %v3184, %v3736
          %v4261 = vsub.f32 %v3186, %v3869
          %v4262 = vsub.f32 %v2517, %v3470
          %v4263 = vsub.f32 %v2519, %v3603
          %v4264 = vsub.f32 %v3190, %v3736
          %v4265 = vsub.f32 %v3192, %v3869
          %v4266 = vsub.f32 %v2521, %v3470
          %v4267 = vsub.f32 %v2523, %v3603
          %v4268 = vsub.f32 %v3194, %v3736
          %v4269 = vsub.f32 %v3196, %v3869
          %v4270 = vsub.f32 %v2527, %v3470
          %v4271 = vsub.f32 %v2529, %v3603
          %v4272 = vsub.f32 %v3200, %v3736
          %v4273 = vsub.f32 %v3202, %v3869
          %v4274 = vsub.f32 %v2531, %v3470
          %v4275 = vsub.f32 %v2533, %v3603
          %v4276 = vsub.f32 %v3204, %v3736
          %v4277 = vsub.f32 %v3206, %v3869
          %v4278 = vsub.f32 %v2537, %v3470
          %v4279 = vsub.f32 %v2539, %v3603
          %v4280 = vsub.f32 %v3210, %v3736
          %v4281 = vsub.f32 %v3212, %v3869
          %v4282 = vsub.f32 %v2541, %v3470
          %v4283 = vsub.f32 %v2543, %v3603
          %v4284 = vsub.f32 %v3214, %v3736
          %v4285 = vsub.f32 %v3216, %v3869
          %v4286 = vsub.f32 %v2547, %v3470
          %v4287 = vsub.f32 %v2549, %v3603
          %v4288 = vsub.f32 %v3220, %v3736
          %v4289 = vsub.f32 %v3222, %v3869
          %v4290 = vsub.f32 %v2551, %v3470
          %v4291 = vsub.f32 %v2553, %v3603
          %v4292 = vsub.f32 %v3224, %v3736
          %v4293 = vsub.f32 %v3226, %v3869
          %v4294 = vsub.f32 %v2557, %v3470
          %v4295 = vsub.f32 %v2559, %v3603
          %v4296 = vsub.f32 %v3230, %v3736
          %v4297 = vsub.f32 %v3232, %v3869
          %v4298 = vsub.f32 %v2561, %v3470
          %v4299 = vsub.f32 %v2563, %v3603
          %v4300 = vsub.f32 %v3234, %v3736
          %v4301 = vsub.f32 %v3236, %v3869
          %v4302 = vsub.f32 %v2567, %v3470
          %v4303 = vsub.f32 %v2569, %v3603
          %v4304 = vsub.f32 %v3240, %v3736
          %v4305 = vsub.f32 %v3242, %v3869
          %v4306 = vsub.f32 %v2571, %v3470
          %v4307 = vsub.f32 %v2573, %v3603
          %v4308 = vsub.f32 %v3244, %v3736
          %v4309 = vsub.f32 %v3246, %v3869
          %v4310 = vsub.f32 %v2577, %v3470
          %v4311 = vsub.f32 %v2579, %v3603
          %v4312 = vsub.f32 %v3250, %v3736
          %v4313 = vsub.f32 %v3252, %v3869
          %v4314 = vsub.f32 %v2581, %v3470
          %v4315 = vsub.f32 %v2583, %v3603
          %v4316 = vsub.f32 %v3254, %v3736
          %v4317 = vsub.f32 %v3256, %v3869
          %v4318 = vsub.f32 %v2587, %v3470
          %v4319 = vsub.f32 %v2589, %v3603
          %v4320 = vsub.f32 %v3260, %v3736
          %v4321 = vsub.f32 %v3262, %v3869
          %v4322 = vsub.f32 %v2591, %v3470
          %v4323 = vsub.f32 %v2593, %v3603
          %v4324 = vsub.f32 %v3264, %v3736
          %v4325 = vsub.f32 %v3266, %v3869
          %v4326 = vsub.f32 %v2597, %v3470
          %v4327 = vsub.f32 %v2599, %v3603
          %v4328 = vsub.f32 %v3270, %v3736
          %v4329 = vsub.f32 %v3272, %v3869
          %v4330 = vsub.f32 %v2601, %v3470
          %v4331 = vsub.f32 %v2603, %v3603
          %v4332 = vsub.f32 %v3274, %v3736
          %v4333 = vsub.f32 %v3276, %v3869
          %v4334 = vsub.f32 %v2607, %v3470
          %v4335 = vsub.f32 %v2609, %v3603
          %v4336 = vsub.f32 %v3280, %v3736
          %v4337 = vsub.f32 %v3282, %v3869
          %v4338 = vsub.f32 %v2611, %v3470
          %v4339 = vsub.f32 %v2613, %v3603
          %v4340 = vsub.f32 %v3284, %v3736
          %v4341 = vsub.f32 %v3286, %v3869
          %v4342 = vsub.f32 %v2617, %v3470
          %v4343 = vsub.f32 %v2619, %v3603
          %v4344 = vsub.f32 %v3290, %v3736
          %v4345 = vsub.f32 %v3292, %v3869
          %v4346 = vsub.f32 %v2621, %v3470
          %v4347 = vsub.f32 %v2623, %v3603
          %v4348 = vsub.f32 %v3294, %v3736
          %v4349 = vsub.f32 %v3296, %v3869
          %v4350 = vsub.f32 %v2627, %v3470
          %v4351 = vsub.f32 %v2629, %v3603
          %v4352 = vsub.f32 %v3300, %v3736
          %v4353 = vsub.f32 %v3302, %v3869
          %v4354 = vsub.f32 %v2631, %v3470
          %v4355 = vsub.f32 %v2633, %v3603
          %v4356 = vsub.f32 %v3304, %v3736
          %v4357 = vsub.f32 %v3306, %v3869
          %v4358 = vsub.f32 %v2637, %v3470
          %v4359 = vsub.f32 %v2639, %v3603
          %v4360 = vsub.f32 %v3310, %v3736
          %v4361 = vsub.f32 %v3312, %v3869
          %v4362 = vsub.f32 %v2641, %v3470
          %v4363 = vsub.f32 %v2643, %v3603
          %v4364 = vsub.f32 %v3314, %v3736
          %v4365 = vsub.f32 %v3316, %v3869
          %v4366 = vsub.f32 %v2647, %v3470
          %v4367 = vsub.f32 %v2649, %v3603
          %v4368 = vsub.f32 %v3320, %v3736
          %v4369 = vsub.f32 %v3322, %v3869
          %v4370 = vsub.f32 %v2651, %v3470
          %v4371 = vsub.f32 %v2653, %v3603
          %v4372 = vsub.f32 %v3324, %v3736
          %v4373 = vsub.f32 %v3326, %v3869
          %v4374 = vsub.f32 %v2657, %v3470
          %v4375 = vsub.f32 %v2659, %v3603
          %v4376 = vsub.f32 %v3330, %v3736
          %v4377 = vsub.f32 %v3332, %v3869
          %v4378 = vsub.f32 %v2661, %v3470
          %v4379 = vsub.f32 %v2663, %v3603
          %v4380 = vsub.f32 %v3334, %v3736
          %v4381 = vsub.f32 %v3336, %v3869
          %v4382 = vmul.f32 %v3870, 1.442695
          %v4383 = vpow.pop %v4382
          %v4384 = vmul.f32 %v3871, 1.442695
          %v4385 = vpow.pop %v4384
          %v4386 = vmul.f32 %v3872, 1.442695
          %v4387 = vpow.pop %v4386
          %v4388 = vmul.f32 %v3873, 1.442695
          %v4389 = vpow.pop %v4388
          %v4390 = vmul.f32 %v3874, 1.442695
          %v4391 = vpow.pop %v4390
          %v4392 = vmul.f32 %v3875, 1.442695
          %v4393 = vpow.pop %v4392
          %v4394 = vmul.f32 %v3876, 1.442695
          %v4395 = vpow.pop %v4394
          %v4396 = vmul.f32 %v3877, 1.442695
          %v4397 = vpow.pop %v4396
          %v4398 = vmul.f32 %v3878, 1.442695
          %v4399 = vpow.pop %v4398
          %v4400 = vmul.f32 %v3879, 1.442695
          %v4401 = vpow.pop %v4400
          %v4402 = vmul.f32 %v3880, 1.442695
          %v4403 = vpow.pop %v4402
          %v4404 = vmul.f32 %v3881, 1.442695
          %v4405 = vpow.pop %v4404
          %v4406 = vmul.f32 %v3882, 1.442695
          %v4407 = vpow.pop %v4406
          %v4408 = vmul.f32 %v3883, 1.442695
          %v4409 = vpow.pop %v4408
          %v4410 = vmul.f32 %v3884, 1.442695
          %v4411 = vpow.pop %v4410
          %v4412 = vmul.f32 %v3885, 1.442695
          %v4413 = vpow.pop %v4412
          %v4414 = vmul.f32 %v3886, 1.442695
          %v4415 = vpow.pop %v4414
          %v4416 = vmul.f32 %v3887, 1.442695
          %v4417 = vpow.pop %v4416
          %v4418 = vmul.f32 %v3888, 1.442695
          %v4419 = vpow.pop %v4418
          %v4420 = vmul.f32 %v3889, 1.442695
          %v4421 = vpow.pop %v4420
          %v4422 = vmul.f32 %v3890, 1.442695
          %v4423 = vpow.pop %v4422
          %v4424 = vmul.f32 %v3891, 1.442695
          %v4425 = vpow.pop %v4424
          %v4426 = vmul.f32 %v3892, 1.442695
          %v4427 = vpow.pop %v4426
          %v4428 = vmul.f32 %v3893, 1.442695
          %v4429 = vpow.pop %v4428
          %v4430 = vmul.f32 %v3894, 1.442695
          %v4431 = vpow.pop %v4430
          %v4432 = vmul.f32 %v3895, 1.442695
          %v4433 = vpow.pop %v4432
          %v4434 = vmul.f32 %v3896, 1.442695
          %v4435 = vpow.pop %v4434
          %v4436 = vmul.f32 %v3897, 1.442695
          %v4437 = vpow.pop %v4436
          %v4438 = vmul.f32 %v3898, 1.442695
          %v4439 = vpow.pop %v4438
          %v4440 = vmul.f32 %v3899, 1.442695
          %v4441 = vpow.pop %v4440
          %v4442 = vmul.f32 %v3900, 1.442695
          %v4443 = vpow.pop %v4442
          %v4444 = vmul.f32 %v3901, 1.442695
          %v4445 = vpow.pop %v4444
          %v4446 = vmul.f32 %v3902, 1.442695
          %v4447 = vpow.pop %v4446
          %v4448 = vmul.f32 %v3903, 1.442695
          %v4449 = vpow.pop %v4448
          %v4450 = vmul.f32 %v3904, 1.442695
          %v4451 = vpow.pop %v4450
          %v4452 = vmul.f32 %v3905, 1.442695
          %v4453 = vpow.pop %v4452
          %v4454 = vmul.f32 %v3906, 1.442695
          %v4455 = vpow.pop %v4454
          %v4456 = vmul.f32 %v3907, 1.442695
          %v4457 = vpow.pop %v4456
          %v4458 = vmul.f32 %v3908, 1.442695
          %v4459 = vpow.pop %v4458
          %v4460 = vmul.f32 %v3909, 1.442695
          %v4461 = vpow.pop %v4460
          %v4462 = vmul.f32 %v3910, 1.442695
          %v4463 = vpow.pop %v4462
          %v4464 = vmul.f32 %v3911, 1.442695
          %v4465 = vpow.pop %v4464
          %v4466 = vmul.f32 %v3912, 1.442695
          %v4467 = vpow.pop %v4466
          %v4468 = vmul.f32 %v3913, 1.442695
          %v4469 = vpow.pop %v4468
          %v4470 = vmul.f32 %v3914, 1.442695
          %v4471 = vpow.pop %v4470
          %v4472 = vmul.f32 %v3915, 1.442695
          %v4473 = vpow.pop %v4472
          %v4474 = vmul.f32 %v3916, 1.442695
          %v4475 = vpow.pop %v4474
          %v4476 = vmul.f32 %v3917, 1.442695
          %v4477 = vpow.pop %v4476
          %v4478 = vmul.f32 %v3918, 1.442695
          %v4479 = vpow.pop %v4478
          %v4480 = vmul.f32 %v3919, 1.442695
          %v4481 = vpow.pop %v4480
          %v4482 = vmul.f32 %v3920, 1.442695
          %v4483 = vpow.pop %v4482
          %v4484 = vmul.f32 %v3921, 1.442695
          %v4485 = vpow.pop %v4484
          %v4486 = vmul.f32 %v3922, 1.442695
          %v4487 = vpow.pop %v4486
          %v4488 = vmul.f32 %v3923, 1.442695
          %v4489 = vpow.pop %v4488
          %v4490 = vmul.f32 %v3924, 1.442695
          %v4491 = vpow.pop %v4490
          %v4492 = vmul.f32 %v3925, 1.442695
          %v4493 = vpow.pop %v4492
          %v4494 = vmul.f32 %v3926, 1.442695
          %v4495 = vpow.pop %v4494
          %v4496 = vmul.f32 %v3927, 1.442695
          %v4497 = vpow.pop %v4496
          %v4498 = vmul.f32 %v3928, 1.442695
          %v4499 = vpow.pop %v4498
          %v4500 = vmul.f32 %v3929, 1.442695
          %v4501 = vpow.pop %v4500
          %v4502 = vmul.f32 %v3930, 1.442695
          %v4503 = vpow.pop %v4502
          %v4504 = vmul.f32 %v3931, 1.442695
          %v4505 = vpow.pop %v4504
          %v4506 = vmul.f32 %v3932, 1.442695
          %v4507 = vpow.pop %v4506
          %v4508 = vmul.f32 %v3933, 1.442695
          %v4509 = vpow.pop %v4508
          %v4510 = vmul.f32 %v3934, 1.442695
          %v4511 = vpow.pop %v4510
          %v4512 = vmul.f32 %v3935, 1.442695
          %v4513 = vpow.pop %v4512
          %v4514 = vmul.f32 %v3936, 1.442695
          %v4515 = vpow.pop %v4514
          %v4516 = vmul.f32 %v3937, 1.442695
          %v4517 = vpow.pop %v4516
          %v4518 = vmul.f32 %v3938, 1.442695
          %v4519 = vpow.pop %v4518
          %v4520 = vmul.f32 %v3939, 1.442695
          %v4521 = vpow.pop %v4520
          %v4522 = vmul.f32 %v3940, 1.442695
          %v4523 = vpow.pop %v4522
          %v4524 = vmul.f32 %v3941, 1.442695
          %v4525 = vpow.pop %v4524
          %v4526 = vmul.f32 %v3942, 1.442695
          %v4527 = vpow.pop %v4526
          %v4528 = vmul.f32 %v3943, 1.442695
          %v4529 = vpow.pop %v4528
          %v4530 = vmul.f32 %v3944, 1.442695
          %v4531 = vpow.pop %v4530
          %v4532 = vmul.f32 %v3945, 1.442695
          %v4533 = vpow.pop %v4532
          %v4534 = vmul.f32 %v3946, 1.442695
          %v4535 = vpow.pop %v4534
          %v4536 = vmul.f32 %v3947, 1.442695
          %v4537 = vpow.pop %v4536
          %v4538 = vmul.f32 %v3948, 1.442695
          %v4539 = vpow.pop %v4538
          %v4540 = vmul.f32 %v3949, 1.442695
          %v4541 = vpow.pop %v4540
          %v4542 = vmul.f32 %v3950, 1.442695
          %v4543 = vpow.pop %v4542
          %v4544 = vmul.f32 %v3951, 1.442695
          %v4545 = vpow.pop %v4544
          %v4546 = vmul.f32 %v3952, 1.442695
          %v4547 = vpow.pop %v4546
          %v4548 = vmul.f32 %v3953, 1.442695
          %v4549 = vpow.pop %v4548
          %v4550 = vmul.f32 %v3954, 1.442695
          %v4551 = vpow.pop %v4550
          %v4552 = vmul.f32 %v3955, 1.442695
          %v4553 = vpow.pop %v4552
          %v4554 = vmul.f32 %v3956, 1.442695
          %v4555 = vpow.pop %v4554
          %v4556 = vmul.f32 %v3957, 1.442695
          %v4557 = vpow.pop %v4556
          %v4558 = vmul.f32 %v3958, 1.442695
          %v4559 = vpow.pop %v4558
          %v4560 = vmul.f32 %v3959, 1.442695
          %v4561 = vpow.pop %v4560
          %v4562 = vmul.f32 %v3960, 1.442695
          %v4563 = vpow.pop %v4562
          %v4564 = vmul.f32 %v3961, 1.442695
          %v4565 = vpow.pop %v4564
          %v4566 = vmul.f32 %v3962, 1.442695
          %v4567 = vpow.pop %v4566
          %v4568 = vmul.f32 %v3963, 1.442695
          %v4569 = vpow.pop %v4568
          %v4570 = vmul.f32 %v3964, 1.442695
          %v4571 = vpow.pop %v4570
          %v4572 = vmul.f32 %v3965, 1.442695
          %v4573 = vpow.pop %v4572
          %v4574 = vmul.f32 %v3966, 1.442695
          %v4575 = vpow.pop %v4574
          %v4576 = vmul.f32 %v3967, 1.442695
          %v4577 = vpow.pop %v4576
          %v4578 = vmul.f32 %v3968, 1.442695
          %v4579 = vpow.pop %v4578
          %v4580 = vmul.f32 %v3969, 1.442695
          %v4581 = vpow.pop %v4580
          %v4582 = vmul.f32 %v3970, 1.442695
          %v4583 = vpow.pop %v4582
          %v4584 = vmul.f32 %v3971, 1.442695
          %v4585 = vpow.pop %v4584
          %v4586 = vmul.f32 %v3972, 1.442695
          %v4587 = vpow.pop %v4586
          %v4588 = vmul.f32 %v3973, 1.442695
          %v4589 = vpow.pop %v4588
          %v4590 = vmul.f32 %v3974, 1.442695
          %v4591 = vpow.pop %v4590
          %v4592 = vmul.f32 %v3975, 1.442695
          %v4593 = vpow.pop %v4592
          %v4594 = vmul.f32 %v3976, 1.442695
          %v4595 = vpow.pop %v4594
          %v4596 = vmul.f32 %v3977, 1.442695
          %v4597 = vpow.pop %v4596
          %v4598 = vmul.f32 %v3978, 1.442695
          %v4599 = vpow.pop %v4598
          %v4600 = vmul.f32 %v3979, 1.442695
          %v4601 = vpow.pop %v4600
          %v4602 = vmul.f32 %v3980, 1.442695
          %v4603 = vpow.pop %v4602
          %v4604 = vmul.f32 %v3981, 1.442695
          %v4605 = vpow.pop %v4604
          %v4606 = vmul.f32 %v3982, 1.442695
          %v4607 = vpow.pop %v4606
          %v4608 = vmul.f32 %v3983, 1.442695
          %v4609 = vpow.pop %v4608
          %v4610 = vmul.f32 %v3984, 1.442695
          %v4611 = vpow.pop %v4610
          %v4612 = vmul.f32 %v3985, 1.442695
          %v4613 = vpow.pop %v4612
          %v4614 = vmul.f32 %v3986, 1.442695
          %v4615 = vpow.pop %v4614
          %v4616 = vmul.f32 %v3987, 1.442695
          %v4617 = vpow.pop %v4616
          %v4618 = vmul.f32 %v3988, 1.442695
          %v4619 = vpow.pop %v4618
          %v4620 = vmul.f32 %v3989, 1.442695
          %v4621 = vpow.pop %v4620
          %v4622 = vmul.f32 %v3990, 1.442695
          %v4623 = vpow.pop %v4622
          %v4624 = vmul.f32 %v3991, 1.442695
          %v4625 = vpow.pop %v4624
          %v4626 = vmul.f32 %v3992, 1.442695
          %v4627 = vpow.pop %v4626
          %v4628 = vmul.f32 %v3993, 1.442695
          %v4629 = vpow.pop %v4628
          %v4630 = vmul.f32 %v3994, 1.442695
          %v4631 = vpow.pop %v4630
          %v4632 = vmul.f32 %v3995, 1.442695
          %v4633 = vpow.pop %v4632
          %v4634 = vmul.f32 %v3996, 1.442695
          %v4635 = vpow.pop %v4634
          %v4636 = vmul.f32 %v3997, 1.442695
          %v4637 = vpow.pop %v4636
          %v4638 = vmul.f32 %v3998, 1.442695
          %v4639 = vpow.pop %v4638
          %v4640 = vmul.f32 %v3999, 1.442695
          %v4641 = vpow.pop %v4640
          %v4642 = vmul.f32 %v4000, 1.442695
          %v4643 = vpow.pop %v4642
          %v4644 = vmul.f32 %v4001, 1.442695
          %v4645 = vpow.pop %v4644
          %v4646 = vmul.f32 %v4002, 1.442695
          %v4647 = vpow.pop %v4646
          %v4648 = vmul.f32 %v4003, 1.442695
          %v4649 = vpow.pop %v4648
          %v4650 = vmul.f32 %v4004, 1.442695
          %v4651 = vpow.pop %v4650
          %v4652 = vmul.f32 %v4005, 1.442695
          %v4653 = vpow.pop %v4652
          %v4654 = vmul.f32 %v4006, 1.442695
          %v4655 = vpow.pop %v4654
          %v4656 = vmul.f32 %v4007, 1.442695
          %v4657 = vpow.pop %v4656
          %v4658 = vmul.f32 %v4008, 1.442695
          %v4659 = vpow.pop %v4658
          %v4660 = vmul.f32 %v4009, 1.442695
          %v4661 = vpow.pop %v4660
          %v4662 = vmul.f32 %v4010, 1.442695
          %v4663 = vpow.pop %v4662
          %v4664 = vmul.f32 %v4011, 1.442695
          %v4665 = vpow.pop %v4664
          %v4666 = vmul.f32 %v4012, 1.442695
          %v4667 = vpow.pop %v4666
          %v4668 = vmul.f32 %v4013, 1.442695
          %v4669 = vpow.pop %v4668
          %v4670 = vmul.f32 %v4014, 1.442695
          %v4671 = vpow.pop %v4670
          %v4672 = vmul.f32 %v4015, 1.442695
          %v4673 = vpow.pop %v4672
          %v4674 = vmul.f32 %v4016, 1.442695
          %v4675 = vpow.pop %v4674
          %v4676 = vmul.f32 %v4017, 1.442695
          %v4677 = vpow.pop %v4676
          %v4678 = vmul.f32 %v4018, 1.442695
          %v4679 = vpow.pop %v4678
          %v4680 = vmul.f32 %v4019, 1.442695
          %v4681 = vpow.pop %v4680
          %v4682 = vmul.f32 %v4020, 1.442695
          %v4683 = vpow.pop %v4682
          %v4684 = vmul.f32 %v4021, 1.442695
          %v4685 = vpow.pop %v4684
          %v4686 = vmul.f32 %v4022, 1.442695
          %v4687 = vpow.pop %v4686
          %v4688 = vmul.f32 %v4023, 1.442695
          %v4689 = vpow.pop %v4688
          %v4690 = vmul.f32 %v4024, 1.442695
          %v4691 = vpow.pop %v4690
          %v4692 = vmul.f32 %v4025, 1.442695
          %v4693 = vpow.pop %v4692
          %v4694 = vmul.f32 %v4026, 1.442695
          %v4695 = vpow.pop %v4694
          %v4696 = vmul.f32 %v4027, 1.442695
          %v4697 = vpow.pop %v4696
          %v4698 = vmul.f32 %v4028, 1.442695
          %v4699 = vpow.pop %v4698
          %v4700 = vmul.f32 %v4029, 1.442695
          %v4701 = vpow.pop %v4700
          %v4702 = vmul.f32 %v4030, 1.442695
          %v4703 = vpow.pop %v4702
          %v4704 = vmul.f32 %v4031, 1.442695
          %v4705 = vpow.pop %v4704
          %v4706 = vmul.f32 %v4032, 1.442695
          %v4707 = vpow.pop %v4706
          %v4708 = vmul.f32 %v4033, 1.442695
          %v4709 = vpow.pop %v4708
          %v4710 = vmul.f32 %v4034, 1.442695
          %v4711 = vpow.pop %v4710
          %v4712 = vmul.f32 %v4035, 1.442695
          %v4713 = vpow.pop %v4712
          %v4714 = vmul.f32 %v4036, 1.442695
          %v4715 = vpow.pop %v4714
          %v4716 = vmul.f32 %v4037, 1.442695
          %v4717 = vpow.pop %v4716
          %v4718 = vmul.f32 %v4038, 1.442695
          %v4719 = vpow.pop %v4718
          %v4720 = vmul.f32 %v4039, 1.442695
          %v4721 = vpow.pop %v4720
          %v4722 = vmul.f32 %v4040, 1.442695
          %v4723 = vpow.pop %v4722
          %v4724 = vmul.f32 %v4041, 1.442695
          %v4725 = vpow.pop %v4724
          %v4726 = vmul.f32 %v4042, 1.442695
          %v4727 = vpow.pop %v4726
          %v4728 = vmul.f32 %v4043, 1.442695
          %v4729 = vpow.pop %v4728
          %v4730 = vmul.f32 %v4044, 1.442695
          %v4731 = vpow.pop %v4730
          %v4732 = vmul.f32 %v4045, 1.442695
          %v4733 = vpow.pop %v4732
          %v4734 = vmul.f32 %v4046, 1.442695
          %v4735 = vpow.pop %v4734
          %v4736 = vmul.f32 %v4047, 1.442695
          %v4737 = vpow.pop %v4736
          %v4738 = vmul.f32 %v4048, 1.442695
          %v4739 = vpow.pop %v4738
          %v4740 = vmul.f32 %v4049, 1.442695
          %v4741 = vpow.pop %v4740
          %v4742 = vmul.f32 %v4050, 1.442695
          %v4743 = vpow.pop %v4742
          %v4744 = vmul.f32 %v4051, 1.442695
          %v4745 = vpow.pop %v4744
          %v4746 = vmul.f32 %v4052, 1.442695
          %v4747 = vpow.pop %v4746
          %v4748 = vmul.f32 %v4053, 1.442695
          %v4749 = vpow.pop %v4748
          %v4750 = vmul.f32 %v4054, 1.442695
          %v4751 = vpow.pop %v4750
          %v4752 = vmul.f32 %v4055, 1.442695
          %v4753 = vpow.pop %v4752
          %v4754 = vmul.f32 %v4056, 1.442695
          %v4755 = vpow.pop %v4754
          %v4756 = vmul.f32 %v4057, 1.442695
          %v4757 = vpow.pop %v4756
          %v4758 = vmul.f32 %v4058, 1.442695
          %v4759 = vpow.pop %v4758
          %v4760 = vmul.f32 %v4059, 1.442695
          %v4761 = vpow.pop %v4760
          %v4762 = vmul.f32 %v4060, 1.442695
          %v4763 = vpow.pop %v4762
          %v4764 = vmul.f32 %v4061, 1.442695
          %v4765 = vpow.pop %v4764
          %v4766 = vmul.f32 %v4062, 1.442695
          %v4767 = vpow.pop %v4766
          %v4768 = vmul.f32 %v4063, 1.442695
          %v4769 = vpow.pop %v4768
          %v4770 = vmul.f32 %v4064, 1.442695
          %v4771 = vpow.pop %v4770
          %v4772 = vmul.f32 %v4065, 1.442695
          %v4773 = vpow.pop %v4772
          %v4774 = vmul.f32 %v4066, 1.442695
          %v4775 = vpow.pop %v4774
          %v4776 = vmul.f32 %v4067, 1.442695
          %v4777 = vpow.pop %v4776
          %v4778 = vmul.f32 %v4068, 1.442695
          %v4779 = vpow.pop %v4778
          %v4780 = vmul.f32 %v4069, 1.442695
          %v4781 = vpow.pop %v4780
          %v4782 = vmul.f32 %v4070, 1.442695
          %v4783 = vpow.pop %v4782
          %v4784 = vmul.f32 %v4071, 1.442695
          %v4785 = vpow.pop %v4784
          %v4786 = vmul.f32 %v4072, 1.442695
          %v4787 = vpow.pop %v4786
          %v4788 = vmul.f32 %v4073, 1.442695
          %v4789 = vpow.pop %v4788
          %v4790 = vmul.f32 %v4074, 1.442695
          %v4791 = vpow.pop %v4790
          %v4792 = vmul.f32 %v4075, 1.442695
          %v4793 = vpow.pop %v4792
          %v4794 = vmul.f32 %v4076, 1.442695
          %v4795 = vpow.pop %v4794
          %v4796 = vmul.f32 %v4077, 1.442695
          %v4797 = vpow.pop %v4796
          %v4798 = vmul.f32 %v4078, 1.442695
          %v4799 = vpow.pop %v4798
          %v4800 = vmul.f32 %v4079, 1.442695
          %v4801 = vpow.pop %v4800
          %v4802 = vmul.f32 %v4080, 1.442695
          %v4803 = vpow.pop %v4802
          %v4804 = vmul.f32 %v4081, 1.442695
          %v4805 = vpow.pop %v4804
          %v4806 = vmul.f32 %v4082, 1.442695
          %v4807 = vpow.pop %v4806
          %v4808 = vmul.f32 %v4083, 1.442695
          %v4809 = vpow.pop %v4808
          %v4810 = vmul.f32 %v4084, 1.442695
          %v4811 = vpow.pop %v4810
          %v4812 = vmul.f32 %v4085, 1.442695
          %v4813 = vpow.pop %v4812
          %v4814 = vmul.f32 %v4086, 1.442695
          %v4815 = vpow.pop %v4814
          %v4816 = vmul.f32 %v4087, 1.442695
          %v4817 = vpow.pop %v4816
          %v4818 = vmul.f32 %v4088, 1.442695
          %v4819 = vpow.pop %v4818
          %v4820 = vmul.f32 %v4089, 1.442695
          %v4821 = vpow.pop %v4820
          %v4822 = vmul.f32 %v4090, 1.442695
          %v4823 = vpow.pop %v4822
          %v4824 = vmul.f32 %v4091, 1.442695
          %v4825 = vpow.pop %v4824
          %v4826 = vmul.f32 %v4092, 1.442695
          %v4827 = vpow.pop %v4826
          %v4828 = vmul.f32 %v4093, 1.442695
          %v4829 = vpow.pop %v4828
          %v4830 = vmul.f32 %v4094, 1.442695
          %v4831 = vpow.pop %v4830
          %v4832 = vmul.f32 %v4095, 1.442695
          %v4833 = vpow.pop %v4832
          %v4834 = vmul.f32 %v4096, 1.442695
          %v4835 = vpow.pop %v4834
          %v4836 = vmul.f32 %v4097, 1.442695
          %v4837 = vpow.pop %v4836
          %v4838 = vmul.f32 %v4098, 1.442695
          %v4839 = vpow.pop %v4838
          %v4840 = vmul.f32 %v4099, 1.442695
          %v4841 = vpow.pop %v4840
          %v4842 = vmul.f32 %v4100, 1.442695
          %v4843 = vpow.pop %v4842
          %v4844 = vmul.f32 %v4101, 1.442695
          %v4845 = vpow.pop %v4844
          %v4846 = vmul.f32 %v4102, 1.442695
          %v4847 = vpow.pop %v4846
          %v4848 = vmul.f32 %v4103, 1.442695
          %v4849 = vpow.pop %v4848
          %v4850 = vmul.f32 %v4104, 1.442695
          %v4851 = vpow.pop %v4850
          %v4852 = vmul.f32 %v4105, 1.442695
          %v4853 = vpow.pop %v4852
          %v4854 = vmul.f32 %v4106, 1.442695
          %v4855 = vpow.pop %v4854
          %v4856 = vmul.f32 %v4107, 1.442695
          %v4857 = vpow.pop %v4856
          %v4858 = vmul.f32 %v4108, 1.442695
          %v4859 = vpow.pop %v4858
          %v4860 = vmul.f32 %v4109, 1.442695
          %v4861 = vpow.pop %v4860
          %v4862 = vmul.f32 %v4110, 1.442695
          %v4863 = vpow.pop %v4862
          %v4864 = vmul.f32 %v4111, 1.442695
          %v4865 = vpow.pop %v4864
          %v4866 = vmul.f32 %v4112, 1.442695
          %v4867 = vpow.pop %v4866
          %v4868 = vmul.f32 %v4113, 1.442695
          %v4869 = vpow.pop %v4868
          %v4870 = vmul.f32 %v4114, 1.442695
          %v4871 = vpow.pop %v4870
          %v4872 = vmul.f32 %v4115, 1.442695
          %v4873 = vpow.pop %v4872
          %v4874 = vmul.f32 %v4116, 1.442695
          %v4875 = vpow.pop %v4874
          %v4876 = vmul.f32 %v4117, 1.442695
          %v4877 = vpow.pop %v4876
          %v4878 = vmul.f32 %v4118, 1.442695
          %v4879 = vpow.pop %v4878
          %v4880 = vmul.f32 %v4119, 1.442695
          %v4881 = vpow.pop %v4880
          %v4882 = vmul.f32 %v4120, 1.442695
          %v4883 = vpow.pop %v4882
          %v4884 = vmul.f32 %v4121, 1.442695
          %v4885 = vpow.pop %v4884
          %v4886 = vmul.f32 %v4122, 1.442695
          %v4887 = vpow.pop %v4886
          %v4888 = vmul.f32 %v4123, 1.442695
          %v4889 = vpow.pop %v4888
          %v4890 = vmul.f32 %v4124, 1.442695
          %v4891 = vpow.pop %v4890
          %v4892 = vmul.f32 %v4125, 1.442695
          %v4893 = vpow.pop %v4892
          %v4894 = vmul.f32 %v4126, 1.442695
          %v4895 = vpow.pop %v4894
          %v4896 = vmul.f32 %v4127, 1.442695
          %v4897 = vpow.pop %v4896
          %v4898 = vmul.f32 %v4128, 1.442695
          %v4899 = vpow.pop %v4898
          %v4900 = vmul.f32 %v4129, 1.442695
          %v4901 = vpow.pop %v4900
          %v4902 = vmul.f32 %v4130, 1.442695
          %v4903 = vpow.pop %v4902
          %v4904 = vmul.f32 %v4131, 1.442695
          %v4905 = vpow.pop %v4904
          %v4906 = vmul.f32 %v4132, 1.442695
          %v4907 = vpow.pop %v4906
          %v4908 = vmul.f32 %v4133, 1.442695
          %v4909 = vpow.pop %v4908
          %v4910 = vmul.f32 %v4134, 1.442695
          %v4911 = vpow.pop %v4910
          %v4912 = vmul.f32 %v4135, 1.442695
          %v4913 = vpow.pop %v4912
          %v4914 = vmul.f32 %v4136, 1.442695
          %v4915 = vpow.pop %v4914
          %v4916 = vmul.f32 %v4137, 1.442695
          %v4917 = vpow.pop %v4916
          %v4918 = vmul.f32 %v4138, 1.442695
          %v4919 = vpow.pop %v4918
          %v4920 = vmul.f32 %v4139, 1.442695
          %v4921 = vpow.pop %v4920
          %v4922 = vmul.f32 %v4140, 1.442695
          %v4923 = vpow.pop %v4922
          %v4924 = vmul.f32 %v4141, 1.442695
          %v4925 = vpow.pop %v4924
          %v4926 = vmul.f32 %v4142, 1.442695
          %v4927 = vpow.pop %v4926
          %v4928 = vmul.f32 %v4143, 1.442695
          %v4929 = vpow.pop %v4928
          %v4930 = vmul.f32 %v4144, 1.442695
          %v4931 = vpow.pop %v4930
          %v4932 = vmul.f32 %v4145, 1.442695
          %v4933 = vpow.pop %v4932
          %v4934 = vmul.f32 %v4146, 1.442695
          %v4935 = vpow.pop %v4934
          %v4936 = vmul.f32 %v4147, 1.442695
          %v4937 = vpow.pop %v4936
          %v4938 = vmul.f32 %v4148, 1.442695
          %v4939 = vpow.pop %v4938
          %v4940 = vmul.f32 %v4149, 1.442695
          %v4941 = vpow.pop %v4940
          %v4942 = vmul.f32 %v4150, 1.442695
          %v4943 = vpow.pop %v4942
          %v4944 = vmul.f32 %v4151, 1.442695
          %v4945 = vpow.pop %v4944
          %v4946 = vmul.f32 %v4152, 1.442695
          %v4947 = vpow.pop %v4946
          %v4948 = vmul.f32 %v4153, 1.442695
          %v4949 = vpow.pop %v4948
          %v4950 = vmul.f32 %v4154, 1.442695
          %v4951 = vpow.pop %v4950
          %v4952 = vmul.f32 %v4155, 1.442695
          %v4953 = vpow.pop %v4952
          %v4954 = vmul.f32 %v4156, 1.442695
          %v4955 = vpow.pop %v4954
          %v4956 = vmul.f32 %v4157, 1.442695
          %v4957 = vpow.pop %v4956
          %v4958 = vmul.f32 %v4158, 1.442695
          %v4959 = vpow.pop %v4958
          %v4960 = vmul.f32 %v4159, 1.442695
          %v4961 = vpow.pop %v4960
          %v4962 = vmul.f32 %v4160, 1.442695
          %v4963 = vpow.pop %v4962
          %v4964 = vmul.f32 %v4161, 1.442695
          %v4965 = vpow.pop %v4964
          %v4966 = vmul.f32 %v4162, 1.442695
          %v4967 = vpow.pop %v4966
          %v4968 = vmul.f32 %v4163, 1.442695
          %v4969 = vpow.pop %v4968
          %v4970 = vmul.f32 %v4164, 1.442695
          %v4971 = vpow.pop %v4970
          %v4972 = vmul.f32 %v4165, 1.442695
          %v4973 = vpow.pop %v4972
          %v4974 = vmul.f32 %v4166, 1.442695
          %v4975 = vpow.pop %v4974
          %v4976 = vmul.f32 %v4167, 1.442695
          %v4977 = vpow.pop %v4976
          %v4978 = vmul.f32 %v4168, 1.442695
          %v4979 = vpow.pop %v4978
          %v4980 = vmul.f32 %v4169, 1.442695
          %v4981 = vpow.pop %v4980
          %v4982 = vmul.f32 %v4170, 1.442695
          %v4983 = vpow.pop %v4982
          %v4984 = vmul.f32 %v4171, 1.442695
          %v4985 = vpow.pop %v4984
          %v4986 = vmul.f32 %v4172, 1.442695
          %v4987 = vpow.pop %v4986
          %v4988 = vmul.f32 %v4173, 1.442695
          %v4989 = vpow.pop %v4988
          %v4990 = vmul.f32 %v4174, 1.442695
          %v4991 = vpow.pop %v4990
          %v4992 = vmul.f32 %v4175, 1.442695
          %v4993 = vpow.pop %v4992
          %v4994 = vmul.f32 %v4176, 1.442695
          %v4995 = vpow.pop %v4994
          %v4996 = vmul.f32 %v4177, 1.442695
          %v4997 = vpow.pop %v4996
          %v4998 = vmul.f32 %v4178, 1.442695
          %v4999 = vpow.pop %v4998
          %v5000 = vmul.f32 %v4179, 1.442695
          %v5001 = vpow.pop %v5000
          %v5002 = vmul.f32 %v4180, 1.442695
          %v5003 = vpow.pop %v5002
          %v5004 = vmul.f32 %v4181, 1.442695
          %v5005 = vpow.pop %v5004
          %v5006 = vmul.f32 %v4182, 1.442695
          %v5007 = vpow.pop %v5006
          %v5008 = vmul.f32 %v4183, 1.442695
          %v5009 = vpow.pop %v5008
          %v5010 = vmul.f32 %v4184, 1.442695
          %v5011 = vpow.pop %v5010
          %v5012 = vmul.f32 %v4185, 1.442695
          %v5013 = vpow.pop %v5012
          %v5014 = vmul.f32 %v4186, 1.442695
          %v5015 = vpow.pop %v5014
          %v5016 = vmul.f32 %v4187, 1.442695
          %v5017 = vpow.pop %v5016
          %v5018 = vmul.f32 %v4188, 1.442695
          %v5019 = vpow.pop %v5018
          %v5020 = vmul.f32 %v4189, 1.442695
          %v5021 = vpow.pop %v5020
          %v5022 = vmul.f32 %v4190, 1.442695
          %v5023 = vpow.pop %v5022
          %v5024 = vmul.f32 %v4191, 1.442695
          %v5025 = vpow.pop %v5024
          %v5026 = vmul.f32 %v4192, 1.442695
          %v5027 = vpow.pop %v5026
          %v5028 = vmul.f32 %v4193, 1.442695
          %v5029 = vpow.pop %v5028
          %v5030 = vmul.f32 %v4194, 1.442695
          %v5031 = vpow.pop %v5030
          %v5032 = vmul.f32 %v4195, 1.442695
          %v5033 = vpow.pop %v5032
          %v5034 = vmul.f32 %v4196, 1.442695
          %v5035 = vpow.pop %v5034
          %v5036 = vmul.f32 %v4197, 1.442695
          %v5037 = vpow.pop %v5036
          %v5038 = vmul.f32 %v4198, 1.442695
          %v5039 = vpow.pop %v5038
          %v5040 = vmul.f32 %v4199, 1.442695
          %v5041 = vpow.pop %v5040
          %v5042 = vmul.f32 %v4200, 1.442695
          %v5043 = vpow.pop %v5042
          %v5044 = vmul.f32 %v4201, 1.442695
          %v5045 = vpow.pop %v5044
          %v5046 = vmul.f32 %v4202, 1.442695
          %v5047 = vpow.pop %v5046
          %v5048 = vmul.f32 %v4203, 1.442695
          %v5049 = vpow.pop %v5048
          %v5050 = vmul.f32 %v4204, 1.442695
          %v5051 = vpow.pop %v5050
          %v5052 = vmul.f32 %v4205, 1.442695
          %v5053 = vpow.pop %v5052
          %v5054 = vmul.f32 %v4206, 1.442695
          %v5055 = vpow.pop %v5054
          %v5056 = vmul.f32 %v4207, 1.442695
          %v5057 = vpow.pop %v5056
          %v5058 = vmul.f32 %v4208, 1.442695
          %v5059 = vpow.pop %v5058
          %v5060 = vmul.f32 %v4209, 1.442695
          %v5061 = vpow.pop %v5060
          %v5062 = vmul.f32 %v4210, 1.442695
          %v5063 = vpow.pop %v5062
          %v5064 = vmul.f32 %v4211, 1.442695
          %v5065 = vpow.pop %v5064
          %v5066 = vmul.f32 %v4212, 1.442695
          %v5067 = vpow.pop %v5066
          %v5068 = vmul.f32 %v4213, 1.442695
          %v5069 = vpow.pop %v5068
          %v5070 = vmul.f32 %v4214, 1.442695
          %v5071 = vpow.pop %v5070
          %v5072 = vmul.f32 %v4215, 1.442695
          %v5073 = vpow.pop %v5072
          %v5074 = vmul.f32 %v4216, 1.442695
          %v5075 = vpow.pop %v5074
          %v5076 = vmul.f32 %v4217, 1.442695
          %v5077 = vpow.pop %v5076
          %v5078 = vmul.f32 %v4218, 1.442695
          %v5079 = vpow.pop %v5078
          %v5080 = vmul.f32 %v4219, 1.442695
          %v5081 = vpow.pop %v5080
          %v5082 = vmul.f32 %v4220, 1.442695
          %v5083 = vpow.pop %v5082
          %v5084 = vmul.f32 %v4221, 1.442695
          %v5085 = vpow.pop %v5084
          %v5086 = vmul.f32 %v4222, 1.442695
          %v5087 = vpow.pop %v5086
          %v5088 = vmul.f32 %v4223, 1.442695
          %v5089 = vpow.pop %v5088
          %v5090 = vmul.f32 %v4224, 1.442695
          %v5091 = vpow.pop %v5090
          %v5092 = vmul.f32 %v4225, 1.442695
          %v5093 = vpow.pop %v5092
          %v5094 = vmul.f32 %v4226, 1.442695
          %v5095 = vpow.pop %v5094
          %v5096 = vmul.f32 %v4227, 1.442695
          %v5097 = vpow.pop %v5096
          %v5098 = vmul.f32 %v4228, 1.442695
          %v5099 = vpow.pop %v5098
          %v5100 = vmul.f32 %v4229, 1.442695
          %v5101 = vpow.pop %v5100
          %v5102 = vmul.f32 %v4230, 1.442695
          %v5103 = vpow.pop %v5102
          %v5104 = vmul.f32 %v4231, 1.442695
          %v5105 = vpow.pop %v5104
          %v5106 = vmul.f32 %v4232, 1.442695
          %v5107 = vpow.pop %v5106
          %v5108 = vmul.f32 %v4233, 1.442695
          %v5109 = vpow.pop %v5108
          %v5110 = vmul.f32 %v4234, 1.442695
          %v5111 = vpow.pop %v5110
          %v5112 = vmul.f32 %v4235, 1.442695
          %v5113 = vpow.pop %v5112
          %v5114 = vmul.f32 %v4236, 1.442695
          %v5115 = vpow.pop %v5114
          %v5116 = vmul.f32 %v4237, 1.442695
          %v5117 = vpow.pop %v5116
          %v5118 = vmul.f32 %v4238, 1.442695
          %v5119 = vpow.pop %v5118
          %v5120 = vmul.f32 %v4239, 1.442695
          %v5121 = vpow.pop %v5120
          %v5122 = vmul.f32 %v4240, 1.442695
          %v5123 = vpow.pop %v5122
          %v5124 = vmul.f32 %v4241, 1.442695
          %v5125 = vpow.pop %v5124
          %v5126 = vmul.f32 %v4242, 1.442695
          %v5127 = vpow.pop %v5126
          %v5128 = vmul.f32 %v4243, 1.442695
          %v5129 = vpow.pop %v5128
          %v5130 = vmul.f32 %v4244, 1.442695
          %v5131 = vpow.pop %v5130
          %v5132 = vmul.f32 %v4245, 1.442695
          %v5133 = vpow.pop %v5132
          %v5134 = vmul.f32 %v4246, 1.442695
          %v5135 = vpow.pop %v5134
          %v5136 = vmul.f32 %v4247, 1.442695
          %v5137 = vpow.pop %v5136
          %v5138 = vmul.f32 %v4248, 1.442695
          %v5139 = vpow.pop %v5138
          %v5140 = vmul.f32 %v4249, 1.442695
          %v5141 = vpow.pop %v5140
          %v5142 = vmul.f32 %v4250, 1.442695
          %v5143 = vpow.pop %v5142
          %v5144 = vmul.f32 %v4251, 1.442695
          %v5145 = vpow.pop %v5144
          %v5146 = vmul.f32 %v4252, 1.442695
          %v5147 = vpow.pop %v5146
          %v5148 = vmul.f32 %v4253, 1.442695
          %v5149 = vpow.pop %v5148
          %v5150 = vmul.f32 %v4254, 1.442695
          %v5151 = vpow.pop %v5150
          %v5152 = vmul.f32 %v4255, 1.442695
          %v5153 = vpow.pop %v5152
          %v5154 = vmul.f32 %v4256, 1.442695
          %v5155 = vpow.pop %v5154
          %v5156 = vmul.f32 %v4257, 1.442695
          %v5157 = vpow.pop %v5156
          %v5158 = vmul.f32 %v4258, 1.442695
          %v5159 = vpow.pop %v5158
          %v5160 = vmul.f32 %v4259, 1.442695
          %v5161 = vpow.pop %v5160
          %v5162 = vmul.f32 %v4260, 1.442695
          %v5163 = vpow.pop %v5162
          %v5164 = vmul.f32 %v4261, 1.442695
          %v5165 = vpow.pop %v5164
          %v5166 = vmul.f32 %v4262, 1.442695
          %v5167 = vpow.pop %v5166
          %v5168 = vmul.f32 %v4263, 1.442695
          %v5169 = vpow.pop %v5168
          %v5170 = vmul.f32 %v4264, 1.442695
          %v5171 = vpow.pop %v5170
          %v5172 = vmul.f32 %v4265, 1.442695
          %v5173 = vpow.pop %v5172
          %v5174 = vmul.f32 %v4266, 1.442695
          %v5175 = vpow.pop %v5174
          %v5176 = vmul.f32 %v4267, 1.442695
          %v5177 = vpow.pop %v5176
          %v5178 = vmul.f32 %v4268, 1.442695
          %v5179 = vpow.pop %v5178
          %v5180 = vmul.f32 %v4269, 1.442695
          %v5181 = vpow.pop %v5180
          %v5182 = vmul.f32 %v4270, 1.442695
          %v5183 = vpow.pop %v5182
          %v5184 = vmul.f32 %v4271, 1.442695
          %v5185 = vpow.pop %v5184
          %v5186 = vmul.f32 %v4272, 1.442695
          %v5187 = vpow.pop %v5186
          %v5188 = vmul.f32 %v4273, 1.442695
          %v5189 = vpow.pop %v5188
          %v5190 = vmul.f32 %v4274, 1.442695
          %v5191 = vpow.pop %v5190
          %v5192 = vmul.f32 %v4275, 1.442695
          %v5193 = vpow.pop %v5192
          %v5194 = vmul.f32 %v4276, 1.442695
          %v5195 = vpow.pop %v5194
          %v5196 = vmul.f32 %v4277, 1.442695
          %v5197 = vpow.pop %v5196
          %v5198 = vmul.f32 %v4278, 1.442695
          %v5199 = vpow.pop %v5198
          %v5200 = vmul.f32 %v4279, 1.442695
          %v5201 = vpow.pop %v5200
          %v5202 = vmul.f32 %v4280, 1.442695
          %v5203 = vpow.pop %v5202
          %v5204 = vmul.f32 %v4281, 1.442695
          %v5205 = vpow.pop %v5204
          %v5206 = vmul.f32 %v4282, 1.442695
          %v5207 = vpow.pop %v5206
          %v5208 = vmul.f32 %v4283, 1.442695
          %v5209 = vpow.pop %v5208
          %v5210 = vmul.f32 %v4284, 1.442695
          %v5211 = vpow.pop %v5210
          %v5212 = vmul.f32 %v4285, 1.442695
          %v5213 = vpow.pop %v5212
          %v5214 = vmul.f32 %v4286, 1.442695
          %v5215 = vpow.pop %v5214
          %v5216 = vmul.f32 %v4287, 1.442695
          %v5217 = vpow.pop %v5216
          %v5218 = vmul.f32 %v4288, 1.442695
          %v5219 = vpow.pop %v5218
          %v5220 = vmul.f32 %v4289, 1.442695
          %v5221 = vpow.pop %v5220
          %v5222 = vmul.f32 %v4290, 1.442695
          %v5223 = vpow.pop %v5222
          %v5224 = vmul.f32 %v4291, 1.442695
          %v5225 = vpow.pop %v5224
          %v5226 = vmul.f32 %v4292, 1.442695
          %v5227 = vpow.pop %v5226
          %v5228 = vmul.f32 %v4293, 1.442695
          %v5229 = vpow.pop %v5228
          %v5230 = vmul.f32 %v4294, 1.442695
          %v5231 = vpow.pop %v5230
          %v5232 = vmul.f32 %v4295, 1.442695
          %v5233 = vpow.pop %v5232
          %v5234 = vmul.f32 %v4296, 1.442695
          %v5235 = vpow.pop %v5234
          %v5236 = vmul.f32 %v4297, 1.442695
          %v5237 = vpow.pop %v5236
          %v5238 = vmul.f32 %v4298, 1.442695
          %v5239 = vpow.pop %v5238
          %v5240 = vmul.f32 %v4299, 1.442695
          %v5241 = vpow.pop %v5240
          %v5242 = vmul.f32 %v4300, 1.442695
          %v5243 = vpow.pop %v5242
          %v5244 = vmul.f32 %v4301, 1.442695
          %v5245 = vpow.pop %v5244
          %v5246 = vmul.f32 %v4302, 1.442695
          %v5247 = vpow.pop %v5246
          %v5248 = vmul.f32 %v4303, 1.442695
          %v5249 = vpow.pop %v5248
          %v5250 = vmul.f32 %v4304, 1.442695
          %v5251 = vpow.pop %v5250
          %v5252 = vmul.f32 %v4305, 1.442695
          %v5253 = vpow.pop %v5252
          %v5254 = vmul.f32 %v4306, 1.442695
          %v5255 = vpow.pop %v5254
          %v5256 = vmul.f32 %v4307, 1.442695
          %v5257 = vpow.pop %v5256
          %v5258 = vmul.f32 %v4308, 1.442695
          %v5259 = vpow.pop %v5258
          %v5260 = vmul.f32 %v4309, 1.442695
          %v5261 = vpow.pop %v5260
          %v5262 = vmul.f32 %v4310, 1.442695
          %v5263 = vpow.pop %v5262
          %v5264 = vmul.f32 %v4311, 1.442695
          %v5265 = vpow.pop %v5264
          %v5266 = vmul.f32 %v4312, 1.442695
          %v5267 = vpow.pop %v5266
          %v5268 = vmul.f32 %v4313, 1.442695
          %v5269 = vpow.pop %v5268
          %v5270 = vmul.f32 %v4314, 1.442695
          %v5271 = vpow.pop %v5270
          %v5272 = vmul.f32 %v4315, 1.442695
          %v5273 = vpow.pop %v5272
          %v5274 = vmul.f32 %v4316, 1.442695
          %v5275 = vpow.pop %v5274
          %v5276 = vmul.f32 %v4317, 1.442695
          %v5277 = vpow.pop %v5276
          %v5278 = vmul.f32 %v4318, 1.442695
          %v5279 = vpow.pop %v5278
          %v5280 = vmul.f32 %v4319, 1.442695
          %v5281 = vpow.pop %v5280
          %v5282 = vmul.f32 %v4320, 1.442695
          %v5283 = vpow.pop %v5282
          %v5284 = vmul.f32 %v4321, 1.442695
          %v5285 = vpow.pop %v5284
          %v5286 = vmul.f32 %v4322, 1.442695
          %v5287 = vpow.pop %v5286
          %v5288 = vmul.f32 %v4323, 1.442695
          %v5289 = vpow.pop %v5288
          %v5290 = vmul.f32 %v4324, 1.442695
          %v5291 = vpow.pop %v5290
          %v5292 = vmul.f32 %v4325, 1.442695
          %v5293 = vpow.pop %v5292
          %v5294 = vmul.f32 %v4326, 1.442695
          %v5295 = vpow.pop %v5294
          %v5296 = vmul.f32 %v4327, 1.442695
          %v5297 = vpow.pop %v5296
          %v5298 = vmul.f32 %v4328, 1.442695
          %v5299 = vpow.pop %v5298
          %v5300 = vmul.f32 %v4329, 1.442695
          %v5301 = vpow.pop %v5300
          %v5302 = vmul.f32 %v4330, 1.442695
          %v5303 = vpow.pop %v5302
          %v5304 = vmul.f32 %v4331, 1.442695
          %v5305 = vpow.pop %v5304
          %v5306 = vmul.f32 %v4332, 1.442695
          %v5307 = vpow.pop %v5306
          %v5308 = vmul.f32 %v4333, 1.442695
          %v5309 = vpow.pop %v5308
          %v5310 = vmul.f32 %v4334, 1.442695
          %v5311 = vpow.pop %v5310
          %v5312 = vmul.f32 %v4335, 1.442695
          %v5313 = vpow.pop %v5312
          %v5314 = vmul.f32 %v4336, 1.442695
          %v5315 = vpow.pop %v5314
          %v5316 = vmul.f32 %v4337, 1.442695
          %v5317 = vpow.pop %v5316
          %v5318 = vmul.f32 %v4338, 1.442695
          %v5319 = vpow.pop %v5318
          %v5320 = vmul.f32 %v4339, 1.442695
          %v5321 = vpow.pop %v5320
          %v5322 = vmul.f32 %v4340, 1.442695
          %v5323 = vpow.pop %v5322
          %v5324 = vmul.f32 %v4341, 1.442695
          %v5325 = vpow.pop %v5324
          %v5326 = vmul.f32 %v4342, 1.442695
          %v5327 = vpow.pop %v5326
          %v5328 = vmul.f32 %v4343, 1.442695
          %v5329 = vpow.pop %v5328
          %v5330 = vmul.f32 %v4344, 1.442695
          %v5331 = vpow.pop %v5330
          %v5332 = vmul.f32 %v4345, 1.442695
          %v5333 = vpow.pop %v5332
          %v5334 = vmul.f32 %v4346, 1.442695
          %v5335 = vpow.pop %v5334
          %v5336 = vmul.f32 %v4347, 1.442695
          %v5337 = vpow.pop %v5336
          %v5338 = vmul.f32 %v4348, 1.442695
          %v5339 = vpow.pop %v5338
          %v5340 = vmul.f32 %v4349, 1.442695
          %v5341 = vpow.pop %v5340
          %v5342 = vmul.f32 %v4350, 1.442695
          %v5343 = vpow.pop %v5342
          %v5344 = vmul.f32 %v4351, 1.442695
          %v5345 = vpow.pop %v5344
          %v5346 = vmul.f32 %v4352, 1.442695
          %v5347 = vpow.pop %v5346
          %v5348 = vmul.f32 %v4353, 1.442695
          %v5349 = vpow.pop %v5348
          %v5350 = vmul.f32 %v4354, 1.442695
          %v5351 = vpow.pop %v5350
          %v5352 = vmul.f32 %v4355, 1.442695
          %v5353 = vpow.pop %v5352
          %v5354 = vmul.f32 %v4356, 1.442695
          %v5355 = vpow.pop %v5354
          %v5356 = vmul.f32 %v4357, 1.442695
          %v5357 = vpow.pop %v5356
          %v5358 = vmul.f32 %v4358, 1.442695
          %v5359 = vpow.pop %v5358
          %v5360 = vmul.f32 %v4359, 1.442695
          %v5361 = vpow.pop %v5360
          %v5362 = vmul.f32 %v4360, 1.442695
          %v5363 = vpow.pop %v5362
          %v5364 = vmul.f32 %v4361, 1.442695
          %v5365 = vpow.pop %v5364
          %v5366 = vmul.f32 %v4362, 1.442695
          %v5367 = vpow.pop %v5366
          %v5368 = vmul.f32 %v4363, 1.442695
          %v5369 = vpow.pop %v5368
          %v5370 = vmul.f32 %v4364, 1.442695
          %v5371 = vpow.pop %v5370
          %v5372 = vmul.f32 %v4365, 1.442695
          %v5373 = vpow.pop %v5372
          %v5374 = vmul.f32 %v4366, 1.442695
          %v5375 = vpow.pop %v5374
          %v5376 = vmul.f32 %v4367, 1.442695
          %v5377 = vpow.pop %v5376
          %v5378 = vmul.f32 %v4368, 1.442695
          %v5379 = vpow.pop %v5378
          %v5380 = vmul.f32 %v4369, 1.442695
          %v5381 = vpow.pop %v5380
          %v5382 = vmul.f32 %v4370, 1.442695
          %v5383 = vpow.pop %v5382
          %v5384 = vmul.f32 %v4371, 1.442695
          %v5385 = vpow.pop %v5384
          %v5386 = vmul.f32 %v4372, 1.442695
          %v5387 = vpow.pop %v5386
          %v5388 = vmul.f32 %v4373, 1.442695
          %v5389 = vpow.pop %v5388
          %v5390 = vmul.f32 %v4374, 1.442695
          %v5391 = vpow.pop %v5390
          %v5392 = vmul.f32 %v4375, 1.442695
          %v5393 = vpow.pop %v5392
          %v5394 = vmul.f32 %v4376, 1.442695
          %v5395 = vpow.pop %v5394
          %v5396 = vmul.f32 %v4377, 1.442695
          %v5397 = vpow.pop %v5396
          %v5398 = vmul.f32 %v4378, 1.442695
          %v5399 = vpow.pop %v5398
          %v5400 = vmul.f32 %v4379, 1.442695
          %v5401 = vpow.pop %v5400
          %v5402 = vmul.f32 %v4380, 1.442695
          %v5403 = vpow.pop %v5402
          %v5404 = vmul.f32 %v4381, 1.442695
          %v5405 = vpow.pop %v5404
          %v5406 = vadd.f32 %v4383, %v4391
          %v5407 = vadd.f32 %v5406, %v4399
          %v5408 = vadd.f32 %v5407, %v4407
          %v5409 = vadd.f32 %v5408, %v4415
          %v5410 = vadd.f32 %v5409, %v4423
          %v5411 = vadd.f32 %v5410, %v4431
          %v5412 = vadd.f32 %v5411, %v4439
          %v5413 = vadd.f32 %v5412, %v4447
          %v5414 = vadd.f32 %v5413, %v4455
          %v5415 = vadd.f32 %v5414, %v4463
          %v5416 = vadd.f32 %v5415, %v4471
          %v5417 = vadd.f32 %v5416, %v4479
          %v5418 = vadd.f32 %v5417, %v4487
          %v5419 = vadd.f32 %v5418, %v4495
          %v5420 = vadd.f32 %v5419, %v4503
          %v5421 = vadd.f32 %v5420, %v4511
          %v5422 = vadd.f32 %v5421, %v4519
          %v5423 = vadd.f32 %v5422, %v4527
          %v5424 = vadd.f32 %v5423, %v4535
          %v5425 = vadd.f32 %v5424, %v4543
          %v5426 = vadd.f32 %v5425, %v4551
          %v5427 = vadd.f32 %v5426, %v4559
          %v5428 = vadd.f32 %v5427, %v4567
          %v5429 = vadd.f32 %v5428, %v4575
          %v5430 = vadd.f32 %v5429, %v4583
          %v5431 = vadd.f32 %v5430, %v4591
          %v5432 = vadd.f32 %v5431, %v4599
          %v5433 = vadd.f32 %v5432, %v4607
          %v5434 = vadd.f32 %v5433, %v4615
          %v5435 = vadd.f32 %v5434, %v4623
          %v5436 = vadd.f32 %v5435, %v4631
          %v5437 = vadd.f32 %v5436, %v4639
          %v5438 = vadd.f32 %v5437, %v4647
          %v5439 = vadd.f32 %v5438, %v4655
          %v5440 = vadd.f32 %v5439, %v4663
          %v5441 = vadd.f32 %v5440, %v4671
          %v5442 = vadd.f32 %v5441, %v4679
          %v5443 = vadd.f32 %v5442, %v4687
          %v5444 = vadd.f32 %v5443, %v4695
          %v5445 = vadd.f32 %v5444, %v4703
          %v5446 = vadd.f32 %v5445, %v4711
          %v5447 = vadd.f32 %v5446, %v4719
          %v5448 = vadd.f32 %v5447, %v4727
          %v5449 = vadd.f32 %v5448, %v4735
          %v5450 = vadd.f32 %v5449, %v4743
          %v5451 = vadd.f32 %v5450, %v4751
          %v5452 = vadd.f32 %v5451, %v4759
          %v5453 = vadd.f32 %v5452, %v4767
          %v5454 = vadd.f32 %v5453, %v4775
          %v5455 = vadd.f32 %v5454, %v4783
          %v5456 = vadd.f32 %v5455, %v4791
          %v5457 = vadd.f32 %v5456, %v4799
          %v5458 = vadd.f32 %v5457, %v4807
          %v5459 = vadd.f32 %v5458, %v4815
          %v5460 = vadd.f32 %v5459, %v4823
          %v5461 = vadd.f32 %v5460, %v4831
          %v5462 = vadd.f32 %v5461, %v4839
          %v5463 = vadd.f32 %v5462, %v4847
          %v5464 = vadd.f32 %v5463, %v4855
          %v5465 = vadd.f32 %v5464, %v4863
          %v5466 = vadd.f32 %v5465, %v4871
          %v5467 = vadd.f32 %v5466, %v4879
          %v5468 = vadd.f32 %v5467, %v4887
          %v5469 = vadd.f32 %v5468, %v4895
          %v5470 = vadd.f32 %v5469, %v4903
          %v5471 = vadd.f32 %v5470, %v4911
          %v5472 = vadd.f32 %v5471, %v4919
          %v5473 = vadd.f32 %v5472, %v4927
          %v5474 = vadd.f32 %v5473, %v4935
          %v5475 = vadd.f32 %v5474, %v4943
          %v5476 = vadd.f32 %v5475, %v4951
          %v5477 = vadd.f32 %v5476, %v4959
          %v5478 = vadd.f32 %v5477, %v4967
          %v5479 = vadd.f32 %v5478, %v4975
          %v5480 = vadd.f32 %v5479, %v4983
          %v5481 = vadd.f32 %v5480, %v4991
          %v5482 = vadd.f32 %v5481, %v4999
          %v5483 = vadd.f32 %v5482, %v5007
          %v5484 = vadd.f32 %v5483, %v5015
          %v5485 = vadd.f32 %v5484, %v5023
          %v5486 = vadd.f32 %v5485, %v5031
          %v5487 = vadd.f32 %v5486, %v5039
          %v5488 = vadd.f32 %v5487, %v5047
          %v5489 = vadd.f32 %v5488, %v5055
          %v5490 = vadd.f32 %v5489, %v5063
          %v5491 = vadd.f32 %v5490, %v5071
          %v5492 = vadd.f32 %v5491, %v5079
          %v5493 = vadd.f32 %v5492, %v5087
          %v5494 = vadd.f32 %v5493, %v5095
          %v5495 = vadd.f32 %v5494, %v5103
          %v5496 = vadd.f32 %v5495, %v5111
          %v5497 = vadd.f32 %v5496, %v5119
          %v5498 = vadd.f32 %v5497, %v5127
          %v5499 = vadd.f32 %v5498, %v5135
          %v5500 = vadd.f32 %v5499, %v5143
          %v5501 = vadd.f32 %v5500, %v5151
          %v5502 = vadd.f32 %v5501, %v5159
          %v5503 = vadd.f32 %v5502, %v5167
          %v5504 = vadd.f32 %v5503, %v5175
          %v5505 = vadd.f32 %v5504, %v5183
          %v5506 = vadd.f32 %v5505, %v5191
          %v5507 = vadd.f32 %v5506, %v5199
          %v5508 = vadd.f32 %v5507, %v5207
          %v5509 = vadd.f32 %v5508, %v5215
          %v5510 = vadd.f32 %v5509, %v5223
          %v5511 = vadd.f32 %v5510, %v5231
          %v5512 = vadd.f32 %v5511, %v5239
          %v5513 = vadd.f32 %v5512, %v5247
          %v5514 = vadd.f32 %v5513, %v5255
          %v5515 = vadd.f32 %v5514, %v5263
          %v5516 = vadd.f32 %v5515, %v5271
          %v5517 = vadd.f32 %v5516, %v5279
          %v5518 = vadd.f32 %v5517, %v5287
          %v5519 = vadd.f32 %v5518, %v5295
          %v5520 = vadd.f32 %v5519, %v5303
          %v5521 = vadd.f32 %v5520, %v5311
          %v5522 = vadd.f32 %v5521, %v5319
          %v5523 = vadd.f32 %v5522, %v5327
          %v5524 = vadd.f32 %v5523, %v5335
          %v5525 = vadd.f32 %v5524, %v5343
          %v5526 = vadd.f32 %v5525, %v5351
          %v5527 = vadd.f32 %v5526, %v5359
          %v5528 = vadd.f32 %v5527, %v5367
          %v5529 = vadd.f32 %v5528, %v5375
          %v5530 = vadd.f32 %v5529, %v5383
          %v5531 = vadd.f32 %v5530, %v5391
          %v5532 = vadd.f32 %v5531, %v5399
          %v5533 = vrot.slane %v5532, 4
          %v5534 = vadd.f32 %v5532, %v5533
          %v5535 = vrot.slane %v5534, 2
          %v5536 = vadd.f32 %v5534, %v5535
          %v5537 = vrot.slane %v5536, 1
          %v5538 = vadd.f32 %v5536, %v5537
          %v5539 = vadd.f32 %v4385, %v4393
          %v5540 = vadd.f32 %v5539, %v4401
          %v5541 = vadd.f32 %v5540, %v4409
          %v5542 = vadd.f32 %v5541, %v4417
          %v5543 = vadd.f32 %v5542, %v4425
          %v5544 = vadd.f32 %v5543, %v4433
          %v5545 = vadd.f32 %v5544, %v4441
          %v5546 = vadd.f32 %v5545, %v4449
          %v5547 = vadd.f32 %v5546, %v4457
          %v5548 = vadd.f32 %v5547, %v4465
          %v5549 = vadd.f32 %v5548, %v4473
          %v5550 = vadd.f32 %v5549, %v4481
          %v5551 = vadd.f32 %v5550, %v4489
          %v5552 = vadd.f32 %v5551, %v4497
          %v5553 = vadd.f32 %v5552, %v4505
          %v5554 = vadd.f32 %v5553, %v4513
          %v5555 = vadd.f32 %v5554, %v4521
          %v5556 = vadd.f32 %v5555, %v4529
          %v5557 = vadd.f32 %v5556, %v4537
          %v5558 = vadd.f32 %v5557, %v4545
          %v5559 = vadd.f32 %v5558, %v4553
          %v5560 = vadd.f32 %v5559, %v4561
          %v5561 = vadd.f32 %v5560, %v4569
          %v5562 = vadd.f32 %v5561, %v4577
          %v5563 = vadd.f32 %v5562, %v4585
          %v5564 = vadd.f32 %v5563, %v4593
          %v5565 = vadd.f32 %v5564, %v4601
          %v5566 = vadd.f32 %v5565, %v4609
          %v5567 = vadd.f32 %v5566, %v4617
          %v5568 = vadd.f32 %v5567, %v4625
          %v5569 = vadd.f32 %v5568, %v4633
          %v5570 = vadd.f32 %v5569, %v4641
          %v5571 = vadd.f32 %v5570, %v4649
          %v5572 = vadd.f32 %v5571, %v4657
          %v5573 = vadd.f32 %v5572, %v4665
          %v5574 = vadd.f32 %v5573, %v4673
          %v5575 = vadd.f32 %v5574, %v4681
          %v5576 = vadd.f32 %v5575, %v4689
          %v5577 = vadd.f32 %v5576, %v4697
          %v5578 = vadd.f32 %v5577, %v4705
          %v5579 = vadd.f32 %v5578, %v4713
          %v5580 = vadd.f32 %v5579, %v4721
          %v5581 = vadd.f32 %v5580, %v4729
          %v5582 = vadd.f32 %v5581, %v4737
          %v5583 = vadd.f32 %v5582, %v4745
          %v5584 = vadd.f32 %v5583, %v4753
          %v5585 = vadd.f32 %v5584, %v4761
          %v5586 = vadd.f32 %v5585, %v4769
          %v5587 = vadd.f32 %v5586, %v4777
          %v5588 = vadd.f32 %v5587, %v4785
          %v5589 = vadd.f32 %v5588, %v4793
          %v5590 = vadd.f32 %v5589, %v4801
          %v5591 = vadd.f32 %v5590, %v4809
          %v5592 = vadd.f32 %v5591, %v4817
          %v5593 = vadd.f32 %v5592, %v4825
          %v5594 = vadd.f32 %v5593, %v4833
          %v5595 = vadd.f32 %v5594, %v4841
          %v5596 = vadd.f32 %v5595, %v4849
          %v5597 = vadd.f32 %v5596, %v4857
          %v5598 = vadd.f32 %v5597, %v4865
          %v5599 = vadd.f32 %v5598, %v4873
          %v5600 = vadd.f32 %v5599, %v4881
          %v5601 = vadd.f32 %v5600, %v4889
          %v5602 = vadd.f32 %v5601, %v4897
          %v5603 = vadd.f32 %v5602, %v4905
          %v5604 = vadd.f32 %v5603, %v4913
          %v5605 = vadd.f32 %v5604, %v4921
          %v5606 = vadd.f32 %v5605, %v4929
          %v5607 = vadd.f32 %v5606, %v4937
          %v5608 = vadd.f32 %v5607, %v4945
          %v5609 = vadd.f32 %v5608, %v4953
          %v5610 = vadd.f32 %v5609, %v4961
          %v5611 = vadd.f32 %v5610, %v4969
          %v5612 = vadd.f32 %v5611, %v4977
          %v5613 = vadd.f32 %v5612, %v4985
          %v5614 = vadd.f32 %v5613, %v4993
          %v5615 = vadd.f32 %v5614, %v5001
          %v5616 = vadd.f32 %v5615, %v5009
          %v5617 = vadd.f32 %v5616, %v5017
          %v5618 = vadd.f32 %v5617, %v5025
          %v5619 = vadd.f32 %v5618, %v5033
          %v5620 = vadd.f32 %v5619, %v5041
          %v5621 = vadd.f32 %v5620, %v5049
          %v5622 = vadd.f32 %v5621, %v5057
          %v5623 = vadd.f32 %v5622, %v5065
          %v5624 = vadd.f32 %v5623, %v5073
          %v5625 = vadd.f32 %v5624, %v5081
          %v5626 = vadd.f32 %v5625, %v5089
          %v5627 = vadd.f32 %v5626, %v5097
          %v5628 = vadd.f32 %v5627, %v5105
          %v5629 = vadd.f32 %v5628, %v5113
          %v5630 = vadd.f32 %v5629, %v5121
          %v5631 = vadd.f32 %v5630, %v5129
          %v5632 = vadd.f32 %v5631, %v5137
          %v5633 = vadd.f32 %v5632, %v5145
          %v5634 = vadd.f32 %v5633, %v5153
          %v5635 = vadd.f32 %v5634, %v5161
          %v5636 = vadd.f32 %v5635, %v5169
          %v5637 = vadd.f32 %v5636, %v5177
          %v5638 = vadd.f32 %v5637, %v5185
          %v5639 = vadd.f32 %v5638, %v5193
          %v5640 = vadd.f32 %v5639, %v5201
          %v5641 = vadd.f32 %v5640, %v5209
          %v5642 = vadd.f32 %v5641, %v5217
          %v5643 = vadd.f32 %v5642, %v5225
          %v5644 = vadd.f32 %v5643, %v5233
          %v5645 = vadd.f32 %v5644, %v5241
          %v5646 = vadd.f32 %v5645, %v5249
          %v5647 = vadd.f32 %v5646, %v5257
          %v5648 = vadd.f32 %v5647, %v5265
          %v5649 = vadd.f32 %v5648, %v5273
          %v5650 = vadd.f32 %v5649, %v5281
          %v5651 = vadd.f32 %v5650, %v5289
          %v5652 = vadd.f32 %v5651, %v5297
          %v5653 = vadd.f32 %v5652, %v5305
          %v5654 = vadd.f32 %v5653, %v5313
          %v5655 = vadd.f32 %v5654, %v5321
          %v5656 = vadd.f32 %v5655, %v5329
          %v5657 = vadd.f32 %v5656, %v5337
          %v5658 = vadd.f32 %v5657, %v5345
          %v5659 = vadd.f32 %v5658, %v5353
          %v5660 = vadd.f32 %v5659, %v5361
          %v5661 = vadd.f32 %v5660, %v5369
          %v5662 = vadd.f32 %v5661, %v5377
          %v5663 = vadd.f32 %v5662, %v5385
          %v5664 = vadd.f32 %v5663, %v5393
          %v5665 = vadd.f32 %v5664, %v5401
          %v5666 = vrot.slane %v5665, 4
          %v5667 = vadd.f32 %v5665, %v5666
          %v5668 = vrot.slane %v5667, 2
          %v5669 = vadd.f32 %v5667, %v5668
          %v5670 = vrot.slane %v5669, 1
          %v5671 = vadd.f32 %v5669, %v5670
          %v5672 = vadd.f32 %v4387, %v4395
          %v5673 = vadd.f32 %v5672, %v4403
          %v5674 = vadd.f32 %v5673, %v4411
          %v5675 = vadd.f32 %v5674, %v4419
          %v5676 = vadd.f32 %v5675, %v4427
          %v5677 = vadd.f32 %v5676, %v4435
          %v5678 = vadd.f32 %v5677, %v4443
          %v5679 = vadd.f32 %v5678, %v4451
          %v5680 = vadd.f32 %v5679, %v4459
          %v5681 = vadd.f32 %v5680, %v4467
          %v5682 = vadd.f32 %v5681, %v4475
          %v5683 = vadd.f32 %v5682, %v4483
          %v5684 = vadd.f32 %v5683, %v4491
          %v5685 = vadd.f32 %v5684, %v4499
          %v5686 = vadd.f32 %v5685, %v4507
          %v5687 = vadd.f32 %v5686, %v4515
          %v5688 = vadd.f32 %v5687, %v4523
          %v5689 = vadd.f32 %v5688, %v4531
          %v5690 = vadd.f32 %v5689, %v4539
          %v5691 = vadd.f32 %v5690, %v4547
          %v5692 = vadd.f32 %v5691, %v4555
          %v5693 = vadd.f32 %v5692, %v4563
          %v5694 = vadd.f32 %v5693, %v4571
          %v5695 = vadd.f32 %v5694, %v4579
          %v5696 = vadd.f32 %v5695, %v4587
          %v5697 = vadd.f32 %v5696, %v4595
          %v5698 = vadd.f32 %v5697, %v4603
          %v5699 = vadd.f32 %v5698, %v4611
          %v5700 = vadd.f32 %v5699, %v4619
          %v5701 = vadd.f32 %v5700, %v4627
          %v5702 = vadd.f32 %v5701, %v4635
          %v5703 = vadd.f32 %v5702, %v4643
          %v5704 = vadd.f32 %v5703, %v4651
          %v5705 = vadd.f32 %v5704, %v4659
          %v5706 = vadd.f32 %v5705, %v4667
          %v5707 = vadd.f32 %v5706, %v4675
          %v5708 = vadd.f32 %v5707, %v4683
          %v5709 = vadd.f32 %v5708, %v4691
          %v5710 = vadd.f32 %v5709, %v4699
          %v5711 = vadd.f32 %v5710, %v4707
          %v5712 = vadd.f32 %v5711, %v4715
          %v5713 = vadd.f32 %v5712, %v4723
          %v5714 = vadd.f32 %v5713, %v4731
          %v5715 = vadd.f32 %v5714, %v4739
          %v5716 = vadd.f32 %v5715, %v4747
          %v5717 = vadd.f32 %v5716, %v4755
          %v5718 = vadd.f32 %v5717, %v4763
          %v5719 = vadd.f32 %v5718, %v4771
          %v5720 = vadd.f32 %v5719, %v4779
          %v5721 = vadd.f32 %v5720, %v4787
          %v5722 = vadd.f32 %v5721, %v4795
          %v5723 = vadd.f32 %v5722, %v4803
          %v5724 = vadd.f32 %v5723, %v4811
          %v5725 = vadd.f32 %v5724, %v4819
          %v5726 = vadd.f32 %v5725, %v4827
          %v5727 = vadd.f32 %v5726, %v4835
          %v5728 = vadd.f32 %v5727, %v4843
          %v5729 = vadd.f32 %v5728, %v4851
          %v5730 = vadd.f32 %v5729, %v4859
          %v5731 = vadd.f32 %v5730, %v4867
          %v5732 = vadd.f32 %v5731, %v4875
          %v5733 = vadd.f32 %v5732, %v4883
          %v5734 = vadd.f32 %v5733, %v4891
          %v5735 = vadd.f32 %v5734, %v4899
          %v5736 = vadd.f32 %v5735, %v4907
          %v5737 = vadd.f32 %v5736, %v4915
          %v5738 = vadd.f32 %v5737, %v4923
          %v5739 = vadd.f32 %v5738, %v4931
          %v5740 = vadd.f32 %v5739, %v4939
          %v5741 = vadd.f32 %v5740, %v4947
          %v5742 = vadd.f32 %v5741, %v4955
          %v5743 = vadd.f32 %v5742, %v4963
          %v5744 = vadd.f32 %v5743, %v4971
          %v5745 = vadd.f32 %v5744, %v4979
          %v5746 = vadd.f32 %v5745, %v4987
          %v5747 = vadd.f32 %v5746, %v4995
          %v5748 = vadd.f32 %v5747, %v5003
          %v5749 = vadd.f32 %v5748, %v5011
          %v5750 = vadd.f32 %v5749, %v5019
          %v5751 = vadd.f32 %v5750, %v5027
          %v5752 = vadd.f32 %v5751, %v5035
          %v5753 = vadd.f32 %v5752, %v5043
          %v5754 = vadd.f32 %v5753, %v5051
          %v5755 = vadd.f32 %v5754, %v5059
          %v5756 = vadd.f32 %v5755, %v5067
          %v5757 = vadd.f32 %v5756, %v5075
          %v5758 = vadd.f32 %v5757, %v5083
          %v5759 = vadd.f32 %v5758, %v5091
          %v5760 = vadd.f32 %v5759, %v5099
          %v5761 = vadd.f32 %v5760, %v5107
          %v5762 = vadd.f32 %v5761, %v5115
          %v5763 = vadd.f32 %v5762, %v5123
          %v5764 = vadd.f32 %v5763, %v5131
          %v5765 = vadd.f32 %v5764, %v5139
          %v5766 = vadd.f32 %v5765, %v5147
          %v5767 = vadd.f32 %v5766, %v5155
          %v5768 = vadd.f32 %v5767, %v5163
          %v5769 = vadd.f32 %v5768, %v5171
          %v5770 = vadd.f32 %v5769, %v5179
          %v5771 = vadd.f32 %v5770, %v5187
          %v5772 = vadd.f32 %v5771, %v5195
          %v5773 = vadd.f32 %v5772, %v5203
          %v5774 = vadd.f32 %v5773, %v5211
          %v5775 = vadd.f32 %v5774, %v5219
          %v5776 = vadd.f32 %v5775, %v5227
          %v5777 = vadd.f32 %v5776, %v5235
          %v5778 = vadd.f32 %v5777, %v5243
          %v5779 = vadd.f32 %v5778, %v5251
          %v5780 = vadd.f32 %v5779, %v5259
          %v5781 = vadd.f32 %v5780, %v5267
          %v5782 = vadd.f32 %v5781, %v5275
          %v5783 = vadd.f32 %v5782, %v5283
          %v5784 = vadd.f32 %v5783, %v5291
          %v5785 = vadd.f32 %v5784, %v5299
          %v5786 = vadd.f32 %v5785, %v5307
          %v5787 = vadd.f32 %v5786, %v5315
          %v5788 = vadd.f32 %v5787, %v5323
          %v5789 = vadd.f32 %v5788, %v5331
          %v5790 = vadd.f32 %v5789, %v5339
          %v5791 = vadd.f32 %v5790, %v5347
          %v5792 = vadd.f32 %v5791, %v5355
          %v5793 = vadd.f32 %v5792, %v5363
          %v5794 = vadd.f32 %v5793, %v5371
          %v5795 = vadd.f32 %v5794, %v5379
          %v5796 = vadd.f32 %v5795, %v5387
          %v5797 = vadd.f32 %v5796, %v5395
          %v5798 = vadd.f32 %v5797, %v5403
          %v5799 = vrot.slane %v5798, 4
          %v5800 = vadd.f32 %v5798, %v5799
          %v5801 = vrot.slane %v5800, 2
          %v5802 = vadd.f32 %v5800, %v5801
          %v5803 = vrot.slane %v5802, 1
          %v5804 = vadd.f32 %v5802, %v5803
          %v5805 = vadd.f32 %v4389, %v4397
          %v5806 = vadd.f32 %v5805, %v4405
          %v5807 = vadd.f32 %v5806, %v4413
          %v5808 = vadd.f32 %v5807, %v4421
          %v5809 = vadd.f32 %v5808, %v4429
          %v5810 = vadd.f32 %v5809, %v4437
          %v5811 = vadd.f32 %v5810, %v4445
          %v5812 = vadd.f32 %v5811, %v4453
          %v5813 = vadd.f32 %v5812, %v4461
          %v5814 = vadd.f32 %v5813, %v4469
          %v5815 = vadd.f32 %v5814, %v4477
          %v5816 = vadd.f32 %v5815, %v4485
          %v5817 = vadd.f32 %v5816, %v4493
          %v5818 = vadd.f32 %v5817, %v4501
          %v5819 = vadd.f32 %v5818, %v4509
          %v5820 = vadd.f32 %v5819, %v4517
          %v5821 = vadd.f32 %v5820, %v4525
          %v5822 = vadd.f32 %v5821, %v4533
          %v5823 = vadd.f32 %v5822, %v4541
          %v5824 = vadd.f32 %v5823, %v4549
          %v5825 = vadd.f32 %v5824, %v4557
          %v5826 = vadd.f32 %v5825, %v4565
          %v5827 = vadd.f32 %v5826, %v4573
          %v5828 = vadd.f32 %v5827, %v4581
          %v5829 = vadd.f32 %v5828, %v4589
          %v5830 = vadd.f32 %v5829, %v4597
          %v5831 = vadd.f32 %v5830, %v4605
          %v5832 = vadd.f32 %v5831, %v4613
          %v5833 = vadd.f32 %v5832, %v4621
          %v5834 = vadd.f32 %v5833, %v4629
          %v5835 = vadd.f32 %v5834, %v4637
          %v5836 = vadd.f32 %v5835, %v4645
          %v5837 = vadd.f32 %v5836, %v4653
          %v5838 = vadd.f32 %v5837, %v4661
          %v5839 = vadd.f32 %v5838, %v4669
          %v5840 = vadd.f32 %v5839, %v4677
          %v5841 = vadd.f32 %v5840, %v4685
          %v5842 = vadd.f32 %v5841, %v4693
          %v5843 = vadd.f32 %v5842, %v4701
          %v5844 = vadd.f32 %v5843, %v4709
          %v5845 = vadd.f32 %v5844, %v4717
          %v5846 = vadd.f32 %v5845, %v4725
          %v5847 = vadd.f32 %v5846, %v4733
          %v5848 = vadd.f32 %v5847, %v4741
          %v5849 = vadd.f32 %v5848, %v4749
          %v5850 = vadd.f32 %v5849, %v4757
          %v5851 = vadd.f32 %v5850, %v4765
          %v5852 = vadd.f32 %v5851, %v4773
          %v5853 = vadd.f32 %v5852, %v4781
          %v5854 = vadd.f32 %v5853, %v4789
          %v5855 = vadd.f32 %v5854, %v4797
          %v5856 = vadd.f32 %v5855, %v4805
          %v5857 = vadd.f32 %v5856, %v4813
          %v5858 = vadd.f32 %v5857, %v4821
          %v5859 = vadd.f32 %v5858, %v4829
          %v5860 = vadd.f32 %v5859, %v4837
          %v5861 = vadd.f32 %v5860, %v4845
          %v5862 = vadd.f32 %v5861, %v4853
          %v5863 = vadd.f32 %v5862, %v4861
          %v5864 = vadd.f32 %v5863, %v4869
          %v5865 = vadd.f32 %v5864, %v4877
          %v5866 = vadd.f32 %v5865, %v4885
          %v5867 = vadd.f32 %v5866, %v4893
          %v5868 = vadd.f32 %v5867, %v4901
          %v5869 = vadd.f32 %v5868, %v4909
          %v5870 = vadd.f32 %v5869, %v4917
          %v5871 = vadd.f32 %v5870, %v4925
          %v5872 = vadd.f32 %v5871, %v4933
          %v5873 = vadd.f32 %v5872, %v4941
          %v5874 = vadd.f32 %v5873, %v4949
          %v5875 = vadd.f32 %v5874, %v4957
          %v5876 = vadd.f32 %v5875, %v4965
          %v5877 = vadd.f32 %v5876, %v4973
          %v5878 = vadd.f32 %v5877, %v4981
          %v5879 = vadd.f32 %v5878, %v4989
          %v5880 = vadd.f32 %v5879, %v4997
          %v5881 = vadd.f32 %v5880, %v5005
          %v5882 = vadd.f32 %v5881, %v5013
          %v5883 = vadd.f32 %v5882, %v5021
          %v5884 = vadd.f32 %v5883, %v5029
          %v5885 = vadd.f32 %v5884, %v5037
          %v5886 = vadd.f32 %v5885, %v5045
          %v5887 = vadd.f32 %v5886, %v5053
          %v5888 = vadd.f32 %v5887, %v5061
          %v5889 = vadd.f32 %v5888, %v5069
          %v5890 = vadd.f32 %v5889, %v5077
          %v5891 = vadd.f32 %v5890, %v5085
          %v5892 = vadd.f32 %v5891, %v5093
          %v5893 = vadd.f32 %v5892, %v5101
          %v5894 = vadd.f32 %v5893, %v5109
          %v5895 = vadd.f32 %v5894, %v5117
          %v5896 = vadd.f32 %v5895, %v5125
          %v5897 = vadd.f32 %v5896, %v5133
          %v5898 = vadd.f32 %v5897, %v5141
          %v5899 = vadd.f32 %v5898, %v5149
          %v5900 = vadd.f32 %v5899, %v5157
          %v5901 = vadd.f32 %v5900, %v5165
          %v5902 = vadd.f32 %v5901, %v5173
          %v5903 = vadd.f32 %v5902, %v5181
          %v5904 = vadd.f32 %v5903, %v5189
          %v5905 = vadd.f32 %v5904, %v5197
          %v5906 = vadd.f32 %v5905, %v5205
          %v5907 = vadd.f32 %v5906, %v5213
          %v5908 = vadd.f32 %v5907, %v5221
          %v5909 = vadd.f32 %v5908, %v5229
          %v5910 = vadd.f32 %v5909, %v5237
          %v5911 = vadd.f32 %v5910, %v5245
          %v5912 = vadd.f32 %v5911, %v5253
          %v5913 = vadd.f32 %v5912, %v5261
          %v5914 = vadd.f32 %v5913, %v5269
          %v5915 = vadd.f32 %v5914, %v5277
          %v5916 = vadd.f32 %v5915, %v5285
          %v5917 = vadd.f32 %v5916, %v5293
          %v5918 = vadd.f32 %v5917, %v5301
          %v5919 = vadd.f32 %v5918, %v5309
          %v5920 = vadd.f32 %v5919, %v5317
          %v5921 = vadd.f32 %v5920, %v5325
          %v5922 = vadd.f32 %v5921, %v5333
          %v5923 = vadd.f32 %v5922, %v5341
          %v5924 = vadd.f32 %v5923, %v5349
          %v5925 = vadd.f32 %v5924, %v5357
          %v5926 = vadd.f32 %v5925, %v5365
          %v5927 = vadd.f32 %v5926, %v5373
          %v5928 = vadd.f32 %v5927, %v5381
          %v5929 = vadd.f32 %v5928, %v5389
          %v5930 = vadd.f32 %v5929, %v5397
          %v5931 = vadd.f32 %v5930, %v5405
          %v5932 = vrot.slane %v5931, 4
          %v5933 = vadd.f32 %v5931, %v5932
          %v5934 = vrot.slane %v5933, 2
          %v5935 = vadd.f32 %v5933, %v5934
          %v5936 = vrot.slane %v5935, 1
          %v5937 = vadd.f32 %v5935, %v5936
          %v5938 = vrcp.pop %v5538
          %v5939 = vrcp.pop %v5671
          %v5940 = vrcp.pop %v5804
          %v5941 = vrcp.pop %v5937
          %v5942 = vmul.f32 %v4383, %v5938
          %v5943 = vmul.f32 %v4385, %v5939
          %v5944 = vmul.f32 %v4387, %v5940
          %v5945 = vmul.f32 %v4389, %v5941
          %v5946 = vmul.f32 %v4391, %v5938
          %v5947 = vmul.f32 %v4393, %v5939
          %v5948 = vmul.f32 %v4395, %v5940
          %v5949 = vmul.f32 %v4397, %v5941
          %v5950 = vmul.f32 %v4399, %v5938
          %v5951 = vmul.f32 %v4401, %v5939
          %v5952 = vmul.f32 %v4403, %v5940
          %v5953 = vmul.f32 %v4405, %v5941
          %v5954 = vmul.f32 %v4407, %v5938
          %v5955 = vmul.f32 %v4409, %v5939
          %v5956 = vmul.f32 %v4411, %v5940
          %v5957 = vmul.f32 %v4413, %v5941
          %v5958 = vmul.f32 %v4415, %v5938
          %v5959 = vmul.f32 %v4417, %v5939
          %v5960 = vmul.f32 %v4419, %v5940
          %v5961 = vmul.f32 %v4421, %v5941
          %v5962 = vmul.f32 %v4423, %v5938
          %v5963 = vmul.f32 %v4425, %v5939
          %v5964 = vmul.f32 %v4427, %v5940
          %v5965 = vmul.f32 %v4429, %v5941
          %v5966 = vmul.f32 %v4431, %v5938
          %v5967 = vmul.f32 %v4433, %v5939
          %v5968 = vmul.f32 %v4435, %v5940
          %v5969 = vmul.f32 %v4437, %v5941
          %v5970 = vmul.f32 %v4439, %v5938
          %v5971 = vmul.f32 %v4441, %v5939
          %v5972 = vmul.f32 %v4443, %v5940
          %v5973 = vmul.f32 %v4445, %v5941
          %v5974 = vmul.f32 %v4447, %v5938
          %v5975 = vmul.f32 %v4449, %v5939
          %v5976 = vmul.f32 %v4451, %v5940
          %v5977 = vmul.f32 %v4453, %v5941
          %v5978 = vmul.f32 %v4455, %v5938
          %v5979 = vmul.f32 %v4457, %v5939
          %v5980 = vmul.f32 %v4459, %v5940
          %v5981 = vmul.f32 %v4461, %v5941
          %v5982 = vmul.f32 %v4463, %v5938
          %v5983 = vmul.f32 %v4465, %v5939
          %v5984 = vmul.f32 %v4467, %v5940
          %v5985 = vmul.f32 %v4469, %v5941
          %v5986 = vmul.f32 %v4471, %v5938
          %v5987 = vmul.f32 %v4473, %v5939
          %v5988 = vmul.f32 %v4475, %v5940
          %v5989 = vmul.f32 %v4477, %v5941
          %v5990 = vmul.f32 %v4479, %v5938
          %v5991 = vmul.f32 %v4481, %v5939
          %v5992 = vmul.f32 %v4483, %v5940
          %v5993 = vmul.f32 %v4485, %v5941
          %v5994 = vmul.f32 %v4487, %v5938
          %v5995 = vmul.f32 %v4489, %v5939
          %v5996 = vmul.f32 %v4491, %v5940
          %v5997 = vmul.f32 %v4493, %v5941
          %v5998 = vmul.f32 %v4495, %v5938
          %v5999 = vmul.f32 %v4497, %v5939
          %v6000 = vmul.f32 %v4499, %v5940
          %v6001 = vmul.f32 %v4501, %v5941
          %v6002 = vmul.f32 %v4503, %v5938
          %v6003 = vmul.f32 %v4505, %v5939
          %v6004 = vmul.f32 %v4507, %v5940
          %v6005 = vmul.f32 %v4509, %v5941
          %v6006 = vmul.f32 %v4511, %v5938
          %v6007 = vmul.f32 %v4513, %v5939
          %v6008 = vmul.f32 %v4515, %v5940
          %v6009 = vmul.f32 %v4517, %v5941
          %v6010 = vmul.f32 %v4519, %v5938
          %v6011 = vmul.f32 %v4521, %v5939
          %v6012 = vmul.f32 %v4523, %v5940
          %v6013 = vmul.f32 %v4525, %v5941
          %v6014 = vmul.f32 %v4527, %v5938
          %v6015 = vmul.f32 %v4529, %v5939
          %v6016 = vmul.f32 %v4531, %v5940
          %v6017 = vmul.f32 %v4533, %v5941
          %v6018 = vmul.f32 %v4535, %v5938
          %v6019 = vmul.f32 %v4537, %v5939
          %v6020 = vmul.f32 %v4539, %v5940
          %v6021 = vmul.f32 %v4541, %v5941
          %v6022 = vmul.f32 %v4543, %v5938
          %v6023 = vmul.f32 %v4545, %v5939
          %v6024 = vmul.f32 %v4547, %v5940
          %v6025 = vmul.f32 %v4549, %v5941
          %v6026 = vmul.f32 %v4551, %v5938
          %v6027 = vmul.f32 %v4553, %v5939
          %v6028 = vmul.f32 %v4555, %v5940
          %v6029 = vmul.f32 %v4557, %v5941
          %v6030 = vmul.f32 %v4559, %v5938
          %v6031 = vmul.f32 %v4561, %v5939
          %v6032 = vmul.f32 %v4563, %v5940
          %v6033 = vmul.f32 %v4565, %v5941
          %v6034 = vmul.f32 %v4567, %v5938
          %v6035 = vmul.f32 %v4569, %v5939
          %v6036 = vmul.f32 %v4571, %v5940
          %v6037 = vmul.f32 %v4573, %v5941
          %v6038 = vmul.f32 %v4575, %v5938
          %v6039 = vmul.f32 %v4577, %v5939
          %v6040 = vmul.f32 %v4579, %v5940
          %v6041 = vmul.f32 %v4581, %v5941
          %v6042 = vmul.f32 %v4583, %v5938
          %v6043 = vmul.f32 %v4585, %v5939
          %v6044 = vmul.f32 %v4587, %v5940
          %v6045 = vmul.f32 %v4589, %v5941
          %v6046 = vmul.f32 %v4591, %v5938
          %v6047 = vmul.f32 %v4593, %v5939
          %v6048 = vmul.f32 %v4595, %v5940
          %v6049 = vmul.f32 %v4597, %v5941
          %v6050 = vmul.f32 %v4599, %v5938
          %v6051 = vmul.f32 %v4601, %v5939
          %v6052 = vmul.f32 %v4603, %v5940
          %v6053 = vmul.f32 %v4605, %v5941
          %v6054 = vmul.f32 %v4607, %v5938
          %v6055 = vmul.f32 %v4609, %v5939
          %v6056 = vmul.f32 %v4611, %v5940
          %v6057 = vmul.f32 %v4613, %v5941
          %v6058 = vmul.f32 %v4615, %v5938
          %v6059 = vmul.f32 %v4617, %v5939
          %v6060 = vmul.f32 %v4619, %v5940
          %v6061 = vmul.f32 %v4621, %v5941
          %v6062 = vmul.f32 %v4623, %v5938
          %v6063 = vmul.f32 %v4625, %v5939
          %v6064 = vmul.f32 %v4627, %v5940
          %v6065 = vmul.f32 %v4629, %v5941
          %v6066 = vmul.f32 %v4631, %v5938
          %v6067 = vmul.f32 %v4633, %v5939
          %v6068 = vmul.f32 %v4635, %v5940
          %v6069 = vmul.f32 %v4637, %v5941
          %v6070 = vmul.f32 %v4639, %v5938
          %v6071 = vmul.f32 %v4641, %v5939
          %v6072 = vmul.f32 %v4643, %v5940
          %v6073 = vmul.f32 %v4645, %v5941
          %v6074 = vmul.f32 %v4647, %v5938
          %v6075 = vmul.f32 %v4649, %v5939
          %v6076 = vmul.f32 %v4651, %v5940
          %v6077 = vmul.f32 %v4653, %v5941
          %v6078 = vmul.f32 %v4655, %v5938
          %v6079 = vmul.f32 %v4657, %v5939
          %v6080 = vmul.f32 %v4659, %v5940
          %v6081 = vmul.f32 %v4661, %v5941
          %v6082 = vmul.f32 %v4663, %v5938
          %v6083 = vmul.f32 %v4665, %v5939
          %v6084 = vmul.f32 %v4667, %v5940
          %v6085 = vmul.f32 %v4669, %v5941
          %v6086 = vmul.f32 %v4671, %v5938
          %v6087 = vmul.f32 %v4673, %v5939
          %v6088 = vmul.f32 %v4675, %v5940
          %v6089 = vmul.f32 %v4677, %v5941
          %v6090 = vmul.f32 %v4679, %v5938
          %v6091 = vmul.f32 %v4681, %v5939
          %v6092 = vmul.f32 %v4683, %v5940
          %v6093 = vmul.f32 %v4685, %v5941
          %v6094 = vmul.f32 %v4687, %v5938
          %v6095 = vmul.f32 %v4689, %v5939
          %v6096 = vmul.f32 %v4691, %v5940
          %v6097 = vmul.f32 %v4693, %v5941
          %v6098 = vmul.f32 %v4695, %v5938
          %v6099 = vmul.f32 %v4697, %v5939
          %v6100 = vmul.f32 %v4699, %v5940
          %v6101 = vmul.f32 %v4701, %v5941
          %v6102 = vmul.f32 %v4703, %v5938
          %v6103 = vmul.f32 %v4705, %v5939
          %v6104 = vmul.f32 %v4707, %v5940
          %v6105 = vmul.f32 %v4709, %v5941
          %v6106 = vmul.f32 %v4711, %v5938
          %v6107 = vmul.f32 %v4713, %v5939
          %v6108 = vmul.f32 %v4715, %v5940
          %v6109 = vmul.f32 %v4717, %v5941
          %v6110 = vmul.f32 %v4719, %v5938
          %v6111 = vmul.f32 %v4721, %v5939
          %v6112 = vmul.f32 %v4723, %v5940
          %v6113 = vmul.f32 %v4725, %v5941
          %v6114 = vmul.f32 %v4727, %v5938
          %v6115 = vmul.f32 %v4729, %v5939
          %v6116 = vmul.f32 %v4731, %v5940
          %v6117 = vmul.f32 %v4733, %v5941
          %v6118 = vmul.f32 %v4735, %v5938
          %v6119 = vmul.f32 %v4737, %v5939
          %v6120 = vmul.f32 %v4739, %v5940
          %v6121 = vmul.f32 %v4741, %v5941
          %v6122 = vmul.f32 %v4743, %v5938
          %v6123 = vmul.f32 %v4745, %v5939
          %v6124 = vmul.f32 %v4747, %v5940
          %v6125 = vmul.f32 %v4749, %v5941
          %v6126 = vmul.f32 %v4751, %v5938
          %v6127 = vmul.f32 %v4753, %v5939
          %v6128 = vmul.f32 %v4755, %v5940
          %v6129 = vmul.f32 %v4757, %v5941
          %v6130 = vmul.f32 %v4759, %v5938
          %v6131 = vmul.f32 %v4761, %v5939
          %v6132 = vmul.f32 %v4763, %v5940
          %v6133 = vmul.f32 %v4765, %v5941
          %v6134 = vmul.f32 %v4767, %v5938
          %v6135 = vmul.f32 %v4769, %v5939
          %v6136 = vmul.f32 %v4771, %v5940
          %v6137 = vmul.f32 %v4773, %v5941
          %v6138 = vmul.f32 %v4775, %v5938
          %v6139 = vmul.f32 %v4777, %v5939
          %v6140 = vmul.f32 %v4779, %v5940
          %v6141 = vmul.f32 %v4781, %v5941
          %v6142 = vmul.f32 %v4783, %v5938
          %v6143 = vmul.f32 %v4785, %v5939
          %v6144 = vmul.f32 %v4787, %v5940
          %v6145 = vmul.f32 %v4789, %v5941
          %v6146 = vmul.f32 %v4791, %v5938
          %v6147 = vmul.f32 %v4793, %v5939
          %v6148 = vmul.f32 %v4795, %v5940
          %v6149 = vmul.f32 %v4797, %v5941
          %v6150 = vmul.f32 %v4799, %v5938
          %v6151 = vmul.f32 %v4801, %v5939
          %v6152 = vmul.f32 %v4803, %v5940
          %v6153 = vmul.f32 %v4805, %v5941
          %v6154 = vmul.f32 %v4807, %v5938
          %v6155 = vmul.f32 %v4809, %v5939
          %v6156 = vmul.f32 %v4811, %v5940
          %v6157 = vmul.f32 %v4813, %v5941
          %v6158 = vmul.f32 %v4815, %v5938
          %v6159 = vmul.f32 %v4817, %v5939
          %v6160 = vmul.f32 %v4819, %v5940
          %v6161 = vmul.f32 %v4821, %v5941
          %v6162 = vmul.f32 %v4823, %v5938
          %v6163 = vmul.f32 %v4825, %v5939
          %v6164 = vmul.f32 %v4827, %v5940
          %v6165 = vmul.f32 %v4829, %v5941
          %v6166 = vmul.f32 %v4831, %v5938
          %v6167 = vmul.f32 %v4833, %v5939
          %v6168 = vmul.f32 %v4835, %v5940
          %v6169 = vmul.f32 %v4837, %v5941
          %v6170 = vmul.f32 %v4839, %v5938
          %v6171 = vmul.f32 %v4841, %v5939
          %v6172 = vmul.f32 %v4843, %v5940
          %v6173 = vmul.f32 %v4845, %v5941
          %v6174 = vmul.f32 %v4847, %v5938
          %v6175 = vmul.f32 %v4849, %v5939
          %v6176 = vmul.f32 %v4851, %v5940
          %v6177 = vmul.f32 %v4853, %v5941
          %v6178 = vmul.f32 %v4855, %v5938
          %v6179 = vmul.f32 %v4857, %v5939
          %v6180 = vmul.f32 %v4859, %v5940
          %v6181 = vmul.f32 %v4861, %v5941
          %v6182 = vmul.f32 %v4863, %v5938
          %v6183 = vmul.f32 %v4865, %v5939
          %v6184 = vmul.f32 %v4867, %v5940
          %v6185 = vmul.f32 %v4869, %v5941
          %v6186 = vmul.f32 %v4871, %v5938
          %v6187 = vmul.f32 %v4873, %v5939
          %v6188 = vmul.f32 %v4875, %v5940
          %v6189 = vmul.f32 %v4877, %v5941
          %v6190 = vmul.f32 %v4879, %v5938
          %v6191 = vmul.f32 %v4881, %v5939
          %v6192 = vmul.f32 %v4883, %v5940
          %v6193 = vmul.f32 %v4885, %v5941
          %v6194 = vmul.f32 %v4887, %v5938
          %v6195 = vmul.f32 %v4889, %v5939
          %v6196 = vmul.f32 %v4891, %v5940
          %v6197 = vmul.f32 %v4893, %v5941
          %v6198 = vmul.f32 %v4895, %v5938
          %v6199 = vmul.f32 %v4897, %v5939
          %v6200 = vmul.f32 %v4899, %v5940
          %v6201 = vmul.f32 %v4901, %v5941
          %v6202 = vmul.f32 %v4903, %v5938
          %v6203 = vmul.f32 %v4905, %v5939
          %v6204 = vmul.f32 %v4907, %v5940
          %v6205 = vmul.f32 %v4909, %v5941
          %v6206 = vmul.f32 %v4911, %v5938
          %v6207 = vmul.f32 %v4913, %v5939
          %v6208 = vmul.f32 %v4915, %v5940
          %v6209 = vmul.f32 %v4917, %v5941
          %v6210 = vmul.f32 %v4919, %v5938
          %v6211 = vmul.f32 %v4921, %v5939
          %v6212 = vmul.f32 %v4923, %v5940
          %v6213 = vmul.f32 %v4925, %v5941
          %v6214 = vmul.f32 %v4927, %v5938
          %v6215 = vmul.f32 %v4929, %v5939
          %v6216 = vmul.f32 %v4931, %v5940
          %v6217 = vmul.f32 %v4933, %v5941
          %v6218 = vmul.f32 %v4935, %v5938
          %v6219 = vmul.f32 %v4937, %v5939
          %v6220 = vmul.f32 %v4939, %v5940
          %v6221 = vmul.f32 %v4941, %v5941
          %v6222 = vmul.f32 %v4943, %v5938
          %v6223 = vmul.f32 %v4945, %v5939
          %v6224 = vmul.f32 %v4947, %v5940
          %v6225 = vmul.f32 %v4949, %v5941
          %v6226 = vmul.f32 %v4951, %v5938
          %v6227 = vmul.f32 %v4953, %v5939
          %v6228 = vmul.f32 %v4955, %v5940
          %v6229 = vmul.f32 %v4957, %v5941
          %v6230 = vmul.f32 %v4959, %v5938
          %v6231 = vmul.f32 %v4961, %v5939
          %v6232 = vmul.f32 %v4963, %v5940
          %v6233 = vmul.f32 %v4965, %v5941
          %v6234 = vmul.f32 %v4967, %v5938
          %v6235 = vmul.f32 %v4969, %v5939
          %v6236 = vmul.f32 %v4971, %v5940
          %v6237 = vmul.f32 %v4973, %v5941
          %v6238 = vmul.f32 %v4975, %v5938
          %v6239 = vmul.f32 %v4977, %v5939
          %v6240 = vmul.f32 %v4979, %v5940
          %v6241 = vmul.f32 %v4981, %v5941
          %v6242 = vmul.f32 %v4983, %v5938
          %v6243 = vmul.f32 %v4985, %v5939
          %v6244 = vmul.f32 %v4987, %v5940
          %v6245 = vmul.f32 %v4989, %v5941
          %v6246 = vmul.f32 %v4991, %v5938
          %v6247 = vmul.f32 %v4993, %v5939
          %v6248 = vmul.f32 %v4995, %v5940
          %v6249 = vmul.f32 %v4997, %v5941
          %v6250 = vmul.f32 %v4999, %v5938
          %v6251 = vmul.f32 %v5001, %v5939
          %v6252 = vmul.f32 %v5003, %v5940
          %v6253 = vmul.f32 %v5005, %v5941
          %v6254 = vmul.f32 %v5007, %v5938
          %v6255 = vmul.f32 %v5009, %v5939
          %v6256 = vmul.f32 %v5011, %v5940
          %v6257 = vmul.f32 %v5013, %v5941
          %v6258 = vmul.f32 %v5015, %v5938
          %v6259 = vmul.f32 %v5017, %v5939
          %v6260 = vmul.f32 %v5019, %v5940
          %v6261 = vmul.f32 %v5021, %v5941
          %v6262 = vmul.f32 %v5023, %v5938
          %v6263 = vmul.f32 %v5025, %v5939
          %v6264 = vmul.f32 %v5027, %v5940
          %v6265 = vmul.f32 %v5029, %v5941
          %v6266 = vmul.f32 %v5031, %v5938
          %v6267 = vmul.f32 %v5033, %v5939
          %v6268 = vmul.f32 %v5035, %v5940
          %v6269 = vmul.f32 %v5037, %v5941
          %v6270 = vmul.f32 %v5039, %v5938
          %v6271 = vmul.f32 %v5041, %v5939
          %v6272 = vmul.f32 %v5043, %v5940
          %v6273 = vmul.f32 %v5045, %v5941
          %v6274 = vmul.f32 %v5047, %v5938
          %v6275 = vmul.f32 %v5049, %v5939
          %v6276 = vmul.f32 %v5051, %v5940
          %v6277 = vmul.f32 %v5053, %v5941
          %v6278 = vmul.f32 %v5055, %v5938
          %v6279 = vmul.f32 %v5057, %v5939
          %v6280 = vmul.f32 %v5059, %v5940
          %v6281 = vmul.f32 %v5061, %v5941
          %v6282 = vmul.f32 %v5063, %v5938
          %v6283 = vmul.f32 %v5065, %v5939
          %v6284 = vmul.f32 %v5067, %v5940
          %v6285 = vmul.f32 %v5069, %v5941
          %v6286 = vmul.f32 %v5071, %v5938
          %v6287 = vmul.f32 %v5073, %v5939
          %v6288 = vmul.f32 %v5075, %v5940
          %v6289 = vmul.f32 %v5077, %v5941
          %v6290 = vmul.f32 %v5079, %v5938
          %v6291 = vmul.f32 %v5081, %v5939
          %v6292 = vmul.f32 %v5083, %v5940
          %v6293 = vmul.f32 %v5085, %v5941
          %v6294 = vmul.f32 %v5087, %v5938
          %v6295 = vmul.f32 %v5089, %v5939
          %v6296 = vmul.f32 %v5091, %v5940
          %v6297 = vmul.f32 %v5093, %v5941
          %v6298 = vmul.f32 %v5095, %v5938
          %v6299 = vmul.f32 %v5097, %v5939
          %v6300 = vmul.f32 %v5099, %v5940
          %v6301 = vmul.f32 %v5101, %v5941
          %v6302 = vmul.f32 %v5103, %v5938
          %v6303 = vmul.f32 %v5105, %v5939
          %v6304 = vmul.f32 %v5107, %v5940
          %v6305 = vmul.f32 %v5109, %v5941
          %v6306 = vmul.f32 %v5111, %v5938
          %v6307 = vmul.f32 %v5113, %v5939
          %v6308 = vmul.f32 %v5115, %v5940
          %v6309 = vmul.f32 %v5117, %v5941
          %v6310 = vmul.f32 %v5119, %v5938
          %v6311 = vmul.f32 %v5121, %v5939
          %v6312 = vmul.f32 %v5123, %v5940
          %v6313 = vmul.f32 %v5125, %v5941
          %v6314 = vmul.f32 %v5127, %v5938
          %v6315 = vmul.f32 %v5129, %v5939
          %v6316 = vmul.f32 %v5131, %v5940
          %v6317 = vmul.f32 %v5133, %v5941
          %v6318 = vmul.f32 %v5135, %v5938
          %v6319 = vmul.f32 %v5137, %v5939
          %v6320 = vmul.f32 %v5139, %v5940
          %v6321 = vmul.f32 %v5141, %v5941
          %v6322 = vmul.f32 %v5143, %v5938
          %v6323 = vmul.f32 %v5145, %v5939
          %v6324 = vmul.f32 %v5147, %v5940
          %v6325 = vmul.f32 %v5149, %v5941
          %v6326 = vmul.f32 %v5151, %v5938
          %v6327 = vmul.f32 %v5153, %v5939
          %v6328 = vmul.f32 %v5155, %v5940
          %v6329 = vmul.f32 %v5157, %v5941
          %v6330 = vmul.f32 %v5159, %v5938
          %v6331 = vmul.f32 %v5161, %v5939
          %v6332 = vmul.f32 %v5163, %v5940
          %v6333 = vmul.f32 %v5165, %v5941
          %v6334 = vmul.f32 %v5167, %v5938
          %v6335 = vmul.f32 %v5169, %v5939
          %v6336 = vmul.f32 %v5171, %v5940
          %v6337 = vmul.f32 %v5173, %v5941
          %v6338 = vmul.f32 %v5175, %v5938
          %v6339 = vmul.f32 %v5177, %v5939
          %v6340 = vmul.f32 %v5179, %v5940
          %v6341 = vmul.f32 %v5181, %v5941
          %v6342 = vmul.f32 %v5183, %v5938
          %v6343 = vmul.f32 %v5185, %v5939
          %v6344 = vmul.f32 %v5187, %v5940
          %v6345 = vmul.f32 %v5189, %v5941
          %v6346 = vmul.f32 %v5191, %v5938
          %v6347 = vmul.f32 %v5193, %v5939
          %v6348 = vmul.f32 %v5195, %v5940
          %v6349 = vmul.f32 %v5197, %v5941
          %v6350 = vmul.f32 %v5199, %v5938
          %v6351 = vmul.f32 %v5201, %v5939
          %v6352 = vmul.f32 %v5203, %v5940
          %v6353 = vmul.f32 %v5205, %v5941
          %v6354 = vmul.f32 %v5207, %v5938
          %v6355 = vmul.f32 %v5209, %v5939
          %v6356 = vmul.f32 %v5211, %v5940
          %v6357 = vmul.f32 %v5213, %v5941
          %v6358 = vmul.f32 %v5215, %v5938
          %v6359 = vmul.f32 %v5217, %v5939
          %v6360 = vmul.f32 %v5219, %v5940
          %v6361 = vmul.f32 %v5221, %v5941
          %v6362 = vmul.f32 %v5223, %v5938
          %v6363 = vmul.f32 %v5225, %v5939
          %v6364 = vmul.f32 %v5227, %v5940
          %v6365 = vmul.f32 %v5229, %v5941
          %v6366 = vmul.f32 %v5231, %v5938
          %v6367 = vmul.f32 %v5233, %v5939
          %v6368 = vmul.f32 %v5235, %v5940
          %v6369 = vmul.f32 %v5237, %v5941
          %v6370 = vmul.f32 %v5239, %v5938
          %v6371 = vmul.f32 %v5241, %v5939
          %v6372 = vmul.f32 %v5243, %v5940
          %v6373 = vmul.f32 %v5245, %v5941
          %v6374 = vmul.f32 %v5247, %v5938
          %v6375 = vmul.f32 %v5249, %v5939
          %v6376 = vmul.f32 %v5251, %v5940
          %v6377 = vmul.f32 %v5253, %v5941
          %v6378 = vmul.f32 %v5255, %v5938
          %v6379 = vmul.f32 %v5257, %v5939
          %v6380 = vmul.f32 %v5259, %v5940
          %v6381 = vmul.f32 %v5261, %v5941
          %v6382 = vmul.f32 %v5263, %v5938
          %v6383 = vmul.f32 %v5265, %v5939
          %v6384 = vmul.f32 %v5267, %v5940
          %v6385 = vmul.f32 %v5269, %v5941
          %v6386 = vmul.f32 %v5271, %v5938
          %v6387 = vmul.f32 %v5273, %v5939
          %v6388 = vmul.f32 %v5275, %v5940
          %v6389 = vmul.f32 %v5277, %v5941
          %v6390 = vmul.f32 %v5279, %v5938
          %v6391 = vmul.f32 %v5281, %v5939
          %v6392 = vmul.f32 %v5283, %v5940
          %v6393 = vmul.f32 %v5285, %v5941
          %v6394 = vmul.f32 %v5287, %v5938
          %v6395 = vmul.f32 %v5289, %v5939
          %v6396 = vmul.f32 %v5291, %v5940
          %v6397 = vmul.f32 %v5293, %v5941
          %v6398 = vmul.f32 %v5295, %v5938
          %v6399 = vmul.f32 %v5297, %v5939
          %v6400 = vmul.f32 %v5299, %v5940
          %v6401 = vmul.f32 %v5301, %v5941
          %v6402 = vmul.f32 %v5303, %v5938
          %v6403 = vmul.f32 %v5305, %v5939
          %v6404 = vmul.f32 %v5307, %v5940
          %v6405 = vmul.f32 %v5309, %v5941
          %v6406 = vmul.f32 %v5311, %v5938
          %v6407 = vmul.f32 %v5313, %v5939
          %v6408 = vmul.f32 %v5315, %v5940
          %v6409 = vmul.f32 %v5317, %v5941
          %v6410 = vmul.f32 %v5319, %v5938
          %v6411 = vmul.f32 %v5321, %v5939
          %v6412 = vmul.f32 %v5323, %v5940
          %v6413 = vmul.f32 %v5325, %v5941
          %v6414 = vmul.f32 %v5327, %v5938
          %v6415 = vmul.f32 %v5329, %v5939
          %v6416 = vmul.f32 %v5331, %v5940
          %v6417 = vmul.f32 %v5333, %v5941
          %v6418 = vmul.f32 %v5335, %v5938
          %v6419 = vmul.f32 %v5337, %v5939
          %v6420 = vmul.f32 %v5339, %v5940
          %v6421 = vmul.f32 %v5341, %v5941
          %v6422 = vmul.f32 %v5343, %v5938
          %v6423 = vmul.f32 %v5345, %v5939
          %v6424 = vmul.f32 %v5347, %v5940
          %v6425 = vmul.f32 %v5349, %v5941
          %v6426 = vmul.f32 %v5351, %v5938
          %v6427 = vmul.f32 %v5353, %v5939
          %v6428 = vmul.f32 %v5355, %v5940
          %v6429 = vmul.f32 %v5357, %v5941
          %v6430 = vmul.f32 %v5359, %v5938
          %v6431 = vmul.f32 %v5361, %v5939
          %v6432 = vmul.f32 %v5363, %v5940
          %v6433 = vmul.f32 %v5365, %v5941
          %v6434 = vmul.f32 %v5367, %v5938
          %v6435 = vmul.f32 %v5369, %v5939
          %v6436 = vmul.f32 %v5371, %v5940
          %v6437 = vmul.f32 %v5373, %v5941
          %v6438 = vmul.f32 %v5375, %v5938
          %v6439 = vmul.f32 %v5377, %v5939
          %v6440 = vmul.f32 %v5379, %v5940
          %v6441 = vmul.f32 %v5381, %v5941
          %v6442 = vmul.f32 %v5383, %v5938
          %v6443 = vmul.f32 %v5385, %v5939
          %v6444 = vmul.f32 %v5387, %v5940
          %v6445 = vmul.f32 %v5389, %v5941
          %v6446 = vmul.f32 %v5391, %v5938
          %v6447 = vmul.f32 %v5393, %v5939
          %v6448 = vmul.f32 %v5395, %v5940
          %v6449 = vmul.f32 %v5397, %v5941
          %v6450 = vmul.f32 %v5399, %v5938
          %v6451 = vmul.f32 %v5401, %v5939
          %v6452 = vmul.f32 %v5403, %v5940
          %v6453 = vmul.f32 %v5405, %v5941
          %v6454 = vpack.c.bf16 %v5946, %v5942
          %v6455 = vpack.c.bf16 %v5947, %v5943
          %v6456 = vpack.c.bf16 %v5948, %v5944
          %v6457 = vpack.c.bf16 %v5949, %v5945
          %v6458 = vpack.c.bf16 %v5954, %v5950
          %v6459 = vpack.c.bf16 %v5955, %v5951
          %v6460 = vpack.c.bf16 %v5956, %v5952
          %v6461 = vpack.c.bf16 %v5957, %v5953
          %v6462 = vpack.c.bf16 %v5962, %v5958
          %v6463 = vpack.c.bf16 %v5963, %v5959
          %v6464 = vpack.c.bf16 %v5964, %v5960
          %v6465 = vpack.c.bf16 %v5965, %v5961
          %v6466 = vpack.c.bf16 %v5970, %v5966
          %v6467 = vpack.c.bf16 %v5971, %v5967
          %v6468 = vpack.c.bf16 %v5972, %v5968
          %v6469 = vpack.c.bf16 %v5973, %v5969
          %v6470 = vpack.c.bf16 %v5978, %v5974
          %v6471 = vpack.c.bf16 %v5979, %v5975
          %v6472 = vpack.c.bf16 %v5980, %v5976
          %v6473 = vpack.c.bf16 %v5981, %v5977
          %v6474 = vpack.c.bf16 %v5986, %v5982
          %v6475 = vpack.c.bf16 %v5987, %v5983
          %v6476 = vpack.c.bf16 %v5988, %v5984
          %v6477 = vpack.c.bf16 %v5989, %v5985
          %v6478 = vpack.c.bf16 %v5994, %v5990
          %v6479 = vpack.c.bf16 %v5995, %v5991
          %v6480 = vpack.c.bf16 %v5996, %v5992
          %v6481 = vpack.c.bf16 %v5997, %v5993
          %v6482 = vpack.c.bf16 %v6002, %v5998
          %v6483 = vpack.c.bf16 %v6003, %v5999
          %v6484 = vpack.c.bf16 %v6004, %v6000
          %v6485 = vpack.c.bf16 %v6005, %v6001
          %v6486 = vpack.c.bf16 %v6010, %v6006
          %v6487 = vpack.c.bf16 %v6011, %v6007
          %v6488 = vpack.c.bf16 %v6012, %v6008
          %v6489 = vpack.c.bf16 %v6013, %v6009
          %v6490 = vpack.c.bf16 %v6018, %v6014
          %v6491 = vpack.c.bf16 %v6019, %v6015
          %v6492 = vpack.c.bf16 %v6020, %v6016
          %v6493 = vpack.c.bf16 %v6021, %v6017
          %v6494 = vpack.c.bf16 %v6026, %v6022
          %v6495 = vpack.c.bf16 %v6027, %v6023
          %v6496 = vpack.c.bf16 %v6028, %v6024
          %v6497 = vpack.c.bf16 %v6029, %v6025
          %v6498 = vpack.c.bf16 %v6034, %v6030
          %v6499 = vpack.c.bf16 %v6035, %v6031
          %v6500 = vpack.c.bf16 %v6036, %v6032
          %v6501 = vpack.c.bf16 %v6037, %v6033
          %v6502 = vpack.c.bf16 %v6042, %v6038
          %v6503 = vpack.c.bf16 %v6043, %v6039
          %v6504 = vpack.c.bf16 %v6044, %v6040
          %v6505 = vpack.c.bf16 %v6045, %v6041
          %v6506 = vpack.c.bf16 %v6050, %v6046
          %v6507 = vpack.c.bf16 %v6051, %v6047
          %v6508 = vpack.c.bf16 %v6052, %v6048
          %v6509 = vpack.c.bf16 %v6053, %v6049
          %v6510 = vpack.c.bf16 %v6058, %v6054
          %v6511 = vpack.c.bf16 %v6059, %v6055
          %v6512 = vpack.c.bf16 %v6060, %v6056
          %v6513 = vpack.c.bf16 %v6061, %v6057
          %v6514 = vpack.c.bf16 %v6066, %v6062
          %v6515 = vpack.c.bf16 %v6067, %v6063
          %v6516 = vpack.c.bf16 %v6068, %v6064
          %v6517 = vpack.c.bf16 %v6069, %v6065
          %v6518 = vpack.c.bf16 %v6074, %v6070
          %v6519 = vpack.c.bf16 %v6075, %v6071
          %v6520 = vpack.c.bf16 %v6076, %v6072
          %v6521 = vpack.c.bf16 %v6077, %v6073
          %v6522 = vpack.c.bf16 %v6082, %v6078
          %v6523 = vpack.c.bf16 %v6083, %v6079
          %v6524 = vpack.c.bf16 %v6084, %v6080
          %v6525 = vpack.c.bf16 %v6085, %v6081
          %v6526 = vpack.c.bf16 %v6090, %v6086
          %v6527 = vpack.c.bf16 %v6091, %v6087
          %v6528 = vpack.c.bf16 %v6092, %v6088
          %v6529 = vpack.c.bf16 %v6093, %v6089
          %v6530 = vpack.c.bf16 %v6098, %v6094
          %v6531 = vpack.c.bf16 %v6099, %v6095
          %v6532 = vpack.c.bf16 %v6100, %v6096
          %v6533 = vpack.c.bf16 %v6101, %v6097
          %v6534 = vpack.c.bf16 %v6106, %v6102
          %v6535 = vpack.c.bf16 %v6107, %v6103
          %v6536 = vpack.c.bf16 %v6108, %v6104
          %v6537 = vpack.c.bf16 %v6109, %v6105
          %v6538 = vpack.c.bf16 %v6114, %v6110
          %v6539 = vpack.c.bf16 %v6115, %v6111
          %v6540 = vpack.c.bf16 %v6116, %v6112
          %v6541 = vpack.c.bf16 %v6117, %v6113
          %v6542 = vpack.c.bf16 %v6122, %v6118
          %v6543 = vpack.c.bf16 %v6123, %v6119
          %v6544 = vpack.c.bf16 %v6124, %v6120
          %v6545 = vpack.c.bf16 %v6125, %v6121
          %v6546 = vpack.c.bf16 %v6130, %v6126
          %v6547 = vpack.c.bf16 %v6131, %v6127
          %v6548 = vpack.c.bf16 %v6132, %v6128
          %v6549 = vpack.c.bf16 %v6133, %v6129
          %v6550 = vpack.c.bf16 %v6138, %v6134
          %v6551 = vpack.c.bf16 %v6139, %v6135
          %v6552 = vpack.c.bf16 %v6140, %v6136
          %v6553 = vpack.c.bf16 %v6141, %v6137
          %v6554 = vpack.c.bf16 %v6146, %v6142
          %v6555 = vpack.c.bf16 %v6147, %v6143
          %v6556 = vpack.c.bf16 %v6148, %v6144
          %v6557 = vpack.c.bf16 %v6149, %v6145
          %v6558 = vpack.c.bf16 %v6154, %v6150
          %v6559 = vpack.c.bf16 %v6155, %v6151
          %v6560 = vpack.c.bf16 %v6156, %v6152
          %v6561 = vpack.c.bf16 %v6157, %v6153
          %v6562 = vpack.c.bf16 %v6162, %v6158
          %v6563 = vpack.c.bf16 %v6163, %v6159
          %v6564 = vpack.c.bf16 %v6164, %v6160
          %v6565 = vpack.c.bf16 %v6165, %v6161
          %v6566 = vpack.c.bf16 %v6170, %v6166
          %v6567 = vpack.c.bf16 %v6171, %v6167
          %v6568 = vpack.c.bf16 %v6172, %v6168
          %v6569 = vpack.c.bf16 %v6173, %v6169
          %v6570 = vpack.c.bf16 %v6178, %v6174
          %v6571 = vpack.c.bf16 %v6179, %v6175
          %v6572 = vpack.c.bf16 %v6180, %v6176
          %v6573 = vpack.c.bf16 %v6181, %v6177
          %v6574 = vpack.c.bf16 %v6186, %v6182
          %v6575 = vpack.c.bf16 %v6187, %v6183
          %v6576 = vpack.c.bf16 %v6188, %v6184
          %v6577 = vpack.c.bf16 %v6189, %v6185
          %v6578 = vpack.c.bf16 %v6194, %v6190
          %v6579 = vpack.c.bf16 %v6195, %v6191
          %v6580 = vpack.c.bf16 %v6196, %v6192
          %v6581 = vpack.c.bf16 %v6197, %v6193
          %v6582 = vpack.c.bf16 %v6202, %v6198
          %v6583 = vpack.c.bf16 %v6203, %v6199
          %v6584 = vpack.c.bf16 %v6204, %v6200
          %v6585 = vpack.c.bf16 %v6205, %v6201
          %v6586 = vpack.c.bf16 %v6210, %v6206
          %v6587 = vpack.c.bf16 %v6211, %v6207
          %v6588 = vpack.c.bf16 %v6212, %v6208
          %v6589 = vpack.c.bf16 %v6213, %v6209
          %v6590 = vpack.c.bf16 %v6218, %v6214
          %v6591 = vpack.c.bf16 %v6219, %v6215
          %v6592 = vpack.c.bf16 %v6220, %v6216
          %v6593 = vpack.c.bf16 %v6221, %v6217
          %v6594 = vpack.c.bf16 %v6226, %v6222
          %v6595 = vpack.c.bf16 %v6227, %v6223
          %v6596 = vpack.c.bf16 %v6228, %v6224
          %v6597 = vpack.c.bf16 %v6229, %v6225
          %v6598 = vpack.c.bf16 %v6234, %v6230
          %v6599 = vpack.c.bf16 %v6235, %v6231
          %v6600 = vpack.c.bf16 %v6236, %v6232
          %v6601 = vpack.c.bf16 %v6237, %v6233
          %v6602 = vpack.c.bf16 %v6242, %v6238
          %v6603 = vpack.c.bf16 %v6243, %v6239
          %v6604 = vpack.c.bf16 %v6244, %v6240
          %v6605 = vpack.c.bf16 %v6245, %v6241
          %v6606 = vpack.c.bf16 %v6250, %v6246
          %v6607 = vpack.c.bf16 %v6251, %v6247
          %v6608 = vpack.c.bf16 %v6252, %v6248
          %v6609 = vpack.c.bf16 %v6253, %v6249
          %v6610 = vpack.c.bf16 %v6258, %v6254
          %v6611 = vpack.c.bf16 %v6259, %v6255
          %v6612 = vpack.c.bf16 %v6260, %v6256
          %v6613 = vpack.c.bf16 %v6261, %v6257
          %v6614 = vpack.c.bf16 %v6266, %v6262
          %v6615 = vpack.c.bf16 %v6267, %v6263
          %v6616 = vpack.c.bf16 %v6268, %v6264
          %v6617 = vpack.c.bf16 %v6269, %v6265
          %v6618 = vpack.c.bf16 %v6274, %v6270
          %v6619 = vpack.c.bf16 %v6275, %v6271
          %v6620 = vpack.c.bf16 %v6276, %v6272
          %v6621 = vpack.c.bf16 %v6277, %v6273
          %v6622 = vpack.c.bf16 %v6282, %v6278
          %v6623 = vpack.c.bf16 %v6283, %v6279
          %v6624 = vpack.c.bf16 %v6284, %v6280
          %v6625 = vpack.c.bf16 %v6285, %v6281
          %v6626 = vpack.c.bf16 %v6290, %v6286
          %v6627 = vpack.c.bf16 %v6291, %v6287
          %v6628 = vpack.c.bf16 %v6292, %v6288
          %v6629 = vpack.c.bf16 %v6293, %v6289
          %v6630 = vpack.c.bf16 %v6298, %v6294
          %v6631 = vpack.c.bf16 %v6299, %v6295
          %v6632 = vpack.c.bf16 %v6300, %v6296
          %v6633 = vpack.c.bf16 %v6301, %v6297
          %v6634 = vpack.c.bf16 %v6306, %v6302
          %v6635 = vpack.c.bf16 %v6307, %v6303
          %v6636 = vpack.c.bf16 %v6308, %v6304
          %v6637 = vpack.c.bf16 %v6309, %v6305
          %v6638 = vpack.c.bf16 %v6314, %v6310
          %v6639 = vpack.c.bf16 %v6315, %v6311
          %v6640 = vpack.c.bf16 %v6316, %v6312
          %v6641 = vpack.c.bf16 %v6317, %v6313
          %v6642 = vpack.c.bf16 %v6322, %v6318
          %v6643 = vpack.c.bf16 %v6323, %v6319
          %v6644 = vpack.c.bf16 %v6324, %v6320
          %v6645 = vpack.c.bf16 %v6325, %v6321
          %v6646 = vpack.c.bf16 %v6330, %v6326
          %v6647 = vpack.c.bf16 %v6331, %v6327
          %v6648 = vpack.c.bf16 %v6332, %v6328
          %v6649 = vpack.c.bf16 %v6333, %v6329
          %v6650 = vpack.c.bf16 %v6338, %v6334
          %v6651 = vpack.c.bf16 %v6339, %v6335
          %v6652 = vpack.c.bf16 %v6340, %v6336
          %v6653 = vpack.c.bf16 %v6341, %v6337
          %v6654 = vpack.c.bf16 %v6346, %v6342
          %v6655 = vpack.c.bf16 %v6347, %v6343
          %v6656 = vpack.c.bf16 %v6348, %v6344
          %v6657 = vpack.c.bf16 %v6349, %v6345
          %v6658 = vpack.c.bf16 %v6354, %v6350
          %v6659 = vpack.c.bf16 %v6355, %v6351
          %v6660 = vpack.c.bf16 %v6356, %v6352
          %v6661 = vpack.c.bf16 %v6357, %v6353
          %v6662 = vpack.c.bf16 %v6362, %v6358
          %v6663 = vpack.c.bf16 %v6363, %v6359
          %v6664 = vpack.c.bf16 %v6364, %v6360
          %v6665 = vpack.c.bf16 %v6365, %v6361
          %v6666 = vpack.c.bf16 %v6370, %v6366
          %v6667 = vpack.c.bf16 %v6371, %v6367
          %v6668 = vpack.c.bf16 %v6372, %v6368
          %v6669 = vpack.c.bf16 %v6373, %v6369
          %v6670 = vpack.c.bf16 %v6378, %v6374
          %v6671 = vpack.c.bf16 %v6379, %v6375
          %v6672 = vpack.c.bf16 %v6380, %v6376
          %v6673 = vpack.c.bf16 %v6381, %v6377
          %v6674 = vpack.c.bf16 %v6386, %v6382
          %v6675 = vpack.c.bf16 %v6387, %v6383
          %v6676 = vpack.c.bf16 %v6388, %v6384
          %v6677 = vpack.c.bf16 %v6389, %v6385
          %v6678 = vpack.c.bf16 %v6394, %v6390
          %v6679 = vpack.c.bf16 %v6395, %v6391
          %v6680 = vpack.c.bf16 %v6396, %v6392
          %v6681 = vpack.c.bf16 %v6397, %v6393
          %v6682 = vpack.c.bf16 %v6402, %v6398
          %v6683 = vpack.c.bf16 %v6403, %v6399
          %v6684 = vpack.c.bf16 %v6404, %v6400
          %v6685 = vpack.c.bf16 %v6405, %v6401
          %v6686 = vpack.c.bf16 %v6410, %v6406
          %v6687 = vpack.c.bf16 %v6411, %v6407
          %v6688 = vpack.c.bf16 %v6412, %v6408
          %v6689 = vpack.c.bf16 %v6413, %v6409
          %v6690 = vpack.c.bf16 %v6418, %v6414
          %v6691 = vpack.c.bf16 %v6419, %v6415
          %v6692 = vpack.c.bf16 %v6420, %v6416
          %v6693 = vpack.c.bf16 %v6421, %v6417
          %v6694 = vpack.c.bf16 %v6426, %v6422
          %v6695 = vpack.c.bf16 %v6427, %v6423
          %v6696 = vpack.c.bf16 %v6428, %v6424
          %v6697 = vpack.c.bf16 %v6429, %v6425
          %v6698 = vpack.c.bf16 %v6434, %v6430
          %v6699 = vpack.c.bf16 %v6435, %v6431
          %v6700 = vpack.c.bf16 %v6436, %v6432
          %v6701 = vpack.c.bf16 %v6437, %v6433
          %v6702 = vpack.c.bf16 %v6442, %v6438
          %v6703 = vpack.c.bf16 %v6443, %v6439
          %v6704 = vpack.c.bf16 %v6444, %v6440
          %v6705 = vpack.c.bf16 %v6445, %v6441
          %v6706 = vpack.c.bf16 %v6450, %v6446
          %v6707 = vpack.c.bf16 %v6451, %v6447
          %v6708 = vpack.c.bf16 %v6452, %v6448
          %v6709 = vpack.c.bf16 %v6453, %v6449
          %6710 = vmatprep.subr.bf16.mxu0 %v6455
          %6711 = vmatpush1.bf16.msra.mxu0 %v6454
          %6712 = vmatprep.subr.bf16.mxu0 %v6459
          %6713 = vmatpush1.bf16.msra.mxu0 %v6458
          %6714 = vmatprep.subr.bf16.mxu0 %v6463
          %6715 = vmatpush1.bf16.msra.mxu0 %v6462
          %6716 = vmatprep.subr.bf16.mxu0 %v6467
          %6717 = vmatpush1.bf16.msra.mxu0 %v6466
          %6718 = vmatprep.subr.bf16.mxu0 %v6471
          %6719 = vmatpush1.bf16.msra.mxu0 %v6470
          %6720 = vmatprep.subr.bf16.mxu0 %v6475
          %6721 = vmatpush1.bf16.msra.mxu0 %v6474
          %6722 = vmatprep.subr.bf16.mxu0 %v6479
          %6723 = vmatpush1.bf16.msra.mxu0 %v6478
          %6724 = vmatprep.subr.bf16.mxu0 %v6483
          %6725 = vmatpush1.bf16.msra.mxu0 %v6482
          %6726 = vmatprep.subr.bf16.mxu0 %v6487
          %6727 = vmatpush1.bf16.msra.mxu0 %v6486
          %6728 = vmatprep.subr.bf16.mxu0 %v6491
          %6729 = vmatpush1.bf16.msra.mxu0 %v6490
          %6730 = vmatprep.subr.bf16.mxu0 %v6495
          %6731 = vmatpush1.bf16.msra.mxu0 %v6494
          %6732 = vmatprep.subr.bf16.mxu0 %v6499
          %6733 = vmatpush1.bf16.msra.mxu0 %v6498
          %6734 = vmatprep.subr.bf16.mxu0 %v6503
          %6735 = vmatpush1.bf16.msra.mxu0 %v6502
          %6736 = vmatprep.subr.bf16.mxu0 %v6507
          %6737 = vmatpush1.bf16.msra.mxu0 %v6506
          %6738 = vmatprep.subr.bf16.mxu0 %v6511
          %6739 = vmatpush1.bf16.msra.mxu0 %v6510
          %6740 = vmatprep.subr.bf16.mxu0 %v6515
          %6741 = vmatpush1.bf16.msra.mxu0 %v6514
          %6742 = vmatprep.mubr.bf16.mxu0 %v1641
          %6743 = vmatmul.mubr.bf16.gmra.mrb[0].mxu0 %v1640
          %v6744 = vpop.f32.mrb[0].mxu0
          %v6745 = vadd.f32 0.0, %v6744
          %v6746 = vpop.f32.mrb[0].mxu0
          %v6747 = vadd.f32 0.0, %v6746
          %v6748 = vpop.f32.mrb[0].mxu0
          %v6749 = vadd.f32 0.0, %v6748
          %v6750 = vpop.f32.mrb[0].mxu0
          %v6751 = vadd.f32 0.0, %v6750
          %6752 = vmatprep.mubr.bf16.mxu0 %v1649
          %6753 = vmatmul.mubr.bf16.gmra.mrb[0].mxu0 %v1648
          %v6754 = vpop.f32.mrb[0].mxu0
          %v6755 = vadd.f32 0.0, %v6754
          %v6756 = vpop.f32.mrb[0].mxu0
          %v6757 = vadd.f32 0.0, %v6756
          %v6758 = vpop.f32.mrb[0].mxu0
          %v6759 = vadd.f32 0.0, %v6758
          %v6760 = vpop.f32.mrb[0].mxu0
          %v6761 = vadd.f32 0.0, %v6760
          %6762 = vmatprep.mubr.bf16.mxu0 %v1657
          %6763 = vmatmul.mubr.bf16.gmra.mrb[0].mxu0 %v1656
          %v6764 = vpop.f32.mrb[0].mxu0
          %v6765 = vadd.f32 0.0, %v6764
          %v6766 = vpop.f32.mrb[0].mxu0
          %v6767 = vadd.f32 0.0, %v6766
          %v6768 = vpop.f32.mrb[0].mxu0
          %v6769 = vadd.f32 0.0, %v6768
          %v6770 = vpop.f32.mrb[0].mxu0
          %v6771 = vadd.f32 0.0, %v6770
          %6772 = vmatprep.mubr.bf16.mxu0 %v1665
          %6773 = vmatmul.mubr.bf16.gmra.mrb[0].mxu0 %v1664
          %v6774 = vpop.f32.mrb[0].mxu0
          %v6775 = vadd.f32 0.0, %v6774
          %v6776 = vpop.f32.mrb[0].mxu0
          %v6777 = vadd.f32 0.0, %v6776
          %v6778 = vpop.f32.mrb[0].mxu0
          %v6779 = vadd.f32 0.0, %v6778
          %v6780 = vpop.f32.mrb[0].mxu0
          %v6781 = vadd.f32 0.0, %v6780
          %6782 = vdwg.mxu0
          %6783 = vmatprep.subr.bf16.mxu0 %v6519
          %6784 = vmatpush1.bf16.msra.mxu0 %v6518
          %6785 = vmatprep.subr.bf16.mxu0 %v6523
          %6786 = vmatpush1.bf16.msra.mxu0 %v6522
          %6787 = vmatprep.subr.bf16.mxu0 %v6527
          %6788 = vmatpush1.bf16.msra.mxu0 %v6526
          %6789 = vmatprep.subr.bf16.mxu0 %v6531
          %6790 = vmatpush1.bf16.msra.mxu0 %v6530
          %6791 = vmatprep.subr.bf16.mxu0 %v6535
          %6792 = vmatpush1.bf16.msra.mxu0 %v6534
          %6793 = vmatprep.subr.bf16.mxu0 %v6539
          %6794 = vmatpush1.bf16.msra.mxu0 %v6538
          %6795 = vmatprep.subr.bf16.mxu0 %v6543
          %6796 = vmatpush1.bf16.msra.mxu0 %v6542
          %6797 = vmatprep.subr.bf16.mxu0 %v6547
          %6798 = vmatpush1.bf16.msra.mxu0 %v6546
          %6799 = vmatprep.subr.bf16.mxu0 %v6551
          %6800 = vmatpush1.bf16.msra.mxu0 %v6550
          %6801 = vmatprep.subr.bf16.mxu0 %v6555
          %6802 = vmatpush1.bf16.msra.mxu0 %v6554
          %6803 = vmatprep.subr.bf16.mxu0 %v6559
          %6804 = vmatpush1.bf16.msra.mxu0 %v6558
          %6805 = vmatprep.subr.bf16.mxu0 %v6563
          %6806 = vmatpush1.bf16.msra.mxu0 %v6562
          %6807 = vmatprep.subr.bf16.mxu0 %v6567
          %6808 = vmatpush1.bf16.msra.mxu0 %v6566
          %6809 = vmatprep.subr.bf16.mxu0 %v6571
          %6810 = vmatpush1.bf16.msra.mxu0 %v6570
          %6811 = vmatprep.subr.bf16.mxu0 %v6575
          %6812 = vmatpush1.bf16.msra.mxu0 %v6574
          %6813 = vmatprep.subr.bf16.mxu0 %v6579
          %6814 = vmatpush1.bf16.msra.mxu0 %v6578
          %6815 = vmatprep.mubr.bf16.mxu0 %v1643
          %6816 = vmatmul.mubr.bf16.gmra.mrb[0].mxu0 %v1642
          %v6817 = vpop.f32.mrb[0].mxu0
          %v6818 = vadd.f32 %v6745, %v6817
          %v6819 = vpop.f32.mrb[0].mxu0
          %v6820 = vadd.f32 %v6747, %v6819
          %v6821 = vpop.f32.mrb[0].mxu0
          %v6822 = vadd.f32 %v6749, %v6821
          %v6823 = vpop.f32.mrb[0].mxu0
          %v6824 = vadd.f32 %v6751, %v6823
          %6825 = vmatprep.mubr.bf16.mxu0 %v1651
          %6826 = vmatmul.mubr.bf16.gmra.mrb[0].mxu0 %v1650
          %v6827 = vpop.f32.mrb[0].mxu0
          %v6828 = vadd.f32 %v6755, %v6827
          %v6829 = vpop.f32.mrb[0].mxu0
          %v6830 = vadd.f32 %v6757, %v6829
          %v6831 = vpop.f32.mrb[0].mxu0
          %v6832 = vadd.f32 %v6759, %v6831
          %v6833 = vpop.f32.mrb[0].mxu0
          %v6834 = vadd.f32 %v6761, %v6833
          %6835 = vmatprep.mubr.bf16.mxu0 %v1659
          %6836 = vmatmul.mubr.bf16.gmra.mrb[0].mxu0 %v1658
          %v6837 = vpop.f32.mrb[0].mxu0
          %v6838 = vadd.f32 %v6765, %v6837
          %v6839 = vpop.f32.mrb[0].mxu0
          %v6840 = vadd.f32 %v6767, %v6839
          %v6841 = vpop.f32.mrb[0].mxu0
          %v6842 = vadd.f32 %v6769, %v6841
          %v6843 = vpop.f32.mrb[0].mxu0
          %v6844 = vadd.f32 %v6771, %v6843
          %6845 = vmatprep.mubr.bf16.mxu0 %v1667
          %6846 = vmatmul.mubr.bf16.gmra.mrb[0].mxu0 %v1666
          %v6847 = vpop.f32.mrb[0].mxu0
          %v6848 = vadd.f32 %v6775, %v6847
          %v6849 = vpop.f32.mrb[0].mxu0
          %v6850 = vadd.f32 %v6777, %v6849
          %v6851 = vpop.f32.mrb[0].mxu0
          %v6852 = vadd.f32 %v6779, %v6851
          %v6853 = vpop.f32.mrb[0].mxu0
          %v6854 = vadd.f32 %v6781, %v6853
          %6855 = vdwg.mxu0
          %6856 = vmatprep.subr.bf16.mxu0 %v6583
          %6857 = vmatpush1.bf16.msra.mxu0 %v6582
          %6858 = vmatprep.subr.bf16.mxu0 %v6587
          %6859 = vmatpush1.bf16.msra.mxu0 %v6586
          %6860 = vmatprep.subr.bf16.mxu0 %v6591
          %6861 = vmatpush1.bf16.msra.mxu0 %v6590
          %6862 = vmatprep.subr.bf16.mxu0 %v6595
          %6863 = vmatpush1.bf16.msra.mxu0 %v6594
          %6864 = vmatprep.subr.bf16.mxu0 %v6599
          %6865 = vmatpush1.bf16.msra.mxu0 %v6598
          %6866 = vmatprep.subr.bf16.mxu0 %v6603
          %6867 = vmatpush1.bf16.msra.mxu0 %v6602
          %6868 = vmatprep.subr.bf16.mxu0 %v6607
          %6869 = vmatpush1.bf16.msra.mxu0 %v6606
          %6870 = vmatprep.subr.bf16.mxu0 %v6611
          %6871 = vmatpush1.bf16.msra.mxu0 %v6610
          %6872 = vmatprep.subr.bf16.mxu0 %v6615
          %6873 = vmatpush1.bf16.msra.mxu0 %v6614
          %6874 = vmatprep.subr.bf16.mxu0 %v6619
          %6875 = vmatpush1.bf16.msra.mxu0 %v6618
          %6876 = vmatprep.subr.bf16.mxu0 %v6623
          %6877 = vmatpush1.bf16.msra.mxu0 %v6622
          %6878 = vmatprep.subr.bf16.mxu0 %v6627
          %6879 = vmatpush1.bf16.msra.mxu0 %v6626
          %6880 = vmatprep.subr.bf16.mxu0 %v6631
          %6881 = vmatpush1.bf16.msra.mxu0 %v6630
          %6882 = vmatprep.subr.bf16.mxu0 %v6635
          %6883 = vmatpush1.bf16.msra.mxu0 %v6634
          %6884 = vmatprep.subr.bf16.mxu0 %v6639
          %6885 = vmatpush1.bf16.msra.mxu0 %v6638
          %6886 = vmatprep.subr.bf16.mxu0 %v6643
          %6887 = vmatpush1.bf16.msra.mxu0 %v6642
          %6888 = vmatprep.mubr.bf16.mxu0 %v1645
          %6889 = vmatmul.mubr.bf16.gmra.mrb[0].mxu0 %v1644
          %v6890 = vpop.f32.mrb[0].mxu0
          %v6891 = vadd.f32 %v6818, %v6890
          %v6892 = vpop.f32.mrb[0].mxu0
          %v6893 = vadd.f32 %v6820, %v6892
          %v6894 = vpop.f32.mrb[0].mxu0
          %v6895 = vadd.f32 %v6822, %v6894
          %v6896 = vpop.f32.mrb[0].mxu0
          %v6897 = vadd.f32 %v6824, %v6896
          %6898 = vmatprep.mubr.bf16.mxu0 %v1653
          %6899 = vmatmul.mubr.bf16.gmra.mrb[0].mxu0 %v1652
          %v6900 = vpop.f32.mrb[0].mxu0
          %v6901 = vadd.f32 %v6828, %v6900
          %v6902 = vpop.f32.mrb[0].mxu0
          %v6903 = vadd.f32 %v6830, %v6902
          %v6904 = vpop.f32.mrb[0].mxu0
          %v6905 = vadd.f32 %v6832, %v6904
          %v6906 = vpop.f32.mrb[0].mxu0
          %v6907 = vadd.f32 %v6834, %v6906
          %6908 = vmatprep.mubr.bf16.mxu0 %v1661
          %6909 = vmatmul.mubr.bf16.gmra.mrb[0].mxu0 %v1660
          %v6910 = vpop.f32.mrb[0].mxu0
          %v6911 = vadd.f32 %v6838, %v6910
          %v6912 = vpop.f32.mrb[0].mxu0
          %v6913 = vadd.f32 %v6840, %v6912
          %v6914 = vpop.f32.mrb[0].mxu0
          %v6915 = vadd.f32 %v6842, %v6914
          %v6916 = vpop.f32.mrb[0].mxu0
          %v6917 = vadd.f32 %v6844, %v6916
          %6918 = vmatprep.mubr.bf16.mxu0 %v1669
          %6919 = vmatmul.mubr.bf16.gmra.mrb[0].mxu0 %v1668
          %v6920 = vpop.f32.mrb[0].mxu0
          %v6921 = vadd.f32 %v6848, %v6920
          %v6922 = vpop.f32.mrb[0].mxu0
          %v6923 = vadd.f32 %v6850, %v6922
          %v6924 = vpop.f32.mrb[0].mxu0
          %v6925 = vadd.f32 %v6852, %v6924
          %v6926 = vpop.f32.mrb[0].mxu0
          %v6927 = vadd.f32 %v6854, %v6926
          %6928 = vdwg.mxu0
          %6929 = vmatprep.subr.bf16.mxu0 %v6647
          %6930 = vmatpush1.bf16.msra.mxu0 %v6646
          %6931 = vmatprep.subr.bf16.mxu0 %v6651
          %6932 = vmatpush1.bf16.msra.mxu0 %v6650
          %6933 = vmatprep.subr.bf16.mxu0 %v6655
          %6934 = vmatpush1.bf16.msra.mxu0 %v6654
          %6935 = vmatprep.subr.bf16.mxu0 %v6659
          %6936 = vmatpush1.bf16.msra.mxu0 %v6658
          %6937 = vmatprep.subr.bf16.mxu0 %v6663
          %6938 = vmatpush1.bf16.msra.mxu0 %v6662
          %6939 = vmatprep.subr.bf16.mxu0 %v6667
          %6940 = vmatpush1.bf16.msra.mxu0 %v6666
          %6941 = vmatprep.subr.bf16.mxu0 %v6671
          %6942 = vmatpush1.bf16.msra.mxu0 %v6670
          %6943 = vmatprep.subr.bf16.mxu0 %v6675
          %6944 = vmatpush1.bf16.msra.mxu0 %v6674
          %6945 = vmatprep.subr.bf16.mxu0 %v6679
          %6946 = vmatpush1.bf16.msra.mxu0 %v6678
          %6947 = vmatprep.subr.bf16.mxu0 %v6683
          %6948 = vmatpush1.bf16.msra.mxu0 %v6682
          %6949 = vmatprep.subr.bf16.mxu0 %v6687
          %6950 = vmatpush1.bf16.msra.mxu0 %v6686
          %6951 = vmatprep.subr.bf16.mxu0 %v6691
          %6952 = vmatpush1.bf16.msra.mxu0 %v6690
          %6953 = vmatprep.subr.bf16.mxu0 %v6695
          %6954 = vmatpush1.bf16.msra.mxu0 %v6694
          %6955 = vmatprep.subr.bf16.mxu0 %v6699
          %6956 = vmatpush1.bf16.msra.mxu0 %v6698
          %6957 = vmatprep.subr.bf16.mxu0 %v6703
          %6958 = vmatpush1.bf16.msra.mxu0 %v6702
          %6959 = vmatprep.subr.bf16.mxu0 %v6707
          %6960 = vmatpush1.bf16.msra.mxu0 %v6706
          %6961 = vmatprep.mubr.bf16.mxu0 %v1647
          %6962 = vmatmul.mubr.bf16.gmra.mrb[0].mxu0 %v1646
          %v6963 = vpop.f32.mrb[0].mxu0
          %v6964 = vadd.f32 %v6891, %v6963
          %v6965 = vpop.f32.mrb[0].mxu0
          %v6966 = vadd.f32 %v6893, %v6965
          %v6967 = vpop.f32.mrb[0].mxu0
          %v6968 = vadd.f32 %v6895, %v6967
          %v6969 = vpop.f32.mrb[0].mxu0
          %v6970 = vadd.f32 %v6897, %v6969
          %6971 = vmatprep.mubr.bf16.mxu0 %v1655
          %6972 = vmatmul.mubr.bf16.gmra.mrb[0].mxu0 %v1654
          %v6973 = vpop.f32.mrb[0].mxu0
          %v6974 = vadd.f32 %v6901, %v6973
          %v6975 = vpop.f32.mrb[0].mxu0
          %v6976 = vadd.f32 %v6903, %v6975
          %v6977 = vpop.f32.mrb[0].mxu0
          %v6978 = vadd.f32 %v6905, %v6977
          %v6979 = vpop.f32.mrb[0].mxu0
          %v6980 = vadd.f32 %v6907, %v6979
          %6981 = vmatprep.mubr.bf16.mxu0 %v1663
          %6982 = vmatmul.mubr.bf16.gmra.mrb[0].mxu0 %v1662
          %v6983 = vpop.f32.mrb[0].mxu0
          %v6984 = vadd.f32 %v6911, %v6983
          %v6985 = vpop.f32.mrb[0].mxu0
          %v6986 = vadd.f32 %v6913, %v6985
          %v6987 = vpop.f32.mrb[0].mxu0
          %v6988 = vadd.f32 %v6915, %v6987
          %v6989 = vpop.f32.mrb[0].mxu0
          %v6990 = vadd.f32 %v6917, %v6989
          %6991 = vmatprep.mubr.bf16.mxu0 %v1671
          %6992 = vmatmul.mubr.bf16.gmra.mrb[0].mxu0 %v1670
          %v6993 = vpop.f32.mrb[0].mxu0
          %v6994 = vadd.f32 %v6921, %v6993
          %v6995 = vpop.f32.mrb[0].mxu0
          %v6996 = vadd.f32 %v6923, %v6995
          %v6997 = vpop.f32.mrb[0].mxu0
          %v6998 = vadd.f32 %v6925, %v6997
          %v6999 = vpop.f32.mrb[0].mxu0
          %v7000 = vadd.f32 %v6927, %v6999
          %7001 = vdwg.mxu0
          %7002 = vmatprep.subr.bf16.mxu0 %v6457
          %7003 = vmatpush1.bf16.msra.mxu0 %v6456
          %7004 = vmatprep.subr.bf16.mxu0 %v6461
          %7005 = vmatpush1.bf16.msra.mxu0 %v6460
          %7006 = vmatprep.subr.bf16.mxu0 %v6465
          %7007 = vmatpush1.bf16.msra.mxu0 %v6464
          %7008 = vmatprep.subr.bf16.mxu0 %v6469
          %7009 = vmatpush1.bf16.msra.mxu0 %v6468
          %7010 = vmatprep.subr.bf16.mxu0 %v6473
          %7011 = vmatpush1.bf16.msra.mxu0 %v6472
          %7012 = vmatprep.subr.bf16.mxu0 %v6477
          %7013 = vmatpush1.bf16.msra.mxu0 %v6476
          %7014 = vmatprep.subr.bf16.mxu0 %v6481
          %7015 = vmatpush1.bf16.msra.mxu0 %v6480
          %7016 = vmatprep.subr.bf16.mxu0 %v6485
          %7017 = vmatpush1.bf16.msra.mxu0 %v6484
          %7018 = vmatprep.subr.bf16.mxu0 %v6489
          %7019 = vmatpush1.bf16.msra.mxu0 %v6488
          %7020 = vmatprep.subr.bf16.mxu0 %v6493
          %7021 = vmatpush1.bf16.msra.mxu0 %v6492
          %7022 = vmatprep.subr.bf16.mxu0 %v6497
          %7023 = vmatpush1.bf16.msra.mxu0 %v6496
          %7024 = vmatprep.subr.bf16.mxu0 %v6501
          %7025 = vmatpush1.bf16.msra.mxu0 %v6500
          %7026 = vmatprep.subr.bf16.mxu0 %v6505
          %7027 = vmatpush1.bf16.msra.mxu0 %v6504
          %7028 = vmatprep.subr.bf16.mxu0 %v6509
          %7029 = vmatpush1.bf16.msra.mxu0 %v6508
          %7030 = vmatprep.subr.bf16.mxu0 %v6513
          %7031 = vmatpush1.bf16.msra.mxu0 %v6512
          %7032 = vmatprep.subr.bf16.mxu0 %v6517
          %7033 = vmatpush1.bf16.msra.mxu0 %v6516
          %7034 = vmatprep.mubr.bf16.mxu0 %v1641
          %7035 = vmatmul.mubr.bf16.gmra.mrb[0].mxu0 %v1640
          %v7036 = vpop.f32.mrb[0].mxu0
          %v7037 = vadd.f32 0.0, %v7036
          %v7038 = vpop.f32.mrb[0].mxu0
          %v7039 = vadd.f32 0.0, %v7038
          %v7040 = vpop.f32.mrb[0].mxu0
          %v7041 = vadd.f32 0.0, %v7040
          %v7042 = vpop.f32.mrb[0].mxu0
          %v7043 = vadd.f32 0.0, %v7042
          %7044 = vmatprep.mubr.bf16.mxu0 %v1649
          %7045 = vmatmul.mubr.bf16.gmra.mrb[0].mxu0 %v1648
          %v7046 = vpop.f32.mrb[0].mxu0
          %v7047 = vadd.f32 0.0, %v7046
          %v7048 = vpop.f32.mrb[0].mxu0
          %v7049 = vadd.f32 0.0, %v7048
          %v7050 = vpop.f32.mrb[0].mxu0
          %v7051 = vadd.f32 0.0, %v7050
          %v7052 = vpop.f32.mrb[0].mxu0
          %v7053 = vadd.f32 0.0, %v7052
          %7054 = vmatprep.mubr.bf16.mxu0 %v1657
          %7055 = vmatmul.mubr.bf16.gmra.mrb[0].mxu0 %v1656
          %v7056 = vpop.f32.mrb[0].mxu0
          %v7057 = vadd.f32 0.0, %v7056
          %v7058 = vpop.f32.mrb[0].mxu0
          %v7059 = vadd.f32 0.0, %v7058
          %v7060 = vpop.f32.mrb[0].mxu0
          %v7061 = vadd.f32 0.0, %v7060
          %v7062 = vpop.f32.mrb[0].mxu0
          %v7063 = vadd.f32 0.0, %v7062
          %7064 = vmatprep.mubr.bf16.mxu0 %v1665
          %7065 = vmatmul.mubr.bf16.gmra.mrb[0].mxu0 %v1664
          %v7066 = vpop.f32.mrb[0].mxu0
          %v7067 = vadd.f32 0.0, %v7066
          %v7068 = vpop.f32.mrb[0].mxu0
          %v7069 = vadd.f32 0.0, %v7068
          %v7070 = vpop.f32.mrb[0].mxu0
          %v7071 = vadd.f32 0.0, %v7070
          %v7072 = vpop.f32.mrb[0].mxu0
          %v7073 = vadd.f32 0.0, %v7072
          %7074 = vdwg.mxu0
          %7075 = vmatprep.subr.bf16.mxu0 %v6521
          %7076 = vmatpush1.bf16.msra.mxu0 %v6520
          %7077 = vmatprep.subr.bf16.mxu0 %v6525
          %7078 = vmatpush1.bf16.msra.mxu0 %v6524
          %7079 = vmatprep.subr.bf16.mxu0 %v6529
          %7080 = vmatpush1.bf16.msra.mxu0 %v6528
          %7081 = vmatprep.subr.bf16.mxu0 %v6533
          %7082 = vmatpush1.bf16.msra.mxu0 %v6532
          %7083 = vmatprep.subr.bf16.mxu0 %v6537
          %7084 = vmatpush1.bf16.msra.mxu0 %v6536
          %7085 = vmatprep.subr.bf16.mxu0 %v6541
          %7086 = vmatpush1.bf16.msra.mxu0 %v6540
          %7087 = vmatprep.subr.bf16.mxu0 %v6545
          %7088 = vmatpush1.bf16.msra.mxu0 %v6544
          %7089 = vmatprep.subr.bf16.mxu0 %v6549
          %7090 = vmatpush1.bf16.msra.mxu0 %v6548
          %7091 = vmatprep.subr.bf16.mxu0 %v6553
          %7092 = vmatpush1.bf16.msra.mxu0 %v6552
          %7093 = vmatprep.subr.bf16.mxu0 %v6557
          %7094 = vmatpush1.bf16.msra.mxu0 %v6556
          %7095 = vmatprep.subr.bf16.mxu0 %v6561
          %7096 = vmatpush1.bf16.msra.mxu0 %v6560
          %7097 = vmatprep.subr.bf16.mxu0 %v6565
          %7098 = vmatpush1.bf16.msra.mxu0 %v6564
          %7099 = vmatprep.subr.bf16.mxu0 %v6569
          %7100 = vmatpush1.bf16.msra.mxu0 %v6568
          %7101 = vmatprep.subr.bf16.mxu0 %v6573
          %7102 = vmatpush1.bf16.msra.mxu0 %v6572
          %7103 = vmatprep.subr.bf16.mxu0 %v6577
          %7104 = vmatpush1.bf16.msra.mxu0 %v6576
          %7105 = vmatprep.subr.bf16.mxu0 %v6581
          %7106 = vmatpush1.bf16.msra.mxu0 %v6580
          %7107 = vmatprep.mubr.bf16.mxu0 %v1643
          %7108 = vmatmul.mubr.bf16.gmra.mrb[0].mxu0 %v1642
          %v7109 = vpop.f32.mrb[0].mxu0
          %v7110 = vadd.f32 %v7037, %v7109
          %v7111 = vpop.f32.mrb[0].mxu0
          %v7112 = vadd.f32 %v7039, %v7111
          %v7113 = vpop.f32.mrb[0].mxu0
          %v7114 = vadd.f32 %v7041, %v7113
          %v7115 = vpop.f32.mrb[0].mxu0
          %v7116 = vadd.f32 %v7043, %v7115
          %7117 = vmatprep.mubr.bf16.mxu0 %v1651
          %7118 = vmatmul.mubr.bf16.gmra.mrb[0].mxu0 %v1650
          %v7119 = vpop.f32.mrb[0].mxu0
          %v7120 = vadd.f32 %v7047, %v7119
          %v7121 = vpop.f32.mrb[0].mxu0
          %v7122 = vadd.f32 %v7049, %v7121
          %v7123 = vpop.f32.mrb[0].mxu0
          %v7124 = vadd.f32 %v7051, %v7123
          %v7125 = vpop.f32.mrb[0].mxu0
          %v7126 = vadd.f32 %v7053, %v7125
          %7127 = vmatprep.mubr.bf16.mxu0 %v1659
          %7128 = vmatmul.mubr.bf16.gmra.mrb[0].mxu0 %v1658
          %v7129 = vpop.f32.mrb[0].mxu0
          %v7130 = vadd.f32 %v7057, %v7129
          %v7131 = vpop.f32.mrb[0].mxu0
          %v7132 = vadd.f32 %v7059, %v7131
          %v7133 = vpop.f32.mrb[0].mxu0
          %v7134 = vadd.f32 %v7061, %v7133
          %v7135 = vpop.f32.mrb[0].mxu0
          %v7136 = vadd.f32 %v7063, %v7135
          %7137 = vmatprep.mubr.bf16.mxu0 %v1667
          %7138 = vmatmul.mubr.bf16.gmra.mrb[0].mxu0 %v1666
          %v7139 = vpop.f32.mrb[0].mxu0
          %v7140 = vadd.f32 %v7067, %v7139
          %v7141 = vpop.f32.mrb[0].mxu0
          %v7142 = vadd.f32 %v7069, %v7141
          %v7143 = vpop.f32.mrb[0].mxu0
          %v7144 = vadd.f32 %v7071, %v7143
          %v7145 = vpop.f32.mrb[0].mxu0
          %v7146 = vadd.f32 %v7073, %v7145
          %7147 = vdwg.mxu0
          %7148 = vmatprep.subr.bf16.mxu0 %v6585
          %7149 = vmatpush1.bf16.msra.mxu0 %v6584
          %7150 = vmatprep.subr.bf16.mxu0 %v6589
          %7151 = vmatpush1.bf16.msra.mxu0 %v6588
          %7152 = vmatprep.subr.bf16.mxu0 %v6593
          %7153 = vmatpush1.bf16.msra.mxu0 %v6592
          %7154 = vmatprep.subr.bf16.mxu0 %v6597
          %7155 = vmatpush1.bf16.msra.mxu0 %v6596
          %7156 = vmatprep.subr.bf16.mxu0 %v6601
          %7157 = vmatpush1.bf16.msra.mxu0 %v6600
          %7158 = vmatprep.subr.bf16.mxu0 %v6605
          %7159 = vmatpush1.bf16.msra.mxu0 %v6604
          %7160 = vmatprep.subr.bf16.mxu0 %v6609
          %7161 = vmatpush1.bf16.msra.mxu0 %v6608
          %7162 = vmatprep.subr.bf16.mxu0 %v6613
          %7163 = vmatpush1.bf16.msra.mxu0 %v6612
          %7164 = vmatprep.subr.bf16.mxu0 %v6617
          %7165 = vmatpush1.bf16.msra.mxu0 %v6616
          %7166 = vmatprep.subr.bf16.mxu0 %v6621
          %7167 = vmatpush1.bf16.msra.mxu0 %v6620
          %7168 = vmatprep.subr.bf16.mxu0 %v6625
          %7169 = vmatpush1.bf16.msra.mxu0 %v6624
          %7170 = vmatprep.subr.bf16.mxu0 %v6629
          %7171 = vmatpush1.bf16.msra.mxu0 %v6628
          %7172 = vmatprep.subr.bf16.mxu0 %v6633
          %7173 = vmatpush1.bf16.msra.mxu0 %v6632
          %7174 = vmatprep.subr.bf16.mxu0 %v6637
          %7175 = vmatpush1.bf16.msra.mxu0 %v6636
          %7176 = vmatprep.subr.bf16.mxu0 %v6641
          %7177 = vmatpush1.bf16.msra.mxu0 %v6640
          %7178 = vmatprep.subr.bf16.mxu0 %v6645
          %7179 = vmatpush1.bf16.msra.mxu0 %v6644
          %7180 = vmatprep.mubr.bf16.mxu0 %v1645
          %7181 = vmatmul.mubr.bf16.gmra.mrb[0].mxu0 %v1644
          %v7182 = vpop.f32.mrb[0].mxu0
          %v7183 = vadd.f32 %v7110, %v7182
          %v7184 = vpop.f32.mrb[0].mxu0
          %v7185 = vadd.f32 %v7112, %v7184
          %v7186 = vpop.f32.mrb[0].mxu0
          %v7187 = vadd.f32 %v7114, %v7186
          %v7188 = vpop.f32.mrb[0].mxu0
          %v7189 = vadd.f32 %v7116, %v7188
          %7190 = vmatprep.mubr.bf16.mxu0 %v1653
          %7191 = vmatmul.mubr.bf16.gmra.mrb[0].mxu0 %v1652
          %v7192 = vpop.f32.mrb[0].mxu0
          %v7193 = vadd.f32 %v7120, %v7192
          %v7194 = vpop.f32.mrb[0].mxu0
          %v7195 = vadd.f32 %v7122, %v7194
          %v7196 = vpop.f32.mrb[0].mxu0
          %v7197 = vadd.f32 %v7124, %v7196
          %v7198 = vpop.f32.mrb[0].mxu0
          %v7199 = vadd.f32 %v7126, %v7198
          %7200 = vmatprep.mubr.bf16.mxu0 %v1661
          %7201 = vmatmul.mubr.bf16.gmra.mrb[0].mxu0 %v1660
          %v7202 = vpop.f32.mrb[0].mxu0
          %v7203 = vadd.f32 %v7130, %v7202
          %v7204 = vpop.f32.mrb[0].mxu0
          %v7205 = vadd.f32 %v7132, %v7204
          %v7206 = vpop.f32.mrb[0].mxu0
          %v7207 = vadd.f32 %v7134, %v7206
          %v7208 = vpop.f32.mrb[0].mxu0
          %v7209 = vadd.f32 %v7136, %v7208
          %7210 = vmatprep.mubr.bf16.mxu0 %v1669
          %7211 = vmatmul.mubr.bf16.gmra.mrb[0].mxu0 %v1668
          %v7212 = vpop.f32.mrb[0].mxu0
          %v7213 = vadd.f32 %v7140, %v7212
          %v7214 = vpop.f32.mrb[0].mxu0
          %v7215 = vadd.f32 %v7142, %v7214
          %v7216 = vpop.f32.mrb[0].mxu0
          %v7217 = vadd.f32 %v7144, %v7216
          %v7218 = vpop.f32.mrb[0].mxu0
          %v7219 = vadd.f32 %v7146, %v7218
          %7220 = vdwg.mxu0
          %7221 = vmatprep.subr.bf16.mxu0 %v6649
          %7222 = vmatpush1.bf16.msra.mxu0 %v6648
          %7223 = vmatprep.subr.bf16.mxu0 %v6653
          %7224 = vmatpush1.bf16.msra.mxu0 %v6652
          %7225 = vmatprep.subr.bf16.mxu0 %v6657
          %7226 = vmatpush1.bf16.msra.mxu0 %v6656
          %7227 = vmatprep.subr.bf16.mxu0 %v6661
          %7228 = vmatpush1.bf16.msra.mxu0 %v6660
          %7229 = vmatprep.subr.bf16.mxu0 %v6665
          %7230 = vmatpush1.bf16.msra.mxu0 %v6664
          %7231 = vmatprep.subr.bf16.mxu0 %v6669
          %7232 = vmatpush1.bf16.msra.mxu0 %v6668
          %7233 = vmatprep.subr.bf16.mxu0 %v6673
          %7234 = vmatpush1.bf16.msra.mxu0 %v6672
          %7235 = vmatprep.subr.bf16.mxu0 %v6677
          %7236 = vmatpush1.bf16.msra.mxu0 %v6676
          %7237 = vmatprep.subr.bf16.mxu0 %v6681
          %7238 = vmatpush1.bf16.msra.mxu0 %v6680
          %7239 = vmatprep.subr.bf16.mxu0 %v6685
          %7240 = vmatpush1.bf16.msra.mxu0 %v6684
          %7241 = vmatprep.subr.bf16.mxu0 %v6689
          %7242 = vmatpush1.bf16.msra.mxu0 %v6688
          %7243 = vmatprep.subr.bf16.mxu0 %v6693
          %7244 = vmatpush1.bf16.msra.mxu0 %v6692
          %7245 = vmatprep.subr.bf16.mxu0 %v6697
          %7246 = vmatpush1.bf16.msra.mxu0 %v6696
          %7247 = vmatprep.subr.bf16.mxu0 %v6701
          %7248 = vmatpush1.bf16.msra.mxu0 %v6700
          %7249 = vmatprep.subr.bf16.mxu0 %v6705
          %7250 = vmatpush1.bf16.msra.mxu0 %v6704
          %7251 = vmatprep.subr.bf16.mxu0 %v6709
          %7252 = vmatpush1.bf16.msra.mxu0 %v6708
          %7253 = vmatprep.mubr.bf16.mxu0 %v1647
          %7254 = vmatmul.mubr.bf16.gmra.mrb[0].mxu0 %v1646
          %v7255 = vpop.f32.mrb[0].mxu0
          %v7256 = vadd.f32 %v7183, %v7255
          %v7257 = vpop.f32.mrb[0].mxu0
          %v7258 = vadd.f32 %v7185, %v7257
          %v7259 = vpop.f32.mrb[0].mxu0
          %v7260 = vadd.f32 %v7187, %v7259
          %v7261 = vpop.f32.mrb[0].mxu0
          %v7262 = vadd.f32 %v7189, %v7261
          %7263 = vmatprep.mubr.bf16.mxu0 %v1655
          %7264 = vmatmul.mubr.bf16.gmra.mrb[0].mxu0 %v1654
          %v7265 = vpop.f32.mrb[0].mxu0
          %v7266 = vadd.f32 %v7193, %v7265
          %v7267 = vpop.f32.mrb[0].mxu0
          %v7268 = vadd.f32 %v7195, %v7267
          %v7269 = vpop.f32.mrb[0].mxu0
          %v7270 = vadd.f32 %v7197, %v7269
          %v7271 = vpop.f32.mrb[0].mxu0
          %v7272 = vadd.f32 %v7199, %v7271
          %7273 = vmatprep.mubr.bf16.mxu0 %v1663
          %7274 = vmatmul.mubr.bf16.gmra.mrb[0].mxu0 %v1662
          %v7275 = vpop.f32.mrb[0].mxu0
          %v7276 = vadd.f32 %v7203, %v7275
          %v7277 = vpop.f32.mrb[0].mxu0
          %v7278 = vadd.f32 %v7205, %v7277
          %v7279 = vpop.f32.mrb[0].mxu0
          %v7280 = vadd.f32 %v7207, %v7279
          %v7281 = vpop.f32.mrb[0].mxu0
          %v7282 = vadd.f32 %v7209, %v7281
          %7283 = vmatprep.mubr.bf16.mxu0 %v1671
          %7284 = vmatmul.mubr.bf16.gmra.mrb[0].mxu0 %v1670
          %v7285 = vpop.f32.mrb[0].mxu0
          %v7286 = vadd.f32 %v7213, %v7285
          %v7287 = vpop.f32.mrb[0].mxu0
          %v7288 = vadd.f32 %v7215, %v7287
          %v7289 = vpop.f32.mrb[0].mxu0
          %v7290 = vadd.f32 %v7217, %v7289
          %v7291 = vpop.f32.mrb[0].mxu0
          %v7292 = vadd.f32 %v7219, %v7291
          %7293 = vdwg.mxu0
          %v7294 = vld [vmem:[#allocation9] sm:$0xf]
          %v7295 = vld [vmem:[#allocation9 + $0x4] sm:$0xf]
          %v7296 = vld [vmem:[#allocation9 + $0x8] sm:$0xf]
          %v7297 = vld [vmem:[#allocation9 + $0xc] sm:$0xf]
          %v7298 = vld [vmem:[#allocation9 + $0x10] sm:$0xf]
          %v7299 = vld [vmem:[#allocation9 + $0x14] sm:$0xf]
          %v7300 = vld [vmem:[#allocation9 + $0x18] sm:$0xf]
          %v7301 = vld [vmem:[#allocation9 + $0x1c] sm:$0xf]
          %v7302 = vpack.c.bf16 %v6968, %v6964
          %v7303 = vpack.c.bf16 %v6970, %v6966
          %v7304 = vpack.c.bf16 %v7260, %v7256
          %v7305 = vpack.c.bf16 %v7262, %v7258
          %v7306 = vpack.c.bf16 %v6978, %v6974
          %v7307 = vpack.c.bf16 %v6980, %v6976
          %v7308 = vpack.c.bf16 %v7270, %v7266
          %v7309 = vpack.c.bf16 %v7272, %v7268
          %v7310 = vpack.c.bf16 %v6988, %v6984
          %v7311 = vpack.c.bf16 %v6990, %v6986
          %v7312 = vpack.c.bf16 %v7280, %v7276
          %v7313 = vpack.c.bf16 %v7282, %v7278
          %v7314 = vpack.c.bf16 %v6998, %v6994
          %v7315 = vpack.c.bf16 %v7000, %v6996
          %v7316 = vpack.c.bf16 %v7290, %v7286
          %v7317 = vpack.c.bf16 %v7292, %v7288
          %v7326 = vunpack.c.l.b16 %v7294
          %v7327 = vunpack.c.l.b16 %v7295
          %v7328 = vunpack.c.l.b16 %v7296
          %v7329 = vunpack.c.l.b16 %v7297
          %v7330 = vunpack.c.l.b16 %v7298
          %v7331 = vunpack.c.l.b16 %v7299
          %v7332 = vunpack.c.l.b16 %v7300
          %v7333 = vunpack.c.l.b16 %v7301
          %v7334 = vpack.c.b16 %v7327, %v7326
          %v7335 = vpack.c.b16 %v7329, %v7328
          %v7336 = vpack.c.b16 %v7331, %v7330
          %v7337 = vpack.c.b16 %v7333, %v7332
          %v7339 = vsel %vm626, %v7334, 0
          %v7342 = vsel %vm626, %v7335, 0
          %v7345 = vsel %vm626, %v7336, 0
          %v7348 = vsel %vm626, %v7337, 0
          %7350 = vmatprep.subr.bf16.mxu0 %v7303
          %7351 = vmatpush1.bf16.msra.mxu0 %v7302
          %7352 = vmatprep.subr.bf16.mxu0 %v7307
          %7353 = vmatpush1.bf16.msra.mxu0 %v7306
          %7354 = vmatprep.subr.bf16.mxu0 %v7311
          %7355 = vmatpush1.bf16.msra.mxu0 %v7310
          %7356 = vmatprep.subr.bf16.mxu0 %v7315
          %7357 = vmatpush1.bf16.msra.mxu0 %v7314
          %7358 = vmatprep.subr.bf16.mxu0 0
          %7359 = vmatpush1.bf16.msra.mxu0 0
          %7360 = vmatprep.subr.bf16.mxu0 0
          %7361 = vmatpush1.bf16.msra.mxu0 0
          %7362 = vmatprep.subr.bf16.mxu0 0
          %7363 = vmatpush1.bf16.msra.mxu0 0
          %7364 = vmatprep.subr.bf16.mxu0 0
          %7365 = vmatpush1.bf16.msra.mxu0 0
          %7366 = vmatprep.subr.bf16.mxu0 0
          %7367 = vmatpush1.bf16.msra.mxu0 0
          %7368 = vmatprep.subr.bf16.mxu0 0
          %7369 = vmatpush1.bf16.msra.mxu0 0
          %7370 = vmatprep.subr.bf16.mxu0 0
          %7371 = vmatpush1.bf16.msra.mxu0 0
          %7372 = vmatprep.subr.bf16.mxu0 0
          %7373 = vmatpush1.bf16.msra.mxu0 0
          %7374 = vmatprep.subr.bf16.mxu0 0
          %7375 = vmatpush1.bf16.msra.mxu0 0
          %7376 = vmatprep.subr.bf16.mxu0 0
          %7377 = vmatpush1.bf16.msra.mxu0 0
          %7378 = vmatprep.subr.bf16.mxu0 0
          %7379 = vmatpush1.bf16.msra.mxu0 0
          %7380 = vmatprep.subr.bf16.mxu0 0
          %7381 = vmatpush1.bf16.msra.mxu0 0
          %7382 = vmatprep.mubr.bf16.mxu0 0
          %7383 = vmatmul.mubr.bf16.gmra.mrb[0].mxu0 %v7339
          %v7384 = vpop.f32.mrb[0].mxu0
          %v7385 = vadd.f32 0.0, %v7384
          %v7386 = vpop.f32.mrb[0].mxu0
          %v7387 = vadd.f32 0.0, %v7386
          %v7388 = vpop.f32.mrb[0].mxu0
          %v7389 = vadd.f32 0.0, %v7388
          %v7390 = vpop.f32.mrb[0].mxu0
          %v7391 = vadd.f32 0.0, %v7390
          %7392 = vmatprep.mubr.bf16.mxu0 0
          %7393 = vmatmul.mubr.bf16.gmra.mrb[0].mxu0 %v7342
          %v7394 = vpop.f32.mrb[0].mxu0
          %v7395 = vadd.f32 0.0, %v7394
          %v7396 = vpop.f32.mrb[0].mxu0
          %v7397 = vadd.f32 0.0, %v7396
          %v7398 = vpop.f32.mrb[0].mxu0
          %v7399 = vadd.f32 0.0, %v7398
          %v7400 = vpop.f32.mrb[0].mxu0
          %v7401 = vadd.f32 0.0, %v7400
          %7402 = vmatprep.mubr.bf16.mxu0 0
          %7403 = vmatmul.mubr.bf16.gmra.mrb[0].mxu0 %v7345
          %v7404 = vpop.f32.mrb[0].mxu0
          %v7405 = vadd.f32 0.0, %v7404
          %v7406 = vpop.f32.mrb[0].mxu0
          %v7407 = vadd.f32 0.0, %v7406
          %v7408 = vpop.f32.mrb[0].mxu0
          %v7409 = vadd.f32 0.0, %v7408
          %v7410 = vpop.f32.mrb[0].mxu0
          %v7411 = vadd.f32 0.0, %v7410
          %7412 = vmatprep.mubr.bf16.mxu0 0
          %7413 = vmatmul.mubr.bf16.gmra.mrb[0].mxu0 %v7348
          %v7414 = vpop.f32.mrb[0].mxu0
          %v7415 = vadd.f32 0.0, %v7414
          %v7416 = vpop.f32.mrb[0].mxu0
          %v7417 = vadd.f32 0.0, %v7416
          %v7418 = vpop.f32.mrb[0].mxu0
          %v7419 = vadd.f32 0.0, %v7418
          %v7420 = vpop.f32.mrb[0].mxu0
          %v7421 = vadd.f32 0.0, %v7420
          %7422 = vdwg.mxu0
          %7423 = vmatprep.subr.bf16.mxu0 %v7305
          %7424 = vmatpush1.bf16.msra.mxu0 %v7304
          %7425 = vmatprep.subr.bf16.mxu0 %v7309
          %7426 = vmatpush1.bf16.msra.mxu0 %v7308
          %7427 = vmatprep.subr.bf16.mxu0 %v7313
          %7428 = vmatpush1.bf16.msra.mxu0 %v7312
          %7429 = vmatprep.subr.bf16.mxu0 %v7317
          %7430 = vmatpush1.bf16.msra.mxu0 %v7316
          %7431 = vmatprep.subr.bf16.mxu0 0
          %7432 = vmatpush1.bf16.msra.mxu0 0
          %7433 = vmatprep.subr.bf16.mxu0 0
          %7434 = vmatpush1.bf16.msra.mxu0 0
          %7435 = vmatprep.subr.bf16.mxu0 0
          %7436 = vmatpush1.bf16.msra.mxu0 0
          %7437 = vmatprep.subr.bf16.mxu0 0
          %7438 = vmatpush1.bf16.msra.mxu0 0
          %7439 = vmatprep.subr.bf16.mxu0 0
          %7440 = vmatpush1.bf16.msra.mxu0 0
          %7441 = vmatprep.subr.bf16.mxu0 0
          %7442 = vmatpush1.bf16.msra.mxu0 0
          %7443 = vmatprep.subr.bf16.mxu0 0
          %7444 = vmatpush1.bf16.msra.mxu0 0
          %7445 = vmatprep.subr.bf16.mxu0 0
          %7446 = vmatpush1.bf16.msra.mxu0 0
          %7447 = vmatprep.subr.bf16.mxu0 0
          %7448 = vmatpush1.bf16.msra.mxu0 0
          %7449 = vmatprep.subr.bf16.mxu0 0
          %7450 = vmatpush1.bf16.msra.mxu0 0
          %7451 = vmatprep.subr.bf16.mxu0 0
          %7452 = vmatpush1.bf16.msra.mxu0 0
          %7453 = vmatprep.subr.bf16.mxu0 0
          %7454 = vmatpush1.bf16.msra.mxu0 0
          %7455 = vmatprep.mubr.bf16.mxu0 0
          %7456 = vmatmul.mubr.bf16.gmra.mrb[0].mxu0 %v7339
          %v7457 = vpop.f32.mrb[0].mxu0
          %v7458 = vadd.f32 0.0, %v7457
          %v7459 = vpop.f32.mrb[0].mxu0
          %v7460 = vadd.f32 0.0, %v7459
          %v7461 = vpop.f32.mrb[0].mxu0
          %v7462 = vadd.f32 0.0, %v7461
          %v7463 = vpop.f32.mrb[0].mxu0
          %v7464 = vadd.f32 0.0, %v7463
          %7465 = vmatprep.mubr.bf16.mxu0 0
          %7466 = vmatmul.mubr.bf16.gmra.mrb[0].mxu0 %v7342
          %v7467 = vpop.f32.mrb[0].mxu0
          %v7468 = vadd.f32 0.0, %v7467
          %v7469 = vpop.f32.mrb[0].mxu0
          %v7470 = vadd.f32 0.0, %v7469
          %v7471 = vpop.f32.mrb[0].mxu0
          %v7472 = vadd.f32 0.0, %v7471
          %v7473 = vpop.f32.mrb[0].mxu0
          %v7474 = vadd.f32 0.0, %v7473
          %7475 = vmatprep.mubr.bf16.mxu0 0
          %7476 = vmatmul.mubr.bf16.gmra.mrb[0].mxu0 %v7345
          %v7477 = vpop.f32.mrb[0].mxu0
          %v7478 = vadd.f32 0.0, %v7477
          %v7479 = vpop.f32.mrb[0].mxu0
          %v7480 = vadd.f32 0.0, %v7479
          %v7481 = vpop.f32.mrb[0].mxu0
          %v7482 = vadd.f32 0.0, %v7481
          %v7483 = vpop.f32.mrb[0].mxu0
          %v7484 = vadd.f32 0.0, %v7483
          %7485 = vmatprep.mubr.bf16.mxu0 0
          %7486 = vmatmul.mubr.bf16.gmra.mrb[0].mxu0 %v7348
          %v7487 = vpop.f32.mrb[0].mxu0
          %v7488 = vadd.f32 0.0, %v7487
          %v7489 = vpop.f32.mrb[0].mxu0
          %v7490 = vadd.f32 0.0, %v7489
          %v7491 = vpop.f32.mrb[0].mxu0
          %v7492 = vadd.f32 0.0, %v7491
          %v7493 = vpop.f32.mrb[0].mxu0
          %v7494 = vadd.f32 0.0, %v7493
          %7495 = vdwg.mxu0
          %v7496 = vadd.f32 %v1558, %v7385
          %v7497 = vadd.f32 %v1559, %v7387
          %v7498 = vadd.f32 %v1560, %v7458
          %v7499 = vadd.f32 %v1561, %v7460
          %v7500 = vadd.f32 %v1562, %v7389
          %v7501 = vadd.f32 %v1563, %v7391
          %v7502 = vadd.f32 %v1564, %v7462
          %v7503 = vadd.f32 %v1565, %v7464
          %v7504 = vadd.f32 %v1566, %v7395
          %v7505 = vadd.f32 %v1567, %v7397
          %v7506 = vadd.f32 %v1568, %v7468
          %v7507 = vadd.f32 %v1569, %v7470
          %v7508 = vadd.f32 %v1570, %v7399
          %v7509 = vadd.f32 %v1571, %v7401
          %v7510 = vadd.f32 %v1572, %v7472
          %v7511 = vadd.f32 %v1573, %v7474
          %v7512 = vadd.f32 %v1574, %v7405
          %v7513 = vadd.f32 %v1575, %v7407
          %v7514 = vadd.f32 %v1576, %v7478
          %v7515 = vadd.f32 %v1577, %v7480
          %v7516 = vadd.f32 %v1578, %v7409
          %v7517 = vadd.f32 %v1579, %v7411
          %v7518 = vadd.f32 %v1580, %v7482
          %v7519 = vadd.f32 %v1581, %v7484
          %v7520 = vadd.f32 %v1582, %v7415
          %v7521 = vadd.f32 %v1583, %v7417
          %v7522 = vadd.f32 %v1584, %v7488
          %v7523 = vadd.f32 %v1585, %v7490
          %v7524 = vadd.f32 %v1586, %v7419
          %v7525 = vadd.f32 %v1587, %v7421
          %v7526 = vadd.f32 %v1588, %v7492
          %v7527 = vadd.f32 %v1589, %v7494
          %s7528 = smul.addr %s1474, 8
          %s7529 = scalar_lea.vmem %s300, %s7528 [#allocation12]
          %7530 = vst [vmem:[%s7529] sm:$0xff] %v7496
          %7531 = vst [vmem:[%s7529 + $0x8] sm:$0xff] %v7497
          %7532 = vst [vmem:[%s7529 + $0x10] sm:$0xff] %v7498
          %7533 = vst [vmem:[%s7529 + $0x18] sm:$0xff] %v7499
          %7534 = vst [vmem:[%s7529 + $0x40] sm:$0xff] %v7500
          %7535 = vst [vmem:[%s7529 + $0x48] sm:$0xff] %v7501
          %7536 = vst [vmem:[%s7529 + $0x50] sm:$0xff] %v7502
          %7537 = vst [vmem:[%s7529 + $0x58] sm:$0xff] %v7503
          %7538 = vst [vmem:[%s7529 + $0x80] sm:$0xff] %v7504
          %7539 = vst [vmem:[%s7529 + $0x88] sm:$0xff] %v7505
          %7540 = vst [vmem:[%s7529 + $0x90] sm:$0xff] %v7506
          %7541 = vst [vmem:[%s7529 + $0x98] sm:$0xff] %v7507
          %7542 = vst [vmem:[%s7529 + $0xc0] sm:$0xff] %v7508
          %7543 = vst [vmem:[%s7529 + $0xc8] sm:$0xff] %v7509
          %7544 = vst [vmem:[%s7529 + $0xd0] sm:$0xff] %v7510
          %7545 = vst [vmem:[%s7529 + $0xd8] sm:$0xff] %v7511
          %7546 = vst [vmem:[%s7529 + $0x100] sm:$0xff] %v7512
          %7547 = vst [vmem:[%s7529 + $0x108] sm:$0xff] %v7513
          %7548 = vst [vmem:[%s7529 + $0x110] sm:$0xff] %v7514
          %7549 = vst [vmem:[%s7529 + $0x118] sm:$0xff] %v7515
          %7550 = vst [vmem:[%s7529 + $0x140] sm:$0xff] %v7516
          %7551 = vst [vmem:[%s7529 + $0x148] sm:$0xff] %v7517
          %7552 = vst [vmem:[%s7529 + $0x150] sm:$0xff] %v7518
          %7553 = vst [vmem:[%s7529 + $0x158] sm:$0xff] %v7519
          %7554 = vst [vmem:[%s7529 + $0x180] sm:$0xff] %v7520
          %7555 = vst [vmem:[%s7529 + $0x188] sm:$0xff] %v7521
          %7556 = vst [vmem:[%s7529 + $0x190] sm:$0xff] %v7522
          %7557 = vst [vmem:[%s7529 + $0x198] sm:$0xff] %v7523
          %7558 = vst [vmem:[%s7529 + $0x1c0] sm:$0xff] %v7524
          %7559 = vst [vmem:[%s7529 + $0x1c8] sm:$0xff] %v7525
          %7560 = vst [vmem:[%s7529 + $0x1d0] sm:$0xff] %v7526
          %7561 = vst [vmem:[%s7529 + $0x1d8] sm:$0xff] %v7527
        $region65: #{tpu_custom_call.1} parent=39 // loop_footer
          %s1472 = sadd.s32 1, %s1468
        $region66: #{tpu_custom_call.1} parent=39 // loop_footer_branch
          %1467 = sbr.rel target = $region62
        $region67: #{tpu_custom_call.1} parent=39 // loop_exit
          _
        %s7562 = sand.u32 %s142, 1
        %s7563 = scalar_lea.sflag [#allocation5], %s7562
        %s7564 = sand.u32 %s142, 1
        %s7565 = smul.addr %s7564, 512
        %s7566 = scalar_lea.vmem [#allocation12], %s7565
        // Predicated region
        $region68: #{tpu_custom_call.1} parent=39 // pred_check
          %p7567 = pneg %p152
        $region69: #{tpu_custom_call.1} parent=39 // pred_check_branch
          %7569 = sbr.rel (%p7567) target = $region71
        $region70: #{tpu_custom_call.1} parent=39 // pred_region
          %s7571 = ssub.s32 8192, 8192
          %7572 = vsyncadd %s7563, %s7571
          %s7573 = smul.addr %s24, 64
          %s7574 = smul.addr %s7573, 128
          %s7575 = scalar_lea.hbm %s5, %s7574
          %s7576 = sshll.u32 %s7566, 4
          %s7577 = int_to_ptr.vmem [resolvable:$true] %s7576
          %7582 = dma.vmem_to_hbm [thread:$0]  %s7577, 8192, %s7575, %s7563, 1024, 1024, 64
        $region71: #{tpu_custom_call.1} parent=39 // pred_fallthru
          _
      $region40: #{tpu_custom_call.1} parent=5 // pred_fallthru
        _
      %p7583 = scmp.le.s32.totalorder 2, %s19
      // Predicated region
      $region72: #{tpu_custom_call.1} parent=5 // pred_check
        %p7584 = pneg %p7583
      $region73: #{tpu_custom_call.1} parent=5 // pred_check_branch
        %7586 = sbr.rel (%p7584) target = $region75
      $region74: #{tpu_custom_call.1} parent=5 // pred_region
        %s7587 = ssub.s32 %s19, 2
        // Predicated region
        $region76: #{tpu_custom_call.1} parent=74 // pred_check
          %p7588 = pneg %p158
        $region77: #{tpu_custom_call.1} parent=74 // pred_check_branch
          %7590 = sbr.rel (%p7588) target = $region79
        $region78: #{tpu_custom_call.1} parent=74 // pred_region
          %s7591 = sand.u32 %s143, 1
          %s7592 = scalar_lea.sflag [#allocation5], %s7591
          %s7593 = sand.u32 %s143, 1
          %s7594 = smul.addr %s7593, 512
          %s7595 = scalar_lea.vmem [#allocation12], %s7594
          %7596 = dma.done %s7592, 8192
        $region79: #{tpu_custom_call.1} parent=74 // pred_fallthru
          _
      $region75: #{tpu_custom_call.1} parent=5 // pred_fallthru
        _
    $region6: #{tpu_custom_call.1} parent=1 // loop_footer
      %s23 = sadd.s32 1, %s19
    $region7: #{tpu_custom_call.1} parent=1 // loop_footer_branch
      %18 = sbr.rel target = $region3
    $region8: #{tpu_custom_call.1} parent=1 // loop_exit
      _
    %7597 = vsyncpa [#allocation4], 1
    %s7598 = scalar_lea.sflag [#allocation4], 1
    %7599 = vsyncpa %s7598, 1
    %7600 = vsyncpa [#allocation7], 1
    %7601 = vsyncpa [#allocation10], 1
    %7602 = vsyncpa [#allocation5], 1
    %s7603 = scalar_lea.sflag [#allocation5], 1
    %7604 = vsyncpa %s7603, 1

</llo_original>
